<compile_context>
chip_gen: v7x
topology: tpu7x:2x2x1
jax: 0.10.0
libtpu: 0.0.40
codegen_flags: <defaults>
</compile_context>

<pallas_src>
import jax
import jax.numpy as jnp
import numpy as np
from jax import lax
from jax.experimental import pallas as pl
from jax.experimental.pallas import tpu as pltpu


def _sigmoid_eup(x):
  # exp + approximate EUP reciprocal: keeps the (VPU/EUP-bound) recurrent path
  # off the full-precision VALU divide.
  return pl.reciprocal(1.0 + jnp.exp(-x), approx=True)


# ----------------------------------------------------------------------------
# Pallas kernel: one grid step == TC decode timesteps for one batch shard.
# grid = (nb, T_pad // tc), dimension_semantics = ("parallel", "arbitrary").
# ----------------------------------------------------------------------------
def decoder_chunk_kernel(
    # per-chunk input
    xpre_ref,     # (TC, Bb, 5D)  x-side pre-activations (GEMM hoisted to wrapper)
    # loop-invariant inputs
    V_ref,        # (Bb, P, D)
    WV_ref,       # (Bb, P, A)    project_V(V), precomputed
    Whh_ref,      # (D, 5D)       [Whh | Wph]  (h-dependent half of fused matmul)
    Wah_ref,      # (D, A)   attention.project_h
    bah_ref,      # (1, A)
    Was_ref,      # (D, A)   attention.project_s
    bas_ref,      # (1, A)
    watt_ref,     # (1, A)   attention.project_att weight
    batt_ref,     # (1, 1)
    watth_ref,    # (1, A)   attention.project_att_hat weight
    batth_ref,    # (1, 1)
    # output
    out_ref,      # (TC, Bb, D)   rows of (c_hat + h_t)
    # scratch (carried recurrent state for this batch shard)
    h_sc,         # (Bb, D)
    m_sc,         # (Bb, D)
):
  TC = xpre_ref.shape[0]
  D = h_sc.shape[-1]
  t_chunk = pl.program_id(1)

  @pl.when(t_chunk == 0)
  def _():
    h_sc[...] = jnp.zeros_like(h_sc)
    m_sc[...] = jnp.zeros_like(m_sc)

  V = V_ref[...]
  WV = WV_ref[...]
  Whh = Whh_ref[...]
  Wah = Wah_ref[...]
  bah = bah_ref[...]
  Was = Was_ref[...]
  bas = bas_ref[...]
  watt = watt_ref[...]
  batt = batt_ref[...]
  watth = watth_ref[...]
  batth = batth_ref[...]

  def step(k, carry):
    h, m = carry
    # Only the h-dependent (Bb, D) @ (D, 5D) dot remains in the serial loop.
    pre = xpre_ref[k] + jnp.dot(h, Whh, preferred_element_type=jnp.float32)
    # TODO(synk): at production sizes pad D (and A) to multiples of 128 so the
    #             gate slices below land on lane-aligned offsets.
    i_g = _sigmoid_eup(pre[:, 0 * D:1 * D])
    f_g = _sigmoid_eup(pre[:, 1 * D:2 * D])
    g_g = jnp.tanh(pre[:, 2 * D:3 * D])
    o_g = _sigmoid_eup(pre[:, 3 * D:4 * D])
    g_t = _sigmoid_eup(pre[:, 4 * D:5 * D])           # sentinel gate (h_{t-1})
    m_t = f_g * m + i_g * g_g
    tanh_m = jnp.tanh(m_t)
    h_t = o_g * tanh_m
    s_t = g_t * tanh_m

    # ---- adaptive attention -------------------------------------------------
    Wh = jnp.dot(h_t, Wah, preferred_element_type=jnp.float32) + bah   # (Bb, A)
    e = jnp.tanh(WV + Wh[:, None, :])                                  # (Bb, P, A)
    z = jnp.sum(e * watt, axis=-1) + batt                              # (Bb, P)

    z_max = jnp.max(z, axis=1, keepdims=True)
    ez = jnp.exp(z - z_max)
    inv_den = pl.reciprocal(jnp.sum(ez, axis=1, keepdims=True), approx=True)
    alpha = ez * inv_den                                               # (Bb, P)
    # VPU broadcast-multiply + sublane reduce (M=1 MXU einsum was wasteful).
    c_t = jnp.sum(V * alpha[:, :, None], axis=1)                       # (Bb, D)

    Ws = jnp.dot(s_t, Was, preferred_element_type=jnp.float32) + bas   # (Bb, A)
    z_hat = (jnp.sum(jnp.tanh(Ws + Wh) * watth, axis=-1, keepdims=True)
             + batth)                                                  # (Bb, 1)

    # beta = last column of softmax(concat([z, z_hat], axis=1))
    m_full = jnp.maximum(z_max, z_hat)
    e_hat = jnp.exp(z_hat - m_full)
    denom = jnp.sum(jnp.exp(z - m_full), axis=1, keepdims=True) + e_hat
    beta = e_hat * pl.reciprocal(denom, approx=True)                   # (Bb, 1)

    c_hat = beta * s_t + (1.0 - beta) * c_t                            # (Bb, D)
    out_ref[k] = c_hat + h_t          # vocab projection happens in the wrapper
    return h_t, m_t

  h, m = lax.fori_loop(0, TC, step, (h_sc[...], m_sc[...]),
                       unroll=True if TC <= 8 else 8)
  h_sc[...] = h
  m_sc[...] = m


# ----------------------------------------------------------------------------
# Wrapper: hoisted GEMMs + pallas_call for the serial recurrence.
# ----------------------------------------------------------------------------
def run_decode_loop(params, x_seq, V, WV, tc, nb):
  T_pad, B, two_e = x_seq.shape
  assert T_pad % tc == 0 and B % nb == 0
  Bb = B // nb
  D = params["Wph_T"].shape[0]
  A = params["Wah_T"].shape[1]
  P = V.shape[1]
  E = V.shape[2]

  # ---- hoisted x-side GEMM: full-M MXU utilization outside the serial loop --
  Wx_fused = jnp.concatenate([params["Wih_T"], params["Wx_T"]], axis=1)   # (2E, 5D)
  b_fused = jnp.concatenate([params["b_lstm"],
                             params["bx"] + params["bph"]], axis=1)       # (1, 5D)
  xpre = x_seq.reshape(T_pad * B, two_e) @ Wx_fused + b_fused             # (T_pad*B, 5D)
  xpre = xpre.reshape(T_pad, nb, Bb, 5 * D).transpose(1, 0, 2, 3)         # (nb, T_pad, Bb, 5D)

  # h-dependent half of the fused recurrent matmul
  Whh_fused = jnp.concatenate([params["Whh_T"], params["Wph_T"]], axis=1)  # (D, 5D)

  V_s = V.reshape(nb, Bb, P, E)
  WV_s = WV.reshape(nb, Bb, P, A)

  weights = [Whh_fused,
             params["Wah_T"], params["bah"],
             params["Was_T"], params["bas"],
             params["watt"], params["batt"],
             params["watth"], params["batth"]]
  # TODO(synk): at production sizes store Whh_fused/Wah/Was/V/WV in bf16 and
  #             cast at the dot inputs (f32 accumulation); kept f32 here for
  #             exact parity with the f32 reference at validation shapes.

  def _call(single_buffer_invariants):
    kw = {}
    if single_buffer_invariants:
      # Loop-invariant blocks: double-buffering only wastes VMEM.
      kw = dict(pipeline_mode=pl.Buffered(1))

    def inv_spec(arr):
      n = arr.ndim
      return pl.BlockSpec(arr.shape, lambda bi, ti, _n=n: (0,) * _n, **kw)

    in_specs = [
        pl.BlockSpec((None, tc, Bb, 5 * D), lambda bi, ti: (bi, ti, 0, 0)),
        pl.BlockSpec((None, Bb, P, E), lambda bi, ti: (bi, 0, 0, 0), **kw),
        pl.BlockSpec((None, Bb, P, A), lambda bi, ti: (bi, 0, 0, 0), **kw),
    ] + [inv_spec(w) for w in weights]

    return pl.pallas_call(
        decoder_chunk_kernel,
        out_shape=jax.ShapeDtypeStruct((nb, T_pad, Bb, D), jnp.float32),
        grid_spec=pltpu.PrefetchScalarGridSpec(
            num_scalar_prefetch=0,
            grid=(nb, T_pad // tc),        # (batch split, serial time chunks)
            in_specs=in_specs,
            out_specs=pl.BlockSpec((None, tc, Bb, D),
                                   lambda bi, ti: (bi, ti, 0, 0)),
            scratch_shapes=[
                pltpu.VMEM((Bb, D), jnp.float32),   # carried h
                pltpu.VMEM((Bb, D), jnp.float32),   # carried m
            ],
        ),
        # Time axis is a serial recurrence ("arbitrary"); the batch-split axis
        # is "parallel" so v7x can shard it across its two TensorCores.
        # No vmem_limit override: footprint is far below the default scoped
        # limit on every generation (incl. v7x's 64 MiB physical VMEM).
        compiler_params=pltpu.CompilerParams(
            dimension_semantics=("parallel", "arbitrary")),
    )(xpre, V_s, WV_s, *weights)

  try:
    return _call(True)
  except Exception:
    # TODO(synk): pipeline_mode=pl.Buffered(1) unsupported on this jax/libtpu
    #             combination; fall back to default double-buffering.
    return _call(False)


def decoder_forward(params, encoded_image, global_img_features, caps, caplens,
                    tc=8, nb=None):
  """Mirrors Decoder.forward: returns (predictions, sorted caps, decode_lengths, sort_ind)."""
  caplens_flat = caplens[:, 0]
  sort_ind = jnp.argsort(-caplens_flat)            # descending sort
  caplens_sorted = caplens_flat[sort_ind]
  enc = encoded_image[sort_ind]                    # (B, P, enc_dim)
  caps_s = caps[sort_ind]                          # (B, L)
  gimg = global_img_features[sort_ind]             # (B, enc_dim)

  # project_features
  V = jnp.maximum(enc @ params["Wi_T"] + params["bi"], 0.0)      # (B, P, E)
  vg = jnp.maximum(gimg @ params["Wg_T"] + params["bg"], 0.0)    # (B, E)

  emb = params["embedding"][caps_s]                # (B, L, E)
  vg_b = jnp.broadcast_to(vg[:, None, :], emb.shape)
  inputX = jnp.concatenate([emb, vg_b], axis=2)    # (B, L, 2E)

  decode_lengths = caplens_sorted - 1
  T = int(jnp.max(decode_lengths))
  B = enc.shape[0]
  D = params["Wph_T"].shape[0]
  vocab = params["Wf_T"].shape[1]

  if nb is None:
    nb = 2 if B % 2 == 0 else 1                    # v7x: one batch half per TC

  # loop-invariant attention projection of V
  WV = V @ params["Wav_T"] + params["bav"]         # (B, P, A)

  # time-major, zero-padded to a multiple of the chunk size
  T_pad = ((T + tc - 1) // tc) * tc
  x_seq = jnp.transpose(inputX[:, :T, :], (1, 0, 2))               # (T, B, 2E)
  if T_pad > T:
    x_seq = jnp.concatenate(
        [x_seq, jnp.zeros((T_pad - T,) + x_seq.shape[1:], x_seq.dtype)],
        axis=0)

  rows = run_decode_loop(params, x_seq, V, WV, tc, nb)   # (nb, T_pad, Bb, D)
  rows = rows.transpose(1, 0, 2, 3).reshape(T_pad, B, D)[:T]        # (T, B, D)

  # Decoupled vocab projection: M = T*B rows -> near-peak MXU GEMM in XLA.
  # (dropout == eval-mode identity)
  logits = rows.reshape(T * B, D) @ params["Wf_T"] + params["bf"]   # (T*B, V)
  logits = logits.reshape(T, B, vocab)
  tmask = jnp.arange(T)[:, None] < decode_lengths[None, :]          # (T, B)
  logits = jnp.where(tmask[:, :, None], logits, 0.0)                # NaN-safe mask
  predictions = jnp.transpose(logits, (1, 0, 2))                    # (B, T, V)
  return predictions, caps_s, decode_lengths, sort_ind


# ----------------------------------------------------------------------------
# Pure-JAX reference (same math, plain XLA) for validation.
# ----------------------------------------------------------------------------
def reference_forward(p, encoded_image, global_img_features, caps, caplens):
  caplens_flat = caplens[:, 0]
  sort_ind = jnp.argsort(-caplens_flat)
  caplens_sorted = caplens_flat[sort_ind]
  enc = encoded_image[sort_ind]
  caps_s = caps[sort_ind]
  gimg = global_img_features[sort_ind]

  V = jnp.maximum(enc @ p["Wi_T"] + p["bi"], 0.0)
  vg = jnp.maximum(gimg @ p["Wg_T"] + p["bg"], 0.0)
  emb = p["embedding"][caps_s]
  inputX = jnp.concatenate(
      [emb, jnp.broadcast_to(vg[:, None, :], emb.shape)], axis=2)

  decode_lengths = caplens_sorted - 1
  T = int(jnp.max(decode_lengths))
  B = enc.shape[0]
  D = p["Wph_T"].shape[0]
  vocab = p["Wf_T"].shape[1]

  WV = V @ p["Wav_T"] + p["bav"]
  h = jnp.zeros((B, D), jnp.float32)
  m = jnp.zeros((B, D), jnp.float32)
  preds = np.zeros((B, T, vocab), np.float32)

  sig = jax.nn.sigmoid
  for t in range(T):
    x = inputX[:, t, :]
    gates = x @ p["Wih_T"] + h @ p["Whh_T"] + p["b_lstm"]
    i_g = sig(gates[:, 0 * D:1 * D])
    f_g = sig(gates[:, 1 * D:2 * D])
    g_g = jnp.tanh(gates[:, 2 * D:3 * D])
    o_g = sig(gates[:, 3 * D:4 * D])
    m_t = f_g * m + i_g * g_g
    h_t = o_g * jnp.tanh(m_t)
    g_t = sig(x @ p["Wx_T"] + p["bx"] + h @ p["Wph_T"] + p["bph"])
    s_t = g_t * jnp.tanh(m_t)

    Wh = h_t @ p["Wah_T"] + p["bah"]
    z_t = jnp.sum(jnp.tanh(WV + Wh[:, None, :]) * p["watt"], -1) + p["batt"]
    alpha = jax.nn.softmax(z_t, axis=1)
    c_t = jnp.sum(V * alpha[:, :, None], axis=1)
    Ws = s_t @ p["Was_T"] + p["bas"]
    z_hat = (jnp.sum(jnp.tanh(Ws + Wh) * p["watth"], -1, keepdims=True)
             + p["batth"])
    cat = jnp.concatenate([z_t, z_hat], axis=1)
    beta = jax.nn.softmax(cat, axis=1)[:, -1:]
    c_hat = beta * s_t + (1.0 - beta) * c_t
    pred = (c_hat + h_t) @ p["Wf_T"] + p["bf"]
    rowmask = (decode_lengths > t).astype(jnp.float32)[:, None]
    preds[:, t, :] = np.asarray(pred * rowmask)
    h, m = h_t, m_t
  return jnp.asarray(preds), caps_s, decode_lengths, sort_ind


# ----------------------------------------------------------------------------
# Deterministic parameter init.
# ----------------------------------------------------------------------------
def init_params(key, *, vocab, embed, decoder, att, enc_dim):
  assert embed == decoder, "module requires embed_dim == decoder_dim"
  D, E, A = decoder, embed, att
  names_shapes = {
      "embedding": (vocab, E),
      "Wih_T": (2 * E, 4 * D), "Whh_T": (D, 4 * D), "b_lstm": (1, 4 * D),
      "Wx_T": (2 * E, D), "bx": (1, D),
      "Wph_T": (D, D), "bph": (1, D),
      "Wah_T": (D, A), "bah": (1, A),
      "Was_T": (D, A), "bas": (1, A),
      "Wav_T": (D, A), "bav": (1, A),
      "watt": (1, A), "batt": (1, 1),
      "watth": (1, A), "batth": (1, 1),
      "Wf_T": (D, vocab), "bf": (1, vocab),
      "Wi_T": (enc_dim, E), "bi": (1, E),
      "Wg_T": (enc_dim, E), "bg": (1, E),
  }
  keys = jax.random.split(key, len(names_shapes))
  params = {}
  for k, (name, shape) in zip(keys, names_shapes.items()):
    params[name] = jax.random.uniform(k, shape, jnp.float32, -0.1, 0.1)
  params["bf"] = jnp.zeros((1, vocab), jnp.float32)  # final_layer.bias.fill_(0)
  return params


# ----------------------------------------------------------------------------
if __name__ == "__main__":
  # small config consistent with the module (encoder_dim shrunk from 2048)
  B, P, ENC_DIM = 4, 16, 64
  EMBED = DECODER = 32
  ATT = 16
  VOCAB = 50
  CAP_LEN = 7

  key = jax.random.PRNGKey(0)
  kp, k1, k2, k3 = jax.random.split(key, 4)
  params = init_params(kp, vocab=VOCAB, embed=EMBED, decoder=DECODER,
                       att=ATT, enc_dim=ENC_DIM)

  encoded_image = jax.random.normal(k1, (B, P, ENC_DIM), jnp.float32)
  global_img_features = jax.random.normal(k2, (B, ENC_DIM), jnp.float32)
  caps = jax.random.randint(k3, (B, CAP_LEN), 0, VOCAB, jnp.int32)
  caplens = jnp.array([[6], [4], [7], [5]], jnp.int32)   # (B, 1), distinct

  # tc=4 (instead of the production default 8) so the test exercises the
  # recurrent h/m carry across multiple time chunks; nb=2 exercises the
  # parallel batch-split axis.
  preds, caps_s, dec_lens, sort_ind = decoder_forward(
      params, encoded_image, global_img_features, caps, caplens, tc=4, nb=2)
  preds = jax.block_until_ready(preds)

  ref_preds, _, _, _ = reference_forward(
      params, encoded_image, global_img_features, caps, caplens)

  np.testing.assert_allclose(np.asarray(preds), np.asarray(ref_preds),
                             rtol=5e-3, atol=5e-3)
  print("KERNEL_OK")
</pallas_src>

<mosaic_0001>
module attributes {stable_mosaic.version = 11 : i64} {
  func.func @decoder_chunk_kernel(%arg0: i32, %arg1: i32, %arg2: memref<1x4x2x160xf32, #tpu.memory_space<vmem>>, %arg3: memref<1x2x16x32xf32, #tpu.memory_space<vmem>>, %arg4: memref<1x2x16x16xf32, #tpu.memory_space<vmem>>, %arg5: memref<32x160xf32, #tpu.memory_space<vmem>>, %arg6: memref<32x16xf32, #tpu.memory_space<vmem>>, %arg7: memref<1x16xf32, #tpu.memory_space<vmem>>, %arg8: memref<32x16xf32, #tpu.memory_space<vmem>>, %arg9: memref<1x16xf32, #tpu.memory_space<vmem>>, %arg10: memref<1x16xf32, #tpu.memory_space<vmem>>, %arg11: memref<1x1xf32, #tpu.memory_space<vmem>>, %arg12: memref<1x16xf32, #tpu.memory_space<vmem>>, %arg13: memref<1x1xf32, #tpu.memory_space<vmem>>, %arg14: memref<1x4x2x32xf32, #tpu.memory_space<vmem>>, %arg15: memref<2x32xf32, #tpu.memory_space<vmem>>, %arg16: memref<2x32xf32, #tpu.memory_space<vmem>>) attributes {dimension_semantics = [#tpu.dimension_semantics<parallel>, #tpu.dimension_semantics<arbitrary>], iteration_bounds = array<i64: 2, 2>, scalar_prefetch = 0 : i64, scratch_operands = 2 : i64, tpu.core_type = #tpu.core_type<tc>, window_params = [{transform_indices = @transform_0, window_bounds = array<i64: 1, 4, 2, 160>}, {pipeline_mode = #tpu.pipeline_mode<synchronous>, transform_indices = @transform_1, window_bounds = array<i64: 1, 2, 16, 32>}, {pipeline_mode = #tpu.pipeline_mode<synchronous>, transform_indices = @transform_2, window_bounds = array<i64: 1, 2, 16, 16>}, {pipeline_mode = #tpu.pipeline_mode<synchronous>, transform_indices = @transform_3, window_bounds = array<i64: 32, 160>}, {pipeline_mode = #tpu.pipeline_mode<synchronous>, transform_indices = @transform_4, window_bounds = array<i64: 32, 16>}, {pipeline_mode = #tpu.pipeline_mode<synchronous>, transform_indices = @transform_5, window_bounds = array<i64: 1, 16>}, {pipeline_mode = #tpu.pipeline_mode<synchronous>, transform_indices = @transform_6, window_bounds = array<i64: 32, 16>}, {pipeline_mode = #tpu.pipeline_mode<synchronous>, transform_indices = @transform_7, window_bounds = array<i64: 1, 16>}, {pipeline_mode = #tpu.pipeline_mode<synchronous>, transform_indices = @transform_8, window_bounds = array<i64: 1, 16>}, {pipeline_mode = #tpu.pipeline_mode<synchronous>, transform_indices = @transform_9, window_bounds = array<i64: 1, 1>}, {pipeline_mode = #tpu.pipeline_mode<synchronous>, transform_indices = @transform_10, window_bounds = array<i64: 1, 16>}, {pipeline_mode = #tpu.pipeline_mode<synchronous>, transform_indices = @transform_11, window_bounds = array<i64: 1, 1>}, {transform_indices = @transform_12, window_bounds = array<i64: 1, 4, 2, 32>}]} {
    %c0_i32 = arith.constant 0 : i32
    %0 = arith.cmpi eq, %arg1, %c0_i32 : i32
    %1 = arith.extui %0 : i1 to i32
    %c0_i32_0 = arith.constant 0 : i32
    %2 = arith.cmpi ne, %1, %c0_i32_0 : i32
    scf.if %2 {
      %cst_130 = arith.constant 0.000000e+00 : f32
      %428 = vector.broadcast %cst_130 : f32 to vector<2x32xf32>
      %c0_131 = arith.constant 0 : index
      %c0_132 = arith.constant 0 : index
      %429 = vector.load %arg15[%c0_131, %c0_132] : memref<2x32xf32, #tpu.memory_space<vmem>>, vector<2x32xf32>
      tpu.vector_store %arg15[%c0_131, %c0_132], %428 {strides = array<i32>} : memref<2x32xf32, #tpu.memory_space<vmem>>, vector<2x32xf32>,
      %cst_133 = arith.constant 0.000000e+00 : f32
      %430 = vector.broadcast %cst_133 : f32 to vector<2x32xf32>
      %c0_134 = arith.constant 0 : index
      %c0_135 = arith.constant 0 : index
      %431 = vector.load %arg16[%c0_134, %c0_135] : memref<2x32xf32, #tpu.memory_space<vmem>>, vector<2x32xf32>
      tpu.vector_store %arg16[%c0_134, %c0_135], %430 {strides = array<i32>} : memref<2x32xf32, #tpu.memory_space<vmem>>, vector<2x32xf32>,
    } else {
    }
    %c0 = arith.constant 0 : index
    %c0_1 = arith.constant 0 : index
    %c0_2 = arith.constant 0 : index
    %c0_3 = arith.constant 0 : index
    %3 = vector.load %arg3[%c0, %c0_1, %c0_2, %c0_3] : memref<1x2x16x32xf32, #tpu.memory_space<vmem>>, vector<1x2x16x32xf32>
    %4 = vector.shape_cast %3 : vector<1x2x16x32xf32> to vector<2x16x32xf32>
    %c0_4 = arith.constant 0 : index
    %c0_5 = arith.constant 0 : index
    %c0_6 = arith.constant 0 : index
    %c0_7 = arith.constant 0 : index
    %5 = vector.load %arg4[%c0_4, %c0_5, %c0_6, %c0_7] : memref<1x2x16x16xf32, #tpu.memory_space<vmem>>, vector<1x2x16x16xf32>
    %6 = vector.shape_cast %5 : vector<1x2x16x16xf32> to vector<2x16x16xf32>
    %c0_8 = arith.constant 0 : index
    %c0_9 = arith.constant 0 : index
    %7 = vector.load %arg5[%c0_8, %c0_9] : memref<32x160xf32, #tpu.memory_space<vmem>>, vector<32x160xf32>
    %c0_10 = arith.constant 0 : index
    %c0_11 = arith.constant 0 : index
    %8 = vector.load %arg6[%c0_10, %c0_11] : memref<32x16xf32, #tpu.memory_space<vmem>>, vector<32x16xf32>
    %c0_12 = arith.constant 0 : index
    %c0_13 = arith.constant 0 : index
    %9 = vector.load %arg7[%c0_12, %c0_13] : memref<1x16xf32, #tpu.memory_space<vmem>>, vector<1x16xf32>
    %c0_14 = arith.constant 0 : index
    %c0_15 = arith.constant 0 : index
    %10 = vector.load %arg8[%c0_14, %c0_15] : memref<32x16xf32, #tpu.memory_space<vmem>>, vector<32x16xf32>
    %c0_16 = arith.constant 0 : index
    %c0_17 = arith.constant 0 : index
    %11 = vector.load %arg9[%c0_16, %c0_17] : memref<1x16xf32, #tpu.memory_space<vmem>>, vector<1x16xf32>
    %c0_18 = arith.constant 0 : index
    %c0_19 = arith.constant 0 : index
    %12 = vector.load %arg10[%c0_18, %c0_19] : memref<1x16xf32, #tpu.memory_space<vmem>>, vector<1x16xf32>
    %c0_20 = arith.constant 0 : index
    %c0_21 = arith.constant 0 : index
    %13 = vector.load %arg11[%c0_20, %c0_21] : memref<1x1xf32, #tpu.memory_space<vmem>>, vector<1x1xf32>
    %c0_22 = arith.constant 0 : index
    %c0_23 = arith.constant 0 : index
    %14 = vector.load %arg12[%c0_22, %c0_23] : memref<1x16xf32, #tpu.memory_space<vmem>>, vector<1x16xf32>
    %c0_24 = arith.constant 0 : index
    %c0_25 = arith.constant 0 : index
    %15 = vector.load %arg13[%c0_24, %c0_25] : memref<1x1xf32, #tpu.memory_space<vmem>>, vector<1x1xf32>
    %c0_26 = arith.constant 0 : index
    %c0_27 = arith.constant 0 : index
    %16 = vector.load %arg15[%c0_26, %c0_27] : memref<2x32xf32, #tpu.memory_space<vmem>>, vector<2x32xf32>
    %c0_28 = arith.constant 0 : index
    %c0_29 = arith.constant 0 : index
    %17 = vector.load %arg16[%c0_28, %c0_29] : memref<2x32xf32, #tpu.memory_space<vmem>>, vector<2x32xf32>
    %c0_i32_30 = arith.constant 0 : i32
    %c0_31 = arith.constant 0 : index
    %18 = arith.index_cast %c0_i32_30 : i32 to index
    %c0_32 = arith.constant 0 : index
    %c0_33 = arith.constant 0 : index
    %19 = vector.load %arg2[%c0_31, %18, %c0_32, %c0_33] : memref<1x4x2x160xf32, #tpu.memory_space<vmem>>, vector<1x1x2x160xf32>
    %20 = vector.shape_cast %19 : vector<1x1x2x160xf32> to vector<2x160xf32>
    %cst = arith.constant dense<0.000000e+00> : vector<2x160xf32>
    %21 = tpu.matmul %16, %7, %cst {dimension_numbers = #tpu.dot_dimension_numbers<[1], [0], [0], [1], [0, 0, 1, 1], [], []>} : vector<2x32xf32>, vector<32x160xf32>, vector<2x160xf32> -> vector<2x160xf32>
    %22 = arith.addf %20, %21 : vector<2x160xf32>
    %23 = vector.extract_strided_slice %22 {offsets = [0, 0], sizes = [2, 32], strides = [1, 1]} : vector<2x160xf32> to vector<2x32xf32>
    %cst_34 = arith.constant 0.000000e+00 : f32
    %24 = vector.broadcast %cst_34 : f32 to vector<2x32xf32>
    %25 = arith.subf %24, %23 : vector<2x32xf32>
    %26 = math.exp %25 : vector<2x32xf32>
    %cst_35 = arith.constant 1.000000e+00 : f32
    %27 = vector.broadcast %cst_35 : f32 to vector<2x32xf32>
    %28 = arith.addf %27, %26 : vector<2x32xf32>
    %29 = tpu.reciprocal %28 {approx = true} : vector<2x32xf32> -> vector<2x32xf32>
    %30 = vector.extract_strided_slice %22 {offsets = [0, 32], sizes = [2, 32], strides = [1, 1]} : vector<2x160xf32> to vector<2x32xf32>
    %cst_36 = arith.constant 0.000000e+00 : f32
    %31 = vector.broadcast %cst_36 : f32 to vector<2x32xf32>
    %32 = arith.subf %31, %30 : vector<2x32xf32>
    %33 = math.exp %32 : vector<2x32xf32>
    %cst_37 = arith.constant 1.000000e+00 : f32
    %34 = vector.broadcast %cst_37 : f32 to vector<2x32xf32>
    %35 = arith.addf %34, %33 : vector<2x32xf32>
    %36 = tpu.reciprocal %35 {approx = true} : vector<2x32xf32> -> vector<2x32xf32>
    %37 = vector.extract_strided_slice %22 {offsets = [0, 64], sizes = [2, 32], strides = [1, 1]} : vector<2x160xf32> to vector<2x32xf32>
    %38 = math.tanh %37 : vector<2x32xf32>
    %39 = vector.extract_strided_slice %22 {offsets = [0, 96], sizes = [2, 32], strides = [1, 1]} : vector<2x160xf32> to vector<2x32xf32>
    %cst_38 = arith.constant 0.000000e+00 : f32
    %40 = vector.broadcast %cst_38 : f32 to vector<2x32xf32>
    %41 = arith.subf %40, %39 : vector<2x32xf32>
    %42 = math.exp %41 : vector<2x32xf32>
    %cst_39 = arith.constant 1.000000e+00 : f32
    %43 = vector.broadcast %cst_39 : f32 to vector<2x32xf32>
    %44 = arith.addf %43, %42 : vector<2x32xf32>
    %45 = tpu.reciprocal %44 {approx = true} : vector<2x32xf32> -> vector<2x32xf32>
    %46 = vector.extract_strided_slice %22 {offsets = [0, 128], sizes = [2, 32], strides = [1, 1]} : vector<2x160xf32> to vector<2x32xf32>
    %cst_40 = arith.constant 0.000000e+00 : f32
    %47 = vector.broadcast %cst_40 : f32 to vector<2x32xf32>
    %48 = arith.subf %47, %46 : vector<2x32xf32>
    %49 = math.exp %48 : vector<2x32xf32>
    %cst_41 = arith.constant 1.000000e+00 : f32
    %50 = vector.broadcast %cst_41 : f32 to vector<2x32xf32>
    %51 = arith.addf %50, %49 : vector<2x32xf32>
    %52 = tpu.reciprocal %51 {approx = true} : vector<2x32xf32> -> vector<2x32xf32>
    %53 = arith.mulf %36, %17 : vector<2x32xf32>
    %54 = arith.mulf %29, %38 : vector<2x32xf32>
    %55 = arith.addf %53, %54 : vector<2x32xf32>
    %56 = math.tanh %55 : vector<2x32xf32>
    %57 = arith.mulf %45, %56 : vector<2x32xf32>
    %58 = arith.mulf %52, %56 : vector<2x32xf32>
    %cst_42 = arith.constant dense<0.000000e+00> : vector<2x16xf32>
    %59 = tpu.matmul %57, %8, %cst_42 {dimension_numbers = #tpu.dot_dimension_numbers<[1], [0], [0], [1], [0, 0, 1, 1], [], []>} : vector<2x32xf32>, vector<32x16xf32>, vector<2x16xf32> -> vector<2x16xf32>
    %60 = vector.broadcast %9 : vector<1x16xf32> to vector<2x16xf32>
    %61 = arith.addf %59, %60 : vector<2x16xf32>
    %62 = vector.shape_cast %61 : vector<2x16xf32> to vector<2x1x16xf32>
    %63 = vector.broadcast %62 : vector<2x1x16xf32> to vector<2x16x16xf32>
    %64 = arith.addf %6, %63 : vector<2x16x16xf32>
    %65 = math.tanh %64 : vector<2x16x16xf32>
    %66 = vector.shape_cast %12 : vector<1x16xf32> to vector<1x1x16xf32>
    %67 = vector.broadcast %66 : vector<1x1x16xf32> to vector<2x16x16xf32>
    %68 = arith.mulf %65, %67 : vector<2x16x16xf32>
    %cst_43 = arith.constant dense<0.000000e+00> : vector<2x16xf32>
    %69 = vector.multi_reduction <add>, %68, %cst_43 [2] : vector<2x16x16xf32> to vector<2x16xf32>
    %70 = vector.broadcast %13 : vector<1x1xf32> to vector<2x16xf32>
    %71 = arith.addf %69, %70 : vector<2x16xf32>
    %cst_44 = arith.constant dense<0xFF800000> : vector<2xf32>
    %72 = vector.multi_reduction <maximumf>, %71, %cst_44 [1] : vector<2x16xf32> to vector<2xf32>
    %73 = vector.shape_cast %72 : vector<2xf32> to vector<2x1xf32>
    %74 = vector.broadcast %73 : vector<2x1xf32> to vector<2x16xf32>
    %75 = arith.subf %71, %74 : vector<2x16xf32>
    %76 = math.exp %75 : vector<2x16xf32>
    %cst_45 = arith.constant dense<0.000000e+00> : vector<2xf32>
    %77 = vector.multi_reduction <add>, %76, %cst_45 [1] : vector<2x16xf32> to vector<2xf32>
    %78 = vector.shape_cast %77 : vector<2xf32> to vector<2x1xf32>
    %79 = tpu.reciprocal %78 {approx = true} : vector<2x1xf32> -> vector<2x1xf32>
    %80 = vector.broadcast %79 : vector<2x1xf32> to vector<2x16xf32>
    %81 = arith.mulf %76, %80 : vector<2x16xf32>
    %82 = vector.shape_cast %81 : vector<2x16xf32> to vector<2x16x1xf32>
    %83 = vector.broadcast %82 : vector<2x16x1xf32> to vector<2x16x32xf32>
    %84 = arith.mulf %4, %83 : vector<2x16x32xf32>
    %cst_46 = arith.constant dense<0.000000e+00> : vector<2x32xf32>
    %85 = vector.multi_reduction <add>, %84, %cst_46 [1] : vector<2x16x32xf32> to vector<2x32xf32>
    %cst_47 = arith.constant dense<0.000000e+00> : vector<2x16xf32>
    %86 = tpu.matmul %58, %10, %cst_47 {dimension_numbers = #tpu.dot_dimension_numbers<[1], [0], [0], [1], [0, 0, 1, 1], [], []>} : vector<2x32xf32>, vector<32x16xf32>, vector<2x16xf32> -> vector<2x16xf32>
    %87 = vector.broadcast %11 : vector<1x16xf32> to vector<2x16xf32>
    %88 = arith.addf %86, %87 : vector<2x16xf32>
    %89 = arith.addf %88, %61 : vector<2x16xf32>
    %90 = math.tanh %89 : vector<2x16xf32>
    %91 = vector.broadcast %14 : vector<1x16xf32> to vector<2x16xf32>
    %92 = arith.mulf %90, %91 : vector<2x16xf32>
    %cst_48 = arith.constant dense<0.000000e+00> : vector<2xf32>
    %93 = vector.multi_reduction <add>, %92, %cst_48 [1] : vector<2x16xf32> to vector<2xf32>
    %94 = vector.shape_cast %93 : vector<2xf32> to vector<2x1xf32>
    %95 = vector.broadcast %15 : vector<1x1xf32> to vector<2x1xf32>
    %96 = arith.addf %94, %95 : vector<2x1xf32>
    %97 = arith.maximumf %73, %96 : vector<2x1xf32>
    %98 = arith.subf %96, %97 : vector<2x1xf32>
    %99 = math.exp %98 : vector<2x1xf32>
    %100 = vector.broadcast %97 : vector<2x1xf32> to vector<2x16xf32>
    %101 = arith.subf %71, %100 : vector<2x16xf32>
    %102 = math.exp %101 : vector<2x16xf32>
    %cst_49 = arith.constant dense<0.000000e+00> : vector<2xf32>
    %103 = vector.multi_reduction <add>, %102, %cst_49 [1] : vector<2x16xf32> to vector<2xf32>
    %104 = vector.shape_cast %103 : vector<2xf32> to vector<2x1xf32>
    %105 = arith.addf %104, %99 : vector<2x1xf32>
    %106 = tpu.reciprocal %105 {approx = true} : vector<2x1xf32> -> vector<2x1xf32>
    %107 = arith.mulf %99, %106 : vector<2x1xf32>
    %108 = vector.broadcast %107 : vector<2x1xf32> to vector<2x32xf32>
    %109 = arith.mulf %108, %58 : vector<2x32xf32>
    %cst_50 = arith.constant 1.000000e+00 : f32
    %110 = vector.broadcast %cst_50 : f32 to vector<2x1xf32>
    %111 = arith.subf %110, %107 : vector<2x1xf32>
    %112 = vector.broadcast %111 : vector<2x1xf32> to vector<2x32xf32>
    %113 = arith.mulf %112, %85 : vector<2x32xf32>
    %114 = arith.addf %109, %113 : vector<2x32xf32>
    %115 = arith.addf %114, %57 : vector<2x32xf32>
    %c0_51 = arith.constant 0 : index
    %116 = arith.index_cast %c0_i32_30 : i32 to index
    %c0_52 = arith.constant 0 : index
    %c0_53 = arith.constant 0 : index
    %117 = vector.load %arg14[%c0_51, %116, %c0_52, %c0_53] : memref<1x4x2x32xf32, #tpu.memory_space<vmem>>, vector<1x1x2x32xf32>
    %118 = vector.shape_cast %117 : vector<1x1x2x32xf32> to vector<2x32xf32>
    %119 = vector.shape_cast %115 : vector<2x32xf32> to vector<1x1x2x32xf32>
    tpu.vector_store %arg14[%c0_51, %116, %c0_52, %c0_53], %119 {strides = array<i32>} : memref<1x4x2x32xf32, #tpu.memory_space<vmem>>, vector<1x1x2x32xf32>,
    %c1_i32 = arith.constant 1 : i32
    %c0_54 = arith.constant 0 : index
    %120 = arith.index_cast %c1_i32 : i32 to index
    %c0_55 = arith.constant 0 : index
    %c0_56 = arith.constant 0 : index
    %121 = vector.load %arg2[%c0_54, %120, %c0_55, %c0_56] : memref<1x4x2x160xf32, #tpu.memory_space<vmem>>, vector<1x1x2x160xf32>
    %122 = vector.shape_cast %121 : vector<1x1x2x160xf32> to vector<2x160xf32>
    %cst_57 = arith.constant dense<0.000000e+00> : vector<2x160xf32>
    %123 = tpu.matmul %57, %7, %cst_57 {dimension_numbers = #tpu.dot_dimension_numbers<[1], [0], [0], [1], [0, 0, 1, 1], [], []>} : vector<2x32xf32>, vector<32x160xf32>, vector<2x160xf32> -> vector<2x160xf32>
    %124 = arith.addf %122, %123 : vector<2x160xf32>
    %125 = vector.extract_strided_slice %124 {offsets = [0, 0], sizes = [2, 32], strides = [1, 1]} : vector<2x160xf32> to vector<2x32xf32>
    %cst_58 = arith.constant 0.000000e+00 : f32
    %126 = vector.broadcast %cst_58 : f32 to vector<2x32xf32>
    %127 = arith.subf %126, %125 : vector<2x32xf32>
    %128 = math.exp %127 : vector<2x32xf32>
    %cst_59 = arith.constant 1.000000e+00 : f32
    %129 = vector.broadcast %cst_59 : f32 to vector<2x32xf32>
    %130 = arith.addf %129, %128 : vector<2x32xf32>
    %131 = tpu.reciprocal %130 {approx = true} : vector<2x32xf32> -> vector<2x32xf32>
    %132 = vector.extract_strided_slice %124 {offsets = [0, 32], sizes = [2, 32], strides = [1, 1]} : vector<2x160xf32> to vector<2x32xf32>
    %cst_60 = arith.constant 0.000000e+00 : f32
    %133 = vector.broadcast %cst_60 : f32 to vector<2x32xf32>
    %134 = arith.subf %133, %132 : vector<2x32xf32>
    %135 = math.exp %134 : vector<2x32xf32>
    %cst_61 = arith.constant 1.000000e+00 : f32
    %136 = vector.broadcast %cst_61 : f32 to vector<2x32xf32>
    %137 = arith.addf %136, %135 : vector<2x32xf32>
    %138 = tpu.reciprocal %137 {approx = true} : vector<2x32xf32> -> vector<2x32xf32>
    %139 = vector.extract_strided_slice %124 {offsets = [0, 64], sizes = [2, 32], strides = [1, 1]} : vector<2x160xf32> to vector<2x32xf32>
    %140 = math.tanh %139 : vector<2x32xf32>
    %141 = vector.extract_strided_slice %124 {offsets = [0, 96], sizes = [2, 32], strides = [1, 1]} : vector<2x160xf32> to vector<2x32xf32>
    %cst_62 = arith.constant 0.000000e+00 : f32
    %142 = vector.broadcast %cst_62 : f32 to vector<2x32xf32>
    %143 = arith.subf %142, %141 : vector<2x32xf32>
    %144 = math.exp %143 : vector<2x32xf32>
    %cst_63 = arith.constant 1.000000e+00 : f32
    %145 = vector.broadcast %cst_63 : f32 to vector<2x32xf32>
    %146 = arith.addf %145, %144 : vector<2x32xf32>
    %147 = tpu.reciprocal %146 {approx = true} : vector<2x32xf32> -> vector<2x32xf32>
    %148 = vector.extract_strided_slice %124 {offsets = [0, 128], sizes = [2, 32], strides = [1, 1]} : vector<2x160xf32> to vector<2x32xf32>
    %cst_64 = arith.constant 0.000000e+00 : f32
    %149 = vector.broadcast %cst_64 : f32 to vector<2x32xf32>
    %150 = arith.subf %149, %148 : vector<2x32xf32>
    %151 = math.exp %150 : vector<2x32xf32>
    %cst_65 = arith.constant 1.000000e+00 : f32
    %152 = vector.broadcast %cst_65 : f32 to vector<2x32xf32>
    %153 = arith.addf %152, %151 : vector<2x32xf32>
    %154 = tpu.reciprocal %153 {approx = true} : vector<2x32xf32> -> vector<2x32xf32>
    %155 = arith.mulf %138, %55 : vector<2x32xf32>
    %156 = arith.mulf %131, %140 : vector<2x32xf32>
    %157 = arith.addf %155, %156 : vector<2x32xf32>
    %158 = math.tanh %157 : vector<2x32xf32>
    %159 = arith.mulf %147, %158 : vector<2x32xf32>
    %160 = arith.mulf %154, %158 : vector<2x32xf32>
    %cst_66 = arith.constant dense<0.000000e+00> : vector<2x16xf32>
    %161 = tpu.matmul %159, %8, %cst_66 {dimension_numbers = #tpu.dot_dimension_numbers<[1], [0], [0], [1], [0, 0, 1, 1], [], []>} : vector<2x32xf32>, vector<32x16xf32>, vector<2x16xf32> -> vector<2x16xf32>
    %162 = vector.broadcast %9 : vector<1x16xf32> to vector<2x16xf32>
    %163 = arith.addf %161, %162 : vector<2x16xf32>
    %164 = vector.shape_cast %163 : vector<2x16xf32> to vector<2x1x16xf32>
    %165 = vector.broadcast %164 : vector<2x1x16xf32> to vector<2x16x16xf32>
    %166 = arith.addf %6, %165 : vector<2x16x16xf32>
    %167 = math.tanh %166 : vector<2x16x16xf32>
    %168 = vector.shape_cast %12 : vector<1x16xf32> to vector<1x1x16xf32>
    %169 = vector.broadcast %168 : vector<1x1x16xf32> to vector<2x16x16xf32>
    %170 = arith.mulf %167, %169 : vector<2x16x16xf32>
    %cst_67 = arith.constant dense<0.000000e+00> : vector<2x16xf32>
    %171 = vector.multi_reduction <add>, %170, %cst_67 [2] : vector<2x16x16xf32> to vector<2x16xf32>
    %172 = vector.broadcast %13 : vector<1x1xf32> to vector<2x16xf32>
    %173 = arith.addf %171, %172 : vector<2x16xf32>
    %cst_68 = arith.constant dense<0xFF800000> : vector<2xf32>
    %174 = vector.multi_reduction <maximumf>, %173, %cst_68 [1] : vector<2x16xf32> to vector<2xf32>
    %175 = vector.shape_cast %174 : vector<2xf32> to vector<2x1xf32>
    %176 = vector.broadcast %175 : vector<2x1xf32> to vector<2x16xf32>
    %177 = arith.subf %173, %176 : vector<2x16xf32>
    %178 = math.exp %177 : vector<2x16xf32>
    %cst_69 = arith.constant dense<0.000000e+00> : vector<2xf32>
    %179 = vector.multi_reduction <add>, %178, %cst_69 [1] : vector<2x16xf32> to vector<2xf32>
    %180 = vector.shape_cast %179 : vector<2xf32> to vector<2x1xf32>
    %181 = tpu.reciprocal %180 {approx = true} : vector<2x1xf32> -> vector<2x1xf32>
    %182 = vector.broadcast %181 : vector<2x1xf32> to vector<2x16xf32>
    %183 = arith.mulf %178, %182 : vector<2x16xf32>
    %184 = vector.shape_cast %183 : vector<2x16xf32> to vector<2x16x1xf32>
    %185 = vector.broadcast %184 : vector<2x16x1xf32> to vector<2x16x32xf32>
    %186 = arith.mulf %4, %185 : vector<2x16x32xf32>
    %cst_70 = arith.constant dense<0.000000e+00> : vector<2x32xf32>
    %187 = vector.multi_reduction <add>, %186, %cst_70 [1] : vector<2x16x32xf32> to vector<2x32xf32>
    %cst_71 = arith.constant dense<0.000000e+00> : vector<2x16xf32>
    %188 = tpu.matmul %160, %10, %cst_71 {dimension_numbers = #tpu.dot_dimension_numbers<[1], [0], [0], [1], [0, 0, 1, 1], [], []>} : vector<2x32xf32>, vector<32x16xf32>, vector<2x16xf32> -> vector<2x16xf32>
    %189 = vector.broadcast %11 : vector<1x16xf32> to vector<2x16xf32>
    %190 = arith.addf %188, %189 : vector<2x16xf32>
    %191 = arith.addf %190, %163 : vector<2x16xf32>
    %192 = math.tanh %191 : vector<2x16xf32>
    %193 = vector.broadcast %14 : vector<1x16xf32> to vector<2x16xf32>
    %194 = arith.mulf %192, %193 : vector<2x16xf32>
    %cst_72 = arith.constant dense<0.000000e+00> : vector<2xf32>
    %195 = vector.multi_reduction <add>, %194, %cst_72 [1] : vector<2x16xf32> to vector<2xf32>
    %196 = vector.shape_cast %195 : vector<2xf32> to vector<2x1xf32>
    %197 = vector.broadcast %15 : vector<1x1xf32> to vector<2x1xf32>
    %198 = arith.addf %196, %197 : vector<2x1xf32>
    %199 = arith.maximumf %175, %198 : vector<2x1xf32>
    %200 = arith.subf %198, %199 : vector<2x1xf32>
    %201 = math.exp %200 : vector<2x1xf32>
    %202 = vector.broadcast %199 : vector<2x1xf32> to vector<2x16xf32>
    %203 = arith.subf %173, %202 : vector<2x16xf32>
    %204 = math.exp %203 : vector<2x16xf32>
    %cst_73 = arith.constant dense<0.000000e+00> : vector<2xf32>
    %205 = vector.multi_reduction <add>, %204, %cst_73 [1] : vector<2x16xf32> to vector<2xf32>
    %206 = vector.shape_cast %205 : vector<2xf32> to vector<2x1xf32>
    %207 = arith.addf %206, %201 : vector<2x1xf32>
    %208 = tpu.reciprocal %207 {approx = true} : vector<2x1xf32> -> vector<2x1xf32>
    %209 = arith.mulf %201, %208 : vector<2x1xf32>
    %210 = vector.broadcast %209 : vector<2x1xf32> to vector<2x32xf32>
    %211 = arith.mulf %210, %160 : vector<2x32xf32>
    %cst_74 = arith.constant 1.000000e+00 : f32
    %212 = vector.broadcast %cst_74 : f32 to vector<2x1xf32>
    %213 = arith.subf %212, %209 : vector<2x1xf32>
    %214 = vector.broadcast %213 : vector<2x1xf32> to vector<2x32xf32>
    %215 = arith.mulf %214, %187 : vector<2x32xf32>
    %216 = arith.addf %211, %215 : vector<2x32xf32>
    %217 = arith.addf %216, %159 : vector<2x32xf32>
    %c0_75 = arith.constant 0 : index
    %218 = arith.index_cast %c1_i32 : i32 to index
    %c0_76 = arith.constant 0 : index
    %c0_77 = arith.constant 0 : index
    %219 = vector.load %arg14[%c0_75, %218, %c0_76, %c0_77] : memref<1x4x2x32xf32, #tpu.memory_space<vmem>>, vector<1x1x2x32xf32>
    %220 = vector.shape_cast %219 : vector<1x1x2x32xf32> to vector<2x32xf32>
    %221 = vector.shape_cast %217 : vector<2x32xf32> to vector<1x1x2x32xf32>
    tpu.vector_store %arg14[%c0_75, %218, %c0_76, %c0_77], %221 {strides = array<i32>} : memref<1x4x2x32xf32, #tpu.memory_space<vmem>>, vector<1x1x2x32xf32>,
    %c2_i32 = arith.constant 2 : i32
    %c0_78 = arith.constant 0 : index
    %222 = arith.index_cast %c2_i32 : i32 to index
    %c0_79 = arith.constant 0 : index
    %c0_80 = arith.constant 0 : index
    %223 = vector.load %arg2[%c0_78, %222, %c0_79, %c0_80] : memref<1x4x2x160xf32, #tpu.memory_space<vmem>>, vector<1x1x2x160xf32>
    %224 = vector.shape_cast %223 : vector<1x1x2x160xf32> to vector<2x160xf32>
    %cst_81 = arith.constant dense<0.000000e+00> : vector<2x160xf32>
    %225 = tpu.matmul %159, %7, %cst_81 {dimension_numbers = #tpu.dot_dimension_numbers<[1], [0], [0], [1], [0, 0, 1, 1], [], []>} : vector<2x32xf32>, vector<32x160xf32>, vector<2x160xf32> -> vector<2x160xf32>
    %226 = arith.addf %224, %225 : vector<2x160xf32>
    %227 = vector.extract_strided_slice %226 {offsets = [0, 0], sizes = [2, 32], strides = [1, 1]} : vector<2x160xf32> to vector<2x32xf32>
    %cst_82 = arith.constant 0.000000e+00 : f32
    %228 = vector.broadcast %cst_82 : f32 to vector<2x32xf32>
    %229 = arith.subf %228, %227 : vector<2x32xf32>
    %230 = math.exp %229 : vector<2x32xf32>
    %cst_83 = arith.constant 1.000000e+00 : f32
    %231 = vector.broadcast %cst_83 : f32 to vector<2x32xf32>
    %232 = arith.addf %231, %230 : vector<2x32xf32>
    %233 = tpu.reciprocal %232 {approx = true} : vector<2x32xf32> -> vector<2x32xf32>
    %234 = vector.extract_strided_slice %226 {offsets = [0, 32], sizes = [2, 32], strides = [1, 1]} : vector<2x160xf32> to vector<2x32xf32>
    %cst_84 = arith.constant 0.000000e+00 : f32
    %235 = vector.broadcast %cst_84 : f32 to vector<2x32xf32>
    %236 = arith.subf %235, %234 : vector<2x32xf32>
    %237 = math.exp %236 : vector<2x32xf32>
    %cst_85 = arith.constant 1.000000e+00 : f32
    %238 = vector.broadcast %cst_85 : f32 to vector<2x32xf32>
    %239 = arith.addf %238, %237 : vector<2x32xf32>
    %240 = tpu.reciprocal %239 {approx = true} : vector<2x32xf32> -> vector<2x32xf32>
    %241 = vector.extract_strided_slice %226 {offsets = [0, 64], sizes = [2, 32], strides = [1, 1]} : vector<2x160xf32> to vector<2x32xf32>
    %242 = math.tanh %241 : vector<2x32xf32>
    %243 = vector.extract_strided_slice %226 {offsets = [0, 96], sizes = [2, 32], strides = [1, 1]} : vector<2x160xf32> to vector<2x32xf32>
    %cst_86 = arith.constant 0.000000e+00 : f32
    %244 = vector.broadcast %cst_86 : f32 to vector<2x32xf32>
    %245 = arith.subf %244, %243 : vector<2x32xf32>
    %246 = math.exp %245 : vector<2x32xf32>
    %cst_87 = arith.constant 1.000000e+00 : f32
    %247 = vector.broadcast %cst_87 : f32 to vector<2x32xf32>
    %248 = arith.addf %247, %246 : vector<2x32xf32>
    %249 = tpu.reciprocal %248 {approx = true} : vector<2x32xf32> -> vector<2x32xf32>
    %250 = vector.extract_strided_slice %226 {offsets = [0, 128], sizes = [2, 32], strides = [1, 1]} : vector<2x160xf32> to vector<2x32xf32>
    %cst_88 = arith.constant 0.000000e+00 : f32
    %251 = vector.broadcast %cst_88 : f32 to vector<2x32xf32>
    %252 = arith.subf %251, %250 : vector<2x32xf32>
    %253 = math.exp %252 : vector<2x32xf32>
    %cst_89 = arith.constant 1.000000e+00 : f32
    %254 = vector.broadcast %cst_89 : f32 to vector<2x32xf32>
    %255 = arith.addf %254, %253 : vector<2x32xf32>
    %256 = tpu.reciprocal %255 {approx = true} : vector<2x32xf32> -> vector<2x32xf32>
    %257 = arith.mulf %240, %157 : vector<2x32xf32>
    %258 = arith.mulf %233, %242 : vector<2x32xf32>
    %259 = arith.addf %257, %258 : vector<2x32xf32>
    %260 = math.tanh %259 : vector<2x32xf32>
    %261 = arith.mulf %249, %260 : vector<2x32xf32>
    %262 = arith.mulf %256, %260 : vector<2x32xf32>
    %cst_90 = arith.constant dense<0.000000e+00> : vector<2x16xf32>
    %263 = tpu.matmul %261, %8, %cst_90 {dimension_numbers = #tpu.dot_dimension_numbers<[1], [0], [0], [1], [0, 0, 1, 1], [], []>} : vector<2x32xf32>, vector<32x16xf32>, vector<2x16xf32> -> vector<2x16xf32>
    %264 = vector.broadcast %9 : vector<1x16xf32> to vector<2x16xf32>
    %265 = arith.addf %263, %264 : vector<2x16xf32>
    %266 = vector.shape_cast %265 : vector<2x16xf32> to vector<2x1x16xf32>
    %267 = vector.broadcast %266 : vector<2x1x16xf32> to vector<2x16x16xf32>
    %268 = arith.addf %6, %267 : vector<2x16x16xf32>
    %269 = math.tanh %268 : vector<2x16x16xf32>
    %270 = vector.shape_cast %12 : vector<1x16xf32> to vector<1x1x16xf32>
    %271 = vector.broadcast %270 : vector<1x1x16xf32> to vector<2x16x16xf32>
    %272 = arith.mulf %269, %271 : vector<2x16x16xf32>
    %cst_91 = arith.constant dense<0.000000e+00> : vector<2x16xf32>
    %273 = vector.multi_reduction <add>, %272, %cst_91 [2] : vector<2x16x16xf32> to vector<2x16xf32>
    %274 = vector.broadcast %13 : vector<1x1xf32> to vector<2x16xf32>
    %275 = arith.addf %273, %274 : vector<2x16xf32>
    %cst_92 = arith.constant dense<0xFF800000> : vector<2xf32>
    %276 = vector.multi_reduction <maximumf>, %275, %cst_92 [1] : vector<2x16xf32> to vector<2xf32>
    %277 = vector.shape_cast %276 : vector<2xf32> to vector<2x1xf32>
    %278 = vector.broadcast %277 : vector<2x1xf32> to vector<2x16xf32>
    %279 = arith.subf %275, %278 : vector<2x16xf32>
    %280 = math.exp %279 : vector<2x16xf32>
    %cst_93 = arith.constant dense<0.000000e+00> : vector<2xf32>
    %281 = vector.multi_reduction <add>, %280, %cst_93 [1] : vector<2x16xf32> to vector<2xf32>
    %282 = vector.shape_cast %281 : vector<2xf32> to vector<2x1xf32>
    %283 = tpu.reciprocal %282 {approx = true} : vector<2x1xf32> -> vector<2x1xf32>
    %284 = vector.broadcast %283 : vector<2x1xf32> to vector<2x16xf32>
    %285 = arith.mulf %280, %284 : vector<2x16xf32>
    %286 = vector.shape_cast %285 : vector<2x16xf32> to vector<2x16x1xf32>
    %287 = vector.broadcast %286 : vector<2x16x1xf32> to vector<2x16x32xf32>
    %288 = arith.mulf %4, %287 : vector<2x16x32xf32>
    %cst_94 = arith.constant dense<0.000000e+00> : vector<2x32xf32>
    %289 = vector.multi_reduction <add>, %288, %cst_94 [1] : vector<2x16x32xf32> to vector<2x32xf32>
    %cst_95 = arith.constant dense<0.000000e+00> : vector<2x16xf32>
    %290 = tpu.matmul %262, %10, %cst_95 {dimension_numbers = #tpu.dot_dimension_numbers<[1], [0], [0], [1], [0, 0, 1, 1], [], []>} : vector<2x32xf32>, vector<32x16xf32>, vector<2x16xf32> -> vector<2x16xf32>
    %291 = vector.broadcast %11 : vector<1x16xf32> to vector<2x16xf32>
    %292 = arith.addf %290, %291 : vector<2x16xf32>
    %293 = arith.addf %292, %265 : vector<2x16xf32>
    %294 = math.tanh %293 : vector<2x16xf32>
    %295 = vector.broadcast %14 : vector<1x16xf32> to vector<2x16xf32>
    %296 = arith.mulf %294, %295 : vector<2x16xf32>
    %cst_96 = arith.constant dense<0.000000e+00> : vector<2xf32>
    %297 = vector.multi_reduction <add>, %296, %cst_96 [1] : vector<2x16xf32> to vector<2xf32>
    %298 = vector.shape_cast %297 : vector<2xf32> to vector<2x1xf32>
    %299 = vector.broadcast %15 : vector<1x1xf32> to vector<2x1xf32>
    %300 = arith.addf %298, %299 : vector<2x1xf32>
    %301 = arith.maximumf %277, %300 : vector<2x1xf32>
    %302 = arith.subf %300, %301 : vector<2x1xf32>
    %303 = math.exp %302 : vector<2x1xf32>
    %304 = vector.broadcast %301 : vector<2x1xf32> to vector<2x16xf32>
    %305 = arith.subf %275, %304 : vector<2x16xf32>
    %306 = math.exp %305 : vector<2x16xf32>
    %cst_97 = arith.constant dense<0.000000e+00> : vector<2xf32>
    %307 = vector.multi_reduction <add>, %306, %cst_97 [1] : vector<2x16xf32> to vector<2xf32>
    %308 = vector.shape_cast %307 : vector<2xf32> to vector<2x1xf32>
    %309 = arith.addf %308, %303 : vector<2x1xf32>
    %310 = tpu.reciprocal %309 {approx = true} : vector<2x1xf32> -> vector<2x1xf32>
    %311 = arith.mulf %303, %310 : vector<2x1xf32>
    %312 = vector.broadcast %311 : vector<2x1xf32> to vector<2x32xf32>
    %313 = arith.mulf %312, %262 : vector<2x32xf32>
    %cst_98 = arith.constant 1.000000e+00 : f32
    %314 = vector.broadcast %cst_98 : f32 to vector<2x1xf32>
    %315 = arith.subf %314, %311 : vector<2x1xf32>
    %316 = vector.broadcast %315 : vector<2x1xf32> to vector<2x32xf32>
    %317 = arith.mulf %316, %289 : vector<2x32xf32>
    %318 = arith.addf %313, %317 : vector<2x32xf32>
    %319 = arith.addf %318, %261 : vector<2x32xf32>
    %c0_99 = arith.constant 0 : index
    %320 = arith.index_cast %c2_i32 : i32 to index
    %c0_100 = arith.constant 0 : index
    %c0_101 = arith.constant 0 : index
    %321 = vector.load %arg14[%c0_99, %320, %c0_100, %c0_101] : memref<1x4x2x32xf32, #tpu.memory_space<vmem>>, vector<1x1x2x32xf32>
    %322 = vector.shape_cast %321 : vector<1x1x2x32xf32> to vector<2x32xf32>
    %323 = vector.shape_cast %319 : vector<2x32xf32> to vector<1x1x2x32xf32>
    tpu.vector_store %arg14[%c0_99, %320, %c0_100, %c0_101], %323 {strides = array<i32>} : memref<1x4x2x32xf32, #tpu.memory_space<vmem>>, vector<1x1x2x32xf32>,
    %c3_i32 = arith.constant 3 : i32
    %c0_102 = arith.constant 0 : index
    %324 = arith.index_cast %c3_i32 : i32 to index
    %c0_103 = arith.constant 0 : index
    %c0_104 = arith.constant 0 : index
    %325 = vector.load %arg2[%c0_102, %324, %c0_103, %c0_104] : memref<1x4x2x160xf32, #tpu.memory_space<vmem>>, vector<1x1x2x160xf32>
    %326 = vector.shape_cast %325 : vector<1x1x2x160xf32> to vector<2x160xf32>
    %cst_105 = arith.constant dense<0.000000e+00> : vector<2x160xf32>
    %327 = tpu.matmul %261, %7, %cst_105 {dimension_numbers = #tpu.dot_dimension_numbers<[1], [0], [0], [1], [0, 0, 1, 1], [], []>} : vector<2x32xf32>, vector<32x160xf32>, vector<2x160xf32> -> vector<2x160xf32>
    %328 = arith.addf %326, %327 : vector<2x160xf32>
    %329 = vector.extract_strided_slice %328 {offsets = [0, 0], sizes = [2, 32], strides = [1, 1]} : vector<2x160xf32> to vector<2x32xf32>
    %cst_106 = arith.constant 0.000000e+00 : f32
    %330 = vector.broadcast %cst_106 : f32 to vector<2x32xf32>
    %331 = arith.subf %330, %329 : vector<2x32xf32>
    %332 = math.exp %331 : vector<2x32xf32>
    %cst_107 = arith.constant 1.000000e+00 : f32
    %333 = vector.broadcast %cst_107 : f32 to vector<2x32xf32>
    %334 = arith.addf %333, %332 : vector<2x32xf32>
    %335 = tpu.reciprocal %334 {approx = true} : vector<2x32xf32> -> vector<2x32xf32>
    %336 = vector.extract_strided_slice %328 {offsets = [0, 32], sizes = [2, 32], strides = [1, 1]} : vector<2x160xf32> to vector<2x32xf32>
    %cst_108 = arith.constant 0.000000e+00 : f32
    %337 = vector.broadcast %cst_108 : f32 to vector<2x32xf32>
    %338 = arith.subf %337, %336 : vector<2x32xf32>
    %339 = math.exp %338 : vector<2x32xf32>
    %cst_109 = arith.constant 1.000000e+00 : f32
    %340 = vector.broadcast %cst_109 : f32 to vector<2x32xf32>
    %341 = arith.addf %340, %339 : vector<2x32xf32>
    %342 = tpu.reciprocal %341 {approx = true} : vector<2x32xf32> -> vector<2x32xf32>
    %343 = vector.extract_strided_slice %328 {offsets = [0, 64], sizes = [2, 32], strides = [1, 1]} : vector<2x160xf32> to vector<2x32xf32>
    %344 = math.tanh %343 : vector<2x32xf32>
    %345 = vector.extract_strided_slice %328 {offsets = [0, 96], sizes = [2, 32], strides = [1, 1]} : vector<2x160xf32> to vector<2x32xf32>
    %cst_110 = arith.constant 0.000000e+00 : f32
    %346 = vector.broadcast %cst_110 : f32 to vector<2x32xf32>
    %347 = arith.subf %346, %345 : vector<2x32xf32>
    %348 = math.exp %347 : vector<2x32xf32>
    %cst_111 = arith.constant 1.000000e+00 : f32
    %349 = vector.broadcast %cst_111 : f32 to vector<2x32xf32>
    %350 = arith.addf %349, %348 : vector<2x32xf32>
    %351 = tpu.reciprocal %350 {approx = true} : vector<2x32xf32> -> vector<2x32xf32>
    %352 = vector.extract_strided_slice %328 {offsets = [0, 128], sizes = [2, 32], strides = [1, 1]} : vector<2x160xf32> to vector<2x32xf32>
    %cst_112 = arith.constant 0.000000e+00 : f32
    %353 = vector.broadcast %cst_112 : f32 to vector<2x32xf32>
    %354 = arith.subf %353, %352 : vector<2x32xf32>
    %355 = math.exp %354 : vector<2x32xf32>
    %cst_113 = arith.constant 1.000000e+00 : f32
    %356 = vector.broadcast %cst_113 : f32 to vector<2x32xf32>
    %357 = arith.addf %356, %355 : vector<2x32xf32>
    %358 = tpu.reciprocal %357 {approx = true} : vector<2x32xf32> -> vector<2x32xf32>
    %359 = arith.mulf %342, %259 : vector<2x32xf32>
    %360 = arith.mulf %335, %344 : vector<2x32xf32>
    %361 = arith.addf %359, %360 : vector<2x32xf32>
    %362 = math.tanh %361 : vector<2x32xf32>
    %363 = arith.mulf %351, %362 : vector<2x32xf32>
    %364 = arith.mulf %358, %362 : vector<2x32xf32>
    %cst_114 = arith.constant dense<0.000000e+00> : vector<2x16xf32>
    %365 = tpu.matmul %363, %8, %cst_114 {dimension_numbers = #tpu.dot_dimension_numbers<[1], [0], [0], [1], [0, 0, 1, 1], [], []>} : vector<2x32xf32>, vector<32x16xf32>, vector<2x16xf32> -> vector<2x16xf32>
    %366 = vector.broadcast %9 : vector<1x16xf32> to vector<2x16xf32>
    %367 = arith.addf %365, %366 : vector<2x16xf32>
    %368 = vector.shape_cast %367 : vector<2x16xf32> to vector<2x1x16xf32>
    %369 = vector.broadcast %368 : vector<2x1x16xf32> to vector<2x16x16xf32>
    %370 = arith.addf %6, %369 : vector<2x16x16xf32>
    %371 = math.tanh %370 : vector<2x16x16xf32>
    %372 = vector.shape_cast %12 : vector<1x16xf32> to vector<1x1x16xf32>
    %373 = vector.broadcast %372 : vector<1x1x16xf32> to vector<2x16x16xf32>
    %374 = arith.mulf %371, %373 : vector<2x16x16xf32>
    %cst_115 = arith.constant dense<0.000000e+00> : vector<2x16xf32>
    %375 = vector.multi_reduction <add>, %374, %cst_115 [2] : vector<2x16x16xf32> to vector<2x16xf32>
    %376 = vector.broadcast %13 : vector<1x1xf32> to vector<2x16xf32>
    %377 = arith.addf %375, %376 : vector<2x16xf32>
    %cst_116 = arith.constant dense<0xFF800000> : vector<2xf32>
    %378 = vector.multi_reduction <maximumf>, %377, %cst_116 [1] : vector<2x16xf32> to vector<2xf32>
    %379 = vector.shape_cast %378 : vector<2xf32> to vector<2x1xf32>
    %380 = vector.broadcast %379 : vector<2x1xf32> to vector<2x16xf32>
    %381 = arith.subf %377, %380 : vector<2x16xf32>
    %382 = math.exp %381 : vector<2x16xf32>
    %cst_117 = arith.constant dense<0.000000e+00> : vector<2xf32>
    %383 = vector.multi_reduction <add>, %382, %cst_117 [1] : vector<2x16xf32> to vector<2xf32>
    %384 = vector.shape_cast %383 : vector<2xf32> to vector<2x1xf32>
    %385 = tpu.reciprocal %384 {approx = true} : vector<2x1xf32> -> vector<2x1xf32>
    %386 = vector.broadcast %385 : vector<2x1xf32> to vector<2x16xf32>
    %387 = arith.mulf %382, %386 : vector<2x16xf32>
    %388 = vector.shape_cast %387 : vector<2x16xf32> to vector<2x16x1xf32>
    %389 = vector.broadcast %388 : vector<2x16x1xf32> to vector<2x16x32xf32>
    %390 = arith.mulf %4, %389 : vector<2x16x32xf32>
    %cst_118 = arith.constant dense<0.000000e+00> : vector<2x32xf32>
    %391 = vector.multi_reduction <add>, %390, %cst_118 [1] : vector<2x16x32xf32> to vector<2x32xf32>
    %cst_119 = arith.constant dense<0.000000e+00> : vector<2x16xf32>
    %392 = tpu.matmul %364, %10, %cst_119 {dimension_numbers = #tpu.dot_dimension_numbers<[1], [0], [0], [1], [0, 0, 1, 1], [], []>} : vector<2x32xf32>, vector<32x16xf32>, vector<2x16xf32> -> vector<2x16xf32>
    %393 = vector.broadcast %11 : vector<1x16xf32> to vector<2x16xf32>
    %394 = arith.addf %392, %393 : vector<2x16xf32>
    %395 = arith.addf %394, %367 : vector<2x16xf32>
    %396 = math.tanh %395 : vector<2x16xf32>
    %397 = vector.broadcast %14 : vector<1x16xf32> to vector<2x16xf32>
    %398 = arith.mulf %396, %397 : vector<2x16xf32>
    %cst_120 = arith.constant dense<0.000000e+00> : vector<2xf32>
    %399 = vector.multi_reduction <add>, %398, %cst_120 [1] : vector<2x16xf32> to vector<2xf32>
    %400 = vector.shape_cast %399 : vector<2xf32> to vector<2x1xf32>
    %401 = vector.broadcast %15 : vector<1x1xf32> to vector<2x1xf32>
    %402 = arith.addf %400, %401 : vector<2x1xf32>
    %403 = arith.maximumf %379, %402 : vector<2x1xf32>
    %404 = arith.subf %402, %403 : vector<2x1xf32>
    %405 = math.exp %404 : vector<2x1xf32>
    %406 = vector.broadcast %403 : vector<2x1xf32> to vector<2x16xf32>
    %407 = arith.subf %377, %406 : vector<2x16xf32>
    %408 = math.exp %407 : vector<2x16xf32>
    %cst_121 = arith.constant dense<0.000000e+00> : vector<2xf32>
    %409 = vector.multi_reduction <add>, %408, %cst_121 [1] : vector<2x16xf32> to vector<2xf32>
    %410 = vector.shape_cast %409 : vector<2xf32> to vector<2x1xf32>
    %411 = arith.addf %410, %405 : vector<2x1xf32>
    %412 = tpu.reciprocal %411 {approx = true} : vector<2x1xf32> -> vector<2x1xf32>
    %413 = arith.mulf %405, %412 : vector<2x1xf32>
    %414 = vector.broadcast %413 : vector<2x1xf32> to vector<2x32xf32>
    %415 = arith.mulf %414, %364 : vector<2x32xf32>
    %cst_122 = arith.constant 1.000000e+00 : f32
    %416 = vector.broadcast %cst_122 : f32 to vector<2x1xf32>
    %417 = arith.subf %416, %413 : vector<2x1xf32>
    %418 = vector.broadcast %417 : vector<2x1xf32> to vector<2x32xf32>
    %419 = arith.mulf %418, %391 : vector<2x32xf32>
    %420 = arith.addf %415, %419 : vector<2x32xf32>
    %421 = arith.addf %420, %363 : vector<2x32xf32>
    %c0_123 = arith.constant 0 : index
    %422 = arith.index_cast %c3_i32 : i32 to index
    %c0_124 = arith.constant 0 : index
    %c0_125 = arith.constant 0 : index
    %423 = vector.load %arg14[%c0_123, %422, %c0_124, %c0_125] : memref<1x4x2x32xf32, #tpu.memory_space<vmem>>, vector<1x1x2x32xf32>
    %424 = vector.shape_cast %423 : vector<1x1x2x32xf32> to vector<2x32xf32>
    %425 = vector.shape_cast %421 : vector<2x32xf32> to vector<1x1x2x32xf32>
    tpu.vector_store %arg14[%c0_123, %422, %c0_124, %c0_125], %425 {strides = array<i32>} : memref<1x4x2x32xf32, #tpu.memory_space<vmem>>, vector<1x1x2x32xf32>,
    %c4_i32 = arith.constant 4 : i32
    %c0_126 = arith.constant 0 : index
    %c0_127 = arith.constant 0 : index
    %426 = vector.load %arg15[%c0_126, %c0_127] : memref<2x32xf32, #tpu.memory_space<vmem>>, vector<2x32xf32>
    tpu.vector_store %arg15[%c0_126, %c0_127], %363 {strides = array<i32>} : memref<2x32xf32, #tpu.memory_space<vmem>>, vector<2x32xf32>,
    %c0_128 = arith.constant 0 : index
    %c0_129 = arith.constant 0 : index
    %427 = vector.load %arg16[%c0_128, %c0_129] : memref<2x32xf32, #tpu.memory_space<vmem>>, vector<2x32xf32>
    tpu.vector_store %arg16[%c0_128, %c0_129], %361 {strides = array<i32>} : memref<2x32xf32, #tpu.memory_space<vmem>>, vector<2x32xf32>,
    return
  }
  func.func @transform_0(%arg0: i32, %arg1: i32) -> (i32, i32, i32, i32) {
    %c0_i32 = arith.constant 0 : i32
    %c0_i32_0 = arith.constant 0 : i32
    %c0_i32_1 = arith.constant 0 : i32
    return %arg0, %arg1, %c0_i32, %c0_i32_0 : i32, i32, i32, i32
  }
  func.func @transform_1(%arg0: i32, %arg1: i32) -> (i32, i32, i32, i32) {
    %c0_i32 = arith.constant 0 : i32
    %c0_i32_0 = arith.constant 0 : i32
    %c0_i32_1 = arith.constant 0 : i32
    %c0_i32_2 = arith.constant 0 : i32
    return %arg0, %c0_i32, %c0_i32_0, %c0_i32_1 : i32, i32, i32, i32
  }
  func.func @transform_2(%arg0: i32, %arg1: i32) -> (i32, i32, i32, i32) {
    %c0_i32 = arith.constant 0 : i32
    %c0_i32_0 = arith.constant 0 : i32
    %c0_i32_1 = arith.constant 0 : i32
    %c0_i32_2 = arith.constant 0 : i32
    return %arg0, %c0_i32, %c0_i32_0, %c0_i32_1 : i32, i32, i32, i32
  }
  func.func @transform_3(%arg0: i32, %arg1: i32) -> (i32, i32) {
    %c0_i32 = arith.constant 0 : i32
    %c0_i32_0 = arith.constant 0 : i32
    %c0_i32_1 = arith.constant 0 : i32
    return %c0_i32, %c0_i32_0 : i32, i32
  }
  func.func @transform_4(%arg0: i32, %arg1: i32) -> (i32, i32) {
    %c0_i32 = arith.constant 0 : i32
    %c0_i32_0 = arith.constant 0 : i32
    %c0_i32_1 = arith.constant 0 : i32
    return %c0_i32, %c0_i32_0 : i32, i32
  }
  func.func @transform_5(%arg0: i32, %arg1: i32) -> (i32, i32) {
    %c0_i32 = arith.constant 0 : i32
    %c0_i32_0 = arith.constant 0 : i32
    %c0_i32_1 = arith.constant 0 : i32
    return %c0_i32, %c0_i32_0 : i32, i32
  }
  func.func @transform_6(%arg0: i32, %arg1: i32) -> (i32, i32) {
    %c0_i32 = arith.constant 0 : i32
    %c0_i32_0 = arith.constant 0 : i32
    %c0_i32_1 = arith.constant 0 : i32
    return %c0_i32, %c0_i32_0 : i32, i32
  }
  func.func @transform_7(%arg0: i32, %arg1: i32) -> (i32, i32) {
    %c0_i32 = arith.constant 0 : i32
    %c0_i32_0 = arith.constant 0 : i32
    %c0_i32_1 = arith.constant 0 : i32
    return %c0_i32, %c0_i32_0 : i32, i32
  }
  func.func @transform_8(%arg0: i32, %arg1: i32) -> (i32, i32) {
    %c0_i32 = arith.constant 0 : i32
    %c0_i32_0 = arith.constant 0 : i32
    %c0_i32_1 = arith.constant 0 : i32
    return %c0_i32, %c0_i32_0 : i32, i32
  }
  func.func @transform_9(%arg0: i32, %arg1: i32) -> (i32, i32) {
    %c0_i32 = arith.constant 0 : i32
    %c0_i32_0 = arith.constant 0 : i32
    %c0_i32_1 = arith.constant 0 : i32
    return %c0_i32, %c0_i32_0 : i32, i32
  }
  func.func @transform_10(%arg0: i32, %arg1: i32) -> (i32, i32) {
    %c0_i32 = arith.constant 0 : i32
    %c0_i32_0 = arith.constant 0 : i32
    %c0_i32_1 = arith.constant 0 : i32
    return %c0_i32, %c0_i32_0 : i32, i32
  }
  func.func @transform_11(%arg0: i32, %arg1: i32) -> (i32, i32) {
    %c0_i32 = arith.constant 0 : i32
    %c0_i32_0 = arith.constant 0 : i32
    %c0_i32_1 = arith.constant 0 : i32
    return %c0_i32, %c0_i32_0 : i32, i32
  }
  func.func @transform_12(%arg0: i32, %arg1: i32) -> (i32, i32, i32, i32) {
    %c0_i32 = arith.constant 0 : i32
    %c0_i32_0 = arith.constant 0 : i32
    %c0_i32_1 = arith.constant 0 : i32
    return %arg0, %arg1, %c0_i32, %c0_i32_0 : i32, i32, i32, i32
  }
}

module attributes {stable_mosaic.version = 11 : i64} {
  func.func @decoder_chunk_kernel(%arg0: i32, %arg1: i32, %arg2: memref<1x4x2x160xf32, #tpu.memory_space<vmem>>, %arg3: memref<1x2x16x32xf32, #tpu.memory_space<vmem>>, %arg4: memref<1x2x16x16xf32, #tpu.memory_space<vmem>>, %arg5: memref<32x160xf32, #tpu.memory_space<vmem>>, %arg6: memref<32x16xf32, #tpu.memory_space<vmem>>, %arg7: memref<1x16xf32, #tpu.memory_space<vmem>>, %arg8: memref<32x16xf32, #tpu.memory_space<vmem>>, %arg9: memref<1x16xf32, #tpu.memory_space<vmem>>, %arg10: memref<1x16xf32, #tpu.memory_space<vmem>>, %arg11: memref<1x1xf32, #tpu.memory_space<vmem>>, %arg12: memref<1x16xf32, #tpu.memory_space<vmem>>, %arg13: memref<1x1xf32, #tpu.memory_space<vmem>>, %arg14: memref<1x4x2x32xf32, #tpu.memory_space<vmem>>, %arg15: memref<2x32xf32, #tpu.memory_space<vmem>>, %arg16: memref<2x32xf32, #tpu.memory_space<vmem>>) attributes {dimension_semantics = [#tpu.dimension_semantics<parallel>, #tpu.dimension_semantics<arbitrary>], iteration_bounds = array<i64: 2, 2>, scalar_prefetch = 0 : i64, scratch_operands = 2 : i64, tpu.core_type = #tpu.core_type<tc>, window_params = [{transform_indices = @transform_0, window_bounds = array<i64: 1, 4, 2, 160>}, {transform_indices = @transform_1, window_bounds = array<i64: 1, 2, 16, 32>}, {transform_indices = @transform_2, window_bounds = array<i64: 1, 2, 16, 16>}, {pipeline_mode = #tpu.pipeline_mode<synchronous>, transform_indices = @transform_3, window_bounds = array<i64: 32, 160>}, {pipeline_mode = #tpu.pipeline_mode<synchronous>, transform_indices = @transform_4, window_bounds = array<i64: 32, 16>}, {pipeline_mode = #tpu.pipeline_mode<synchronous>, transform_indices = @transform_5, window_bounds = array<i64: 1, 16>}, {pipeline_mode = #tpu.pipeline_mode<synchronous>, transform_indices = @transform_6, window_bounds = array<i64: 32, 16>}, {pipeline_mode = #tpu.pipeline_mode<synchronous>, transform_indices = @transform_7, window_bounds = array<i64: 1, 16>}, {pipeline_mode = #tpu.pipeline_mode<synchronous>, transform_indices = @transform_8, window_bounds = array<i64: 1, 16>}, {pipeline_mode = #tpu.pipeline_mode<synchronous>, transform_indices = @transform_9, window_bounds = array<i64: 1, 1>}, {pipeline_mode = #tpu.pipeline_mode<synchronous>, transform_indices = @transform_10, window_bounds = array<i64: 1, 16>}, {pipeline_mode = #tpu.pipeline_mode<synchronous>, transform_indices = @transform_11, window_bounds = array<i64: 1, 1>}, {transform_indices = @transform_12, window_bounds = array<i64: 1, 4, 2, 32>}]} {
    %c0_i32 = arith.constant 0 : i32
    %0 = arith.cmpi eq, %arg1, %c0_i32 : i32
    %1 = arith.extui %0 : i1 to i32
    %c0_i32_0 = arith.constant 0 : i32
    %2 = arith.cmpi ne, %1, %c0_i32_0 : i32
    scf.if %2 {
      %cst_130 = arith.constant 0.000000e+00 : f32
      %428 = vector.broadcast %cst_130 : f32 to vector<2x32xf32>
      %c0_131 = arith.constant 0 : index
      %c0_132 = arith.constant 0 : index
      %429 = vector.load %arg15[%c0_131, %c0_132] : memref<2x32xf32, #tpu.memory_space<vmem>>, vector<2x32xf32>
      tpu.vector_store %arg15[%c0_131, %c0_132], %428 {strides = array<i32>} : memref<2x32xf32, #tpu.memory_space<vmem>>, vector<2x32xf32>,
      %cst_133 = arith.constant 0.000000e+00 : f32
      %430 = vector.broadcast %cst_133 : f32 to vector<2x32xf32>
      %c0_134 = arith.constant 0 : index
      %c0_135 = arith.constant 0 : index
      %431 = vector.load %arg16[%c0_134, %c0_135] : memref<2x32xf32, #tpu.memory_space<vmem>>, vector<2x32xf32>
      tpu.vector_store %arg16[%c0_134, %c0_135], %430 {strides = array<i32>} : memref<2x32xf32, #tpu.memory_space<vmem>>, vector<2x32xf32>,
    } else {
    }
    %c0 = arith.constant 0 : index
    %c0_1 = arith.constant 0 : index
    %c0_2 = arith.constant 0 : index
    %c0_3 = arith.constant 0 : index
    %3 = vector.load %arg3[%c0, %c0_1, %c0_2, %c0_3] : memref<1x2x16x32xf32, #tpu.memory_space<vmem>>, vector<1x2x16x32xf32>
    %4 = vector.shape_cast %3 : vector<1x2x16x32xf32> to vector<2x16x32xf32>
    %c0_4 = arith.constant 0 : index
    %c0_5 = arith.constant 0 : index
    %c0_6 = arith.constant 0 : index
    %c0_7 = arith.constant 0 : index
    %5 = vector.load %arg4[%c0_4, %c0_5, %c0_6, %c0_7] : memref<1x2x16x16xf32, #tpu.memory_space<vmem>>, vector<1x2x16x16xf32>
    %6 = vector.shape_cast %5 : vector<1x2x16x16xf32> to vector<2x16x16xf32>
    %c0_8 = arith.constant 0 : index
    %c0_9 = arith.constant 0 : index
    %7 = vector.load %arg5[%c0_8, %c0_9] : memref<32x160xf32, #tpu.memory_space<vmem>>, vector<32x160xf32>
    %c0_10 = arith.constant 0 : index
    %c0_11 = arith.constant 0 : index
    %8 = vector.load %arg6[%c0_10, %c0_11] : memref<32x16xf32, #tpu.memory_space<vmem>>, vector<32x16xf32>
    %c0_12 = arith.constant 0 : index
    %c0_13 = arith.constant 0 : index
    %9 = vector.load %arg7[%c0_12, %c0_13] : memref<1x16xf32, #tpu.memory_space<vmem>>, vector<1x16xf32>
    %c0_14 = arith.constant 0 : index
    %c0_15 = arith.constant 0 : index
    %10 = vector.load %arg8[%c0_14, %c0_15] : memref<32x16xf32, #tpu.memory_space<vmem>>, vector<32x16xf32>
    %c0_16 = arith.constant 0 : index
    %c0_17 = arith.constant 0 : index
    %11 = vector.load %arg9[%c0_16, %c0_17] : memref<1x16xf32, #tpu.memory_space<vmem>>, vector<1x16xf32>
    %c0_18 = arith.constant 0 : index
    %c0_19 = arith.constant 0 : index
    %12 = vector.load %arg10[%c0_18, %c0_19] : memref<1x16xf32, #tpu.memory_space<vmem>>, vector<1x16xf32>
    %c0_20 = arith.constant 0 : index
    %c0_21 = arith.constant 0 : index
    %13 = vector.load %arg11[%c0_20, %c0_21] : memref<1x1xf32, #tpu.memory_space<vmem>>, vector<1x1xf32>
    %c0_22 = arith.constant 0 : index
    %c0_23 = arith.constant 0 : index
    %14 = vector.load %arg12[%c0_22, %c0_23] : memref<1x16xf32, #tpu.memory_space<vmem>>, vector<1x16xf32>
    %c0_24 = arith.constant 0 : index
    %c0_25 = arith.constant 0 : index
    %15 = vector.load %arg13[%c0_24, %c0_25] : memref<1x1xf32, #tpu.memory_space<vmem>>, vector<1x1xf32>
    %c0_26 = arith.constant 0 : index
    %c0_27 = arith.constant 0 : index
    %16 = vector.load %arg15[%c0_26, %c0_27] : memref<2x32xf32, #tpu.memory_space<vmem>>, vector<2x32xf32>
    %c0_28 = arith.constant 0 : index
    %c0_29 = arith.constant 0 : index
    %17 = vector.load %arg16[%c0_28, %c0_29] : memref<2x32xf32, #tpu.memory_space<vmem>>, vector<2x32xf32>
    %c0_i32_30 = arith.constant 0 : i32
    %c0_31 = arith.constant 0 : index
    %18 = arith.index_cast %c0_i32_30 : i32 to index
    %c0_32 = arith.constant 0 : index
    %c0_33 = arith.constant 0 : index
    %19 = vector.load %arg2[%c0_31, %18, %c0_32, %c0_33] : memref<1x4x2x160xf32, #tpu.memory_space<vmem>>, vector<1x1x2x160xf32>
    %20 = vector.shape_cast %19 : vector<1x1x2x160xf32> to vector<2x160xf32>
    %cst = arith.constant dense<0.000000e+00> : vector<2x160xf32>
    %21 = tpu.matmul %16, %7, %cst {dimension_numbers = #tpu.dot_dimension_numbers<[1], [0], [0], [1], [0, 0, 1, 1], [], []>} : vector<2x32xf32>, vector<32x160xf32>, vector<2x160xf32> -> vector<2x160xf32>
    %22 = arith.addf %20, %21 : vector<2x160xf32>
    %23 = vector.extract_strided_slice %22 {offsets = [0, 0], sizes = [2, 32], strides = [1, 1]} : vector<2x160xf32> to vector<2x32xf32>
    %cst_34 = arith.constant 0.000000e+00 : f32
    %24 = vector.broadcast %cst_34 : f32 to vector<2x32xf32>
    %25 = arith.subf %24, %23 : vector<2x32xf32>
    %26 = math.exp %25 : vector<2x32xf32>
    %cst_35 = arith.constant 1.000000e+00 : f32
    %27 = vector.broadcast %cst_35 : f32 to vector<2x32xf32>
    %28 = arith.addf %27, %26 : vector<2x32xf32>
    %29 = tpu.reciprocal %28 {approx = true} : vector<2x32xf32> -> vector<2x32xf32>
    %30 = vector.extract_strided_slice %22 {offsets = [0, 32], sizes = [2, 32], strides = [1, 1]} : vector<2x160xf32> to vector<2x32xf32>
    %cst_36 = arith.constant 0.000000e+00 : f32
    %31 = vector.broadcast %cst_36 : f32 to vector<2x32xf32>
    %32 = arith.subf %31, %30 : vector<2x32xf32>
    %33 = math.exp %32 : vector<2x32xf32>
    %cst_37 = arith.constant 1.000000e+00 : f32
    %34 = vector.broadcast %cst_37 : f32 to vector<2x32xf32>
    %35 = arith.addf %34, %33 : vector<2x32xf32>
    %36 = tpu.reciprocal %35 {approx = true} : vector<2x32xf32> -> vector<2x32xf32>
    %37 = vector.extract_strided_slice %22 {offsets = [0, 64], sizes = [2, 32], strides = [1, 1]} : vector<2x160xf32> to vector<2x32xf32>
    %38 = math.tanh %37 : vector<2x32xf32>
    %39 = vector.extract_strided_slice %22 {offsets = [0, 96], sizes = [2, 32], strides = [1, 1]} : vector<2x160xf32> to vector<2x32xf32>
    %cst_38 = arith.constant 0.000000e+00 : f32
    %40 = vector.broadcast %cst_38 : f32 to vector<2x32xf32>
    %41 = arith.subf %40, %39 : vector<2x32xf32>
    %42 = math.exp %41 : vector<2x32xf32>
    %cst_39 = arith.constant 1.000000e+00 : f32
    %43 = vector.broadcast %cst_39 : f32 to vector<2x32xf32>
    %44 = arith.addf %43, %42 : vector<2x32xf32>
    %45 = tpu.reciprocal %44 {approx = true} : vector<2x32xf32> -> vector<2x32xf32>
    %46 = vector.extract_strided_slice %22 {offsets = [0, 128], sizes = [2, 32], strides = [1, 1]} : vector<2x160xf32> to vector<2x32xf32>
    %cst_40 = arith.constant 0.000000e+00 : f32
    %47 = vector.broadcast %cst_40 : f32 to vector<2x32xf32>
    %48 = arith.subf %47, %46 : vector<2x32xf32>
    %49 = math.exp %48 : vector<2x32xf32>
    %cst_41 = arith.constant 1.000000e+00 : f32
    %50 = vector.broadcast %cst_41 : f32 to vector<2x32xf32>
    %51 = arith.addf %50, %49 : vector<2x32xf32>
    %52 = tpu.reciprocal %51 {approx = true} : vector<2x32xf32> -> vector<2x32xf32>
    %53 = arith.mulf %36, %17 : vector<2x32xf32>
    %54 = arith.mulf %29, %38 : vector<2x32xf32>
    %55 = arith.addf %53, %54 : vector<2x32xf32>
    %56 = math.tanh %55 : vector<2x32xf32>
    %57 = arith.mulf %45, %56 : vector<2x32xf32>
    %58 = arith.mulf %52, %56 : vector<2x32xf32>
    %cst_42 = arith.constant dense<0.000000e+00> : vector<2x16xf32>
    %59 = tpu.matmul %57, %8, %cst_42 {dimension_numbers = #tpu.dot_dimension_numbers<[1], [0], [0], [1], [0, 0, 1, 1], [], []>} : vector<2x32xf32>, vector<32x16xf32>, vector<2x16xf32> -> vector<2x16xf32>
    %60 = vector.broadcast %9 : vector<1x16xf32> to vector<2x16xf32>
    %61 = arith.addf %59, %60 : vector<2x16xf32>
    %62 = vector.shape_cast %61 : vector<2x16xf32> to vector<2x1x16xf32>
    %63 = vector.broadcast %62 : vector<2x1x16xf32> to vector<2x16x16xf32>
    %64 = arith.addf %6, %63 : vector<2x16x16xf32>
    %65 = math.tanh %64 : vector<2x16x16xf32>
    %66 = vector.shape_cast %12 : vector<1x16xf32> to vector<1x1x16xf32>
    %67 = vector.broadcast %66 : vector<1x1x16xf32> to vector<2x16x16xf32>
    %68 = arith.mulf %65, %67 : vector<2x16x16xf32>
    %cst_43 = arith.constant dense<0.000000e+00> : vector<2x16xf32>
    %69 = vector.multi_reduction <add>, %68, %cst_43 [2] : vector<2x16x16xf32> to vector<2x16xf32>
    %70 = vector.broadcast %13 : vector<1x1xf32> to vector<2x16xf32>
    %71 = arith.addf %69, %70 : vector<2x16xf32>
    %cst_44 = arith.constant dense<0xFF800000> : vector<2xf32>
    %72 = vector.multi_reduction <maximumf>, %71, %cst_44 [1] : vector<2x16xf32> to vector<2xf32>
    %73 = vector.shape_cast %72 : vector<2xf32> to vector<2x1xf32>
    %74 = vector.broadcast %73 : vector<2x1xf32> to vector<2x16xf32>
    %75 = arith.subf %71, %74 : vector<2x16xf32>
    %76 = math.exp %75 : vector<2x16xf32>
    %cst_45 = arith.constant dense<0.000000e+00> : vector<2xf32>
    %77 = vector.multi_reduction <add>, %76, %cst_45 [1] : vector<2x16xf32> to vector<2xf32>
    %78 = vector.shape_cast %77 : vector<2xf32> to vector<2x1xf32>
    %79 = tpu.reciprocal %78 {approx = true} : vector<2x1xf32> -> vector<2x1xf32>
    %80 = vector.broadcast %79 : vector<2x1xf32> to vector<2x16xf32>
    %81 = arith.mulf %76, %80 : vector<2x16xf32>
    %82 = vector.shape_cast %81 : vector<2x16xf32> to vector<2x16x1xf32>
    %83 = vector.broadcast %82 : vector<2x16x1xf32> to vector<2x16x32xf32>
    %84 = arith.mulf %4, %83 : vector<2x16x32xf32>
    %cst_46 = arith.constant dense<0.000000e+00> : vector<2x32xf32>
    %85 = vector.multi_reduction <add>, %84, %cst_46 [1] : vector<2x16x32xf32> to vector<2x32xf32>
    %cst_47 = arith.constant dense<0.000000e+00> : vector<2x16xf32>
    %86 = tpu.matmul %58, %10, %cst_47 {dimension_numbers = #tpu.dot_dimension_numbers<[1], [0], [0], [1], [0, 0, 1, 1], [], []>} : vector<2x32xf32>, vector<32x16xf32>, vector<2x16xf32> -> vector<2x16xf32>
    %87 = vector.broadcast %11 : vector<1x16xf32> to vector<2x16xf32>
    %88 = arith.addf %86, %87 : vector<2x16xf32>
    %89 = arith.addf %88, %61 : vector<2x16xf32>
    %90 = math.tanh %89 : vector<2x16xf32>
    %91 = vector.broadcast %14 : vector<1x16xf32> to vector<2x16xf32>
    %92 = arith.mulf %90, %91 : vector<2x16xf32>
    %cst_48 = arith.constant dense<0.000000e+00> : vector<2xf32>
    %93 = vector.multi_reduction <add>, %92, %cst_48 [1] : vector<2x16xf32> to vector<2xf32>
    %94 = vector.shape_cast %93 : vector<2xf32> to vector<2x1xf32>
    %95 = vector.broadcast %15 : vector<1x1xf32> to vector<2x1xf32>
    %96 = arith.addf %94, %95 : vector<2x1xf32>
    %97 = arith.maximumf %73, %96 : vector<2x1xf32>
    %98 = arith.subf %96, %97 : vector<2x1xf32>
    %99 = math.exp %98 : vector<2x1xf32>
    %100 = vector.broadcast %97 : vector<2x1xf32> to vector<2x16xf32>
    %101 = arith.subf %71, %100 : vector<2x16xf32>
    %102 = math.exp %101 : vector<2x16xf32>
    %cst_49 = arith.constant dense<0.000000e+00> : vector<2xf32>
    %103 = vector.multi_reduction <add>, %102, %cst_49 [1] : vector<2x16xf32> to vector<2xf32>
    %104 = vector.shape_cast %103 : vector<2xf32> to vector<2x1xf32>
    %105 = arith.addf %104, %99 : vector<2x1xf32>
    %106 = tpu.reciprocal %105 {approx = true} : vector<2x1xf32> -> vector<2x1xf32>
    %107 = arith.mulf %99, %106 : vector<2x1xf32>
    %108 = vector.broadcast %107 : vector<2x1xf32> to vector<2x32xf32>
    %109 = arith.mulf %108, %58 : vector<2x32xf32>
    %cst_50 = arith.constant 1.000000e+00 : f32
    %110 = vector.broadcast %cst_50 : f32 to vector<2x1xf32>
    %111 = arith.subf %110, %107 : vector<2x1xf32>
    %112 = vector.broadcast %111 : vector<2x1xf32> to vector<2x32xf32>
    %113 = arith.mulf %112, %85 : vector<2x32xf32>
    %114 = arith.addf %109, %113 : vector<2x32xf32>
    %115 = arith.addf %114, %57 : vector<2x32xf32>
    %c0_51 = arith.constant 0 : index
    %116 = arith.index_cast %c0_i32_30 : i32 to index
    %c0_52 = arith.constant 0 : index
    %c0_53 = arith.constant 0 : index
    %117 = vector.load %arg14[%c0_51, %116, %c0_52, %c0_53] : memref<1x4x2x32xf32, #tpu.memory_space<vmem>>, vector<1x1x2x32xf32>
    %118 = vector.shape_cast %117 : vector<1x1x2x32xf32> to vector<2x32xf32>
    %119 = vector.shape_cast %115 : vector<2x32xf32> to vector<1x1x2x32xf32>
    tpu.vector_store %arg14[%c0_51, %116, %c0_52, %c0_53], %119 {strides = array<i32>} : memref<1x4x2x32xf32, #tpu.memory_space<vmem>>, vector<1x1x2x32xf32>,
    %c1_i32 = arith.constant 1 : i32
    %c0_54 = arith.constant 0 : index
    %120 = arith.index_cast %c1_i32 : i32 to index
    %c0_55 = arith.constant 0 : index
    %c0_56 = arith.constant 0 : index
    %121 = vector.load %arg2[%c0_54, %120, %c0_55, %c0_56] : memref<1x4x2x160xf32, #tpu.memory_space<vmem>>, vector<1x1x2x160xf32>
    %122 = vector.shape_cast %121 : vector<1x1x2x160xf32> to vector<2x160xf32>
    %cst_57 = arith.constant dense<0.000000e+00> : vector<2x160xf32>
    %123 = tpu.matmul %57, %7, %cst_57 {dimension_numbers = #tpu.dot_dimension_numbers<[1], [0], [0], [1], [0, 0, 1, 1], [], []>} : vector<2x32xf32>, vector<32x160xf32>, vector<2x160xf32> -> vector<2x160xf32>
    %124 = arith.addf %122, %123 : vector<2x160xf32>
    %125 = vector.extract_strided_slice %124 {offsets = [0, 0], sizes = [2, 32], strides = [1, 1]} : vector<2x160xf32> to vector<2x32xf32>
    %cst_58 = arith.constant 0.000000e+00 : f32
    %126 = vector.broadcast %cst_58 : f32 to vector<2x32xf32>
    %127 = arith.subf %126, %125 : vector<2x32xf32>
    %128 = math.exp %127 : vector<2x32xf32>
    %cst_59 = arith.constant 1.000000e+00 : f32
    %129 = vector.broadcast %cst_59 : f32 to vector<2x32xf32>
    %130 = arith.addf %129, %128 : vector<2x32xf32>
    %131 = tpu.reciprocal %130 {approx = true} : vector<2x32xf32> -> vector<2x32xf32>
    %132 = vector.extract_strided_slice %124 {offsets = [0, 32], sizes = [2, 32], strides = [1, 1]} : vector<2x160xf32> to vector<2x32xf32>
    %cst_60 = arith.constant 0.000000e+00 : f32
    %133 = vector.broadcast %cst_60 : f32 to vector<2x32xf32>
    %134 = arith.subf %133, %132 : vector<2x32xf32>
    %135 = math.exp %134 : vector<2x32xf32>
    %cst_61 = arith.constant 1.000000e+00 : f32
    %136 = vector.broadcast %cst_61 : f32 to vector<2x32xf32>
    %137 = arith.addf %136, %135 : vector<2x32xf32>
    %138 = tpu.reciprocal %137 {approx = true} : vector<2x32xf32> -> vector<2x32xf32>
    %139 = vector.extract_strided_slice %124 {offsets = [0, 64], sizes = [2, 32], strides = [1, 1]} : vector<2x160xf32> to vector<2x32xf32>
    %140 = math.tanh %139 : vector<2x32xf32>
    %141 = vector.extract_strided_slice %124 {offsets = [0, 96], sizes = [2, 32], strides = [1, 1]} : vector<2x160xf32> to vector<2x32xf32>
    %cst_62 = arith.constant 0.000000e+00 : f32
    %142 = vector.broadcast %cst_62 : f32 to vector<2x32xf32>
    %143 = arith.subf %142, %141 : vector<2x32xf32>
    %144 = math.exp %143 : vector<2x32xf32>
    %cst_63 = arith.constant 1.000000e+00 : f32
    %145 = vector.broadcast %cst_63 : f32 to vector<2x32xf32>
    %146 = arith.addf %145, %144 : vector<2x32xf32>
    %147 = tpu.reciprocal %146 {approx = true} : vector<2x32xf32> -> vector<2x32xf32>
    %148 = vector.extract_strided_slice %124 {offsets = [0, 128], sizes = [2, 32], strides = [1, 1]} : vector<2x160xf32> to vector<2x32xf32>
    %cst_64 = arith.constant 0.000000e+00 : f32
    %149 = vector.broadcast %cst_64 : f32 to vector<2x32xf32>
    %150 = arith.subf %149, %148 : vector<2x32xf32>
    %151 = math.exp %150 : vector<2x32xf32>
    %cst_65 = arith.constant 1.000000e+00 : f32
    %152 = vector.broadcast %cst_65 : f32 to vector<2x32xf32>
    %153 = arith.addf %152, %151 : vector<2x32xf32>
    %154 = tpu.reciprocal %153 {approx = true} : vector<2x32xf32> -> vector<2x32xf32>
    %155 = arith.mulf %138, %55 : vector<2x32xf32>
    %156 = arith.mulf %131, %140 : vector<2x32xf32>
    %157 = arith.addf %155, %156 : vector<2x32xf32>
    %158 = math.tanh %157 : vector<2x32xf32>
    %159 = arith.mulf %147, %158 : vector<2x32xf32>
    %160 = arith.mulf %154, %158 : vector<2x32xf32>
    %cst_66 = arith.constant dense<0.000000e+00> : vector<2x16xf32>
    %161 = tpu.matmul %159, %8, %cst_66 {dimension_numbers = #tpu.dot_dimension_numbers<[1], [0], [0], [1], [0, 0, 1, 1], [], []>} : vector<2x32xf32>, vector<32x16xf32>, vector<2x16xf32> -> vector<2x16xf32>
    %162 = vector.broadcast %9 : vector<1x16xf32> to vector<2x16xf32>
    %163 = arith.addf %161, %162 : vector<2x16xf32>
    %164 = vector.shape_cast %163 : vector<2x16xf32> to vector<2x1x16xf32>
    %165 = vector.broadcast %164 : vector<2x1x16xf32> to vector<2x16x16xf32>
    %166 = arith.addf %6, %165 : vector<2x16x16xf32>
    %167 = math.tanh %166 : vector<2x16x16xf32>
    %168 = vector.shape_cast %12 : vector<1x16xf32> to vector<1x1x16xf32>
    %169 = vector.broadcast %168 : vector<1x1x16xf32> to vector<2x16x16xf32>
    %170 = arith.mulf %167, %169 : vector<2x16x16xf32>
    %cst_67 = arith.constant dense<0.000000e+00> : vector<2x16xf32>
    %171 = vector.multi_reduction <add>, %170, %cst_67 [2] : vector<2x16x16xf32> to vector<2x16xf32>
    %172 = vector.broadcast %13 : vector<1x1xf32> to vector<2x16xf32>
    %173 = arith.addf %171, %172 : vector<2x16xf32>
    %cst_68 = arith.constant dense<0xFF800000> : vector<2xf32>
    %174 = vector.multi_reduction <maximumf>, %173, %cst_68 [1] : vector<2x16xf32> to vector<2xf32>
    %175 = vector.shape_cast %174 : vector<2xf32> to vector<2x1xf32>
    %176 = vector.broadcast %175 : vector<2x1xf32> to vector<2x16xf32>
    %177 = arith.subf %173, %176 : vector<2x16xf32>
    %178 = math.exp %177 : vector<2x16xf32>
    %cst_69 = arith.constant dense<0.000000e+00> : vector<2xf32>
    %179 = vector.multi_reduction <add>, %178, %cst_69 [1] : vector<2x16xf32> to vector<2xf32>
    %180 = vector.shape_cast %179 : vector<2xf32> to vector<2x1xf32>
    %181 = tpu.reciprocal %180 {approx = true} : vector<2x1xf32> -> vector<2x1xf32>
    %182 = vector.broadcast %181 : vector<2x1xf32> to vector<2x16xf32>
    %183 = arith.mulf %178, %182 : vector<2x16xf32>
    %184 = vector.shape_cast %183 : vector<2x16xf32> to vector<2x16x1xf32>
    %185 = vector.broadcast %184 : vector<2x16x1xf32> to vector<2x16x32xf32>
    %186 = arith.mulf %4, %185 : vector<2x16x32xf32>
    %cst_70 = arith.constant dense<0.000000e+00> : vector<2x32xf32>
    %187 = vector.multi_reduction <add>, %186, %cst_70 [1] : vector<2x16x32xf32> to vector<2x32xf32>
    %cst_71 = arith.constant dense<0.000000e+00> : vector<2x16xf32>
    %188 = tpu.matmul %160, %10, %cst_71 {dimension_numbers = #tpu.dot_dimension_numbers<[1], [0], [0], [1], [0, 0, 1, 1], [], []>} : vector<2x32xf32>, vector<32x16xf32>, vector<2x16xf32> -> vector<2x16xf32>
    %189 = vector.broadcast %11 : vector<1x16xf32> to vector<2x16xf32>
    %190 = arith.addf %188, %189 : vector<2x16xf32>
    %191 = arith.addf %190, %163 : vector<2x16xf32>
    %192 = math.tanh %191 : vector<2x16xf32>
    %193 = vector.broadcast %14 : vector<1x16xf32> to vector<2x16xf32>
    %194 = arith.mulf %192, %193 : vector<2x16xf32>
    %cst_72 = arith.constant dense<0.000000e+00> : vector<2xf32>
    %195 = vector.multi_reduction <add>, %194, %cst_72 [1] : vector<2x16xf32> to vector<2xf32>
    %196 = vector.shape_cast %195 : vector<2xf32> to vector<2x1xf32>
    %197 = vector.broadcast %15 : vector<1x1xf32> to vector<2x1xf32>
    %198 = arith.addf %196, %197 : vector<2x1xf32>
    %199 = arith.maximumf %175, %198 : vector<2x1xf32>
    %200 = arith.subf %198, %199 : vector<2x1xf32>
    %201 = math.exp %200 : vector<2x1xf32>
    %202 = vector.broadcast %199 : vector<2x1xf32> to vector<2x16xf32>
    %203 = arith.subf %173, %202 : vector<2x16xf32>
    %204 = math.exp %203 : vector<2x16xf32>
    %cst_73 = arith.constant dense<0.000000e+00> : vector<2xf32>
    %205 = vector.multi_reduction <add>, %204, %cst_73 [1] : vector<2x16xf32> to vector<2xf32>
    %206 = vector.shape_cast %205 : vector<2xf32> to vector<2x1xf32>
    %207 = arith.addf %206, %201 : vector<2x1xf32>
    %208 = tpu.reciprocal %207 {approx = true} : vector<2x1xf32> -> vector<2x1xf32>
    %209 = arith.mulf %201, %208 : vector<2x1xf32>
    %210 = vector.broadcast %209 : vector<2x1xf32> to vector<2x32xf32>
    %211 = arith.mulf %210, %160 : vector<2x32xf32>
    %cst_74 = arith.constant 1.000000e+00 : f32
    %212 = vector.broadcast %cst_74 : f32 to vector<2x1xf32>
    %213 = arith.subf %212, %209 : vector<2x1xf32>
    %214 = vector.broadcast %213 : vector<2x1xf32> to vector<2x32xf32>
    %215 = arith.mulf %214, %187 : vector<2x32xf32>
    %216 = arith.addf %211, %215 : vector<2x32xf32>
    %217 = arith.addf %216, %159 : vector<2x32xf32>
    %c0_75 = arith.constant 0 : index
    %218 = arith.index_cast %c1_i32 : i32 to index
    %c0_76 = arith.constant 0 : index
    %c0_77 = arith.constant 0 : index
    %219 = vector.load %arg14[%c0_75, %218, %c0_76, %c0_77] : memref<1x4x2x32xf32, #tpu.memory_space<vmem>>, vector<1x1x2x32xf32>
    %220 = vector.shape_cast %219 : vector<1x1x2x32xf32> to vector<2x32xf32>
    %221 = vector.shape_cast %217 : vector<2x32xf32> to vector<1x1x2x32xf32>
    tpu.vector_store %arg14[%c0_75, %218, %c0_76, %c0_77], %221 {strides = array<i32>} : memref<1x4x2x32xf32, #tpu.memory_space<vmem>>, vector<1x1x2x32xf32>,
    %c2_i32 = arith.constant 2 : i32
    %c0_78 = arith.constant 0 : index
    %222 = arith.index_cast %c2_i32 : i32 to index
    %c0_79 = arith.constant 0 : index
    %c0_80 = arith.constant 0 : index
    %223 = vector.load %arg2[%c0_78, %222, %c0_79, %c0_80] : memref<1x4x2x160xf32, #tpu.memory_space<vmem>>, vector<1x1x2x160xf32>
    %224 = vector.shape_cast %223 : vector<1x1x2x160xf32> to vector<2x160xf32>
    %cst_81 = arith.constant dense<0.000000e+00> : vector<2x160xf32>
    %225 = tpu.matmul %159, %7, %cst_81 {dimension_numbers = #tpu.dot_dimension_numbers<[1], [0], [0], [1], [0, 0, 1, 1], [], []>} : vector<2x32xf32>, vector<32x160xf32>, vector<2x160xf32> -> vector<2x160xf32>
    %226 = arith.addf %224, %225 : vector<2x160xf32>
    %227 = vector.extract_strided_slice %226 {offsets = [0, 0], sizes = [2, 32], strides = [1, 1]} : vector<2x160xf32> to vector<2x32xf32>
    %cst_82 = arith.constant 0.000000e+00 : f32
    %228 = vector.broadcast %cst_82 : f32 to vector<2x32xf32>
    %229 = arith.subf %228, %227 : vector<2x32xf32>
    %230 = math.exp %229 : vector<2x32xf32>
    %cst_83 = arith.constant 1.000000e+00 : f32
    %231 = vector.broadcast %cst_83 : f32 to vector<2x32xf32>
    %232 = arith.addf %231, %230 : vector<2x32xf32>
    %233 = tpu.reciprocal %232 {approx = true} : vector<2x32xf32> -> vector<2x32xf32>
    %234 = vector.extract_strided_slice %226 {offsets = [0, 32], sizes = [2, 32], strides = [1, 1]} : vector<2x160xf32> to vector<2x32xf32>
    %cst_84 = arith.constant 0.000000e+00 : f32
    %235 = vector.broadcast %cst_84 : f32 to vector<2x32xf32>
    %236 = arith.subf %235, %234 : vector<2x32xf32>
    %237 = math.exp %236 : vector<2x32xf32>
    %cst_85 = arith.constant 1.000000e+00 : f32
    %238 = vector.broadcast %cst_85 : f32 to vector<2x32xf32>
    %239 = arith.addf %238, %237 : vector<2x32xf32>
    %240 = tpu.reciprocal %239 {approx = true} : vector<2x32xf32> -> vector<2x32xf32>
    %241 = vector.extract_strided_slice %226 {offsets = [0, 64], sizes = [2, 32], strides = [1, 1]} : vector<2x160xf32> to vector<2x32xf32>
    %242 = math.tanh %241 : vector<2x32xf32>
    %243 = vector.extract_strided_slice %226 {offsets = [0, 96], sizes = [2, 32], strides = [1, 1]} : vector<2x160xf32> to vector<2x32xf32>
    %cst_86 = arith.constant 0.000000e+00 : f32
    %244 = vector.broadcast %cst_86 : f32 to vector<2x32xf32>
    %245 = arith.subf %244, %243 : vector<2x32xf32>
    %246 = math.exp %245 : vector<2x32xf32>
    %cst_87 = arith.constant 1.000000e+00 : f32
    %247 = vector.broadcast %cst_87 : f32 to vector<2x32xf32>
    %248 = arith.addf %247, %246 : vector<2x32xf32>
    %249 = tpu.reciprocal %248 {approx = true} : vector<2x32xf32> -> vector<2x32xf32>
    %250 = vector.extract_strided_slice %226 {offsets = [0, 128], sizes = [2, 32], strides = [1, 1]} : vector<2x160xf32> to vector<2x32xf32>
    %cst_88 = arith.constant 0.000000e+00 : f32
    %251 = vector.broadcast %cst_88 : f32 to vector<2x32xf32>
    %252 = arith.subf %251, %250 : vector<2x32xf32>
    %253 = math.exp %252 : vector<2x32xf32>
    %cst_89 = arith.constant 1.000000e+00 : f32
    %254 = vector.broadcast %cst_89 : f32 to vector<2x32xf32>
    %255 = arith.addf %254, %253 : vector<2x32xf32>
    %256 = tpu.reciprocal %255 {approx = true} : vector<2x32xf32> -> vector<2x32xf32>
    %257 = arith.mulf %240, %157 : vector<2x32xf32>
    %258 = arith.mulf %233, %242 : vector<2x32xf32>
    %259 = arith.addf %257, %258 : vector<2x32xf32>
    %260 = math.tanh %259 : vector<2x32xf32>
    %261 = arith.mulf %249, %260 : vector<2x32xf32>
    %262 = arith.mulf %256, %260 : vector<2x32xf32>
    %cst_90 = arith.constant dense<0.000000e+00> : vector<2x16xf32>
    %263 = tpu.matmul %261, %8, %cst_90 {dimension_numbers = #tpu.dot_dimension_numbers<[1], [0], [0], [1], [0, 0, 1, 1], [], []>} : vector<2x32xf32>, vector<32x16xf32>, vector<2x16xf32> -> vector<2x16xf32>
    %264 = vector.broadcast %9 : vector<1x16xf32> to vector<2x16xf32>
    %265 = arith.addf %263, %264 : vector<2x16xf32>
    %266 = vector.shape_cast %265 : vector<2x16xf32> to vector<2x1x16xf32>
    %267 = vector.broadcast %266 : vector<2x1x16xf32> to vector<2x16x16xf32>
    %268 = arith.addf %6, %267 : vector<2x16x16xf32>
    %269 = math.tanh %268 : vector<2x16x16xf32>
    %270 = vector.shape_cast %12 : vector<1x16xf32> to vector<1x1x16xf32>
    %271 = vector.broadcast %270 : vector<1x1x16xf32> to vector<2x16x16xf32>
    %272 = arith.mulf %269, %271 : vector<2x16x16xf32>
    %cst_91 = arith.constant dense<0.000000e+00> : vector<2x16xf32>
    %273 = vector.multi_reduction <add>, %272, %cst_91 [2] : vector<2x16x16xf32> to vector<2x16xf32>
    %274 = vector.broadcast %13 : vector<1x1xf32> to vector<2x16xf32>
    %275 = arith.addf %273, %274 : vector<2x16xf32>
    %cst_92 = arith.constant dense<0xFF800000> : vector<2xf32>
    %276 = vector.multi_reduction <maximumf>, %275, %cst_92 [1] : vector<2x16xf32> to vector<2xf32>
    %277 = vector.shape_cast %276 : vector<2xf32> to vector<2x1xf32>
    %278 = vector.broadcast %277 : vector<2x1xf32> to vector<2x16xf32>
    %279 = arith.subf %275, %278 : vector<2x16xf32>
    %280 = math.exp %279 : vector<2x16xf32>
    %cst_93 = arith.constant dense<0.000000e+00> : vector<2xf32>
    %281 = vector.multi_reduction <add>, %280, %cst_93 [1] : vector<2x16xf32> to vector<2xf32>
    %282 = vector.shape_cast %281 : vector<2xf32> to vector<2x1xf32>
    %283 = tpu.reciprocal %282 {approx = true} : vector<2x1xf32> -> vector<2x1xf32>
    %284 = vector.broadcast %283 : vector<2x1xf32> to vector<2x16xf32>
    %285 = arith.mulf %280, %284 : vector<2x16xf32>
    %286 = vector.shape_cast %285 : vector<2x16xf32> to vector<2x16x1xf32>
    %287 = vector.broadcast %286 : vector<2x16x1xf32> to vector<2x16x32xf32>
    %288 = arith.mulf %4, %287 : vector<2x16x32xf32>
    %cst_94 = arith.constant dense<0.000000e+00> : vector<2x32xf32>
    %289 = vector.multi_reduction <add>, %288, %cst_94 [1] : vector<2x16x32xf32> to vector<2x32xf32>
    %cst_95 = arith.constant dense<0.000000e+00> : vector<2x16xf32>
    %290 = tpu.matmul %262, %10, %cst_95 {dimension_numbers = #tpu.dot_dimension_numbers<[1], [0], [0], [1], [0, 0, 1, 1], [], []>} : vector<2x32xf32>, vector<32x16xf32>, vector<2x16xf32> -> vector<2x16xf32>
    %291 = vector.broadcast %11 : vector<1x16xf32> to vector<2x16xf32>
    %292 = arith.addf %290, %291 : vector<2x16xf32>
    %293 = arith.addf %292, %265 : vector<2x16xf32>
    %294 = math.tanh %293 : vector<2x16xf32>
    %295 = vector.broadcast %14 : vector<1x16xf32> to vector<2x16xf32>
    %296 = arith.mulf %294, %295 : vector<2x16xf32>
    %cst_96 = arith.constant dense<0.000000e+00> : vector<2xf32>
    %297 = vector.multi_reduction <add>, %296, %cst_96 [1] : vector<2x16xf32> to vector<2xf32>
    %298 = vector.shape_cast %297 : vector<2xf32> to vector<2x1xf32>
    %299 = vector.broadcast %15 : vector<1x1xf32> to vector<2x1xf32>
    %300 = arith.addf %298, %299 : vector<2x1xf32>
    %301 = arith.maximumf %277, %300 : vector<2x1xf32>
    %302 = arith.subf %300, %301 : vector<2x1xf32>
    %303 = math.exp %302 : vector<2x1xf32>
    %304 = vector.broadcast %301 : vector<2x1xf32> to vector<2x16xf32>
    %305 = arith.subf %275, %304 : vector<2x16xf32>
    %306 = math.exp %305 : vector<2x16xf32>
    %cst_97 = arith.constant dense<0.000000e+00> : vector<2xf32>
    %307 = vector.multi_reduction <add>, %306, %cst_97 [1] : vector<2x16xf32> to vector<2xf32>
    %308 = vector.shape_cast %307 : vector<2xf32> to vector<2x1xf32>
    %309 = arith.addf %308, %303 : vector<2x1xf32>
    %310 = tpu.reciprocal %309 {approx = true} : vector<2x1xf32> -> vector<2x1xf32>
    %311 = arith.mulf %303, %310 : vector<2x1xf32>
    %312 = vector.broadcast %311 : vector<2x1xf32> to vector<2x32xf32>
    %313 = arith.mulf %312, %262 : vector<2x32xf32>
    %cst_98 = arith.constant 1.000000e+00 : f32
    %314 = vector.broadcast %cst_98 : f32 to vector<2x1xf32>
    %315 = arith.subf %314, %311 : vector<2x1xf32>
    %316 = vector.broadcast %315 : vector<2x1xf32> to vector<2x32xf32>
    %317 = arith.mulf %316, %289 : vector<2x32xf32>
    %318 = arith.addf %313, %317 : vector<2x32xf32>
    %319 = arith.addf %318, %261 : vector<2x32xf32>
    %c0_99 = arith.constant 0 : index
    %320 = arith.index_cast %c2_i32 : i32 to index
    %c0_100 = arith.constant 0 : index
    %c0_101 = arith.constant 0 : index
    %321 = vector.load %arg14[%c0_99, %320, %c0_100, %c0_101] : memref<1x4x2x32xf32, #tpu.memory_space<vmem>>, vector<1x1x2x32xf32>
    %322 = vector.shape_cast %321 : vector<1x1x2x32xf32> to vector<2x32xf32>
    %323 = vector.shape_cast %319 : vector<2x32xf32> to vector<1x1x2x32xf32>
    tpu.vector_store %arg14[%c0_99, %320, %c0_100, %c0_101], %323 {strides = array<i32>} : memref<1x4x2x32xf32, #tpu.memory_space<vmem>>, vector<1x1x2x32xf32>,
    %c3_i32 = arith.constant 3 : i32
    %c0_102 = arith.constant 0 : index
    %324 = arith.index_cast %c3_i32 : i32 to index
    %c0_103 = arith.constant 0 : index
    %c0_104 = arith.constant 0 : index
    %325 = vector.load %arg2[%c0_102, %324, %c0_103, %c0_104] : memref<1x4x2x160xf32, #tpu.memory_space<vmem>>, vector<1x1x2x160xf32>
    %326 = vector.shape_cast %325 : vector<1x1x2x160xf32> to vector<2x160xf32>
    %cst_105 = arith.constant dense<0.000000e+00> : vector<2x160xf32>
    %327 = tpu.matmul %261, %7, %cst_105 {dimension_numbers = #tpu.dot_dimension_numbers<[1], [0], [0], [1], [0, 0, 1, 1], [], []>} : vector<2x32xf32>, vector<32x160xf32>, vector<2x160xf32> -> vector<2x160xf32>
    %328 = arith.addf %326, %327 : vector<2x160xf32>
    %329 = vector.extract_strided_slice %328 {offsets = [0, 0], sizes = [2, 32], strides = [1, 1]} : vector<2x160xf32> to vector<2x32xf32>
    %cst_106 = arith.constant 0.000000e+00 : f32
    %330 = vector.broadcast %cst_106 : f32 to vector<2x32xf32>
    %331 = arith.subf %330, %329 : vector<2x32xf32>
    %332 = math.exp %331 : vector<2x32xf32>
    %cst_107 = arith.constant 1.000000e+00 : f32
    %333 = vector.broadcast %cst_107 : f32 to vector<2x32xf32>
    %334 = arith.addf %333, %332 : vector<2x32xf32>
    %335 = tpu.reciprocal %334 {approx = true} : vector<2x32xf32> -> vector<2x32xf32>
    %336 = vector.extract_strided_slice %328 {offsets = [0, 32], sizes = [2, 32], strides = [1, 1]} : vector<2x160xf32> to vector<2x32xf32>
    %cst_108 = arith.constant 0.000000e+00 : f32
    %337 = vector.broadcast %cst_108 : f32 to vector<2x32xf32>
    %338 = arith.subf %337, %336 : vector<2x32xf32>
    %339 = math.exp %338 : vector<2x32xf32>
    %cst_109 = arith.constant 1.000000e+00 : f32
    %340 = vector.broadcast %cst_109 : f32 to vector<2x32xf32>
    %341 = arith.addf %340, %339 : vector<2x32xf32>
    %342 = tpu.reciprocal %341 {approx = true} : vector<2x32xf32> -> vector<2x32xf32>
    %343 = vector.extract_strided_slice %328 {offsets = [0, 64], sizes = [2, 32], strides = [1, 1]} : vector<2x160xf32> to vector<2x32xf32>
    %344 = math.tanh %343 : vector<2x32xf32>
    %345 = vector.extract_strided_slice %328 {offsets = [0, 96], sizes = [2, 32], strides = [1, 1]} : vector<2x160xf32> to vector<2x32xf32>
    %cst_110 = arith.constant 0.000000e+00 : f32
    %346 = vector.broadcast %cst_110 : f32 to vector<2x32xf32>
    %347 = arith.subf %346, %345 : vector<2x32xf32>
    %348 = math.exp %347 : vector<2x32xf32>
    %cst_111 = arith.constant 1.000000e+00 : f32
    %349 = vector.broadcast %cst_111 : f32 to vector<2x32xf32>
    %350 = arith.addf %349, %348 : vector<2x32xf32>
    %351 = tpu.reciprocal %350 {approx = true} : vector<2x32xf32> -> vector<2x32xf32>
    %352 = vector.extract_strided_slice %328 {offsets = [0, 128], sizes = [2, 32], strides = [1, 1]} : vector<2x160xf32> to vector<2x32xf32>
    %cst_112 = arith.constant 0.000000e+00 : f32
    %353 = vector.broadcast %cst_112 : f32 to vector<2x32xf32>
    %354 = arith.subf %353, %352 : vector<2x32xf32>
    %355 = math.exp %354 : vector<2x32xf32>
    %cst_113 = arith.constant 1.000000e+00 : f32
    %356 = vector.broadcast %cst_113 : f32 to vector<2x32xf32>
    %357 = arith.addf %356, %355 : vector<2x32xf32>
    %358 = tpu.reciprocal %357 {approx = true} : vector<2x32xf32> -> vector<2x32xf32>
    %359 = arith.mulf %342, %259 : vector<2x32xf32>
    %360 = arith.mulf %335, %344 : vector<2x32xf32>
    %361 = arith.addf %359, %360 : vector<2x32xf32>
    %362 = math.tanh %361 : vector<2x32xf32>
    %363 = arith.mulf %351, %362 : vector<2x32xf32>
    %364 = arith.mulf %358, %362 : vector<2x32xf32>
    %cst_114 = arith.constant dense<0.000000e+00> : vector<2x16xf32>
    %365 = tpu.matmul %363, %8, %cst_114 {dimension_numbers = #tpu.dot_dimension_numbers<[1], [0], [0], [1], [0, 0, 1, 1], [], []>} : vector<2x32xf32>, vector<32x16xf32>, vector<2x16xf32> -> vector<2x16xf32>
    %366 = vector.broadcast %9 : vector<1x16xf32> to vector<2x16xf32>
    %367 = arith.addf %365, %366 : vector<2x16xf32>
    %368 = vector.shape_cast %367 : vector<2x16xf32> to vector<2x1x16xf32>
    %369 = vector.broadcast %368 : vector<2x1x16xf32> to vector<2x16x16xf32>
    %370 = arith.addf %6, %369 : vector<2x16x16xf32>
    %371 = math.tanh %370 : vector<2x16x16xf32>
    %372 = vector.shape_cast %12 : vector<1x16xf32> to vector<1x1x16xf32>
    %373 = vector.broadcast %372 : vector<1x1x16xf32> to vector<2x16x16xf32>
    %374 = arith.mulf %371, %373 : vector<2x16x16xf32>
    %cst_115 = arith.constant dense<0.000000e+00> : vector<2x16xf32>
    %375 = vector.multi_reduction <add>, %374, %cst_115 [2] : vector<2x16x16xf32> to vector<2x16xf32>
    %376 = vector.broadcast %13 : vector<1x1xf32> to vector<2x16xf32>
    %377 = arith.addf %375, %376 : vector<2x16xf32>
    %cst_116 = arith.constant dense<0xFF800000> : vector<2xf32>
    %378 = vector.multi_reduction <maximumf>, %377, %cst_116 [1] : vector<2x16xf32> to vector<2xf32>
    %379 = vector.shape_cast %378 : vector<2xf32> to vector<2x1xf32>
    %380 = vector.broadcast %379 : vector<2x1xf32> to vector<2x16xf32>
    %381 = arith.subf %377, %380 : vector<2x16xf32>
    %382 = math.exp %381 : vector<2x16xf32>
    %cst_117 = arith.constant dense<0.000000e+00> : vector<2xf32>
    %383 = vector.multi_reduction <add>, %382, %cst_117 [1] : vector<2x16xf32> to vector<2xf32>
    %384 = vector.shape_cast %383 : vector<2xf32> to vector<2x1xf32>
    %385 = tpu.reciprocal %384 {approx = true} : vector<2x1xf32> -> vector<2x1xf32>
    %386 = vector.broadcast %385 : vector<2x1xf32> to vector<2x16xf32>
    %387 = arith.mulf %382, %386 : vector<2x16xf32>
    %388 = vector.shape_cast %387 : vector<2x16xf32> to vector<2x16x1xf32>
    %389 = vector.broadcast %388 : vector<2x16x1xf32> to vector<2x16x32xf32>
    %390 = arith.mulf %4, %389 : vector<2x16x32xf32>
    %cst_118 = arith.constant dense<0.000000e+00> : vector<2x32xf32>
    %391 = vector.multi_reduction <add>, %390, %cst_118 [1] : vector<2x16x32xf32> to vector<2x32xf32>
    %cst_119 = arith.constant dense<0.000000e+00> : vector<2x16xf32>
    %392 = tpu.matmul %364, %10, %cst_119 {dimension_numbers = #tpu.dot_dimension_numbers<[1], [0], [0], [1], [0, 0, 1, 1], [], []>} : vector<2x32xf32>, vector<32x16xf32>, vector<2x16xf32> -> vector<2x16xf32>
    %393 = vector.broadcast %11 : vector<1x16xf32> to vector<2x16xf32>
    %394 = arith.addf %392, %393 : vector<2x16xf32>
    %395 = arith.addf %394, %367 : vector<2x16xf32>
    %396 = math.tanh %395 : vector<2x16xf32>
    %397 = vector.broadcast %14 : vector<1x16xf32> to vector<2x16xf32>
    %398 = arith.mulf %396, %397 : vector<2x16xf32>
    %cst_120 = arith.constant dense<0.000000e+00> : vector<2xf32>
    %399 = vector.multi_reduction <add>, %398, %cst_120 [1] : vector<2x16xf32> to vector<2xf32>
    %400 = vector.shape_cast %399 : vector<2xf32> to vector<2x1xf32>
    %401 = vector.broadcast %15 : vector<1x1xf32> to vector<2x1xf32>
    %402 = arith.addf %400, %401 : vector<2x1xf32>
    %403 = arith.maximumf %379, %402 : vector<2x1xf32>
    %404 = arith.subf %402, %403 : vector<2x1xf32>
    %405 = math.exp %404 : vector<2x1xf32>
    %406 = vector.broadcast %403 : vector<2x1xf32> to vector<2x16xf32>
    %407 = arith.subf %377, %406 : vector<2x16xf32>
    %408 = math.exp %407 : vector<2x16xf32>
    %cst_121 = arith.constant dense<0.000000e+00> : vector<2xf32>
    %409 = vector.multi_reduction <add>, %408, %cst_121 [1] : vector<2x16xf32> to vector<2xf32>
    %410 = vector.shape_cast %409 : vector<2xf32> to vector<2x1xf32>
    %411 = arith.addf %410, %405 : vector<2x1xf32>
    %412 = tpu.reciprocal %411 {approx = true} : vector<2x1xf32> -> vector<2x1xf32>
    %413 = arith.mulf %405, %412 : vector<2x1xf32>
    %414 = vector.broadcast %413 : vector<2x1xf32> to vector<2x32xf32>
    %415 = arith.mulf %414, %364 : vector<2x32xf32>
    %cst_122 = arith.constant 1.000000e+00 : f32
    %416 = vector.broadcast %cst_122 : f32 to vector<2x1xf32>
    %417 = arith.subf %416, %413 : vector<2x1xf32>
    %418 = vector.broadcast %417 : vector<2x1xf32> to vector<2x32xf32>
    %419 = arith.mulf %418, %391 : vector<2x32xf32>
    %420 = arith.addf %415, %419 : vector<2x32xf32>
    %421 = arith.addf %420, %363 : vector<2x32xf32>
    %c0_123 = arith.constant 0 : index
    %422 = arith.index_cast %c3_i32 : i32 to index
    %c0_124 = arith.constant 0 : index
    %c0_125 = arith.constant 0 : index
    %423 = vector.load %arg14[%c0_123, %422, %c0_124, %c0_125] : memref<1x4x2x32xf32, #tpu.memory_space<vmem>>, vector<1x1x2x32xf32>
    %424 = vector.shape_cast %423 : vector<1x1x2x32xf32> to vector<2x32xf32>
    %425 = vector.shape_cast %421 : vector<2x32xf32> to vector<1x1x2x32xf32>
    tpu.vector_store %arg14[%c0_123, %422, %c0_124, %c0_125], %425 {strides = array<i32>} : memref<1x4x2x32xf32, #tpu.memory_space<vmem>>, vector<1x1x2x32xf32>,
    %c4_i32 = arith.constant 4 : i32
    %c0_126 = arith.constant 0 : index
    %c0_127 = arith.constant 0 : index
    %426 = vector.load %arg15[%c0_126, %c0_127] : memref<2x32xf32, #tpu.memory_space<vmem>>, vector<2x32xf32>
    tpu.vector_store %arg15[%c0_126, %c0_127], %363 {strides = array<i32>} : memref<2x32xf32, #tpu.memory_space<vmem>>, vector<2x32xf32>,
    %c0_128 = arith.constant 0 : index
    %c0_129 = arith.constant 0 : index
    %427 = vector.load %arg16[%c0_128, %c0_129] : memref<2x32xf32, #tpu.memory_space<vmem>>, vector<2x32xf32>
    tpu.vector_store %arg16[%c0_128, %c0_129], %361 {strides = array<i32>} : memref<2x32xf32, #tpu.memory_space<vmem>>, vector<2x32xf32>,
    return
  }
  func.func @transform_0(%arg0: i32, %arg1: i32) -> (i32, i32, i32, i32) {
    %c0_i32 = arith.constant 0 : i32
    %c0_i32_0 = arith.constant 0 : i32
    %c0_i32_1 = arith.constant 0 : i32
    return %arg0, %arg1, %c0_i32, %c0_i32_0 : i32, i32, i32, i32
  }
  func.func @transform_1(%arg0: i32, %arg1: i32) -> (i32, i32, i32, i32) {
    %c0_i32 = arith.constant 0 : i32
    %c0_i32_0 = arith.constant 0 : i32
    %c0_i32_1 = arith.constant 0 : i32
    %c0_i32_2 = arith.constant 0 : i32
    return %arg0, %c0_i32, %c0_i32_0, %c0_i32_1 : i32, i32, i32, i32
  }
  func.func @transform_2(%arg0: i32, %arg1: i32) -> (i32, i32, i32, i32) {
    %c0_i32 = arith.constant 0 : i32
    %c0_i32_0 = arith.constant 0 : i32
    %c0_i32_1 = arith.constant 0 : i32
    %c0_i32_2 = arith.constant 0 : i32
    return %arg0, %c0_i32, %c0_i32_0, %c0_i32_1 : i32, i32, i32, i32
  }
  func.func @transform_3(%arg0: i32, %arg1: i32) -> (i32, i32) {
    %c0_i32 = arith.constant 0 : i32
    %c0_i32_0 = arith.constant 0 : i32
    %c0_i32_1 = arith.constant 0 : i32
    return %c0_i32, %c0_i32_0 : i32, i32
  }
  func.func @transform_4(%arg0: i32, %arg1: i32) -> (i32, i32) {
    %c0_i32 = arith.constant 0 : i32
    %c0_i32_0 = arith.constant 0 : i32
    %c0_i32_1 = arith.constant 0 : i32
    return %c0_i32, %c0_i32_0 : i32, i32
  }
  func.func @transform_5(%arg0: i32, %arg1: i32) -> (i32, i32) {
    %c0_i32 = arith.constant 0 : i32
    %c0_i32_0 = arith.constant 0 : i32
    %c0_i32_1 = arith.constant 0 : i32
    return %c0_i32, %c0_i32_0 : i32, i32
  }
  func.func @transform_6(%arg0: i32, %arg1: i32) -> (i32, i32) {
    %c0_i32 = arith.constant 0 : i32
    %c0_i32_0 = arith.constant 0 : i32
    %c0_i32_1 = arith.constant 0 : i32
    return %c0_i32, %c0_i32_0 : i32, i32
  }
  func.func @transform_7(%arg0: i32, %arg1: i32) -> (i32, i32) {
    %c0_i32 = arith.constant 0 : i32
    %c0_i32_0 = arith.constant 0 : i32
    %c0_i32_1 = arith.constant 0 : i32
    return %c0_i32, %c0_i32_0 : i32, i32
  }
  func.func @transform_8(%arg0: i32, %arg1: i32) -> (i32, i32) {
    %c0_i32 = arith.constant 0 : i32
    %c0_i32_0 = arith.constant 0 : i32
    %c0_i32_1 = arith.constant 0 : i32
    return %c0_i32, %c0_i32_0 : i32, i32
  }
  func.func @transform_9(%arg0: i32, %arg1: i32) -> (i32, i32) {
    %c0_i32 = arith.constant 0 : i32
    %c0_i32_0 = arith.constant 0 : i32
    %c0_i32_1 = arith.constant 0 : i32
    return %c0_i32, %c0_i32_0 : i32, i32
  }
  func.func @transform_10(%arg0: i32, %arg1: i32) -> (i32, i32) {
    %c0_i32 = arith.constant 0 : i32
    %c0_i32_0 = arith.constant 0 : i32
    %c0_i32_1 = arith.constant 0 : i32
    return %c0_i32, %c0_i32_0 : i32, i32
  }
  func.func @transform_11(%arg0: i32, %arg1: i32) -> (i32, i32) {
    %c0_i32 = arith.constant 0 : i32
    %c0_i32_0 = arith.constant 0 : i32
    %c0_i32_1 = arith.constant 0 : i32
    return %c0_i32, %c0_i32_0 : i32, i32
  }
  func.func @transform_12(%arg0: i32, %arg1: i32) -> (i32, i32, i32, i32) {
    %c0_i32 = arith.constant 0 : i32
    %c0_i32_0 = arith.constant 0 : i32
    %c0_i32_1 = arith.constant 0 : i32
    return %arg0, %arg1, %c0_i32, %c0_i32_0 : i32, i32, i32, i32
  }
}

</mosaic_0001>

<llo_original>
// kernel: tpu_custom_call.1
$region0: #{tpu_custom_call.1}
  #allocation0 [shape = 'u32[]', space=smem, size = 0x4, offset = 0x4, fixed_abs, tag = 'smem constant byte address 0x4 - core index']
  #allocation1 [shape = 'u32[144,128]{1,0:T(1,128)}', space=vmem, size = 0x12000, scoped, tag = 'internal scratch']
  #allocation2 [shape = 'f32[2,32]{1,0:T(2,128)}', space=vmem, size = 0x400, scoped, tag = 'scratch operand']
  #allocation3 [shape = 'f32[2,32]{1,0:T(2,128)}', space=vmem, size = 0x400, scoped, tag = 'scratch operand']
  #allocation4 [shape = 'f32[1,1]{1,0:T(1,128)S(1)}', space=vmem, size = 0x200, scoped, tag = 'scoped memory for tpu_custom_call.1']
  #allocation5 [shape = 'f32[1,1]{1,0:T(1,128)S(1)}', space=vmem, size = 0x200, scoped, tag = 'scoped memory for tpu_custom_call.1']
  %s0 = inlined_call_operand.vmem [shape: f32[2,8,2,160], index: 0, kind: input, shape index: {}]
  %s1 = inlined_call_operand.hbm [shape: f32[2,2,16,32], index: 1, kind: input, shape index: {}]
  %s2 = inlined_call_operand.hbm [shape: f32[2,2,16,16], index: 2, kind: input, shape index: {}]
  %s3 = inlined_call_operand.hbm [shape: f32[32,160], index: 3, kind: input, shape index: {}]
  %s4 = inlined_call_operand.vmem [shape: f32[32,16], index: 4, kind: input, shape index: {}]
  %s5 = inlined_call_operand.vmem [shape: f32[1,16], index: 5, kind: input, shape index: {}]
  %s6 = inlined_call_operand.vmem [shape: f32[32,16], index: 6, kind: input, shape index: {}]
  %s7 = inlined_call_operand.vmem [shape: f32[1,16], index: 7, kind: input, shape index: {}]
  %s8 = inlined_call_operand.vmem [shape: f32[1,16], index: 8, kind: input, shape index: {}]
  %s9 = inlined_call_operand.<no memory space> [shape: f32[1,1], index: 9, kind: input, shape index: {}]
  %s10 = inlined_call_operand.vmem [shape: f32[1,16], index: 10, kind: input, shape index: {}]
  %s11 = inlined_call_operand.<no memory space> [shape: f32[1,1], index: 11, kind: input, shape index: {}]
  %s12 = inlined_call_operand.hbm [shape: f32[2,8,2,32], index: 12, kind: output, shape index: {}]
  %s13 = sld [smem:[#allocation0]]
  $region97: #{tpu_custom_call.1} parent=0
    _
  %s15 = ssub.s32 1, %s13
  %s16 = scalar_select 0, %s15, %s13
  %v17 = vstv %s9
  %18 = vst [vmem:[#allocation4] sm:$0x1] %v17
  %v19 = vstv %s11
  %20 = vst [vmem:[#allocation5] sm:$0x1] %v19
  $region1: #{tpu_custom_call.1} parent=0
    #allocation6 [shape = 'u8[16384]{0}', space=vmem, size = 0x4000, scoped, tag = 'input window, operand 1, single buffered']
    #allocation7 [shape = 's32[2]{0}', space=sflag, size = 0x8, scoped, tag = 'scoped memory for tpu_custom_call.1']
    #allocation8 [shape = 's32[2]{0}', space=sflag, size = 0x8, scoped, tag = 'scoped memory for tpu_custom_call.1']
    #allocation9 [shape = 'u8[16384]{0}', space=vmem, size = 0x4000, scoped, tag = 'input window, operand 2, single buffered']
    #allocation10 [shape = 's32[1]{0}', space=sflag, size = 0x4, scoped, tag = 'scoped memory for tpu_custom_call.1']
    #allocation11 [shape = 'u8[32768]{0}', space=vmem, size = 0x8000, scoped, tag = 'input window, operand 3, single buffered']
    #allocation12 [shape = 'u8[8192]{0}', space=vmem, size = 0x2000, scoped, tag = 'output window, operand 0']
    %21 = vsyncpa [#allocation7], 0
    %22 = vsyncpa [#allocation10], 0
    %23 = vsyncpa [#allocation8], 0
    %s24 = scalar_lea.sflag [#allocation8], 1
    %25 = vsyncpa %s24, 0
    loop: start=0, step=1, limit=6
    $region2: #{tpu_custom_call.1} parent=1 // loop_pre_header
      _
    $region3: #{tpu_custom_call.1} parent=1 // loop_header
      %s27 = sphi 0, %s31
      %p28 = scmp.ge.s32.totalorder %s27, 6
      %s34 = sphi 0, %s46
      %s35 = sphi 0, %s42
      %s36 = sphi 0, %s34
      %s37 = sphi 0, %s35
      %s38 = sphi 0, %s36
      %s39 = sphi 0, %s37
      %s51 = sphi 0, %s53
      %s54 = sphi 0, %s51
      %s55 = sphi 0, %s54
      %s71 = sphi 0, %s55
      %s77 = sphi 0, %s79
      %s80 = sphi 0, %s77
      %s81 = sphi 0, %s80
      %s97 = sphi 0, %s81
      %s103 = sphi 0, %s105
      %s106 = sphi 0, %s103
      %s107 = sphi 0, %s106
      %s123 = sphi 0, %s107
      %s127 = sphi 0, %s127
      %s129 = sphi 0, %s127
      %s130 = sphi 0, %s129
      %s144 = sphi 0, %s130
      %s148 = sphi 0, %s148
      %s150 = sphi 0, %s148
      %s151 = sphi 0, %s150
      %s165 = sphi 0, %s151
      %s169 = sphi 0, %s169
      %s171 = sphi 0, %s169
      %s172 = sphi 0, %s171
      %s186 = sphi 0, %s172
      %s190 = sphi 0, %s190
      %s192 = sphi 0, %s190
      %s193 = sphi 0, %s192
      %s207 = sphi 0, %s193
      %s211 = sphi 0, %s211
      %s213 = sphi 0, %s211
      %s214 = sphi 0, %s213
      %s228 = sphi 0, %s214
      %s232 = sphi 0, %s232
      %s234 = sphi 0, %s232
      %s235 = sphi 0, %s234
      %s249 = sphi 0, %s235
      %s253 = sphi 0, %s253
      %s255 = sphi 0, %s253
      %s256 = sphi 0, %s255
      %s270 = sphi 0, %s256
      %s274 = sphi 0, %s274
      %s276 = sphi 0, %s274
      %s277 = sphi 0, %s276
      %s291 = sphi 0, %s277
      %s295 = sphi 0, %s295
      %s297 = sphi 0, %s295
      %s298 = sphi 0, %s297
      %s312 = sphi 0, %s298
      %s320 = sphi 0, %s322
      %s323 = sphi 0, %s320
      %s324 = sphi 0, %s323
      %s340 = sphi 0, %s324
    $region4: #{tpu_custom_call.1} parent=1 // loop_header_branch
      %30 = sbr.rel (%p28) target = $region8
    $region5: #{tpu_custom_call.1} parent=1 // loop_body
      %s32 = ssub.s32 %s27, 1
      %s33 = ssub.s32 %s27, 2
      %s40 = sadd.s32 1, %s35
      %p41 = scmp.ge.s32.totalorder %s40, 2
      %s42 = scalar_select %p41, 0, %s40
      %s43 = sadd.s32 1, %s34
      %s44 = scalar_select %p41, %s43, %s34
      %p45 = scmp.ge.s32.totalorder %s44, 2
      %s46 = scalar_select %p45, 0, %s44
      %s47 = ssub.s32 %s34, %s46
      %s48 = ssub.s32 %s35, %s42
      %s49 = sor.u32 %s47, %s48
      %p50 = scmp.eq.s32.totalorder %s49, 0
      %s52 = sadd.s32 %s51, 1
      %s53 = scalar_select %p50, %s51, %s52
      %p56 = pneg %p50
      %p57 = scmp.eq.s32.totalorder %s27, 3
      %p58 = por %p56, %p57
      %p59 = scmp.ne.s32.totalorder %s51, %s54
      %p60 = scmp.eq.s32.totalorder %s27, 0
      %p61 = por %p59, %p60
      %p62 = scmp.ne.s32.totalorder %s51, %s54
      %p63 = scmp.eq.s32.totalorder %s32, 3
      %p64 = por %p62, %p63
      %p65 = scmp.ne.s32.totalorder %s54, %s55
      %p66 = scmp.eq.s32.totalorder %s32, 0
      %p67 = por %p65, %p66
      %p68 = scmp.ne.s32.totalorder %s54, %s55
      %p69 = scmp.eq.s32.totalorder %s33, 3
      %p70 = por %p68, %p69
      %p72 = scmp.ne.s32.totalorder %s55, %s71
      %p73 = scmp.eq.s32.totalorder %s33, 0
      %p74 = por %p72, %p73
      %s75 = ssub.s32 %s34, %s46
      %p76 = scmp.eq.s32.totalorder %s75, 0
      %s78 = sadd.s32 %s77, 1
      %s79 = scalar_select %p76, %s77, %s78
      %p82 = pneg %p76
      %p83 = scmp.eq.s32.totalorder %s27, 3
      %p84 = por %p82, %p83
      %p85 = scmp.ne.s32.totalorder %s77, %s80
      %p86 = scmp.eq.s32.totalorder %s27, 0
      %p87 = por %p85, %p86
      %p88 = scmp.ne.s32.totalorder %s77, %s80
      %p89 = scmp.eq.s32.totalorder %s32, 3
      %p90 = por %p88, %p89
      %p91 = scmp.ne.s32.totalorder %s80, %s81
      %p92 = scmp.eq.s32.totalorder %s32, 0
      %p93 = por %p91, %p92
      %p94 = scmp.ne.s32.totalorder %s80, %s81
      %p95 = scmp.eq.s32.totalorder %s33, 3
      %p96 = por %p94, %p95
      %p98 = scmp.ne.s32.totalorder %s81, %s97
      %p99 = scmp.eq.s32.totalorder %s33, 0
      %p100 = por %p98, %p99
      %s101 = ssub.s32 %s34, %s46
      %p102 = scmp.eq.s32.totalorder %s101, 0
      %s104 = sadd.s32 %s103, 1
      %s105 = scalar_select %p102, %s103, %s104
      %p108 = pneg %p102
      %p109 = scmp.eq.s32.totalorder %s27, 3
      %p110 = por %p108, %p109
      %p111 = scmp.ne.s32.totalorder %s103, %s106
      %p112 = scmp.eq.s32.totalorder %s27, 0
      %p113 = por %p111, %p112
      %p114 = scmp.ne.s32.totalorder %s103, %s106
      %p115 = scmp.eq.s32.totalorder %s32, 3
      %p116 = por %p114, %p115
      %p117 = scmp.ne.s32.totalorder %s106, %s107
      %p118 = scmp.eq.s32.totalorder %s32, 0
      %p119 = por %p117, %p118
      %p120 = scmp.ne.s32.totalorder %s106, %s107
      %p121 = scmp.eq.s32.totalorder %s33, 3
      %p122 = por %p120, %p121
      %p124 = scmp.ne.s32.totalorder %s107, %s123
      %p125 = scmp.eq.s32.totalorder %s33, 0
      %p126 = por %p124, %p125
      %s128 = sadd.s32 %s127, 1
      %p131 = scmp.eq.s32.totalorder %s27, 3
      %p132 = scmp.ne.s32.totalorder %s127, %s129
      %p133 = scmp.eq.s32.totalorder %s27, 0
      %p134 = por %p132, %p133
      %p135 = scmp.ne.s32.totalorder %s127, %s129
      %p136 = scmp.eq.s32.totalorder %s32, 3
      %p137 = por %p135, %p136
      %p138 = scmp.ne.s32.totalorder %s129, %s130
      %p139 = scmp.eq.s32.totalorder %s32, 0
      %p140 = por %p138, %p139
      %p141 = scmp.ne.s32.totalorder %s129, %s130
      %p142 = scmp.eq.s32.totalorder %s33, 3
      %p143 = por %p141, %p142
      %p145 = scmp.ne.s32.totalorder %s130, %s144
      %p146 = scmp.eq.s32.totalorder %s33, 0
      %p147 = por %p145, %p146
      %s149 = sadd.s32 %s148, 1
      %p152 = scmp.eq.s32.totalorder %s27, 3
      %p153 = scmp.ne.s32.totalorder %s148, %s150
      %p154 = scmp.eq.s32.totalorder %s27, 0
      %p155 = por %p153, %p154
      %p156 = scmp.ne.s32.totalorder %s148, %s150
      %p157 = scmp.eq.s32.totalorder %s32, 3
      %p158 = por %p156, %p157
      %p159 = scmp.ne.s32.totalorder %s150, %s151
      %p160 = scmp.eq.s32.totalorder %s32, 0
      %p161 = por %p159, %p160
      %p162 = scmp.ne.s32.totalorder %s150, %s151
      %p163 = scmp.eq.s32.totalorder %s33, 3
      %p164 = por %p162, %p163
      %p166 = scmp.ne.s32.totalorder %s151, %s165
      %p167 = scmp.eq.s32.totalorder %s33, 0
      %p168 = por %p166, %p167
      %s170 = sadd.s32 %s169, 1
      %p173 = scmp.eq.s32.totalorder %s27, 3
      %p174 = scmp.ne.s32.totalorder %s169, %s171
      %p175 = scmp.eq.s32.totalorder %s27, 0
      %p176 = por %p174, %p175
      %p177 = scmp.ne.s32.totalorder %s169, %s171
      %p178 = scmp.eq.s32.totalorder %s32, 3
      %p179 = por %p177, %p178
      %p180 = scmp.ne.s32.totalorder %s171, %s172
      %p181 = scmp.eq.s32.totalorder %s32, 0
      %p182 = por %p180, %p181
      %p183 = scmp.ne.s32.totalorder %s171, %s172
      %p184 = scmp.eq.s32.totalorder %s33, 3
      %p185 = por %p183, %p184
      %p187 = scmp.ne.s32.totalorder %s172, %s186
      %p188 = scmp.eq.s32.totalorder %s33, 0
      %p189 = por %p187, %p188
      %s191 = sadd.s32 %s190, 1
      %p194 = scmp.eq.s32.totalorder %s27, 3
      %p195 = scmp.ne.s32.totalorder %s190, %s192
      %p196 = scmp.eq.s32.totalorder %s27, 0
      %p197 = por %p195, %p196
      %p198 = scmp.ne.s32.totalorder %s190, %s192
      %p199 = scmp.eq.s32.totalorder %s32, 3
      %p200 = por %p198, %p199
      %p201 = scmp.ne.s32.totalorder %s192, %s193
      %p202 = scmp.eq.s32.totalorder %s32, 0
      %p203 = por %p201, %p202
      %p204 = scmp.ne.s32.totalorder %s192, %s193
      %p205 = scmp.eq.s32.totalorder %s33, 3
      %p206 = por %p204, %p205
      %p208 = scmp.ne.s32.totalorder %s193, %s207
      %p209 = scmp.eq.s32.totalorder %s33, 0
      %p210 = por %p208, %p209
      %s212 = sadd.s32 %s211, 1
      %p215 = scmp.eq.s32.totalorder %s27, 3
      %p216 = scmp.ne.s32.totalorder %s211, %s213
      %p217 = scmp.eq.s32.totalorder %s27, 0
      %p218 = por %p216, %p217
      %p219 = scmp.ne.s32.totalorder %s211, %s213
      %p220 = scmp.eq.s32.totalorder %s32, 3
      %p221 = por %p219, %p220
      %p222 = scmp.ne.s32.totalorder %s213, %s214
      %p223 = scmp.eq.s32.totalorder %s32, 0
      %p224 = por %p222, %p223
      %p225 = scmp.ne.s32.totalorder %s213, %s214
      %p226 = scmp.eq.s32.totalorder %s33, 3
      %p227 = por %p225, %p226
      %p229 = scmp.ne.s32.totalorder %s214, %s228
      %p230 = scmp.eq.s32.totalorder %s33, 0
      %p231 = por %p229, %p230
      %s233 = sadd.s32 %s232, 1
      %p236 = scmp.eq.s32.totalorder %s27, 3
      %p237 = scmp.ne.s32.totalorder %s232, %s234
      %p238 = scmp.eq.s32.totalorder %s27, 0
      %p239 = por %p237, %p238
      %p240 = scmp.ne.s32.totalorder %s232, %s234
      %p241 = scmp.eq.s32.totalorder %s32, 3
      %p242 = por %p240, %p241
      %p243 = scmp.ne.s32.totalorder %s234, %s235
      %p244 = scmp.eq.s32.totalorder %s32, 0
      %p245 = por %p243, %p244
      %p246 = scmp.ne.s32.totalorder %s234, %s235
      %p247 = scmp.eq.s32.totalorder %s33, 3
      %p248 = por %p246, %p247
      %p250 = scmp.ne.s32.totalorder %s235, %s249
      %p251 = scmp.eq.s32.totalorder %s33, 0
      %p252 = por %p250, %p251
      %s254 = sadd.s32 %s253, 1
      %p257 = scmp.eq.s32.totalorder %s27, 3
      %p258 = scmp.ne.s32.totalorder %s253, %s255
      %p259 = scmp.eq.s32.totalorder %s27, 0
      %p260 = por %p258, %p259
      %p261 = scmp.ne.s32.totalorder %s253, %s255
      %p262 = scmp.eq.s32.totalorder %s32, 3
      %p263 = por %p261, %p262
      %p264 = scmp.ne.s32.totalorder %s255, %s256
      %p265 = scmp.eq.s32.totalorder %s32, 0
      %p266 = por %p264, %p265
      %p267 = scmp.ne.s32.totalorder %s255, %s256
      %p268 = scmp.eq.s32.totalorder %s33, 3
      %p269 = por %p267, %p268
      %p271 = scmp.ne.s32.totalorder %s256, %s270
      %p272 = scmp.eq.s32.totalorder %s33, 0
      %p273 = por %p271, %p272
      %s275 = sadd.s32 %s274, 1
      %p278 = scmp.eq.s32.totalorder %s27, 3
      %p279 = scmp.ne.s32.totalorder %s274, %s276
      %p280 = scmp.eq.s32.totalorder %s27, 0
      %p281 = por %p279, %p280
      %p282 = scmp.ne.s32.totalorder %s274, %s276
      %p283 = scmp.eq.s32.totalorder %s32, 3
      %p284 = por %p282, %p283
      %p285 = scmp.ne.s32.totalorder %s276, %s277
      %p286 = scmp.eq.s32.totalorder %s32, 0
      %p287 = por %p285, %p286
      %p288 = scmp.ne.s32.totalorder %s276, %s277
      %p289 = scmp.eq.s32.totalorder %s33, 3
      %p290 = por %p288, %p289
      %p292 = scmp.ne.s32.totalorder %s277, %s291
      %p293 = scmp.eq.s32.totalorder %s33, 0
      %p294 = por %p292, %p293
      %s296 = sadd.s32 %s295, 1
      %p299 = scmp.eq.s32.totalorder %s27, 3
      %p300 = scmp.ne.s32.totalorder %s295, %s297
      %p301 = scmp.eq.s32.totalorder %s27, 0
      %p302 = por %p300, %p301
      %p303 = scmp.ne.s32.totalorder %s295, %s297
      %p304 = scmp.eq.s32.totalorder %s32, 3
      %p305 = por %p303, %p304
      %p306 = scmp.ne.s32.totalorder %s297, %s298
      %p307 = scmp.eq.s32.totalorder %s32, 0
      %p308 = por %p306, %p307
      %p309 = scmp.ne.s32.totalorder %s297, %s298
      %p310 = scmp.eq.s32.totalorder %s33, 3
      %p311 = por %p309, %p310
      %p313 = scmp.ne.s32.totalorder %s298, %s312
      %p314 = scmp.eq.s32.totalorder %s33, 0
      %p315 = por %p313, %p314
      %s316 = ssub.s32 %s34, %s46
      %s317 = ssub.s32 %s35, %s42
      %s318 = sor.u32 %s316, %s317
      %p319 = scmp.eq.s32.totalorder %s318, 0
      %s321 = sadd.s32 %s320, 1
      %s322 = scalar_select %p319, %s320, %s321
      %p325 = pneg %p319
      %p326 = scmp.eq.s32.totalorder %s27, 3
      %p327 = por %p325, %p326
      %p328 = scmp.ne.s32.totalorder %s320, %s323
      %p329 = scmp.eq.s32.totalorder %s27, 0
      %p330 = por %p328, %p329
      %p331 = scmp.ne.s32.totalorder %s320, %s323
      %p332 = scmp.eq.s32.totalorder %s32, 3
      %p333 = por %p331, %p332
      %p334 = scmp.ne.s32.totalorder %s323, %s324
      %p335 = scmp.eq.s32.totalorder %s32, 0
      %p336 = por %p334, %p335
      %p337 = scmp.ne.s32.totalorder %s323, %s324
      %p338 = scmp.eq.s32.totalorder %s33, 3
      %p339 = por %p337, %p338
      %p341 = scmp.ne.s32.totalorder %s324, %s340
      %p342 = scmp.eq.s32.totalorder %s33, 0
      %p343 = por %p341, %p342
      %p344 = scmp.le.s32.totalorder 1, %s27
      %p345 = scmp.lt.s32.totalorder %s27, 5
      %p346 = pnand %p344, %p345
      %p347 = pneg %p346
      // Predicated region
      $region9: #{tpu_custom_call.1} parent=5 // pred_check
        _
      $region10: #{tpu_custom_call.1} parent=5 // pred_check_branch
        %349 = sbr.rel (%p346) target = $region12
      $region11: #{tpu_custom_call.1} parent=5 // pred_region
        %s350 = ssub.s32 %s27, 1
        // Predicated region
        $region13: #{tpu_custom_call.1} parent=11 // pred_check
          %p351 = pneg %p93
        $region14: #{tpu_custom_call.1} parent=11 // pred_check_branch
          %353 = sbr.rel (%p351) target = $region16
        $region15: #{tpu_custom_call.1} parent=11 // pred_region
          %s355 = ssub.s32 512, 512
          %356 = vsyncadd [#allocation7], %s355
          %s357 = smul.addr %s36, 4
          %s358 = smul.addr %s357, 128
          %s359 = scalar_lea.hbm %s1, %s358
          %s360 = sshll.u32 [#allocation6], 4
          %s361 = int_to_ptr.vmem [resolvable:$true] %s360
          %366 = dma.hbm_to_vmem [thread:$0]  %s359, 512, %s361, [#allocation7], 128, 128, 8
        $region16: #{tpu_custom_call.1} parent=11 // pred_fallthru
          _
        // Predicated region
        $region17: #{tpu_custom_call.1} parent=11 // pred_check
          %p367 = pneg %p119
        $region18: #{tpu_custom_call.1} parent=11 // pred_check_branch
          %369 = sbr.rel (%p367) target = $region20
        $region19: #{tpu_custom_call.1} parent=11 // pred_region
          %s371 = ssub.s32 512, 512
          %372 = vsyncadd [#allocation10], %s371
          %s373 = smul.addr %s36, 4
          %s374 = smul.addr %s373, 128
          %s375 = scalar_lea.hbm %s2, %s374
          %s376 = sshll.u32 [#allocation9], 4
          %s377 = int_to_ptr.vmem [resolvable:$true] %s376
          %382 = dma.hbm_to_vmem [thread:$0]  %s375, 512, %s377, [#allocation10], 128, 128, 8
        $region20: #{tpu_custom_call.1} parent=11 // pred_fallthru
          _
        // Predicated region
        $region21: #{tpu_custom_call.1} parent=11 // pred_check
          %p383 = pneg %p140
        $region22: #{tpu_custom_call.1} parent=11 // pred_check_branch
          %385 = sbr.rel (%p383) target = $region24
        $region23: #{tpu_custom_call.1} parent=11 // pred_region
          %s387 = ssub.s32 1024, 1024
          %388 = vsyncadd [#allocation10], %s387
          %s389 = sshll.u32 [#allocation11], 4
          %s390 = int_to_ptr.vmem [resolvable:$true] %s389
          %395 = dma.hbm_to_vmem [thread:$0]  %s3, 1024, %s390, [#allocation10], 256, 256, 16
        $region24: #{tpu_custom_call.1} parent=11 // pred_fallthru
          _
        // Predicated region
        $region25: #{tpu_custom_call.1} parent=11 // pred_check
          %p396 = pneg %p161
        $region26: #{tpu_custom_call.1} parent=11 // pred_check_branch
          %398 = sbr.rel (%p396) target = $region28
        $region27: #{tpu_custom_call.1} parent=11 // pred_region
          _
        $region28: #{tpu_custom_call.1} parent=11 // pred_fallthru
          _
        // Predicated region
        $region29: #{tpu_custom_call.1} parent=11 // pred_check
          %p399 = pneg %p182
        $region30: #{tpu_custom_call.1} parent=11 // pred_check_branch
          %401 = sbr.rel (%p399) target = $region32
        $region31: #{tpu_custom_call.1} parent=11 // pred_region
          _
        $region32: #{tpu_custom_call.1} parent=11 // pred_fallthru
          _
        // Predicated region
        $region33: #{tpu_custom_call.1} parent=11 // pred_check
          %p402 = pneg %p203
        $region34: #{tpu_custom_call.1} parent=11 // pred_check_branch
          %404 = sbr.rel (%p402) target = $region36
        $region35: #{tpu_custom_call.1} parent=11 // pred_region
          _
        $region36: #{tpu_custom_call.1} parent=11 // pred_fallthru
          _
        // Predicated region
        $region37: #{tpu_custom_call.1} parent=11 // pred_check
          %p405 = pneg %p224
        $region38: #{tpu_custom_call.1} parent=11 // pred_check_branch
          %407 = sbr.rel (%p405) target = $region40
        $region39: #{tpu_custom_call.1} parent=11 // pred_region
          _
        $region40: #{tpu_custom_call.1} parent=11 // pred_fallthru
          _
        // Predicated region
        $region41: #{tpu_custom_call.1} parent=11 // pred_check
          %p408 = pneg %p245
        $region42: #{tpu_custom_call.1} parent=11 // pred_check_branch
          %410 = sbr.rel (%p408) target = $region44
        $region43: #{tpu_custom_call.1} parent=11 // pred_region
          _
        $region44: #{tpu_custom_call.1} parent=11 // pred_fallthru
          _
        // Predicated region
        $region45: #{tpu_custom_call.1} parent=11 // pred_check
          %p411 = pneg %p266
        $region46: #{tpu_custom_call.1} parent=11 // pred_check_branch
          %413 = sbr.rel (%p411) target = $region48
        $region47: #{tpu_custom_call.1} parent=11 // pred_region
          _
        $region48: #{tpu_custom_call.1} parent=11 // pred_fallthru
          _
        // Predicated region
        $region49: #{tpu_custom_call.1} parent=11 // pred_check
          %p414 = pneg %p287
        $region50: #{tpu_custom_call.1} parent=11 // pred_check_branch
          %416 = sbr.rel (%p414) target = $region52
        $region51: #{tpu_custom_call.1} parent=11 // pred_region
          _
        $region52: #{tpu_custom_call.1} parent=11 // pred_fallthru
          _
        // Predicated region
        $region53: #{tpu_custom_call.1} parent=11 // pred_check
          %p417 = pneg %p308
        $region54: #{tpu_custom_call.1} parent=11 // pred_check_branch
          %419 = sbr.rel (%p417) target = $region56
        $region55: #{tpu_custom_call.1} parent=11 // pred_region
          _
        $region56: #{tpu_custom_call.1} parent=11 // pred_fallthru
          _
      $region12: #{tpu_custom_call.1} parent=5 // pred_fallthru
        _
      %p420 = scmp.lt.s32.totalorder %s27, 4
      // Predicated region
      $region57: #{tpu_custom_call.1} parent=5 // pred_check
        %p421 = pneg %p420
      $region58: #{tpu_custom_call.1} parent=5 // pred_check_branch
        %423 = sbr.rel (%p421) target = $region60
      $region59: #{tpu_custom_call.1} parent=5 // pred_region
        // Predicated region
        $region61: #{tpu_custom_call.1} parent=59 // pred_check
          %p424 = pneg %p61
        $region62: #{tpu_custom_call.1} parent=59 // pred_check_branch
          %426 = sbr.rel (%p424) target = $region64
        $region63: #{tpu_custom_call.1} parent=59 // pred_region
          %s427 = smul.u32 4, %s35
          %p428 = scmp.lt.s32.totalorder %s34, 1
          %s429 = scalar_select %p428, %s34, 1
          %p430 = scmp.lt.s32.totalorder %s427, 7
          %s431 = scalar_select %p430, %s427, 7
          %s432 = smul.addr %s431, 2
          %s433 = smul.addr %s429, 16
          %s434 = sadd.s32 %s432, %s433
          %s435 = smul.addr %s434, 2
          %s436 = scalar_lea.vmem %s0, %s435
          %s437 = smul.u32 4, %s35
        $region64: #{tpu_custom_call.1} parent=59 // pred_fallthru
          _
      $region60: #{tpu_custom_call.1} parent=5 // pred_fallthru
        _
      %p438 = scmp.le.s32.totalorder 1, %s27
      %p439 = scmp.lt.s32.totalorder %s27, 5
      %p440 = pnand %p438, %p439
      %p441 = pneg %p440
      // Predicated region
      $region65: #{tpu_custom_call.1} parent=5 // pred_check
        _
      $region66: #{tpu_custom_call.1} parent=5 // pred_check_branch
        %443 = sbr.rel (%p440) target = $region68
      $region67: #{tpu_custom_call.1} parent=5 // pred_region
        %s444 = ssub.s32 %s27, 1
        // Predicated region
        $region69: #{tpu_custom_call.1} parent=67 // pred_check
          %p445 = pneg %p93
        $region70: #{tpu_custom_call.1} parent=67 // pred_check_branch
          %447 = sbr.rel (%p445) target = $region72
        $region71: #{tpu_custom_call.1} parent=67 // pred_region
          %448 = dma.done [#allocation7], 512
        $region72: #{tpu_custom_call.1} parent=67 // pred_fallthru
          _
        // Predicated region
        $region73: #{tpu_custom_call.1} parent=67 // pred_check
          %p449 = pneg %p119
        $region74: #{tpu_custom_call.1} parent=67 // pred_check_branch
          %451 = sbr.rel (%p449) target = $region76
        $region75: #{tpu_custom_call.1} parent=67 // pred_region
          %452 = dma.done [#allocation10], 512
        $region76: #{tpu_custom_call.1} parent=67 // pred_fallthru
          _
        // Predicated region
        $region77: #{tpu_custom_call.1} parent=67 // pred_check
          %p453 = pneg %p140
        $region78: #{tpu_custom_call.1} parent=67 // pred_check_branch
          %455 = sbr.rel (%p453) target = $region80
        $region79: #{tpu_custom_call.1} parent=67 // pred_region
          %456 = dma.done [#allocation10], 1024
        $region80: #{tpu_custom_call.1} parent=67 // pred_fallthru
          _
        %s457 = smul.u32 4, %s37
        %p458 = scmp.lt.s32.totalorder %s36, 1
        %s459 = scalar_select %p458, %s36, 1
        %p460 = scmp.lt.s32.totalorder %s457, 7
        %s461 = scalar_select %p460, %s457, 7
        %s462 = smul.addr %s461, 2
        %s463 = smul.addr %s459, 16
        %s464 = sadd.s32 %s462, %s463
        %s465 = smul.addr %s464, 2
        %s466 = scalar_lea.vmem %s0, %s465
        %p467 = pneg %p67
        %p468 = pneg %p64
        %p469 = pneg %p93
        %p470 = pneg %p90
        %p471 = pneg %p119
        %p472 = pneg %p116
        %p473 = pneg %p140
        %p474 = pneg %p137
        %p475 = pneg %p161
        %p476 = pneg %p158
        %p477 = pneg %p182
        %p478 = pneg %p179
        %p479 = pneg %p203
        %p480 = pneg %p200
        %p481 = pneg %p224
        %p482 = pneg %p221
        %p483 = pneg %p245
        %p484 = pneg %p242
        %p485 = pneg %p266
        %p486 = pneg %p263
        %p487 = pneg %p287
        %p488 = pneg %p284
        %p489 = pneg %p308
        %p490 = pneg %p305
        %p491 = pneg %p336
        %p492 = pneg %p333
        %s493 = sand.u32 %s323, 1
        %s494 = scalar_lea.sflag [#allocation8], %s493
        %s495 = sand.u32 %s323, 1
        %s496 = smul.addr %s495, 8
        %s497 = scalar_lea.vmem [#allocation12], %s496
        %s498 = smul.u32 4, %s37
        %p499 = scmp.lt.s32.totalorder %s36, 1
        %s500 = scalar_select %p499, %s36, 1
        %p501 = scmp.lt.s32.totalorder %s498, 7
        %s502 = scalar_select %p501, %s498, 7
        %s503 = smul.addr %s502, 2
        %s504 = smul.addr %s500, 16
        %s505 = sadd.s32 %s503, %s504
        %s506 = smul.addr %s505, 2
        %s507 = scalar_lea.vmem %s0, %s506
        %s508 = smul.u32 4, %s37
        %s509 = smul.u32 4, %s37
        %p510 = scmp.eq.s32.totalorder %s37, 0
        // Predicated region
        $region81: #{tpu_custom_call.1} parent=67 // pred_check
          %p511 = pneg %p510
        $region82: #{tpu_custom_call.1} parent=67 // pred_check_branch
          %513 = sbr.rel (%p511) target = $region84
        $region83: #{tpu_custom_call.1} parent=67 // pred_region
          %vm514 = vcmask 254976
          %515 = vst.msk [vmem:[#allocation2] sm:$0x3] %vm514, 0.0
          %516 = vst.msk [vmem:[#allocation3] sm:$0x3] %vm514, 0.0
        $region84: #{tpu_custom_call.1} parent=67 // pred_fallthru
          _
        %v517 = vld [vmem:[#allocation6] sm:$0xff]
        %v518 = vld [vmem:[#allocation6 + $0x8] sm:$0xff]
        %v519 = vld [vmem:[#allocation6 + $0x10] sm:$0xff]
        %v520 = vld [vmem:[#allocation6 + $0x18] sm:$0xff]
        %v521 = vld [vmem:[#allocation9] sm:$0xff]
        %v522 = vld [vmem:[#allocation9 + $0x8] sm:$0xff]
        %v523 = vld [vmem:[#allocation9 + $0x10] sm:$0xff]
        %v524 = vld [vmem:[#allocation9 + $0x18] sm:$0xff]
        %v525 = vld [vmem:[#allocation11] sm:$0xff]
        %v526 = vld [vmem:[#allocation11 + $0x8] sm:$0xff]
        %v527 = vld [vmem:[#allocation11 + $0x10] sm:$0xff]
        %v528 = vld [vmem:[#allocation11 + $0x18] sm:$0xff]
        %v529 = vld [vmem:[#allocation11 + $0x20] sm:$0xff]
        %v530 = vld [vmem:[#allocation11 + $0x28] sm:$0xff]
        %v531 = vld [vmem:[#allocation11 + $0x30] sm:$0xff]
        %v532 = vld [vmem:[#allocation11 + $0x38] sm:$0xff]
        %v533 = vld [vmem:[%s4] sm:$0xff]
        %v534 = vld [vmem:[%s4 + $0x8] sm:$0xff]
        %v535 = vld [vmem:[%s4 + $0x10] sm:$0xff]
        %v536 = vld [vmem:[%s4 + $0x18] sm:$0xff]
        %v537 = vld [vmem:[%s5] sm:$0x1]
        %v538 = vld [vmem:[%s6] sm:$0xff]
        %v539 = vld [vmem:[%s6 + $0x8] sm:$0xff]
        %v540 = vld [vmem:[%s6 + $0x10] sm:$0xff]
        %v541 = vld [vmem:[%s6 + $0x18] sm:$0xff]
        %v542 = vld [vmem:[%s7] sm:$0x1]
        %v543 = vld [vmem:[%s8] sm:$0x1]
        %v544 = vld [vmem:[#allocation4] sm:$0x1]
        %v545 = vld [vmem:[%s10] sm:$0x1]
        %v546 = vld [vmem:[#allocation5] sm:$0x1]
        %v547 = vld [vmem:[#allocation2] sm:$0x3]
        %v548 = vld [vmem:[#allocation3] sm:$0x3]
        %v549 = vld [vmem:[%s507] sm:$0xf]
        %vm550 = vcmask 261120
        %v552 = vsel %vm550, %v547, 0
        %554 = vmatprep.subr.mxu0 %v526
        %555 = vmatpush1.msra.mxu0 %v525
        %556 = vmatprep.subr.mxu0 %v528
        %557 = vmatpush1.msra.mxu0 %v527
        %558 = vmatprep.subr.mxu0 %v530
        %559 = vmatpush1.msra.mxu0 %v529
        %560 = vmatprep.subr.mxu0 %v532
        %561 = vmatpush1.msra.mxu0 %v531
        %562 = vmatprep.subr.mxu0 0.0
        %563 = vmatpush1.msra.mxu0 0.0
        %564 = vmatprep.subr.mxu0 0.0
        %565 = vmatpush1.msra.mxu0 0.0
        %566 = vmatprep.subr.mxu0 0.0
        %567 = vmatpush1.msra.mxu0 0.0
        %568 = vmatprep.subr.mxu0 0.0
        %569 = vmatpush1.msra.mxu0 0.0
        %570 = vmatprep.subr.mxu0 0.0
        %571 = vmatpush1.msra.mxu0 0.0
        %572 = vmatprep.subr.mxu0 0.0
        %573 = vmatpush1.msra.mxu0 0.0
        %574 = vmatprep.subr.mxu0 0.0
        %575 = vmatpush1.msra.mxu0 0.0
        %576 = vmatprep.subr.mxu0 0.0
        %577 = vmatpush1.msra.mxu0 0.0
        %578 = vmatprep.subr.mxu0 0.0
        %579 = vmatpush1.msra.mxu0 0.0
        %580 = vmatprep.subr.mxu0 0.0
        %581 = vmatpush1.msra.mxu0 0.0
        %582 = vmatprep.subr.mxu0 0.0
        %583 = vmatpush1.msra.mxu0 0.0
        %584 = vmatprep.subr.mxu0 0.0
        %585 = vmatpush1.msra.mxu0 0.0
        %586 = vmatprep.subr.mxu0 0.0
        %587 = vmatpush1.msra.mxu0 0.0
        %588 = vmatprep.subr.mxu0 0.0
        %589 = vmatpush1.msra.mxu0 0.0
        %590 = vmatprep.subr.mxu0 0.0
        %591 = vmatpush1.msra.mxu0 0.0
        %592 = vmatprep.subr.mxu0 0.0
        %593 = vmatpush1.msra.mxu0 0.0
        %594 = vmatprep.subr.mxu0 0.0
        %595 = vmatpush1.msra.mxu0 0.0
        %596 = vmatprep.subr.mxu0 0.0
        %597 = vmatpush1.msra.mxu0 0.0
        %598 = vmatprep.subr.mxu0 0.0
        %599 = vmatpush1.msra.mxu0 0.0
        %600 = vmatprep.subr.mxu0 0.0
        %601 = vmatpush1.msra.mxu0 0.0
        %602 = vmatprep.subr.mxu0 0.0
        %603 = vmatpush1.msra.mxu0 0.0
        %604 = vmatprep.subr.mxu0 0.0
        %605 = vmatpush1.msra.mxu0 0.0
        %606 = vmatprep.subr.mxu0 0.0
        %607 = vmatpush1.msra.mxu0 0.0
        %608 = vmatprep.subr.mxu0 0.0
        %609 = vmatpush1.msra.mxu0 0.0
        %610 = vmatprep.subr.mxu0 0.0
        %611 = vmatpush1.msra.mxu0 0.0
        %612 = vmatprep.subr.mxu0 0.0
        %613 = vmatpush1.msra.mxu0 0.0
        %614 = vmatprep.subr.mxu0 0.0
        %615 = vmatpush1.msra.mxu0 0.0
        %616 = vmatprep.subr.mxu0 0.0
        %617 = vmatpush1.msra.mxu0 0.0
        %618 = vmatprep.mubr.f32.mxu0 0.0
        %619 = vmatmul.mubr.f32.gmra.mrb[0].mxu0 %v552
        %v620 = vpop.f32.mrb[0].mxu0
        %v621 = vadd.f32 0.0, %v620
        %v622 = vpop.f32.mrb[0].mxu0
        %v623 = vadd.f32 0.0, %v622
        %624 = vdwg.mxu0
        %v627 = vcombine.low %v621, %v623
        %v629 = vunpack.c.l.s4 1983009808
        %v630 = vunpack.c.0.s8 %v629
        %v631 = vlaneseq
        %v632 = vshrl.u32 %v631, 7
        %v633 = vsub.s32 %v630, %v632
        %v634 = vrot.slane %v627, %v633
        %v636 = vadd.f32 %v549, %v634
        %v637 = vsub.f32 0.0, %v636
        %v638 = vmul.f32 %v637, 1.442695
        %v639 = vpow.pop %v638
        %v640 = vadd.f32 %v639, 1.0
        %v641 = vrcp.pop %v640
        %v642 = vtanh.pop %v636
        %v644 = vrot.slane %v636, 2
        %v646 = vsub.f32 0.0, %v644
        %v647 = vmul.f32 %v646, 1.442695
        %v648 = vpow.pop %v647
        %v649 = vadd.f32 %v648, 1.0
        %v650 = vrcp.pop %v649
        %v653 = vunpack.c.l.s4 1983009808
        %v654 = vunpack.c.0.s8 %v653
        %v655 = vlaneseq
        %v656 = vshrl.u32 %v655, 7
        %v657 = vsub.s32 %v654, %v656
        %v658 = vrot.slane %v548, %v657
        %659 = vrot.lane.b32.xlu0 %v658, 32
        %v660 = vpop.permute.xlu0 %659
        %v662 = vmul.f32 %v641, %v660
        %664 = vrot.lane.b32.xlu0 %v642, 64
        %v665 = vpop.permute.xlu0 %664
        %v667 = vmul.f32 %v641, %v665
        %669 = vrot.lane.b32.xlu0 %v667, 32
        %v670 = vpop.permute.xlu0 %669
        %v672 = vadd.f32 %v662, %v670
        %v673 = vtanh.pop %v672
        %675 = vrot.lane.b32.xlu0 %v673, 64
        %v676 = vpop.permute.xlu0 %675
        %v678 = vmul.f32 %v641, %v676
        %679 = vrot.lane.b32.xlu0 %v673, 96
        %v680 = vpop.permute.xlu0 %679
        %v682 = vmul.f32 %v650, %v680
        %v684 = vlaneseq
        %v685 = vshrl.u32 %v684, 7
        %v686 = vsub.s32 0, %v685
        %v687 = vrot.slane %v537, %v686
        %v691 = vunpack.c.l.s4 1983009808
        %v692 = vunpack.c.0.s8 %v691
        %v693 = vlaneseq
        %v694 = vshrl.u32 %v693, 7
        %v695 = vsub.s32 %v692, %v694
        %v696 = vrot.slane %v678, %v695
        %697 = vrot.lane.b32.xlu0 %v696, 32
        %v698 = vpop.permute.xlu0 %697
        %v699 = vsel %vm550, %v698, 0
        %701 = vmatprep.subr.mxu0 0.0
        %702 = vmatpush1.msra.mxu0 %v533
        %703 = vmatprep.subr.mxu0 0.0
        %704 = vmatpush1.msra.mxu0 %v534
        %705 = vmatprep.subr.mxu0 0.0
        %706 = vmatpush1.msra.mxu0 %v535
        %707 = vmatprep.subr.mxu0 0.0
        %708 = vmatpush1.msra.mxu0 %v536
        %709 = vmatprep.subr.mxu0 0.0
        %710 = vmatpush1.msra.mxu0 0.0
        %711 = vmatprep.subr.mxu0 0.0
        %712 = vmatpush1.msra.mxu0 0.0
        %713 = vmatprep.subr.mxu0 0.0
        %714 = vmatpush1.msra.mxu0 0.0
        %715 = vmatprep.subr.mxu0 0.0
        %716 = vmatpush1.msra.mxu0 0.0
        %717 = vmatprep.subr.mxu0 0.0
        %718 = vmatpush1.msra.mxu0 0.0
        %719 = vmatprep.subr.mxu0 0.0
        %720 = vmatpush1.msra.mxu0 0.0
        %721 = vmatprep.subr.mxu0 0.0
        %722 = vmatpush1.msra.mxu0 0.0
        %723 = vmatprep.subr.mxu0 0.0
        %724 = vmatpush1.msra.mxu0 0.0
        %725 = vmatprep.subr.mxu0 0.0
        %726 = vmatpush1.msra.mxu0 0.0
        %727 = vmatprep.subr.mxu0 0.0
        %728 = vmatpush1.msra.mxu0 0.0
        %729 = vmatprep.subr.mxu0 0.0
        %730 = vmatpush1.msra.mxu0 0.0
        %731 = vmatprep.subr.mxu0 0.0
        %732 = vmatpush1.msra.mxu0 0.0
        %733 = vmatprep.subr.mxu0 0.0
        %734 = vmatpush1.msra.mxu0 0.0
        %735 = vmatprep.subr.mxu0 0.0
        %736 = vmatpush1.msra.mxu0 0.0
        %737 = vmatprep.subr.mxu0 0.0
        %738 = vmatpush1.msra.mxu0 0.0
        %739 = vmatprep.subr.mxu0 0.0
        %740 = vmatpush1.msra.mxu0 0.0
        %741 = vmatprep.subr.mxu0 0.0
        %742 = vmatpush1.msra.mxu0 0.0
        %743 = vmatprep.subr.mxu0 0.0
        %744 = vmatpush1.msra.mxu0 0.0
        %745 = vmatprep.subr.mxu0 0.0
        %746 = vmatpush1.msra.mxu0 0.0
        %747 = vmatprep.subr.mxu0 0.0
        %748 = vmatpush1.msra.mxu0 0.0
        %749 = vmatprep.subr.mxu0 0.0
        %750 = vmatpush1.msra.mxu0 0.0
        %751 = vmatprep.subr.mxu0 0.0
        %752 = vmatpush1.msra.mxu0 0.0
        %753 = vmatprep.subr.mxu0 0.0
        %754 = vmatpush1.msra.mxu0 0.0
        %755 = vmatprep.subr.mxu0 0.0
        %756 = vmatpush1.msra.mxu0 0.0
        %757 = vmatprep.subr.mxu0 0.0
        %758 = vmatpush1.msra.mxu0 0.0
        %759 = vmatprep.subr.mxu0 0.0
        %760 = vmatpush1.msra.mxu0 0.0
        %761 = vmatprep.subr.mxu0 0.0
        %762 = vmatpush1.msra.mxu0 0.0
        %763 = vmatprep.subr.mxu0 0.0
        %764 = vmatpush1.msra.mxu0 0.0
        %765 = vmatprep.mubr.f32.mxu0 0.0
        %766 = vmatmul.mubr.f32.gmra.mrb[0].mxu0 %v699
        %v767 = vpop.f32.mrb[0].mxu0
        %v768 = vadd.f32 %v687, %v767
        %v769 = vpop.f32.mrb[0].mxu0
        %770 = vdwg.mxu0
        %v773 = vunpack.c.l.s4 1966171168
        %v774 = vunpack.c.0.s8 %v773
        %v775 = vlaneseq
        %v776 = vshrl.u32 %v775, 7
        %v777 = vsub.s32 %v774, %v776
        %v778 = vrot.slane %v768, %v777
        %v779 = vcombine.high %v778, %v778
        %v781 = vunpack.c.l.s4 1966171168
        %v782 = vunpack.c.0.s8 %v781
        %v783 = vlaneseq
        %v784 = vshrl.u32 %v783, 7
        %v785 = vsub.s32 %v782, %v784
        %v786 = vrot.slane %v778, %v785
        %v788 = vunpack.c.l.s4 1966171168
        %v789 = vunpack.c.0.s8 %v788
        %v790 = vlaneseq
        %v791 = vshrl.u32 %v790, 7
        %v792 = vsub.s32 %v789, %v791
        %v793 = vrot.slane %v779, %v792
        %v794 = vlaneseq
        %v795 = vshrl.u32 %v794, 7
        %v796 = vsub.s32 0, %v795
        %v797 = vrot.slane %v786, %v796
        %v798 = vlaneseq
        %v799 = vshrl.u32 %v798, 7
        %v800 = vsub.s32 0, %v799
        %v801 = vrot.slane %v793, %v800
        %v804 = vadd.f32 %v521, %v797
        %v805 = vadd.f32 %v522, %v797
        %v806 = vadd.f32 %v523, %v801
        %v807 = vadd.f32 %v524, %v801
        %v808 = vtanh.pop %v804
        %v809 = vtanh.pop %v805
        %v810 = vtanh.pop %v806
        %v811 = vtanh.pop %v807
        %v813 = vlaneseq
        %v814 = vshrl.u32 %v813, 7
        %v815 = vsub.s32 0, %v814
        %v816 = vrot.slane %v543, %v815
        %v818 = vmul.f32 %v808, %v816
        %v819 = vmul.f32 %v809, %v816
        %v820 = vmul.f32 %v810, %v816
        %v821 = vmul.f32 %v811, %v816
        %vm822 = vcmask 130048
        %v823 = vsel %vm822, %v818, 0.0
        %824 = vadd.xlane.f32.xlu0 %v823
        %v825 = vpop.xlane.xlu0 %824
        %v826 = vsel %vm822, %v819, 0.0
        %827 = vadd.xlane.f32.xlu0 %v826
        %v828 = vpop.xlane.xlu0 %827
        %v829 = vsel %vm822, %v820, 0.0
        %830 = vadd.xlane.f32.xlu0 %v829
        %v831 = vpop.xlane.xlu0 %830
        %v832 = vsel %vm822, %v821, 0.0
        %833 = vadd.xlane.f32.xlu0 %v832
        %v834 = vpop.xlane.xlu0 %833
        %v836 = vlaneseq
        %v837 = vshrl.u32 %v836, 7
        %v838 = vsub.s32 0, %v837
        %v839 = vrot.slane %v544, %v838
        %840 = vset.pattern.permute.xlu0 0
        %841 = vperm.xlu0 %840, %v839
        %v842 = vpop.permute.xlu0 %841
        %v844 = vadd.f32 %v825, %v842
        %v845 = vadd.f32 %v828, %v842
        %v846 = vadd.f32 %v831, %v842
        %v847 = vadd.f32 %v834, %v842
        %v852 = vlaneseq
        %v853 = vand.u32 %v852, 127
        %v854 = vlaneseq
        %v855 = vshrl.u32 %v854, 7
        %v856 = vsub.s32 %v853, %v855
        %v857 = vrot.slane %v844, %v856
        %v858 = vadd.s32 %v853, 4294967288
        %v859 = vlaneseq
        %v860 = vshrl.u32 %v859, 7
        %v861 = vsub.s32 %v858, %v860
        %v862 = vrot.slane %v845, %v861
        %vm863 = vcmask 130112
        %v864 = vsel %vm863, %v862, %v857
        %v865 = vlaneseq
        %v866 = vshrl.u32 %v865, 7
        %v867 = vsub.s32 %v853, %v866
        %v868 = vrot.slane %v846, %v867
        %v869 = vlaneseq
        %v870 = vshrl.u32 %v869, 7
        %v871 = vsub.s32 %v858, %v870
        %v872 = vrot.slane %v847, %v871
        %v873 = vsel %vm863, %v872, %v868
        %vm874 = vcmask 1041409
        %v875 = vsel %vm874, %v873, %v864
        %vm877 = vcmask 123904
        %v878 = vsel %vm877, %v875, -inf
        %879 = vmax.xlane.f32.xlu0 %v878
        %v880 = vpop.xlane.xlu0 %879
        %v882 = vlaneseq
        %v883 = vshrl.u32 %v882, 7
        %v884 = vsub.s32 0, %v883
        %v885 = vrot.slane %v880, %v884
        %v886 = vlaneseq
        %v887 = vshrl.u32 %v886, 7
        %v888 = vsub.s32 1, %v887
        %v889 = vrot.slane %v880, %v888
        %v892 = vsub.f32 %v844, %v885
        %v893 = vsub.f32 %v845, %v885
        %v894 = vsub.f32 %v846, %v889
        %v895 = vsub.f32 %v847, %v889
        %v896 = vmul.f32 %v892, 1.442695
        %v897 = vpow.pop %v896
        %v898 = vmul.f32 %v893, 1.442695
        %v899 = vpow.pop %v898
        %v900 = vmul.f32 %v894, 1.442695
        %v901 = vpow.pop %v900
        %v902 = vmul.f32 %v895, 1.442695
        %v903 = vpow.pop %v902
        %908 = vset.pattern.permute.xlu0 0
        %909 = vperm.xlu0 %908, %v897
        %v910 = vpop.permute.xlu0 %909
        %911 = vset.pattern.permute.xlu0 0
        %912 = vperm.xlu0 %911, %v899
        %v913 = vpop.permute.xlu0 %912
        %914 = vset.pattern.permute.xlu0 0
        %915 = vperm.xlu0 %914, %v901
        %v916 = vpop.permute.xlu0 %915
        %917 = vset.pattern.permute.xlu0 0
        %918 = vperm.xlu0 %917, %v903
        %v919 = vpop.permute.xlu0 %918
        %v920 = vlaneseq
        %v921 = vshrl.u32 %v920, 7
        %v922 = vsub.s32 %v853, %v921
        %v923 = vrot.slane %v910, %v922
        %v924 = vlaneseq
        %v925 = vshrl.u32 %v924, 7
        %v926 = vsub.s32 %v858, %v925
        %v927 = vrot.slane %v913, %v926
        %v928 = vsel %vm863, %v927, %v923
        %v929 = vlaneseq
        %v930 = vshrl.u32 %v929, 7
        %v931 = vsub.s32 %v853, %v930
        %v932 = vrot.slane %v916, %v931
        %v933 = vlaneseq
        %v934 = vshrl.u32 %v933, 7
        %v935 = vsub.s32 %v858, %v934
        %v936 = vrot.slane %v919, %v935
        %v937 = vsel %vm863, %v936, %v932
        %v938 = vsel %vm874, %v937, %v928
        %v940 = vsel %vm877, %v938, 0.0
        %941 = vadd.xlane.f32.xlu0 %v940
        %v942 = vpop.xlane.xlu0 %941
        %v943 = vrcp.pop %v942
        %v945 = vlaneseq
        %v946 = vshrl.u32 %v945, 7
        %v947 = vsub.s32 0, %v946
        %v948 = vrot.slane %v943, %v947
        %v949 = vlaneseq
        %v950 = vshrl.u32 %v949, 7
        %v951 = vsub.s32 1, %v950
        %v952 = vrot.slane %v943, %v951
        %v955 = vmul.f32 %v897, %v948
        %v956 = vmul.f32 %v899, %v948
        %v957 = vmul.f32 %v901, %v952
        %v958 = vmul.f32 %v903, %v952
        %960 = vset.pattern.permute.xlu0 0
        %961 = vperm.xlu0 %960, %v955
        %v962 = vpop.permute.xlu0 %961
        %965 = vset.pattern.permute.xlu0 0
        %966 = vperm.xlu0 %965, %v956
        %v967 = vpop.permute.xlu0 %966
        %970 = vset.pattern.permute.xlu0 0
        %971 = vperm.xlu0 %970, %v957
        %v972 = vpop.permute.xlu0 %971
        %975 = vset.pattern.permute.xlu0 0
        %976 = vperm.xlu0 %975, %v958
        %v977 = vpop.permute.xlu0 %976
        %v979 = vmul.f32 %v517, %v962
        %v980 = vmul.f32 %v518, %v967
        %v981 = vmul.f32 %v519, %v972
        %v982 = vmul.f32 %v520, %v977
        %v983 = vsel %vm550, %v979, 0.0
        %v984 = vsel %vm550, %v980, 0.0
        %v985 = vadd.f32 %v983, %v984
        %v986 = vrot.slane %v985, 4
        %v987 = vadd.f32 %v985, %v986
        %v988 = vrot.slane %v987, 2
        %v989 = vadd.f32 %v987, %v988
        %v990 = vrot.slane %v989, 1
        %v991 = vadd.f32 %v989, %v990
        %v992 = vsel %vm550, %v981, 0.0
        %v993 = vsel %vm550, %v982, 0.0
        %v994 = vadd.f32 %v992, %v993
        %v995 = vrot.slane %v994, 4
        %v996 = vadd.f32 %v994, %v995
        %v997 = vrot.slane %v996, 2
        %v998 = vadd.f32 %v996, %v997
        %v999 = vrot.slane %v998, 1
        %v1000 = vadd.f32 %v998, %v999
        %v1002 = vlaneseq
        %v1003 = vshrl.u32 %v1002, 7
        %v1004 = vsub.s32 0, %v1003
        %v1005 = vrot.slane %v542, %v1004
        %v1008 = vsel %vm550, %v682, 0
        %1010 = vmatprep.subr.mxu0 0.0
        %1011 = vmatpush1.msra.mxu0 %v538
        %1012 = vmatprep.subr.mxu0 0.0
        %1013 = vmatpush1.msra.mxu0 %v539
        %1014 = vmatprep.subr.mxu0 0.0
        %1015 = vmatpush1.msra.mxu0 %v540
        %1016 = vmatprep.subr.mxu0 0.0
        %1017 = vmatpush1.msra.mxu0 %v541
        %1018 = vmatprep.subr.mxu0 0.0
        %1019 = vmatpush1.msra.mxu0 0.0
        %1020 = vmatprep.subr.mxu0 0.0
        %1021 = vmatpush1.msra.mxu0 0.0
        %1022 = vmatprep.subr.mxu0 0.0
        %1023 = vmatpush1.msra.mxu0 0.0
        %1024 = vmatprep.subr.mxu0 0.0
        %1025 = vmatpush1.msra.mxu0 0.0
        %1026 = vmatprep.subr.mxu0 0.0
        %1027 = vmatpush1.msra.mxu0 0.0
        %1028 = vmatprep.subr.mxu0 0.0
        %1029 = vmatpush1.msra.mxu0 0.0
        %1030 = vmatprep.subr.mxu0 0.0
        %1031 = vmatpush1.msra.mxu0 0.0
        %1032 = vmatprep.subr.mxu0 0.0
        %1033 = vmatpush1.msra.mxu0 0.0
        %1034 = vmatprep.subr.mxu0 0.0
        %1035 = vmatpush1.msra.mxu0 0.0
        %1036 = vmatprep.subr.mxu0 0.0
        %1037 = vmatpush1.msra.mxu0 0.0
        %1038 = vmatprep.subr.mxu0 0.0
        %1039 = vmatpush1.msra.mxu0 0.0
        %1040 = vmatprep.subr.mxu0 0.0
        %1041 = vmatpush1.msra.mxu0 0.0
        %1042 = vmatprep.subr.mxu0 0.0
        %1043 = vmatpush1.msra.mxu0 0.0
        %1044 = vmatprep.subr.mxu0 0.0
        %1045 = vmatpush1.msra.mxu0 0.0
        %1046 = vmatprep.subr.mxu0 0.0
        %1047 = vmatpush1.msra.mxu0 0.0
        %1048 = vmatprep.subr.mxu0 0.0
        %1049 = vmatpush1.msra.mxu0 0.0
        %1050 = vmatprep.subr.mxu0 0.0
        %1051 = vmatpush1.msra.mxu0 0.0
        %1052 = vmatprep.subr.mxu0 0.0
        %1053 = vmatpush1.msra.mxu0 0.0
        %1054 = vmatprep.subr.mxu0 0.0
        %1055 = vmatpush1.msra.mxu0 0.0
        %1056 = vmatprep.subr.mxu0 0.0
        %1057 = vmatpush1.msra.mxu0 0.0
        %1058 = vmatprep.subr.mxu0 0.0
        %1059 = vmatpush1.msra.mxu0 0.0
        %1060 = vmatprep.subr.mxu0 0.0
        %1061 = vmatpush1.msra.mxu0 0.0
        %1062 = vmatprep.subr.mxu0 0.0
        %1063 = vmatpush1.msra.mxu0 0.0
        %1064 = vmatprep.subr.mxu0 0.0
        %1065 = vmatpush1.msra.mxu0 0.0
        %1066 = vmatprep.subr.mxu0 0.0
        %1067 = vmatpush1.msra.mxu0 0.0
        %1068 = vmatprep.subr.mxu0 0.0
        %1069 = vmatpush1.msra.mxu0 0.0
        %1070 = vmatprep.subr.mxu0 0.0
        %1071 = vmatpush1.msra.mxu0 0.0
        %1072 = vmatprep.subr.mxu0 0.0
        %1073 = vmatpush1.msra.mxu0 0.0
        %1074 = vmatprep.mubr.f32.mxu0 0.0
        %1075 = vmatmul.mubr.f32.gmra.mrb[0].mxu0 %v1008
        %v1076 = vpop.f32.mrb[0].mxu0
        %v1077 = vadd.f32 %v1005, %v1076
        %v1078 = vpop.f32.mrb[0].mxu0
        %1079 = vdwg.mxu0
        %v1080 = vadd.f32 %v1077, %v768
        %v1081 = vtanh.pop %v1080
        %v1083 = vlaneseq
        %v1084 = vshrl.u32 %v1083, 7
        %v1085 = vsub.s32 0, %v1084
        %v1086 = vrot.slane %v545, %v1085
        %v1088 = vmul.f32 %v1081, %v1086
        %v1089 = vsel %vm877, %v1088, 0.0
        %1090 = vadd.xlane.f32.xlu0 %v1089
        %v1091 = vpop.xlane.xlu0 %1090
        %v1093 = vlaneseq
        %v1094 = vshrl.u32 %v1093, 7
        %v1095 = vsub.s32 0, %v1094
        %v1096 = vrot.slane %v546, %v1095
        %v1098 = vadd.f32 %v1091, %v1096
        %v1099 = vmax.f32 %v880, %v1098
        %v1100 = vsub.f32 %v1098, %v1099
        %v1101 = vmul.f32 %v1100, 1.442695
        %v1102 = vpow.pop %v1101
        %1104 = vset.pattern.permute.xlu0 0
        %1105 = vperm.xlu0 %1104, %v1099
        %v1106 = vpop.permute.xlu0 %1105
        %v1107 = vlaneseq
        %v1108 = vshrl.u32 %v1107, 7
        %v1109 = vsub.s32 0, %v1108
        %v1110 = vrot.slane %v1106, %v1109
        %v1111 = vlaneseq
        %v1112 = vshrl.u32 %v1111, 7
        %v1113 = vsub.s32 1, %v1112
        %v1114 = vrot.slane %v1106, %v1113
        %v1117 = vsub.f32 %v844, %v1110
        %v1118 = vsub.f32 %v845, %v1110
        %v1119 = vsub.f32 %v846, %v1114
        %v1120 = vsub.f32 %v847, %v1114
        %v1121 = vmul.f32 %v1117, 1.442695
        %v1122 = vpow.pop %v1121
        %v1123 = vmul.f32 %v1118, 1.442695
        %v1124 = vpow.pop %v1123
        %v1125 = vmul.f32 %v1119, 1.442695
        %v1126 = vpow.pop %v1125
        %v1127 = vmul.f32 %v1120, 1.442695
        %v1128 = vpow.pop %v1127
        %1133 = vset.pattern.permute.xlu0 0
        %1134 = vperm.xlu0 %1133, %v1122
        %v1135 = vpop.permute.xlu0 %1134
        %1136 = vset.pattern.permute.xlu0 0
        %1137 = vperm.xlu0 %1136, %v1124
        %v1138 = vpop.permute.xlu0 %1137
        %1139 = vset.pattern.permute.xlu0 0
        %1140 = vperm.xlu0 %1139, %v1126
        %v1141 = vpop.permute.xlu0 %1140
        %1142 = vset.pattern.permute.xlu0 0
        %1143 = vperm.xlu0 %1142, %v1128
        %v1144 = vpop.permute.xlu0 %1143
        %v1145 = vlaneseq
        %v1146 = vshrl.u32 %v1145, 7
        %v1147 = vsub.s32 %v853, %v1146
        %v1148 = vrot.slane %v1135, %v1147
        %v1149 = vlaneseq
        %v1150 = vshrl.u32 %v1149, 7
        %v1151 = vsub.s32 %v858, %v1150
        %v1152 = vrot.slane %v1138, %v1151
        %v1153 = vsel %vm863, %v1152, %v1148
        %v1154 = vlaneseq
        %v1155 = vshrl.u32 %v1154, 7
        %v1156 = vsub.s32 %v853, %v1155
        %v1157 = vrot.slane %v1141, %v1156
        %v1158 = vlaneseq
        %v1159 = vshrl.u32 %v1158, 7
        %v1160 = vsub.s32 %v858, %v1159
        %v1161 = vrot.slane %v1144, %v1160
        %v1162 = vsel %vm863, %v1161, %v1157
        %v1163 = vsel %vm874, %v1162, %v1153
        %v1165 = vsel %vm877, %v1163, 0.0
        %1166 = vadd.xlane.f32.xlu0 %v1165
        %v1167 = vpop.xlane.xlu0 %1166
        %v1168 = vadd.f32 %v1167, %v1102
        %v1169 = vrcp.pop %v1168
        %v1170 = vmul.f32 %v1102, %v1169
        %1172 = vset.pattern.permute.xlu0 0
        %1173 = vperm.xlu0 %1172, %v1170
        %v1174 = vpop.permute.xlu0 %1173
        %v1176 = vmul.f32 %v1174, %v682
        %v1177 = vsub.f32 1.0, %v1170
        %1179 = vset.pattern.permute.xlu0 0
        %1180 = vperm.xlu0 %1179, %v1177
        %v1181 = vpop.permute.xlu0 %1180
        %v1185 = vsel %vm874, %v1000, %v991
        %v1187 = vmul.f32 %v1181, %v1185
        %v1188 = vadd.f32 %v1176, %v1187
        %v1190 = vadd.f32 %v1188, %v698
        %vm1191 = vcmask 254976
        %1192 = vst.msk [vmem:[%s497] sm:$0x3] %vm1191, %v1190
        %s1193 = scalar_lea.vmem %s507, 4
        %v1194 = vld [vmem:[%s1193] sm:$0xf]
        %1195 = vmatprep.subr.mxu0 %v526
        %1196 = vmatpush1.msra.mxu0 %v525
        %1197 = vmatprep.subr.mxu0 %v528
        %1198 = vmatpush1.msra.mxu0 %v527
        %1199 = vmatprep.subr.mxu0 %v530
        %1200 = vmatpush1.msra.mxu0 %v529
        %1201 = vmatprep.subr.mxu0 %v532
        %1202 = vmatpush1.msra.mxu0 %v531
        %1203 = vmatprep.subr.mxu0 0.0
        %1204 = vmatpush1.msra.mxu0 0.0
        %1205 = vmatprep.subr.mxu0 0.0
        %1206 = vmatpush1.msra.mxu0 0.0
        %1207 = vmatprep.subr.mxu0 0.0
        %1208 = vmatpush1.msra.mxu0 0.0
        %1209 = vmatprep.subr.mxu0 0.0
        %1210 = vmatpush1.msra.mxu0 0.0
        %1211 = vmatprep.subr.mxu0 0.0
        %1212 = vmatpush1.msra.mxu0 0.0
        %1213 = vmatprep.subr.mxu0 0.0
        %1214 = vmatpush1.msra.mxu0 0.0
        %1215 = vmatprep.subr.mxu0 0.0
        %1216 = vmatpush1.msra.mxu0 0.0
        %1217 = vmatprep.subr.mxu0 0.0
        %1218 = vmatpush1.msra.mxu0 0.0
        %1219 = vmatprep.subr.mxu0 0.0
        %1220 = vmatpush1.msra.mxu0 0.0
        %1221 = vmatprep.subr.mxu0 0.0
        %1222 = vmatpush1.msra.mxu0 0.0
        %1223 = vmatprep.subr.mxu0 0.0
        %1224 = vmatpush1.msra.mxu0 0.0
        %1225 = vmatprep.subr.mxu0 0.0
        %1226 = vmatpush1.msra.mxu0 0.0
        %1227 = vmatprep.subr.mxu0 0.0
        %1228 = vmatpush1.msra.mxu0 0.0
        %1229 = vmatprep.subr.mxu0 0.0
        %1230 = vmatpush1.msra.mxu0 0.0
        %1231 = vmatprep.subr.mxu0 0.0
        %1232 = vmatpush1.msra.mxu0 0.0
        %1233 = vmatprep.subr.mxu0 0.0
        %1234 = vmatpush1.msra.mxu0 0.0
        %1235 = vmatprep.subr.mxu0 0.0
        %1236 = vmatpush1.msra.mxu0 0.0
        %1237 = vmatprep.subr.mxu0 0.0
        %1238 = vmatpush1.msra.mxu0 0.0
        %1239 = vmatprep.subr.mxu0 0.0
        %1240 = vmatpush1.msra.mxu0 0.0
        %1241 = vmatprep.subr.mxu0 0.0
        %1242 = vmatpush1.msra.mxu0 0.0
        %1243 = vmatprep.subr.mxu0 0.0
        %1244 = vmatpush1.msra.mxu0 0.0
        %1245 = vmatprep.subr.mxu0 0.0
        %1246 = vmatpush1.msra.mxu0 0.0
        %1247 = vmatprep.subr.mxu0 0.0
        %1248 = vmatpush1.msra.mxu0 0.0
        %1249 = vmatprep.subr.mxu0 0.0
        %1250 = vmatpush1.msra.mxu0 0.0
        %1251 = vmatprep.subr.mxu0 0.0
        %1252 = vmatpush1.msra.mxu0 0.0
        %1253 = vmatprep.subr.mxu0 0.0
        %1254 = vmatpush1.msra.mxu0 0.0
        %1255 = vmatprep.subr.mxu0 0.0
        %1256 = vmatpush1.msra.mxu0 0.0
        %1257 = vmatprep.subr.mxu0 0.0
        %1258 = vmatpush1.msra.mxu0 0.0
        %1259 = vmatprep.mubr.f32.mxu0 0.0
        %1260 = vmatmul.mubr.f32.gmra.mrb[0].mxu0 %v699
        %v1261 = vpop.f32.mrb[0].mxu0
        %v1262 = vadd.f32 0.0, %v1261
        %v1263 = vpop.f32.mrb[0].mxu0
        %v1264 = vadd.f32 0.0, %v1263
        %1265 = vdwg.mxu0
        %v1268 = vcombine.low %v1262, %v1264
        %v1270 = vunpack.c.l.s4 1983009808
        %v1271 = vunpack.c.0.s8 %v1270
        %v1272 = vlaneseq
        %v1273 = vshrl.u32 %v1272, 7
        %v1274 = vsub.s32 %v1271, %v1273
        %v1275 = vrot.slane %v1268, %v1274
        %v1277 = vadd.f32 %v1194, %v1275
        %v1278 = vsub.f32 0.0, %v1277
        %v1279 = vmul.f32 %v1278, 1.442695
        %v1280 = vpow.pop %v1279
        %v1281 = vadd.f32 %v1280, 1.0
        %v1282 = vrcp.pop %v1281
        %v1283 = vtanh.pop %v1277
        %v1285 = vrot.slane %v1277, 2
        %v1287 = vsub.f32 0.0, %v1285
        %v1288 = vmul.f32 %v1287, 1.442695
        %v1289 = vpow.pop %v1288
        %v1290 = vadd.f32 %v1289, 1.0
        %v1291 = vrcp.pop %v1290
        %v1292 = vmul.f32 %v1282, %v672
        %1294 = vrot.lane.b32.xlu0 %v1283, 64
        %v1295 = vpop.permute.xlu0 %1294
        %v1297 = vmul.f32 %v1282, %v1295
        %1299 = vrot.lane.b32.xlu0 %v1297, 32
        %v1300 = vpop.permute.xlu0 %1299
        %v1302 = vadd.f32 %v1292, %v1300
        %v1303 = vtanh.pop %v1302
        %1305 = vrot.lane.b32.xlu0 %v1303, 64
        %v1306 = vpop.permute.xlu0 %1305
        %v1308 = vmul.f32 %v1282, %v1306
        %1309 = vrot.lane.b32.xlu0 %v1303, 96
        %v1310 = vpop.permute.xlu0 %1309
        %v1312 = vmul.f32 %v1291, %v1310
        %v1315 = vunpack.c.l.s4 1983009808
        %v1316 = vunpack.c.0.s8 %v1315
        %v1317 = vlaneseq
        %v1318 = vshrl.u32 %v1317, 7
        %v1319 = vsub.s32 %v1316, %v1318
        %v1320 = vrot.slane %v1308, %v1319
        %1321 = vrot.lane.b32.xlu0 %v1320, 32
        %v1322 = vpop.permute.xlu0 %1321
        %v1323 = vsel %vm550, %v1322, 0
        %1325 = vmatprep.subr.mxu0 0.0
        %1326 = vmatpush1.msra.mxu0 %v533
        %1327 = vmatprep.subr.mxu0 0.0
        %1328 = vmatpush1.msra.mxu0 %v534
        %1329 = vmatprep.subr.mxu0 0.0
        %1330 = vmatpush1.msra.mxu0 %v535
        %1331 = vmatprep.subr.mxu0 0.0
        %1332 = vmatpush1.msra.mxu0 %v536
        %1333 = vmatprep.subr.mxu0 0.0
        %1334 = vmatpush1.msra.mxu0 0.0
        %1335 = vmatprep.subr.mxu0 0.0
        %1336 = vmatpush1.msra.mxu0 0.0
        %1337 = vmatprep.subr.mxu0 0.0
        %1338 = vmatpush1.msra.mxu0 0.0
        %1339 = vmatprep.subr.mxu0 0.0
        %1340 = vmatpush1.msra.mxu0 0.0
        %1341 = vmatprep.subr.mxu0 0.0
        %1342 = vmatpush1.msra.mxu0 0.0
        %1343 = vmatprep.subr.mxu0 0.0
        %1344 = vmatpush1.msra.mxu0 0.0
        %1345 = vmatprep.subr.mxu0 0.0
        %1346 = vmatpush1.msra.mxu0 0.0
        %1347 = vmatprep.subr.mxu0 0.0
        %1348 = vmatpush1.msra.mxu0 0.0
        %1349 = vmatprep.subr.mxu0 0.0
        %1350 = vmatpush1.msra.mxu0 0.0
        %1351 = vmatprep.subr.mxu0 0.0
        %1352 = vmatpush1.msra.mxu0 0.0
        %1353 = vmatprep.subr.mxu0 0.0
        %1354 = vmatpush1.msra.mxu0 0.0
        %1355 = vmatprep.subr.mxu0 0.0
        %1356 = vmatpush1.msra.mxu0 0.0
        %1357 = vmatprep.subr.mxu0 0.0
        %1358 = vmatpush1.msra.mxu0 0.0
        %1359 = vmatprep.subr.mxu0 0.0
        %1360 = vmatpush1.msra.mxu0 0.0
        %1361 = vmatprep.subr.mxu0 0.0
        %1362 = vmatpush1.msra.mxu0 0.0
        %1363 = vmatprep.subr.mxu0 0.0
        %1364 = vmatpush1.msra.mxu0 0.0
        %1365 = vmatprep.subr.mxu0 0.0
        %1366 = vmatpush1.msra.mxu0 0.0
        %1367 = vmatprep.subr.mxu0 0.0
        %1368 = vmatpush1.msra.mxu0 0.0
        %1369 = vmatprep.subr.mxu0 0.0
        %1370 = vmatpush1.msra.mxu0 0.0
        %1371 = vmatprep.subr.mxu0 0.0
        %1372 = vmatpush1.msra.mxu0 0.0
        %1373 = vmatprep.subr.mxu0 0.0
        %1374 = vmatpush1.msra.mxu0 0.0
        %1375 = vmatprep.subr.mxu0 0.0
        %1376 = vmatpush1.msra.mxu0 0.0
        %1377 = vmatprep.subr.mxu0 0.0
        %1378 = vmatpush1.msra.mxu0 0.0
        %1379 = vmatprep.subr.mxu0 0.0
        %1380 = vmatpush1.msra.mxu0 0.0
        %1381 = vmatprep.subr.mxu0 0.0
        %1382 = vmatpush1.msra.mxu0 0.0
        %1383 = vmatprep.subr.mxu0 0.0
        %1384 = vmatpush1.msra.mxu0 0.0
        %1385 = vmatprep.subr.mxu0 0.0
        %1386 = vmatpush1.msra.mxu0 0.0
        %1387 = vmatprep.subr.mxu0 0.0
        %1388 = vmatpush1.msra.mxu0 0.0
        %1389 = vmatprep.mubr.f32.mxu0 0.0
        %1390 = vmatmul.mubr.f32.gmra.mrb[0].mxu0 %v1323
        %v1391 = vpop.f32.mrb[0].mxu0
        %v1392 = vadd.f32 %v687, %v1391
        %v1393 = vpop.f32.mrb[0].mxu0
        %1394 = vdwg.mxu0
        %v1397 = vunpack.c.l.s4 1966171168
        %v1398 = vunpack.c.0.s8 %v1397
        %v1399 = vlaneseq
        %v1400 = vshrl.u32 %v1399, 7
        %v1401 = vsub.s32 %v1398, %v1400
        %v1402 = vrot.slane %v1392, %v1401
        %v1403 = vcombine.high %v1402, %v1402
        %v1405 = vunpack.c.l.s4 1966171168
        %v1406 = vunpack.c.0.s8 %v1405
        %v1407 = vlaneseq
        %v1408 = vshrl.u32 %v1407, 7
        %v1409 = vsub.s32 %v1406, %v1408
        %v1410 = vrot.slane %v1402, %v1409
        %v1412 = vunpack.c.l.s4 1966171168
        %v1413 = vunpack.c.0.s8 %v1412
        %v1414 = vlaneseq
        %v1415 = vshrl.u32 %v1414, 7
        %v1416 = vsub.s32 %v1413, %v1415
        %v1417 = vrot.slane %v1403, %v1416
        %v1418 = vlaneseq
        %v1419 = vshrl.u32 %v1418, 7
        %v1420 = vsub.s32 0, %v1419
        %v1421 = vrot.slane %v1410, %v1420
        %v1422 = vlaneseq
        %v1423 = vshrl.u32 %v1422, 7
        %v1424 = vsub.s32 0, %v1423
        %v1425 = vrot.slane %v1417, %v1424
        %v1428 = vadd.f32 %v521, %v1421
        %v1429 = vadd.f32 %v522, %v1421
        %v1430 = vadd.f32 %v523, %v1425
        %v1431 = vadd.f32 %v524, %v1425
        %v1432 = vtanh.pop %v1428
        %v1433 = vtanh.pop %v1429
        %v1434 = vtanh.pop %v1430
        %v1435 = vtanh.pop %v1431
        %v1436 = vmul.f32 %v1432, %v816
        %v1437 = vmul.f32 %v1433, %v816
        %v1438 = vmul.f32 %v1434, %v816
        %v1439 = vmul.f32 %v1435, %v816
        %v1440 = vsel %vm822, %v1436, 0.0
        %1441 = vadd.xlane.f32.xlu0 %v1440
        %v1442 = vpop.xlane.xlu0 %1441
        %v1443 = vsel %vm822, %v1437, 0.0
        %1444 = vadd.xlane.f32.xlu0 %v1443
        %v1445 = vpop.xlane.xlu0 %1444
        %v1446 = vsel %vm822, %v1438, 0.0
        %1447 = vadd.xlane.f32.xlu0 %v1446
        %v1448 = vpop.xlane.xlu0 %1447
        %v1449 = vsel %vm822, %v1439, 0.0
        %1450 = vadd.xlane.f32.xlu0 %v1449
        %v1451 = vpop.xlane.xlu0 %1450
        %v1452 = vadd.f32 %v1442, %v842
        %v1453 = vadd.f32 %v1445, %v842
        %v1454 = vadd.f32 %v1448, %v842
        %v1455 = vadd.f32 %v1451, %v842
        %v1460 = vlaneseq
        %v1461 = vshrl.u32 %v1460, 7
        %v1462 = vsub.s32 %v853, %v1461
        %v1463 = vrot.slane %v1452, %v1462
        %v1464 = vlaneseq
        %v1465 = vshrl.u32 %v1464, 7
        %v1466 = vsub.s32 %v858, %v1465
        %v1467 = vrot.slane %v1453, %v1466
        %v1468 = vsel %vm863, %v1467, %v1463
        %v1469 = vlaneseq
        %v1470 = vshrl.u32 %v1469, 7
        %v1471 = vsub.s32 %v853, %v1470
        %v1472 = vrot.slane %v1454, %v1471
        %v1473 = vlaneseq
        %v1474 = vshrl.u32 %v1473, 7
        %v1475 = vsub.s32 %v858, %v1474
        %v1476 = vrot.slane %v1455, %v1475
        %v1477 = vsel %vm863, %v1476, %v1472
        %v1478 = vsel %vm874, %v1477, %v1468
        %v1480 = vsel %vm877, %v1478, -inf
        %1481 = vmax.xlane.f32.xlu0 %v1480
        %v1482 = vpop.xlane.xlu0 %1481
        %v1484 = vlaneseq
        %v1485 = vshrl.u32 %v1484, 7
        %v1486 = vsub.s32 0, %v1485
        %v1487 = vrot.slane %v1482, %v1486
        %v1488 = vlaneseq
        %v1489 = vshrl.u32 %v1488, 7
        %v1490 = vsub.s32 1, %v1489
        %v1491 = vrot.slane %v1482, %v1490
        %v1494 = vsub.f32 %v1452, %v1487
        %v1495 = vsub.f32 %v1453, %v1487
        %v1496 = vsub.f32 %v1454, %v1491
        %v1497 = vsub.f32 %v1455, %v1491
        %v1498 = vmul.f32 %v1494, 1.442695
        %v1499 = vpow.pop %v1498
        %v1500 = vmul.f32 %v1495, 1.442695
        %v1501 = vpow.pop %v1500
        %v1502 = vmul.f32 %v1496, 1.442695
        %v1503 = vpow.pop %v1502
        %v1504 = vmul.f32 %v1497, 1.442695
        %v1505 = vpow.pop %v1504
        %1510 = vset.pattern.permute.xlu0 0
        %1511 = vperm.xlu0 %1510, %v1499
        %v1512 = vpop.permute.xlu0 %1511
        %1513 = vset.pattern.permute.xlu0 0
        %1514 = vperm.xlu0 %1513, %v1501
        %v1515 = vpop.permute.xlu0 %1514
        %1516 = vset.pattern.permute.xlu0 0
        %1517 = vperm.xlu0 %1516, %v1503
        %v1518 = vpop.permute.xlu0 %1517
        %1519 = vset.pattern.permute.xlu0 0
        %1520 = vperm.xlu0 %1519, %v1505
        %v1521 = vpop.permute.xlu0 %1520
        %v1522 = vlaneseq
        %v1523 = vshrl.u32 %v1522, 7
        %v1524 = vsub.s32 %v853, %v1523
        %v1525 = vrot.slane %v1512, %v1524
        %v1526 = vlaneseq
        %v1527 = vshrl.u32 %v1526, 7
        %v1528 = vsub.s32 %v858, %v1527
        %v1529 = vrot.slane %v1515, %v1528
        %v1530 = vsel %vm863, %v1529, %v1525
        %v1531 = vlaneseq
        %v1532 = vshrl.u32 %v1531, 7
        %v1533 = vsub.s32 %v853, %v1532
        %v1534 = vrot.slane %v1518, %v1533
        %v1535 = vlaneseq
        %v1536 = vshrl.u32 %v1535, 7
        %v1537 = vsub.s32 %v858, %v1536
        %v1538 = vrot.slane %v1521, %v1537
        %v1539 = vsel %vm863, %v1538, %v1534
        %v1540 = vsel %vm874, %v1539, %v1530
        %v1542 = vsel %vm877, %v1540, 0.0
        %1543 = vadd.xlane.f32.xlu0 %v1542
        %v1544 = vpop.xlane.xlu0 %1543
        %v1545 = vrcp.pop %v1544
        %v1547 = vlaneseq
        %v1548 = vshrl.u32 %v1547, 7
        %v1549 = vsub.s32 0, %v1548
        %v1550 = vrot.slane %v1545, %v1549
        %v1551 = vlaneseq
        %v1552 = vshrl.u32 %v1551, 7
        %v1553 = vsub.s32 1, %v1552
        %v1554 = vrot.slane %v1545, %v1553
        %v1557 = vmul.f32 %v1499, %v1550
        %v1558 = vmul.f32 %v1501, %v1550
        %v1559 = vmul.f32 %v1503, %v1554
        %v1560 = vmul.f32 %v1505, %v1554
        %1562 = vset.pattern.permute.xlu0 0
        %1563 = vperm.xlu0 %1562, %v1557
        %v1564 = vpop.permute.xlu0 %1563
        %1567 = vset.pattern.permute.xlu0 0
        %1568 = vperm.xlu0 %1567, %v1558
        %v1569 = vpop.permute.xlu0 %1568
        %1572 = vset.pattern.permute.xlu0 0
        %1573 = vperm.xlu0 %1572, %v1559
        %v1574 = vpop.permute.xlu0 %1573
        %1577 = vset.pattern.permute.xlu0 0
        %1578 = vperm.xlu0 %1577, %v1560
        %v1579 = vpop.permute.xlu0 %1578
        %v1581 = vmul.f32 %v517, %v1564
        %v1582 = vmul.f32 %v518, %v1569
        %v1583 = vmul.f32 %v519, %v1574
        %v1584 = vmul.f32 %v520, %v1579
        %v1585 = vsel %vm550, %v1581, 0.0
        %v1586 = vsel %vm550, %v1582, 0.0
        %v1587 = vadd.f32 %v1585, %v1586
        %v1588 = vrot.slane %v1587, 4
        %v1589 = vadd.f32 %v1587, %v1588
        %v1590 = vrot.slane %v1589, 2
        %v1591 = vadd.f32 %v1589, %v1590
        %v1592 = vrot.slane %v1591, 1
        %v1593 = vadd.f32 %v1591, %v1592
        %v1594 = vsel %vm550, %v1583, 0.0
        %v1595 = vsel %vm550, %v1584, 0.0
        %v1596 = vadd.f32 %v1594, %v1595
        %v1597 = vrot.slane %v1596, 4
        %v1598 = vadd.f32 %v1596, %v1597
        %v1599 = vrot.slane %v1598, 2
        %v1600 = vadd.f32 %v1598, %v1599
        %v1601 = vrot.slane %v1600, 1
        %v1602 = vadd.f32 %v1600, %v1601
        %v1604 = vsel %vm550, %v1312, 0
        %1606 = vmatprep.subr.mxu0 0.0
        %1607 = vmatpush1.msra.mxu0 %v538
        %1608 = vmatprep.subr.mxu0 0.0
        %1609 = vmatpush1.msra.mxu0 %v539
        %1610 = vmatprep.subr.mxu0 0.0
        %1611 = vmatpush1.msra.mxu0 %v540
        %1612 = vmatprep.subr.mxu0 0.0
        %1613 = vmatpush1.msra.mxu0 %v541
        %1614 = vmatprep.subr.mxu0 0.0
        %1615 = vmatpush1.msra.mxu0 0.0
        %1616 = vmatprep.subr.mxu0 0.0
        %1617 = vmatpush1.msra.mxu0 0.0
        %1618 = vmatprep.subr.mxu0 0.0
        %1619 = vmatpush1.msra.mxu0 0.0
        %1620 = vmatprep.subr.mxu0 0.0
        %1621 = vmatpush1.msra.mxu0 0.0
        %1622 = vmatprep.subr.mxu0 0.0
        %1623 = vmatpush1.msra.mxu0 0.0
        %1624 = vmatprep.subr.mxu0 0.0
        %1625 = vmatpush1.msra.mxu0 0.0
        %1626 = vmatprep.subr.mxu0 0.0
        %1627 = vmatpush1.msra.mxu0 0.0
        %1628 = vmatprep.subr.mxu0 0.0
        %1629 = vmatpush1.msra.mxu0 0.0
        %1630 = vmatprep.subr.mxu0 0.0
        %1631 = vmatpush1.msra.mxu0 0.0
        %1632 = vmatprep.subr.mxu0 0.0
        %1633 = vmatpush1.msra.mxu0 0.0
        %1634 = vmatprep.subr.mxu0 0.0
        %1635 = vmatpush1.msra.mxu0 0.0
        %1636 = vmatprep.subr.mxu0 0.0
        %1637 = vmatpush1.msra.mxu0 0.0
        %1638 = vmatprep.subr.mxu0 0.0
        %1639 = vmatpush1.msra.mxu0 0.0
        %1640 = vmatprep.subr.mxu0 0.0
        %1641 = vmatpush1.msra.mxu0 0.0
        %1642 = vmatprep.subr.mxu0 0.0
        %1643 = vmatpush1.msra.mxu0 0.0
        %1644 = vmatprep.subr.mxu0 0.0
        %1645 = vmatpush1.msra.mxu0 0.0
        %1646 = vmatprep.subr.mxu0 0.0
        %1647 = vmatpush1.msra.mxu0 0.0
        %1648 = vmatprep.subr.mxu0 0.0
        %1649 = vmatpush1.msra.mxu0 0.0
        %1650 = vmatprep.subr.mxu0 0.0
        %1651 = vmatpush1.msra.mxu0 0.0
        %1652 = vmatprep.subr.mxu0 0.0
        %1653 = vmatpush1.msra.mxu0 0.0
        %1654 = vmatprep.subr.mxu0 0.0
        %1655 = vmatpush1.msra.mxu0 0.0
        %1656 = vmatprep.subr.mxu0 0.0
        %1657 = vmatpush1.msra.mxu0 0.0
        %1658 = vmatprep.subr.mxu0 0.0
        %1659 = vmatpush1.msra.mxu0 0.0
        %1660 = vmatprep.subr.mxu0 0.0
        %1661 = vmatpush1.msra.mxu0 0.0
        %1662 = vmatprep.subr.mxu0 0.0
        %1663 = vmatpush1.msra.mxu0 0.0
        %1664 = vmatprep.subr.mxu0 0.0
        %1665 = vmatpush1.msra.mxu0 0.0
        %1666 = vmatprep.subr.mxu0 0.0
        %1667 = vmatpush1.msra.mxu0 0.0
        %1668 = vmatprep.subr.mxu0 0.0
        %1669 = vmatpush1.msra.mxu0 0.0
        %1670 = vmatprep.mubr.f32.mxu0 0.0
        %1671 = vmatmul.mubr.f32.gmra.mrb[0].mxu0 %v1604
        %v1672 = vpop.f32.mrb[0].mxu0
        %v1673 = vadd.f32 %v1005, %v1672
        %v1674 = vpop.f32.mrb[0].mxu0
        %1675 = vdwg.mxu0
        %v1676 = vadd.f32 %v1673, %v1392
        %v1677 = vtanh.pop %v1676
        %v1678 = vmul.f32 %v1677, %v1086
        %v1679 = vsel %vm877, %v1678, 0.0
        %1680 = vadd.xlane.f32.xlu0 %v1679
        %v1681 = vpop.xlane.xlu0 %1680
        %v1682 = vadd.f32 %v1681, %v1096
        %v1683 = vmax.f32 %v1482, %v1682
        %v1684 = vsub.f32 %v1682, %v1683
        %v1685 = vmul.f32 %v1684, 1.442695
        %v1686 = vpow.pop %v1685
        %1688 = vset.pattern.permute.xlu0 0
        %1689 = vperm.xlu0 %1688, %v1683
        %v1690 = vpop.permute.xlu0 %1689
        %v1691 = vlaneseq
        %v1692 = vshrl.u32 %v1691, 7
        %v1693 = vsub.s32 0, %v1692
        %v1694 = vrot.slane %v1690, %v1693
        %v1695 = vlaneseq
        %v1696 = vshrl.u32 %v1695, 7
        %v1697 = vsub.s32 1, %v1696
        %v1698 = vrot.slane %v1690, %v1697
        %v1701 = vsub.f32 %v1452, %v1694
        %v1702 = vsub.f32 %v1453, %v1694
        %v1703 = vsub.f32 %v1454, %v1698
        %v1704 = vsub.f32 %v1455, %v1698
        %v1705 = vmul.f32 %v1701, 1.442695
        %v1706 = vpow.pop %v1705
        %v1707 = vmul.f32 %v1702, 1.442695
        %v1708 = vpow.pop %v1707
        %v1709 = vmul.f32 %v1703, 1.442695
        %v1710 = vpow.pop %v1709
        %v1711 = vmul.f32 %v1704, 1.442695
        %v1712 = vpow.pop %v1711
        %1717 = vset.pattern.permute.xlu0 0
        %1718 = vperm.xlu0 %1717, %v1706
        %v1719 = vpop.permute.xlu0 %1718
        %1720 = vset.pattern.permute.xlu0 0
        %1721 = vperm.xlu0 %1720, %v1708
        %v1722 = vpop.permute.xlu0 %1721
        %1723 = vset.pattern.permute.xlu0 0
        %1724 = vperm.xlu0 %1723, %v1710
        %v1725 = vpop.permute.xlu0 %1724
        %1726 = vset.pattern.permute.xlu0 0
        %1727 = vperm.xlu0 %1726, %v1712
        %v1728 = vpop.permute.xlu0 %1727
        %v1729 = vlaneseq
        %v1730 = vshrl.u32 %v1729, 7
        %v1731 = vsub.s32 %v853, %v1730
        %v1732 = vrot.slane %v1719, %v1731
        %v1733 = vlaneseq
        %v1734 = vshrl.u32 %v1733, 7
        %v1735 = vsub.s32 %v858, %v1734
        %v1736 = vrot.slane %v1722, %v1735
        %v1737 = vsel %vm863, %v1736, %v1732
        %v1738 = vlaneseq
        %v1739 = vshrl.u32 %v1738, 7
        %v1740 = vsub.s32 %v853, %v1739
        %v1741 = vrot.slane %v1725, %v1740
        %v1742 = vlaneseq
        %v1743 = vshrl.u32 %v1742, 7
        %v1744 = vsub.s32 %v858, %v1743
        %v1745 = vrot.slane %v1728, %v1744
        %v1746 = vsel %vm863, %v1745, %v1741
        %v1747 = vsel %vm874, %v1746, %v1737
        %v1749 = vsel %vm877, %v1747, 0.0
        %1750 = vadd.xlane.f32.xlu0 %v1749
        %v1751 = vpop.xlane.xlu0 %1750
        %v1752 = vadd.f32 %v1751, %v1686
        %v1753 = vrcp.pop %v1752
        %v1754 = vmul.f32 %v1686, %v1753
        %1756 = vset.pattern.permute.xlu0 0
        %1757 = vperm.xlu0 %1756, %v1754
        %v1758 = vpop.permute.xlu0 %1757
        %v1760 = vmul.f32 %v1758, %v1312
        %v1761 = vsub.f32 1.0, %v1754
        %1763 = vset.pattern.permute.xlu0 0
        %1764 = vperm.xlu0 %1763, %v1761
        %v1765 = vpop.permute.xlu0 %1764
        %v1769 = vsel %vm874, %v1602, %v1593
        %v1771 = vmul.f32 %v1765, %v1769
        %v1772 = vadd.f32 %v1760, %v1771
        %v1774 = vadd.f32 %v1772, %v1322
        %s1775 = scalar_lea.vmem %s497, 2 [#allocation12]
        %1776 = vst.msk [vmem:[%s1775] sm:$0x3] %vm1191, %v1774
        %s1777 = scalar_lea.vmem %s507, 8
        %v1778 = vld [vmem:[%s1777] sm:$0xf]
        %1779 = vmatprep.subr.mxu0 %v526
        %1780 = vmatpush1.msra.mxu0 %v525
        %1781 = vmatprep.subr.mxu0 %v528
        %1782 = vmatpush1.msra.mxu0 %v527
        %1783 = vmatprep.subr.mxu0 %v530
        %1784 = vmatpush1.msra.mxu0 %v529
        %1785 = vmatprep.subr.mxu0 %v532
        %1786 = vmatpush1.msra.mxu0 %v531
        %1787 = vmatprep.subr.mxu0 0.0
        %1788 = vmatpush1.msra.mxu0 0.0
        %1789 = vmatprep.subr.mxu0 0.0
        %1790 = vmatpush1.msra.mxu0 0.0
        %1791 = vmatprep.subr.mxu0 0.0
        %1792 = vmatpush1.msra.mxu0 0.0
        %1793 = vmatprep.subr.mxu0 0.0
        %1794 = vmatpush1.msra.mxu0 0.0
        %1795 = vmatprep.subr.mxu0 0.0
        %1796 = vmatpush1.msra.mxu0 0.0
        %1797 = vmatprep.subr.mxu0 0.0
        %1798 = vmatpush1.msra.mxu0 0.0
        %1799 = vmatprep.subr.mxu0 0.0
        %1800 = vmatpush1.msra.mxu0 0.0
        %1801 = vmatprep.subr.mxu0 0.0
        %1802 = vmatpush1.msra.mxu0 0.0
        %1803 = vmatprep.subr.mxu0 0.0
        %1804 = vmatpush1.msra.mxu0 0.0
        %1805 = vmatprep.subr.mxu0 0.0
        %1806 = vmatpush1.msra.mxu0 0.0
        %1807 = vmatprep.subr.mxu0 0.0
        %1808 = vmatpush1.msra.mxu0 0.0
        %1809 = vmatprep.subr.mxu0 0.0
        %1810 = vmatpush1.msra.mxu0 0.0
        %1811 = vmatprep.subr.mxu0 0.0
        %1812 = vmatpush1.msra.mxu0 0.0
        %1813 = vmatprep.subr.mxu0 0.0
        %1814 = vmatpush1.msra.mxu0 0.0
        %1815 = vmatprep.subr.mxu0 0.0
        %1816 = vmatpush1.msra.mxu0 0.0
        %1817 = vmatprep.subr.mxu0 0.0
        %1818 = vmatpush1.msra.mxu0 0.0
        %1819 = vmatprep.subr.mxu0 0.0
        %1820 = vmatpush1.msra.mxu0 0.0
        %1821 = vmatprep.subr.mxu0 0.0
        %1822 = vmatpush1.msra.mxu0 0.0
        %1823 = vmatprep.subr.mxu0 0.0
        %1824 = vmatpush1.msra.mxu0 0.0
        %1825 = vmatprep.subr.mxu0 0.0
        %1826 = vmatpush1.msra.mxu0 0.0
        %1827 = vmatprep.subr.mxu0 0.0
        %1828 = vmatpush1.msra.mxu0 0.0
        %1829 = vmatprep.subr.mxu0 0.0
        %1830 = vmatpush1.msra.mxu0 0.0
        %1831 = vmatprep.subr.mxu0 0.0
        %1832 = vmatpush1.msra.mxu0 0.0
        %1833 = vmatprep.subr.mxu0 0.0
        %1834 = vmatpush1.msra.mxu0 0.0
        %1835 = vmatprep.subr.mxu0 0.0
        %1836 = vmatpush1.msra.mxu0 0.0
        %1837 = vmatprep.subr.mxu0 0.0
        %1838 = vmatpush1.msra.mxu0 0.0
        %1839 = vmatprep.subr.mxu0 0.0
        %1840 = vmatpush1.msra.mxu0 0.0
        %1841 = vmatprep.subr.mxu0 0.0
        %1842 = vmatpush1.msra.mxu0 0.0
        %1843 = vmatprep.mubr.f32.mxu0 0.0
        %1844 = vmatmul.mubr.f32.gmra.mrb[0].mxu0 %v1323
        %v1845 = vpop.f32.mrb[0].mxu0
        %v1846 = vadd.f32 0.0, %v1845
        %v1847 = vpop.f32.mrb[0].mxu0
        %v1848 = vadd.f32 0.0, %v1847
        %1849 = vdwg.mxu0
        %v1852 = vcombine.low %v1846, %v1848
        %v1854 = vunpack.c.l.s4 1983009808
        %v1855 = vunpack.c.0.s8 %v1854
        %v1856 = vlaneseq
        %v1857 = vshrl.u32 %v1856, 7
        %v1858 = vsub.s32 %v1855, %v1857
        %v1859 = vrot.slane %v1852, %v1858
        %v1861 = vadd.f32 %v1778, %v1859
        %v1862 = vsub.f32 0.0, %v1861
        %v1863 = vmul.f32 %v1862, 1.442695
        %v1864 = vpow.pop %v1863
        %v1865 = vadd.f32 %v1864, 1.0
        %v1866 = vrcp.pop %v1865
        %v1867 = vtanh.pop %v1861
        %v1869 = vrot.slane %v1861, 2
        %v1871 = vsub.f32 0.0, %v1869
        %v1872 = vmul.f32 %v1871, 1.442695
        %v1873 = vpow.pop %v1872
        %v1874 = vadd.f32 %v1873, 1.0
        %v1875 = vrcp.pop %v1874
        %v1876 = vmul.f32 %v1866, %v1302
        %1878 = vrot.lane.b32.xlu0 %v1867, 64
        %v1879 = vpop.permute.xlu0 %1878
        %v1881 = vmul.f32 %v1866, %v1879
        %1883 = vrot.lane.b32.xlu0 %v1881, 32
        %v1884 = vpop.permute.xlu0 %1883
        %v1886 = vadd.f32 %v1876, %v1884
        %v1887 = vtanh.pop %v1886
        %1889 = vrot.lane.b32.xlu0 %v1887, 64
        %v1890 = vpop.permute.xlu0 %1889
        %v1892 = vmul.f32 %v1866, %v1890
        %1893 = vrot.lane.b32.xlu0 %v1887, 96
        %v1894 = vpop.permute.xlu0 %1893
        %v1896 = vmul.f32 %v1875, %v1894
        %v1899 = vunpack.c.l.s4 1983009808
        %v1900 = vunpack.c.0.s8 %v1899
        %v1901 = vlaneseq
        %v1902 = vshrl.u32 %v1901, 7
        %v1903 = vsub.s32 %v1900, %v1902
        %v1904 = vrot.slane %v1892, %v1903
        %1905 = vrot.lane.b32.xlu0 %v1904, 32
        %v1906 = vpop.permute.xlu0 %1905
        %v1907 = vsel %vm550, %v1906, 0
        %1909 = vmatprep.subr.mxu0 0.0
        %1910 = vmatpush1.msra.mxu0 %v533
        %1911 = vmatprep.subr.mxu0 0.0
        %1912 = vmatpush1.msra.mxu0 %v534
        %1913 = vmatprep.subr.mxu0 0.0
        %1914 = vmatpush1.msra.mxu0 %v535
        %1915 = vmatprep.subr.mxu0 0.0
        %1916 = vmatpush1.msra.mxu0 %v536
        %1917 = vmatprep.subr.mxu0 0.0
        %1918 = vmatpush1.msra.mxu0 0.0
        %1919 = vmatprep.subr.mxu0 0.0
        %1920 = vmatpush1.msra.mxu0 0.0
        %1921 = vmatprep.subr.mxu0 0.0
        %1922 = vmatpush1.msra.mxu0 0.0
        %1923 = vmatprep.subr.mxu0 0.0
        %1924 = vmatpush1.msra.mxu0 0.0
        %1925 = vmatprep.subr.mxu0 0.0
        %1926 = vmatpush1.msra.mxu0 0.0
        %1927 = vmatprep.subr.mxu0 0.0
        %1928 = vmatpush1.msra.mxu0 0.0
        %1929 = vmatprep.subr.mxu0 0.0
        %1930 = vmatpush1.msra.mxu0 0.0
        %1931 = vmatprep.subr.mxu0 0.0
        %1932 = vmatpush1.msra.mxu0 0.0
        %1933 = vmatprep.subr.mxu0 0.0
        %1934 = vmatpush1.msra.mxu0 0.0
        %1935 = vmatprep.subr.mxu0 0.0
        %1936 = vmatpush1.msra.mxu0 0.0
        %1937 = vmatprep.subr.mxu0 0.0
        %1938 = vmatpush1.msra.mxu0 0.0
        %1939 = vmatprep.subr.mxu0 0.0
        %1940 = vmatpush1.msra.mxu0 0.0
        %1941 = vmatprep.subr.mxu0 0.0
        %1942 = vmatpush1.msra.mxu0 0.0
        %1943 = vmatprep.subr.mxu0 0.0
        %1944 = vmatpush1.msra.mxu0 0.0
        %1945 = vmatprep.subr.mxu0 0.0
        %1946 = vmatpush1.msra.mxu0 0.0
        %1947 = vmatprep.subr.mxu0 0.0
        %1948 = vmatpush1.msra.mxu0 0.0
        %1949 = vmatprep.subr.mxu0 0.0
        %1950 = vmatpush1.msra.mxu0 0.0
        %1951 = vmatprep.subr.mxu0 0.0
        %1952 = vmatpush1.msra.mxu0 0.0
        %1953 = vmatprep.subr.mxu0 0.0
        %1954 = vmatpush1.msra.mxu0 0.0
        %1955 = vmatprep.subr.mxu0 0.0
        %1956 = vmatpush1.msra.mxu0 0.0
        %1957 = vmatprep.subr.mxu0 0.0
        %1958 = vmatpush1.msra.mxu0 0.0
        %1959 = vmatprep.subr.mxu0 0.0
        %1960 = vmatpush1.msra.mxu0 0.0
        %1961 = vmatprep.subr.mxu0 0.0
        %1962 = vmatpush1.msra.mxu0 0.0
        %1963 = vmatprep.subr.mxu0 0.0
        %1964 = vmatpush1.msra.mxu0 0.0
        %1965 = vmatprep.subr.mxu0 0.0
        %1966 = vmatpush1.msra.mxu0 0.0
        %1967 = vmatprep.subr.mxu0 0.0
        %1968 = vmatpush1.msra.mxu0 0.0
        %1969 = vmatprep.subr.mxu0 0.0
        %1970 = vmatpush1.msra.mxu0 0.0
        %1971 = vmatprep.subr.mxu0 0.0
        %1972 = vmatpush1.msra.mxu0 0.0
        %1973 = vmatprep.mubr.f32.mxu0 0.0
        %1974 = vmatmul.mubr.f32.gmra.mrb[0].mxu0 %v1907
        %v1975 = vpop.f32.mrb[0].mxu0
        %v1976 = vadd.f32 %v687, %v1975
        %v1977 = vpop.f32.mrb[0].mxu0
        %1978 = vdwg.mxu0
        %v1981 = vunpack.c.l.s4 1966171168
        %v1982 = vunpack.c.0.s8 %v1981
        %v1983 = vlaneseq
        %v1984 = vshrl.u32 %v1983, 7
        %v1985 = vsub.s32 %v1982, %v1984
        %v1986 = vrot.slane %v1976, %v1985
        %v1987 = vcombine.high %v1986, %v1986
        %v1989 = vunpack.c.l.s4 1966171168
        %v1990 = vunpack.c.0.s8 %v1989
        %v1991 = vlaneseq
        %v1992 = vshrl.u32 %v1991, 7
        %v1993 = vsub.s32 %v1990, %v1992
        %v1994 = vrot.slane %v1986, %v1993
        %v1996 = vunpack.c.l.s4 1966171168
        %v1997 = vunpack.c.0.s8 %v1996
        %v1998 = vlaneseq
        %v1999 = vshrl.u32 %v1998, 7
        %v2000 = vsub.s32 %v1997, %v1999
        %v2001 = vrot.slane %v1987, %v2000
        %v2002 = vlaneseq
        %v2003 = vshrl.u32 %v2002, 7
        %v2004 = vsub.s32 0, %v2003
        %v2005 = vrot.slane %v1994, %v2004
        %v2006 = vlaneseq
        %v2007 = vshrl.u32 %v2006, 7
        %v2008 = vsub.s32 0, %v2007
        %v2009 = vrot.slane %v2001, %v2008
        %v2012 = vadd.f32 %v521, %v2005
        %v2013 = vadd.f32 %v522, %v2005
        %v2014 = vadd.f32 %v523, %v2009
        %v2015 = vadd.f32 %v524, %v2009
        %v2016 = vtanh.pop %v2012
        %v2017 = vtanh.pop %v2013
        %v2018 = vtanh.pop %v2014
        %v2019 = vtanh.pop %v2015
        %v2020 = vmul.f32 %v2016, %v816
        %v2021 = vmul.f32 %v2017, %v816
        %v2022 = vmul.f32 %v2018, %v816
        %v2023 = vmul.f32 %v2019, %v816
        %v2024 = vsel %vm822, %v2020, 0.0
        %2025 = vadd.xlane.f32.xlu0 %v2024
        %v2026 = vpop.xlane.xlu0 %2025
        %v2027 = vsel %vm822, %v2021, 0.0
        %2028 = vadd.xlane.f32.xlu0 %v2027
        %v2029 = vpop.xlane.xlu0 %2028
        %v2030 = vsel %vm822, %v2022, 0.0
        %2031 = vadd.xlane.f32.xlu0 %v2030
        %v2032 = vpop.xlane.xlu0 %2031
        %v2033 = vsel %vm822, %v2023, 0.0
        %2034 = vadd.xlane.f32.xlu0 %v2033
        %v2035 = vpop.xlane.xlu0 %2034
        %v2036 = vadd.f32 %v2026, %v842
        %v2037 = vadd.f32 %v2029, %v842
        %v2038 = vadd.f32 %v2032, %v842
        %v2039 = vadd.f32 %v2035, %v842
        %v2044 = vlaneseq
        %v2045 = vshrl.u32 %v2044, 7
        %v2046 = vsub.s32 %v853, %v2045
        %v2047 = vrot.slane %v2036, %v2046
        %v2048 = vlaneseq
        %v2049 = vshrl.u32 %v2048, 7
        %v2050 = vsub.s32 %v858, %v2049
        %v2051 = vrot.slane %v2037, %v2050
        %v2052 = vsel %vm863, %v2051, %v2047
        %v2053 = vlaneseq
        %v2054 = vshrl.u32 %v2053, 7
        %v2055 = vsub.s32 %v853, %v2054
        %v2056 = vrot.slane %v2038, %v2055
        %v2057 = vlaneseq
        %v2058 = vshrl.u32 %v2057, 7
        %v2059 = vsub.s32 %v858, %v2058
        %v2060 = vrot.slane %v2039, %v2059
        %v2061 = vsel %vm863, %v2060, %v2056
        %v2062 = vsel %vm874, %v2061, %v2052
        %v2064 = vsel %vm877, %v2062, -inf
        %2065 = vmax.xlane.f32.xlu0 %v2064
        %v2066 = vpop.xlane.xlu0 %2065
        %v2068 = vlaneseq
        %v2069 = vshrl.u32 %v2068, 7
        %v2070 = vsub.s32 0, %v2069
        %v2071 = vrot.slane %v2066, %v2070
        %v2072 = vlaneseq
        %v2073 = vshrl.u32 %v2072, 7
        %v2074 = vsub.s32 1, %v2073
        %v2075 = vrot.slane %v2066, %v2074
        %v2078 = vsub.f32 %v2036, %v2071
        %v2079 = vsub.f32 %v2037, %v2071
        %v2080 = vsub.f32 %v2038, %v2075
        %v2081 = vsub.f32 %v2039, %v2075
        %v2082 = vmul.f32 %v2078, 1.442695
        %v2083 = vpow.pop %v2082
        %v2084 = vmul.f32 %v2079, 1.442695
        %v2085 = vpow.pop %v2084
        %v2086 = vmul.f32 %v2080, 1.442695
        %v2087 = vpow.pop %v2086
        %v2088 = vmul.f32 %v2081, 1.442695
        %v2089 = vpow.pop %v2088
        %2094 = vset.pattern.permute.xlu0 0
        %2095 = vperm.xlu0 %2094, %v2083
        %v2096 = vpop.permute.xlu0 %2095
        %2097 = vset.pattern.permute.xlu0 0
        %2098 = vperm.xlu0 %2097, %v2085
        %v2099 = vpop.permute.xlu0 %2098
        %2100 = vset.pattern.permute.xlu0 0
        %2101 = vperm.xlu0 %2100, %v2087
        %v2102 = vpop.permute.xlu0 %2101
        %2103 = vset.pattern.permute.xlu0 0
        %2104 = vperm.xlu0 %2103, %v2089
        %v2105 = vpop.permute.xlu0 %2104
        %v2106 = vlaneseq
        %v2107 = vshrl.u32 %v2106, 7
        %v2108 = vsub.s32 %v853, %v2107
        %v2109 = vrot.slane %v2096, %v2108
        %v2110 = vlaneseq
        %v2111 = vshrl.u32 %v2110, 7
        %v2112 = vsub.s32 %v858, %v2111
        %v2113 = vrot.slane %v2099, %v2112
        %v2114 = vsel %vm863, %v2113, %v2109
        %v2115 = vlaneseq
        %v2116 = vshrl.u32 %v2115, 7
        %v2117 = vsub.s32 %v853, %v2116
        %v2118 = vrot.slane %v2102, %v2117
        %v2119 = vlaneseq
        %v2120 = vshrl.u32 %v2119, 7
        %v2121 = vsub.s32 %v858, %v2120
        %v2122 = vrot.slane %v2105, %v2121
        %v2123 = vsel %vm863, %v2122, %v2118
        %v2124 = vsel %vm874, %v2123, %v2114
        %v2126 = vsel %vm877, %v2124, 0.0
        %2127 = vadd.xlane.f32.xlu0 %v2126
        %v2128 = vpop.xlane.xlu0 %2127
        %v2129 = vrcp.pop %v2128
        %v2131 = vlaneseq
        %v2132 = vshrl.u32 %v2131, 7
        %v2133 = vsub.s32 0, %v2132
        %v2134 = vrot.slane %v2129, %v2133
        %v2135 = vlaneseq
        %v2136 = vshrl.u32 %v2135, 7
        %v2137 = vsub.s32 1, %v2136
        %v2138 = vrot.slane %v2129, %v2137
        %v2141 = vmul.f32 %v2083, %v2134
        %v2142 = vmul.f32 %v2085, %v2134
        %v2143 = vmul.f32 %v2087, %v2138
        %v2144 = vmul.f32 %v2089, %v2138
        %2146 = vset.pattern.permute.xlu0 0
        %2147 = vperm.xlu0 %2146, %v2141
        %v2148 = vpop.permute.xlu0 %2147
        %2151 = vset.pattern.permute.xlu0 0
        %2152 = vperm.xlu0 %2151, %v2142
        %v2153 = vpop.permute.xlu0 %2152
        %2156 = vset.pattern.permute.xlu0 0
        %2157 = vperm.xlu0 %2156, %v2143
        %v2158 = vpop.permute.xlu0 %2157
        %2161 = vset.pattern.permute.xlu0 0
        %2162 = vperm.xlu0 %2161, %v2144
        %v2163 = vpop.permute.xlu0 %2162
        %v2165 = vmul.f32 %v517, %v2148
        %v2166 = vmul.f32 %v518, %v2153
        %v2167 = vmul.f32 %v519, %v2158
        %v2168 = vmul.f32 %v520, %v2163
        %v2169 = vsel %vm550, %v2165, 0.0
        %v2170 = vsel %vm550, %v2166, 0.0
        %v2171 = vadd.f32 %v2169, %v2170
        %v2172 = vrot.slane %v2171, 4
        %v2173 = vadd.f32 %v2171, %v2172
        %v2174 = vrot.slane %v2173, 2
        %v2175 = vadd.f32 %v2173, %v2174
        %v2176 = vrot.slane %v2175, 1
        %v2177 = vadd.f32 %v2175, %v2176
        %v2178 = vsel %vm550, %v2167, 0.0
        %v2179 = vsel %vm550, %v2168, 0.0
        %v2180 = vadd.f32 %v2178, %v2179
        %v2181 = vrot.slane %v2180, 4
        %v2182 = vadd.f32 %v2180, %v2181
        %v2183 = vrot.slane %v2182, 2
        %v2184 = vadd.f32 %v2182, %v2183
        %v2185 = vrot.slane %v2184, 1
        %v2186 = vadd.f32 %v2184, %v2185
        %v2188 = vsel %vm550, %v1896, 0
        %2190 = vmatprep.subr.mxu0 0.0
        %2191 = vmatpush1.msra.mxu0 %v538
        %2192 = vmatprep.subr.mxu0 0.0
        %2193 = vmatpush1.msra.mxu0 %v539
        %2194 = vmatprep.subr.mxu0 0.0
        %2195 = vmatpush1.msra.mxu0 %v540
        %2196 = vmatprep.subr.mxu0 0.0
        %2197 = vmatpush1.msra.mxu0 %v541
        %2198 = vmatprep.subr.mxu0 0.0
        %2199 = vmatpush1.msra.mxu0 0.0
        %2200 = vmatprep.subr.mxu0 0.0
        %2201 = vmatpush1.msra.mxu0 0.0
        %2202 = vmatprep.subr.mxu0 0.0
        %2203 = vmatpush1.msra.mxu0 0.0
        %2204 = vmatprep.subr.mxu0 0.0
        %2205 = vmatpush1.msra.mxu0 0.0
        %2206 = vmatprep.subr.mxu0 0.0
        %2207 = vmatpush1.msra.mxu0 0.0
        %2208 = vmatprep.subr.mxu0 0.0
        %2209 = vmatpush1.msra.mxu0 0.0
        %2210 = vmatprep.subr.mxu0 0.0
        %2211 = vmatpush1.msra.mxu0 0.0
        %2212 = vmatprep.subr.mxu0 0.0
        %2213 = vmatpush1.msra.mxu0 0.0
        %2214 = vmatprep.subr.mxu0 0.0
        %2215 = vmatpush1.msra.mxu0 0.0
        %2216 = vmatprep.subr.mxu0 0.0
        %2217 = vmatpush1.msra.mxu0 0.0
        %2218 = vmatprep.subr.mxu0 0.0
        %2219 = vmatpush1.msra.mxu0 0.0
        %2220 = vmatprep.subr.mxu0 0.0
        %2221 = vmatpush1.msra.mxu0 0.0
        %2222 = vmatprep.subr.mxu0 0.0
        %2223 = vmatpush1.msra.mxu0 0.0
        %2224 = vmatprep.subr.mxu0 0.0
        %2225 = vmatpush1.msra.mxu0 0.0
        %2226 = vmatprep.subr.mxu0 0.0
        %2227 = vmatpush1.msra.mxu0 0.0
        %2228 = vmatprep.subr.mxu0 0.0
        %2229 = vmatpush1.msra.mxu0 0.0
        %2230 = vmatprep.subr.mxu0 0.0
        %2231 = vmatpush1.msra.mxu0 0.0
        %2232 = vmatprep.subr.mxu0 0.0
        %2233 = vmatpush1.msra.mxu0 0.0
        %2234 = vmatprep.subr.mxu0 0.0
        %2235 = vmatpush1.msra.mxu0 0.0
        %2236 = vmatprep.subr.mxu0 0.0
        %2237 = vmatpush1.msra.mxu0 0.0
        %2238 = vmatprep.subr.mxu0 0.0
        %2239 = vmatpush1.msra.mxu0 0.0
        %2240 = vmatprep.subr.mxu0 0.0
        %2241 = vmatpush1.msra.mxu0 0.0
        %2242 = vmatprep.subr.mxu0 0.0
        %2243 = vmatpush1.msra.mxu0 0.0
        %2244 = vmatprep.subr.mxu0 0.0
        %2245 = vmatpush1.msra.mxu0 0.0
        %2246 = vmatprep.subr.mxu0 0.0
        %2247 = vmatpush1.msra.mxu0 0.0
        %2248 = vmatprep.subr.mxu0 0.0
        %2249 = vmatpush1.msra.mxu0 0.0
        %2250 = vmatprep.subr.mxu0 0.0
        %2251 = vmatpush1.msra.mxu0 0.0
        %2252 = vmatprep.subr.mxu0 0.0
        %2253 = vmatpush1.msra.mxu0 0.0
        %2254 = vmatprep.mubr.f32.mxu0 0.0
        %2255 = vmatmul.mubr.f32.gmra.mrb[0].mxu0 %v2188
        %v2256 = vpop.f32.mrb[0].mxu0
        %v2257 = vadd.f32 %v1005, %v2256
        %v2258 = vpop.f32.mrb[0].mxu0
        %2259 = vdwg.mxu0
        %v2260 = vadd.f32 %v2257, %v1976
        %v2261 = vtanh.pop %v2260
        %v2262 = vmul.f32 %v2261, %v1086
        %v2263 = vsel %vm877, %v2262, 0.0
        %2264 = vadd.xlane.f32.xlu0 %v2263
        %v2265 = vpop.xlane.xlu0 %2264
        %v2266 = vadd.f32 %v2265, %v1096
        %v2267 = vmax.f32 %v2066, %v2266
        %v2268 = vsub.f32 %v2266, %v2267
        %v2269 = vmul.f32 %v2268, 1.442695
        %v2270 = vpow.pop %v2269
        %2272 = vset.pattern.permute.xlu0 0
        %2273 = vperm.xlu0 %2272, %v2267
        %v2274 = vpop.permute.xlu0 %2273
        %v2275 = vlaneseq
        %v2276 = vshrl.u32 %v2275, 7
        %v2277 = vsub.s32 0, %v2276
        %v2278 = vrot.slane %v2274, %v2277
        %v2279 = vlaneseq
        %v2280 = vshrl.u32 %v2279, 7
        %v2281 = vsub.s32 1, %v2280
        %v2282 = vrot.slane %v2274, %v2281
        %v2285 = vsub.f32 %v2036, %v2278
        %v2286 = vsub.f32 %v2037, %v2278
        %v2287 = vsub.f32 %v2038, %v2282
        %v2288 = vsub.f32 %v2039, %v2282
        %v2289 = vmul.f32 %v2285, 1.442695
        %v2290 = vpow.pop %v2289
        %v2291 = vmul.f32 %v2286, 1.442695
        %v2292 = vpow.pop %v2291
        %v2293 = vmul.f32 %v2287, 1.442695
        %v2294 = vpow.pop %v2293
        %v2295 = vmul.f32 %v2288, 1.442695
        %v2296 = vpow.pop %v2295
        %2301 = vset.pattern.permute.xlu0 0
        %2302 = vperm.xlu0 %2301, %v2290
        %v2303 = vpop.permute.xlu0 %2302
        %2304 = vset.pattern.permute.xlu0 0
        %2305 = vperm.xlu0 %2304, %v2292
        %v2306 = vpop.permute.xlu0 %2305
        %2307 = vset.pattern.permute.xlu0 0
        %2308 = vperm.xlu0 %2307, %v2294
        %v2309 = vpop.permute.xlu0 %2308
        %2310 = vset.pattern.permute.xlu0 0
        %2311 = vperm.xlu0 %2310, %v2296
        %v2312 = vpop.permute.xlu0 %2311
        %v2313 = vlaneseq
        %v2314 = vshrl.u32 %v2313, 7
        %v2315 = vsub.s32 %v853, %v2314
        %v2316 = vrot.slane %v2303, %v2315
        %v2317 = vlaneseq
        %v2318 = vshrl.u32 %v2317, 7
        %v2319 = vsub.s32 %v858, %v2318
        %v2320 = vrot.slane %v2306, %v2319
        %v2321 = vsel %vm863, %v2320, %v2316
        %v2322 = vlaneseq
        %v2323 = vshrl.u32 %v2322, 7
        %v2324 = vsub.s32 %v853, %v2323
        %v2325 = vrot.slane %v2309, %v2324
        %v2326 = vlaneseq
        %v2327 = vshrl.u32 %v2326, 7
        %v2328 = vsub.s32 %v858, %v2327
        %v2329 = vrot.slane %v2312, %v2328
        %v2330 = vsel %vm863, %v2329, %v2325
        %v2331 = vsel %vm874, %v2330, %v2321
        %v2333 = vsel %vm877, %v2331, 0.0
        %2334 = vadd.xlane.f32.xlu0 %v2333
        %v2335 = vpop.xlane.xlu0 %2334
        %v2336 = vadd.f32 %v2335, %v2270
        %v2337 = vrcp.pop %v2336
        %v2338 = vmul.f32 %v2270, %v2337
        %2340 = vset.pattern.permute.xlu0 0
        %2341 = vperm.xlu0 %2340, %v2338
        %v2342 = vpop.permute.xlu0 %2341
        %v2344 = vmul.f32 %v2342, %v1896
        %v2345 = vsub.f32 1.0, %v2338
        %2347 = vset.pattern.permute.xlu0 0
        %2348 = vperm.xlu0 %2347, %v2345
        %v2349 = vpop.permute.xlu0 %2348
        %v2353 = vsel %vm874, %v2186, %v2177
        %v2355 = vmul.f32 %v2349, %v2353
        %v2356 = vadd.f32 %v2344, %v2355
        %v2358 = vadd.f32 %v2356, %v1906
        %s2359 = scalar_lea.vmem %s497, 4 [#allocation12]
        %2360 = vst.msk [vmem:[%s2359] sm:$0x3] %vm1191, %v2358
        %s2361 = scalar_lea.vmem %s507, 12
        %v2362 = vld [vmem:[%s2361] sm:$0xf]
        %2363 = vmatprep.subr.mxu0 %v526
        %2364 = vmatpush1.msra.mxu0 %v525
        %2365 = vmatprep.subr.mxu0 %v528
        %2366 = vmatpush1.msra.mxu0 %v527
        %2367 = vmatprep.subr.mxu0 %v530
        %2368 = vmatpush1.msra.mxu0 %v529
        %2369 = vmatprep.subr.mxu0 %v532
        %2370 = vmatpush1.msra.mxu0 %v531
        %2371 = vmatprep.subr.mxu0 0.0
        %2372 = vmatpush1.msra.mxu0 0.0
        %2373 = vmatprep.subr.mxu0 0.0
        %2374 = vmatpush1.msra.mxu0 0.0
        %2375 = vmatprep.subr.mxu0 0.0
        %2376 = vmatpush1.msra.mxu0 0.0
        %2377 = vmatprep.subr.mxu0 0.0
        %2378 = vmatpush1.msra.mxu0 0.0
        %2379 = vmatprep.subr.mxu0 0.0
        %2380 = vmatpush1.msra.mxu0 0.0
        %2381 = vmatprep.subr.mxu0 0.0
        %2382 = vmatpush1.msra.mxu0 0.0
        %2383 = vmatprep.subr.mxu0 0.0
        %2384 = vmatpush1.msra.mxu0 0.0
        %2385 = vmatprep.subr.mxu0 0.0
        %2386 = vmatpush1.msra.mxu0 0.0
        %2387 = vmatprep.subr.mxu0 0.0
        %2388 = vmatpush1.msra.mxu0 0.0
        %2389 = vmatprep.subr.mxu0 0.0
        %2390 = vmatpush1.msra.mxu0 0.0
        %2391 = vmatprep.subr.mxu0 0.0
        %2392 = vmatpush1.msra.mxu0 0.0
        %2393 = vmatprep.subr.mxu0 0.0
        %2394 = vmatpush1.msra.mxu0 0.0
        %2395 = vmatprep.subr.mxu0 0.0
        %2396 = vmatpush1.msra.mxu0 0.0
        %2397 = vmatprep.subr.mxu0 0.0
        %2398 = vmatpush1.msra.mxu0 0.0
        %2399 = vmatprep.subr.mxu0 0.0
        %2400 = vmatpush1.msra.mxu0 0.0
        %2401 = vmatprep.subr.mxu0 0.0
        %2402 = vmatpush1.msra.mxu0 0.0
        %2403 = vmatprep.subr.mxu0 0.0
        %2404 = vmatpush1.msra.mxu0 0.0
        %2405 = vmatprep.subr.mxu0 0.0
        %2406 = vmatpush1.msra.mxu0 0.0
        %2407 = vmatprep.subr.mxu0 0.0
        %2408 = vmatpush1.msra.mxu0 0.0
        %2409 = vmatprep.subr.mxu0 0.0
        %2410 = vmatpush1.msra.mxu0 0.0
        %2411 = vmatprep.subr.mxu0 0.0
        %2412 = vmatpush1.msra.mxu0 0.0
        %2413 = vmatprep.subr.mxu0 0.0
        %2414 = vmatpush1.msra.mxu0 0.0
        %2415 = vmatprep.subr.mxu0 0.0
        %2416 = vmatpush1.msra.mxu0 0.0
        %2417 = vmatprep.subr.mxu0 0.0
        %2418 = vmatpush1.msra.mxu0 0.0
        %2419 = vmatprep.subr.mxu0 0.0
        %2420 = vmatpush1.msra.mxu0 0.0
        %2421 = vmatprep.subr.mxu0 0.0
        %2422 = vmatpush1.msra.mxu0 0.0
        %2423 = vmatprep.subr.mxu0 0.0
        %2424 = vmatpush1.msra.mxu0 0.0
        %2425 = vmatprep.subr.mxu0 0.0
        %2426 = vmatpush1.msra.mxu0 0.0
        %2427 = vmatprep.mubr.f32.mxu0 0.0
        %2428 = vmatmul.mubr.f32.gmra.mrb[0].mxu0 %v1907
        %v2429 = vpop.f32.mrb[0].mxu0
        %v2430 = vadd.f32 0.0, %v2429
        %v2431 = vpop.f32.mrb[0].mxu0
        %v2432 = vadd.f32 0.0, %v2431
        %2433 = vdwg.mxu0
        %v2436 = vcombine.low %v2430, %v2432
        %v2438 = vunpack.c.l.s4 1983009808
        %v2439 = vunpack.c.0.s8 %v2438
        %v2440 = vlaneseq
        %v2441 = vshrl.u32 %v2440, 7
        %v2442 = vsub.s32 %v2439, %v2441
        %v2443 = vrot.slane %v2436, %v2442
        %v2445 = vadd.f32 %v2362, %v2443
        %v2446 = vsub.f32 0.0, %v2445
        %v2447 = vmul.f32 %v2446, 1.442695
        %v2448 = vpow.pop %v2447
        %v2449 = vadd.f32 %v2448, 1.0
        %v2450 = vrcp.pop %v2449
        %v2451 = vtanh.pop %v2445
        %v2453 = vrot.slane %v2445, 2
        %v2455 = vsub.f32 0.0, %v2453
        %v2456 = vmul.f32 %v2455, 1.442695
        %v2457 = vpow.pop %v2456
        %v2458 = vadd.f32 %v2457, 1.0
        %v2459 = vrcp.pop %v2458
        %v2460 = vmul.f32 %v2450, %v1886
        %2462 = vrot.lane.b32.xlu0 %v2451, 64
        %v2463 = vpop.permute.xlu0 %2462
        %v2465 = vmul.f32 %v2450, %v2463
        %2467 = vrot.lane.b32.xlu0 %v2465, 32
        %v2468 = vpop.permute.xlu0 %2467
        %v2470 = vadd.f32 %v2460, %v2468
        %v2471 = vtanh.pop %v2470
        %2473 = vrot.lane.b32.xlu0 %v2471, 64
        %v2474 = vpop.permute.xlu0 %2473
        %v2476 = vmul.f32 %v2450, %v2474
        %2477 = vrot.lane.b32.xlu0 %v2471, 96
        %v2478 = vpop.permute.xlu0 %2477
        %v2480 = vmul.f32 %v2459, %v2478
        %v2483 = vunpack.c.l.s4 1983009808
        %v2484 = vunpack.c.0.s8 %v2483
        %v2485 = vlaneseq
        %v2486 = vshrl.u32 %v2485, 7
        %v2487 = vsub.s32 %v2484, %v2486
        %v2488 = vrot.slane %v2476, %v2487
        %2489 = vrot.lane.b32.xlu0 %v2488, 32
        %v2490 = vpop.permute.xlu0 %2489
        %v2491 = vsel %vm550, %v2490, 0
        %2493 = vmatprep.subr.mxu0 0.0
        %2494 = vmatpush1.msra.mxu0 %v533
        %2495 = vmatprep.subr.mxu0 0.0
        %2496 = vmatpush1.msra.mxu0 %v534
        %2497 = vmatprep.subr.mxu0 0.0
        %2498 = vmatpush1.msra.mxu0 %v535
        %2499 = vmatprep.subr.mxu0 0.0
        %2500 = vmatpush1.msra.mxu0 %v536
        %2501 = vmatprep.subr.mxu0 0.0
        %2502 = vmatpush1.msra.mxu0 0.0
        %2503 = vmatprep.subr.mxu0 0.0
        %2504 = vmatpush1.msra.mxu0 0.0
        %2505 = vmatprep.subr.mxu0 0.0
        %2506 = vmatpush1.msra.mxu0 0.0
        %2507 = vmatprep.subr.mxu0 0.0
        %2508 = vmatpush1.msra.mxu0 0.0
        %2509 = vmatprep.subr.mxu0 0.0
        %2510 = vmatpush1.msra.mxu0 0.0
        %2511 = vmatprep.subr.mxu0 0.0
        %2512 = vmatpush1.msra.mxu0 0.0
        %2513 = vmatprep.subr.mxu0 0.0
        %2514 = vmatpush1.msra.mxu0 0.0
        %2515 = vmatprep.subr.mxu0 0.0
        %2516 = vmatpush1.msra.mxu0 0.0
        %2517 = vmatprep.subr.mxu0 0.0
        %2518 = vmatpush1.msra.mxu0 0.0
        %2519 = vmatprep.subr.mxu0 0.0
        %2520 = vmatpush1.msra.mxu0 0.0
        %2521 = vmatprep.subr.mxu0 0.0
        %2522 = vmatpush1.msra.mxu0 0.0
        %2523 = vmatprep.subr.mxu0 0.0
        %2524 = vmatpush1.msra.mxu0 0.0
        %2525 = vmatprep.subr.mxu0 0.0
        %2526 = vmatpush1.msra.mxu0 0.0
        %2527 = vmatprep.subr.mxu0 0.0
        %2528 = vmatpush1.msra.mxu0 0.0
        %2529 = vmatprep.subr.mxu0 0.0
        %2530 = vmatpush1.msra.mxu0 0.0
        %2531 = vmatprep.subr.mxu0 0.0
        %2532 = vmatpush1.msra.mxu0 0.0
        %2533 = vmatprep.subr.mxu0 0.0
        %2534 = vmatpush1.msra.mxu0 0.0
        %2535 = vmatprep.subr.mxu0 0.0
        %2536 = vmatpush1.msra.mxu0 0.0
        %2537 = vmatprep.subr.mxu0 0.0
        %2538 = vmatpush1.msra.mxu0 0.0
        %2539 = vmatprep.subr.mxu0 0.0
        %2540 = vmatpush1.msra.mxu0 0.0
        %2541 = vmatprep.subr.mxu0 0.0
        %2542 = vmatpush1.msra.mxu0 0.0
        %2543 = vmatprep.subr.mxu0 0.0
        %2544 = vmatpush1.msra.mxu0 0.0
        %2545 = vmatprep.subr.mxu0 0.0
        %2546 = vmatpush1.msra.mxu0 0.0
        %2547 = vmatprep.subr.mxu0 0.0
        %2548 = vmatpush1.msra.mxu0 0.0
        %2549 = vmatprep.subr.mxu0 0.0
        %2550 = vmatpush1.msra.mxu0 0.0
        %2551 = vmatprep.subr.mxu0 0.0
        %2552 = vmatpush1.msra.mxu0 0.0
        %2553 = vmatprep.subr.mxu0 0.0
        %2554 = vmatpush1.msra.mxu0 0.0
        %2555 = vmatprep.subr.mxu0 0.0
        %2556 = vmatpush1.msra.mxu0 0.0
        %2557 = vmatprep.mubr.f32.mxu0 0.0
        %2558 = vmatmul.mubr.f32.gmra.mrb[0].mxu0 %v2491
        %v2559 = vpop.f32.mrb[0].mxu0
        %v2560 = vadd.f32 %v687, %v2559
        %v2561 = vpop.f32.mrb[0].mxu0
        %2562 = vdwg.mxu0
        %v2565 = vunpack.c.l.s4 1966171168
        %v2566 = vunpack.c.0.s8 %v2565
        %v2567 = vlaneseq
        %v2568 = vshrl.u32 %v2567, 7
        %v2569 = vsub.s32 %v2566, %v2568
        %v2570 = vrot.slane %v2560, %v2569
        %v2571 = vcombine.high %v2570, %v2570
        %v2573 = vunpack.c.l.s4 1966171168
        %v2574 = vunpack.c.0.s8 %v2573
        %v2575 = vlaneseq
        %v2576 = vshrl.u32 %v2575, 7
        %v2577 = vsub.s32 %v2574, %v2576
        %v2578 = vrot.slane %v2570, %v2577
        %v2580 = vunpack.c.l.s4 1966171168
        %v2581 = vunpack.c.0.s8 %v2580
        %v2582 = vlaneseq
        %v2583 = vshrl.u32 %v2582, 7
        %v2584 = vsub.s32 %v2581, %v2583
        %v2585 = vrot.slane %v2571, %v2584
        %v2586 = vlaneseq
        %v2587 = vshrl.u32 %v2586, 7
        %v2588 = vsub.s32 0, %v2587
        %v2589 = vrot.slane %v2578, %v2588
        %v2590 = vlaneseq
        %v2591 = vshrl.u32 %v2590, 7
        %v2592 = vsub.s32 0, %v2591
        %v2593 = vrot.slane %v2585, %v2592
        %v2596 = vadd.f32 %v521, %v2589
        %v2597 = vadd.f32 %v522, %v2589
        %v2598 = vadd.f32 %v523, %v2593
        %v2599 = vadd.f32 %v524, %v2593
        %v2600 = vtanh.pop %v2596
        %v2601 = vtanh.pop %v2597
        %v2602 = vtanh.pop %v2598
        %v2603 = vtanh.pop %v2599
        %v2604 = vmul.f32 %v2600, %v816
        %v2605 = vmul.f32 %v2601, %v816
        %v2606 = vmul.f32 %v2602, %v816
        %v2607 = vmul.f32 %v2603, %v816
        %v2608 = vsel %vm822, %v2604, 0.0
        %2609 = vadd.xlane.f32.xlu0 %v2608
        %v2610 = vpop.xlane.xlu0 %2609
        %v2611 = vsel %vm822, %v2605, 0.0
        %2612 = vadd.xlane.f32.xlu0 %v2611
        %v2613 = vpop.xlane.xlu0 %2612
        %v2614 = vsel %vm822, %v2606, 0.0
        %2615 = vadd.xlane.f32.xlu0 %v2614
        %v2616 = vpop.xlane.xlu0 %2615
        %v2617 = vsel %vm822, %v2607, 0.0
        %2618 = vadd.xlane.f32.xlu0 %v2617
        %v2619 = vpop.xlane.xlu0 %2618
        %v2620 = vadd.f32 %v2610, %v842
        %v2621 = vadd.f32 %v2613, %v842
        %v2622 = vadd.f32 %v2616, %v842
        %v2623 = vadd.f32 %v2619, %v842
        %v2628 = vlaneseq
        %v2629 = vshrl.u32 %v2628, 7
        %v2630 = vsub.s32 %v853, %v2629
        %v2631 = vrot.slane %v2620, %v2630
        %v2632 = vlaneseq
        %v2633 = vshrl.u32 %v2632, 7
        %v2634 = vsub.s32 %v858, %v2633
        %v2635 = vrot.slane %v2621, %v2634
        %v2636 = vsel %vm863, %v2635, %v2631
        %v2637 = vlaneseq
        %v2638 = vshrl.u32 %v2637, 7
        %v2639 = vsub.s32 %v853, %v2638
        %v2640 = vrot.slane %v2622, %v2639
        %v2641 = vlaneseq
        %v2642 = vshrl.u32 %v2641, 7
        %v2643 = vsub.s32 %v858, %v2642
        %v2644 = vrot.slane %v2623, %v2643
        %v2645 = vsel %vm863, %v2644, %v2640
        %v2646 = vsel %vm874, %v2645, %v2636
        %v2648 = vsel %vm877, %v2646, -inf
        %2649 = vmax.xlane.f32.xlu0 %v2648
        %v2650 = vpop.xlane.xlu0 %2649
        %v2652 = vlaneseq
        %v2653 = vshrl.u32 %v2652, 7
        %v2654 = vsub.s32 0, %v2653
        %v2655 = vrot.slane %v2650, %v2654
        %v2656 = vlaneseq
        %v2657 = vshrl.u32 %v2656, 7
        %v2658 = vsub.s32 1, %v2657
        %v2659 = vrot.slane %v2650, %v2658
        %v2662 = vsub.f32 %v2620, %v2655
        %v2663 = vsub.f32 %v2621, %v2655
        %v2664 = vsub.f32 %v2622, %v2659
        %v2665 = vsub.f32 %v2623, %v2659
        %v2666 = vmul.f32 %v2662, 1.442695
        %v2667 = vpow.pop %v2666
        %v2668 = vmul.f32 %v2663, 1.442695
        %v2669 = vpow.pop %v2668
        %v2670 = vmul.f32 %v2664, 1.442695
        %v2671 = vpow.pop %v2670
        %v2672 = vmul.f32 %v2665, 1.442695
        %v2673 = vpow.pop %v2672
        %2678 = vset.pattern.permute.xlu0 0
        %2679 = vperm.xlu0 %2678, %v2667
        %v2680 = vpop.permute.xlu0 %2679
        %2681 = vset.pattern.permute.xlu0 0
        %2682 = vperm.xlu0 %2681, %v2669
        %v2683 = vpop.permute.xlu0 %2682
        %2684 = vset.pattern.permute.xlu0 0
        %2685 = vperm.xlu0 %2684, %v2671
        %v2686 = vpop.permute.xlu0 %2685
        %2687 = vset.pattern.permute.xlu0 0
        %2688 = vperm.xlu0 %2687, %v2673
        %v2689 = vpop.permute.xlu0 %2688
        %v2690 = vlaneseq
        %v2691 = vshrl.u32 %v2690, 7
        %v2692 = vsub.s32 %v853, %v2691
        %v2693 = vrot.slane %v2680, %v2692
        %v2694 = vlaneseq
        %v2695 = vshrl.u32 %v2694, 7
        %v2696 = vsub.s32 %v858, %v2695
        %v2697 = vrot.slane %v2683, %v2696
        %v2698 = vsel %vm863, %v2697, %v2693
        %v2699 = vlaneseq
        %v2700 = vshrl.u32 %v2699, 7
        %v2701 = vsub.s32 %v853, %v2700
        %v2702 = vrot.slane %v2686, %v2701
        %v2703 = vlaneseq
        %v2704 = vshrl.u32 %v2703, 7
        %v2705 = vsub.s32 %v858, %v2704
        %v2706 = vrot.slane %v2689, %v2705
        %v2707 = vsel %vm863, %v2706, %v2702
        %v2708 = vsel %vm874, %v2707, %v2698
        %v2710 = vsel %vm877, %v2708, 0.0
        %2711 = vadd.xlane.f32.xlu0 %v2710
        %v2712 = vpop.xlane.xlu0 %2711
        %v2713 = vrcp.pop %v2712
        %v2715 = vlaneseq
        %v2716 = vshrl.u32 %v2715, 7
        %v2717 = vsub.s32 0, %v2716
        %v2718 = vrot.slane %v2713, %v2717
        %v2719 = vlaneseq
        %v2720 = vshrl.u32 %v2719, 7
        %v2721 = vsub.s32 1, %v2720
        %v2722 = vrot.slane %v2713, %v2721
        %v2725 = vmul.f32 %v2667, %v2718
        %v2726 = vmul.f32 %v2669, %v2718
        %v2727 = vmul.f32 %v2671, %v2722
        %v2728 = vmul.f32 %v2673, %v2722
        %2730 = vset.pattern.permute.xlu0 0
        %2731 = vperm.xlu0 %2730, %v2725
        %v2732 = vpop.permute.xlu0 %2731
        %2735 = vset.pattern.permute.xlu0 0
        %2736 = vperm.xlu0 %2735, %v2726
        %v2737 = vpop.permute.xlu0 %2736
        %2740 = vset.pattern.permute.xlu0 0
        %2741 = vperm.xlu0 %2740, %v2727
        %v2742 = vpop.permute.xlu0 %2741
        %2745 = vset.pattern.permute.xlu0 0
        %2746 = vperm.xlu0 %2745, %v2728
        %v2747 = vpop.permute.xlu0 %2746
        %v2749 = vmul.f32 %v517, %v2732
        %v2750 = vmul.f32 %v518, %v2737
        %v2751 = vmul.f32 %v519, %v2742
        %v2752 = vmul.f32 %v520, %v2747
        %v2753 = vsel %vm550, %v2749, 0.0
        %v2754 = vsel %vm550, %v2750, 0.0
        %v2755 = vadd.f32 %v2753, %v2754
        %v2756 = vrot.slane %v2755, 4
        %v2757 = vadd.f32 %v2755, %v2756
        %v2758 = vrot.slane %v2757, 2
        %v2759 = vadd.f32 %v2757, %v2758
        %v2760 = vrot.slane %v2759, 1
        %v2761 = vadd.f32 %v2759, %v2760
        %v2762 = vsel %vm550, %v2751, 0.0
        %v2763 = vsel %vm550, %v2752, 0.0
        %v2764 = vadd.f32 %v2762, %v2763
        %v2765 = vrot.slane %v2764, 4
        %v2766 = vadd.f32 %v2764, %v2765
        %v2767 = vrot.slane %v2766, 2
        %v2768 = vadd.f32 %v2766, %v2767
        %v2769 = vrot.slane %v2768, 1
        %v2770 = vadd.f32 %v2768, %v2769
        %v2772 = vsel %vm550, %v2480, 0
        %2774 = vmatprep.subr.mxu0 0.0
        %2775 = vmatpush1.msra.mxu0 %v538
        %2776 = vmatprep.subr.mxu0 0.0
        %2777 = vmatpush1.msra.mxu0 %v539
        %2778 = vmatprep.subr.mxu0 0.0
        %2779 = vmatpush1.msra.mxu0 %v540
        %2780 = vmatprep.subr.mxu0 0.0
        %2781 = vmatpush1.msra.mxu0 %v541
        %2782 = vmatprep.subr.mxu0 0.0
        %2783 = vmatpush1.msra.mxu0 0.0
        %2784 = vmatprep.subr.mxu0 0.0
        %2785 = vmatpush1.msra.mxu0 0.0
        %2786 = vmatprep.subr.mxu0 0.0
        %2787 = vmatpush1.msra.mxu0 0.0
        %2788 = vmatprep.subr.mxu0 0.0
        %2789 = vmatpush1.msra.mxu0 0.0
        %2790 = vmatprep.subr.mxu0 0.0
        %2791 = vmatpush1.msra.mxu0 0.0
        %2792 = vmatprep.subr.mxu0 0.0
        %2793 = vmatpush1.msra.mxu0 0.0
        %2794 = vmatprep.subr.mxu0 0.0
        %2795 = vmatpush1.msra.mxu0 0.0
        %2796 = vmatprep.subr.mxu0 0.0
        %2797 = vmatpush1.msra.mxu0 0.0
        %2798 = vmatprep.subr.mxu0 0.0
        %2799 = vmatpush1.msra.mxu0 0.0
        %2800 = vmatprep.subr.mxu0 0.0
        %2801 = vmatpush1.msra.mxu0 0.0
        %2802 = vmatprep.subr.mxu0 0.0
        %2803 = vmatpush1.msra.mxu0 0.0
        %2804 = vmatprep.subr.mxu0 0.0
        %2805 = vmatpush1.msra.mxu0 0.0
        %2806 = vmatprep.subr.mxu0 0.0
        %2807 = vmatpush1.msra.mxu0 0.0
        %2808 = vmatprep.subr.mxu0 0.0
        %2809 = vmatpush1.msra.mxu0 0.0
        %2810 = vmatprep.subr.mxu0 0.0
        %2811 = vmatpush1.msra.mxu0 0.0
        %2812 = vmatprep.subr.mxu0 0.0
        %2813 = vmatpush1.msra.mxu0 0.0
        %2814 = vmatprep.subr.mxu0 0.0
        %2815 = vmatpush1.msra.mxu0 0.0
        %2816 = vmatprep.subr.mxu0 0.0
        %2817 = vmatpush1.msra.mxu0 0.0
        %2818 = vmatprep.subr.mxu0 0.0
        %2819 = vmatpush1.msra.mxu0 0.0
        %2820 = vmatprep.subr.mxu0 0.0
        %2821 = vmatpush1.msra.mxu0 0.0
        %2822 = vmatprep.subr.mxu0 0.0
        %2823 = vmatpush1.msra.mxu0 0.0
        %2824 = vmatprep.subr.mxu0 0.0
        %2825 = vmatpush1.msra.mxu0 0.0
        %2826 = vmatprep.subr.mxu0 0.0
        %2827 = vmatpush1.msra.mxu0 0.0
        %2828 = vmatprep.subr.mxu0 0.0
        %2829 = vmatpush1.msra.mxu0 0.0
        %2830 = vmatprep.subr.mxu0 0.0
        %2831 = vmatpush1.msra.mxu0 0.0
        %2832 = vmatprep.subr.mxu0 0.0
        %2833 = vmatpush1.msra.mxu0 0.0
        %2834 = vmatprep.subr.mxu0 0.0
        %2835 = vmatpush1.msra.mxu0 0.0
        %2836 = vmatprep.subr.mxu0 0.0
        %2837 = vmatpush1.msra.mxu0 0.0
        %2838 = vmatprep.mubr.f32.mxu0 0.0
        %2839 = vmatmul.mubr.f32.gmra.mrb[0].mxu0 %v2772
        %v2840 = vpop.f32.mrb[0].mxu0
        %v2841 = vadd.f32 %v1005, %v2840
        %v2842 = vpop.f32.mrb[0].mxu0
        %2843 = vdwg.mxu0
        %v2844 = vadd.f32 %v2841, %v2560
        %v2845 = vtanh.pop %v2844
        %v2846 = vmul.f32 %v2845, %v1086
        %v2847 = vsel %vm877, %v2846, 0.0
        %2848 = vadd.xlane.f32.xlu0 %v2847
        %v2849 = vpop.xlane.xlu0 %2848
        %v2850 = vadd.f32 %v2849, %v1096
        %v2851 = vmax.f32 %v2650, %v2850
        %v2852 = vsub.f32 %v2850, %v2851
        %v2853 = vmul.f32 %v2852, 1.442695
        %v2854 = vpow.pop %v2853
        %2856 = vset.pattern.permute.xlu0 0
        %2857 = vperm.xlu0 %2856, %v2851
        %v2858 = vpop.permute.xlu0 %2857
        %v2859 = vlaneseq
        %v2860 = vshrl.u32 %v2859, 7
        %v2861 = vsub.s32 0, %v2860
        %v2862 = vrot.slane %v2858, %v2861
        %v2863 = vlaneseq
        %v2864 = vshrl.u32 %v2863, 7
        %v2865 = vsub.s32 1, %v2864
        %v2866 = vrot.slane %v2858, %v2865
        %v2869 = vsub.f32 %v2620, %v2862
        %v2870 = vsub.f32 %v2621, %v2862
        %v2871 = vsub.f32 %v2622, %v2866
        %v2872 = vsub.f32 %v2623, %v2866
        %v2873 = vmul.f32 %v2869, 1.442695
        %v2874 = vpow.pop %v2873
        %v2875 = vmul.f32 %v2870, 1.442695
        %v2876 = vpow.pop %v2875
        %v2877 = vmul.f32 %v2871, 1.442695
        %v2878 = vpow.pop %v2877
        %v2879 = vmul.f32 %v2872, 1.442695
        %v2880 = vpow.pop %v2879
        %2885 = vset.pattern.permute.xlu0 0
        %2886 = vperm.xlu0 %2885, %v2874
        %v2887 = vpop.permute.xlu0 %2886
        %2888 = vset.pattern.permute.xlu0 0
        %2889 = vperm.xlu0 %2888, %v2876
        %v2890 = vpop.permute.xlu0 %2889
        %2891 = vset.pattern.permute.xlu0 0
        %2892 = vperm.xlu0 %2891, %v2878
        %v2893 = vpop.permute.xlu0 %2892
        %2894 = vset.pattern.permute.xlu0 0
        %2895 = vperm.xlu0 %2894, %v2880
        %v2896 = vpop.permute.xlu0 %2895
        %v2897 = vlaneseq
        %v2898 = vshrl.u32 %v2897, 7
        %v2899 = vsub.s32 %v853, %v2898
        %v2900 = vrot.slane %v2887, %v2899
        %v2901 = vlaneseq
        %v2902 = vshrl.u32 %v2901, 7
        %v2903 = vsub.s32 %v858, %v2902
        %v2904 = vrot.slane %v2890, %v2903
        %v2905 = vsel %vm863, %v2904, %v2900
        %v2906 = vlaneseq
        %v2907 = vshrl.u32 %v2906, 7
        %v2908 = vsub.s32 %v853, %v2907
        %v2909 = vrot.slane %v2893, %v2908
        %v2910 = vlaneseq
        %v2911 = vshrl.u32 %v2910, 7
        %v2912 = vsub.s32 %v858, %v2911
        %v2913 = vrot.slane %v2896, %v2912
        %v2914 = vsel %vm863, %v2913, %v2909
        %v2915 = vsel %vm874, %v2914, %v2905
        %v2917 = vsel %vm877, %v2915, 0.0
        %2918 = vadd.xlane.f32.xlu0 %v2917
        %v2919 = vpop.xlane.xlu0 %2918
        %v2920 = vadd.f32 %v2919, %v2854
        %v2921 = vrcp.pop %v2920
        %v2922 = vmul.f32 %v2854, %v2921
        %2924 = vset.pattern.permute.xlu0 0
        %2925 = vperm.xlu0 %2924, %v2922
        %v2926 = vpop.permute.xlu0 %2925
        %v2928 = vmul.f32 %v2926, %v2480
        %v2929 = vsub.f32 1.0, %v2922
        %2931 = vset.pattern.permute.xlu0 0
        %2932 = vperm.xlu0 %2931, %v2929
        %v2933 = vpop.permute.xlu0 %2932
        %v2937 = vsel %vm874, %v2770, %v2761
        %v2939 = vmul.f32 %v2933, %v2937
        %v2940 = vadd.f32 %v2928, %v2939
        %v2942 = vadd.f32 %v2940, %v2490
        %s2943 = scalar_lea.vmem %s497, 6 [#allocation12]
        %2944 = vst.msk [vmem:[%s2943] sm:$0x3] %vm1191, %v2942
        %2945 = vst.msk [vmem:[#allocation2] sm:$0x3] %vm1191, %v2490
        %v2948 = vunpack.c.l.s4 1983009808
        %v2949 = vunpack.c.0.s8 %v2948
        %v2950 = vlaneseq
        %v2951 = vshrl.u32 %v2950, 7
        %v2952 = vsub.s32 %v2949, %v2951
        %v2953 = vrot.slane %v2470, %v2952
        %2954 = vrot.lane.b32.xlu0 %v2953, 96
        %v2955 = vpop.permute.xlu0 %2954
        %2957 = vst.msk [vmem:[#allocation3] sm:$0x3] %vm1191, %v2955
        %s2958 = sand.u32 %s323, 1
        %s2959 = scalar_lea.sflag [#allocation8], %s2958
        %s2960 = sand.u32 %s323, 1
        %s2961 = smul.addr %s2960, 8
        %s2962 = scalar_lea.vmem [#allocation12], %s2961
        // Predicated region
        $region85: #{tpu_custom_call.1} parent=67 // pred_check
          %p2963 = pneg %p333
        $region86: #{tpu_custom_call.1} parent=67 // pred_check_branch
          %2965 = sbr.rel (%p2963) target = $region88
        $region87: #{tpu_custom_call.1} parent=67 // pred_region
          %s2966 = smul.u32 4, %s37
          %s2968 = ssub.s32 128, 128
          %2969 = vsyncadd %s2959, %s2968
          %s2970 = smul.addr %s36, 8
          %s2971 = sadd.s32 %s2966, %s2970
          %s2972 = smul.addr %s2971, 32
          %s2973 = scalar_lea.hbm %s12, %s2972
          %s2974 = sshll.u32 %s2962, 4
          %s2975 = int_to_ptr.vmem [resolvable:$true] %s2974
          %2980 = dma.vmem_to_hbm [thread:$0]  %s2975, 128, %s2973, %s2959, 32, 32, 2
        $region88: #{tpu_custom_call.1} parent=67 // pred_fallthru
          _
      $region68: #{tpu_custom_call.1} parent=5 // pred_fallthru
        _
      %p2981 = scmp.le.s32.totalorder 2, %s27
      // Predicated region
      $region89: #{tpu_custom_call.1} parent=5 // pred_check
        %p2982 = pneg %p2981
      $region90: #{tpu_custom_call.1} parent=5 // pred_check_branch
        %2984 = sbr.rel (%p2982) target = $region92
      $region91: #{tpu_custom_call.1} parent=5 // pred_region
        %s2985 = ssub.s32 %s27, 2
        // Predicated region
        $region93: #{tpu_custom_call.1} parent=91 // pred_check
          %p2986 = pneg %p339
        $region94: #{tpu_custom_call.1} parent=91 // pred_check_branch
          %2988 = sbr.rel (%p2986) target = $region96
        $region95: #{tpu_custom_call.1} parent=91 // pred_region
          %s2989 = sand.u32 %s324, 1
          %s2990 = scalar_lea.sflag [#allocation8], %s2989
          %s2991 = sand.u32 %s324, 1
          %s2992 = smul.addr %s2991, 8
          %s2993 = scalar_lea.vmem [#allocation12], %s2992
          %2994 = dma.done %s2990, 128
        $region96: #{tpu_custom_call.1} parent=91 // pred_fallthru
          _
      $region92: #{tpu_custom_call.1} parent=5 // pred_fallthru
        _
    $region6: #{tpu_custom_call.1} parent=1 // loop_footer
      %s31 = sadd.s32 1, %s27
    $region7: #{tpu_custom_call.1} parent=1 // loop_footer_branch
      %26 = sbr.rel target = $region3
    $region8: #{tpu_custom_call.1} parent=1 // loop_exit
      _
    %2995 = vsyncpa [#allocation7], 1
    %s2996 = scalar_lea.sflag [#allocation7], 1
    %2997 = vsyncpa %s2996, 1
    %2998 = vsyncpa [#allocation10], 1
    %2999 = vsyncpa [#allocation8], 1
    %s3000 = scalar_lea.sflag [#allocation8], 1
    %3001 = vsyncpa %s3000, 1

// kernel: tpu_custom_call.1
$region0: #{tpu_custom_call.1}
  #allocation0 [shape = 'u32[]', space=smem, size = 0x4, offset = 0x4, fixed_abs, tag = 'smem constant byte address 0x4 - core index']
  #allocation1 [shape = 'u32[144,128]{1,0:T(1,128)}', space=vmem, size = 0x12000, scoped, tag = 'internal scratch']
  #allocation2 [shape = 'f32[2,32]{1,0:T(2,128)}', space=vmem, size = 0x400, scoped, tag = 'scratch operand']
  #allocation3 [shape = 'f32[2,32]{1,0:T(2,128)}', space=vmem, size = 0x400, scoped, tag = 'scratch operand']
  #allocation4 [shape = 'f32[1,1]{1,0:T(1,128)S(1)}', space=vmem, size = 0x200, scoped, tag = 'scoped memory for tpu_custom_call.1']
  #allocation5 [shape = 'f32[1,1]{1,0:T(1,128)S(1)}', space=vmem, size = 0x200, scoped, tag = 'scoped memory for tpu_custom_call.1']
  %s0 = inlined_call_operand.vmem [shape: f32[2,8,2,160], index: 0, kind: input, shape index: {}]
  %s1 = inlined_call_operand.hbm [shape: f32[2,2,16,32], index: 1, kind: input, shape index: {}]
  %s2 = inlined_call_operand.hbm [shape: f32[2,2,16,16], index: 2, kind: input, shape index: {}]
  %s3 = inlined_call_operand.hbm [shape: f32[32,160], index: 3, kind: input, shape index: {}]
  %s4 = inlined_call_operand.vmem [shape: f32[32,16], index: 4, kind: input, shape index: {}]
  %s5 = inlined_call_operand.vmem [shape: f32[1,16], index: 5, kind: input, shape index: {}]
  %s6 = inlined_call_operand.vmem [shape: f32[32,16], index: 6, kind: input, shape index: {}]
  %s7 = inlined_call_operand.vmem [shape: f32[1,16], index: 7, kind: input, shape index: {}]
  %s8 = inlined_call_operand.vmem [shape: f32[1,16], index: 8, kind: input, shape index: {}]
  %s9 = inlined_call_operand.<no memory space> [shape: f32[1,1], index: 9, kind: input, shape index: {}]
  %s10 = inlined_call_operand.vmem [shape: f32[1,16], index: 10, kind: input, shape index: {}]
  %s11 = inlined_call_operand.<no memory space> [shape: f32[1,1], index: 11, kind: input, shape index: {}]
  %s12 = inlined_call_operand.hbm [shape: f32[2,8,2,32], index: 12, kind: output, shape index: {}]
  %s13 = sld [smem:[#allocation0]]
  $region97: #{tpu_custom_call.1} parent=0
    _
  %s15 = ssub.s32 1, %s13
  %s16 = scalar_select 0, %s15, %s13
  %v17 = vstv %s9
  %18 = vst [vmem:[#allocation4] sm:$0x1] %v17
  %v19 = vstv %s11
  %20 = vst [vmem:[#allocation5] sm:$0x1] %v19
  $region1: #{tpu_custom_call.1} parent=0
    #allocation6 [shape = 'u8[32768]{0}', space=vmem, size = 0x8000, scoped, tag = 'input window, operand 1']
    #allocation7 [shape = 's32[2]{0}', space=sflag, size = 0x8, scoped, tag = 'scoped memory for tpu_custom_call.1']
    #allocation8 [shape = 's32[2]{0}', space=sflag, size = 0x8, scoped, tag = 'scoped memory for tpu_custom_call.1']
    #allocation9 [shape = 'u8[32768]{0}', space=vmem, size = 0x8000, scoped, tag = 'input window, operand 2']
    #allocation10 [shape = 's32[2]{0}', space=sflag, size = 0x8, scoped, tag = 'scoped memory for tpu_custom_call.1']
    #allocation11 [shape = 'u8[32768]{0}', space=vmem, size = 0x8000, scoped, tag = 'input window, operand 3, single buffered']
    #allocation12 [shape = 'u8[8192]{0}', space=vmem, size = 0x2000, scoped, tag = 'output window, operand 0']
    %21 = vsyncpa [#allocation7], 0
    %s22 = scalar_lea.sflag [#allocation7], 1
    %23 = vsyncpa %s22, 0
    %24 = vsyncpa [#allocation10], 0
    %s25 = scalar_lea.sflag [#allocation10], 1
    %26 = vsyncpa %s25, 0
    %27 = vsyncpa [#allocation8], 0
    %s28 = scalar_lea.sflag [#allocation8], 1
    %29 = vsyncpa %s28, 0
    loop: start=0, step=1, limit=6
    $region2: #{tpu_custom_call.1} parent=1 // loop_pre_header
      _
    $region3: #{tpu_custom_call.1} parent=1 // loop_header
      %s31 = sphi 0, %s35
      %p32 = scmp.ge.s32.totalorder %s31, 6
      %s38 = sphi 0, %s50
      %s39 = sphi 0, %s46
      %s40 = sphi 0, %s38
      %s41 = sphi 0, %s39
      %s42 = sphi 0, %s40
      %s43 = sphi 0, %s41
      %s55 = sphi 0, %s57
      %s58 = sphi 0, %s55
      %s59 = sphi 0, %s58
      %s75 = sphi 0, %s59
      %s81 = sphi 0, %s83
      %s84 = sphi 0, %s81
      %s85 = sphi 0, %s84
      %s101 = sphi 0, %s85
      %s107 = sphi 0, %s109
      %s110 = sphi 0, %s107
      %s111 = sphi 0, %s110
      %s127 = sphi 0, %s111
      %s131 = sphi 0, %s131
      %s133 = sphi 0, %s131
      %s134 = sphi 0, %s133
      %s148 = sphi 0, %s134
      %s152 = sphi 0, %s152
      %s154 = sphi 0, %s152
      %s155 = sphi 0, %s154
      %s169 = sphi 0, %s155
      %s173 = sphi 0, %s173
      %s175 = sphi 0, %s173
      %s176 = sphi 0, %s175
      %s190 = sphi 0, %s176
      %s194 = sphi 0, %s194
      %s196 = sphi 0, %s194
      %s197 = sphi 0, %s196
      %s211 = sphi 0, %s197
      %s215 = sphi 0, %s215
      %s217 = sphi 0, %s215
      %s218 = sphi 0, %s217
      %s232 = sphi 0, %s218
      %s236 = sphi 0, %s236
      %s238 = sphi 0, %s236
      %s239 = sphi 0, %s238
      %s253 = sphi 0, %s239
      %s257 = sphi 0, %s257
      %s259 = sphi 0, %s257
      %s260 = sphi 0, %s259
      %s274 = sphi 0, %s260
      %s278 = sphi 0, %s278
      %s280 = sphi 0, %s278
      %s281 = sphi 0, %s280
      %s295 = sphi 0, %s281
      %s299 = sphi 0, %s299
      %s301 = sphi 0, %s299
      %s302 = sphi 0, %s301
      %s316 = sphi 0, %s302
      %s324 = sphi 0, %s326
      %s327 = sphi 0, %s324
      %s328 = sphi 0, %s327
      %s344 = sphi 0, %s328
    $region4: #{tpu_custom_call.1} parent=1 // loop_header_branch
      %34 = sbr.rel (%p32) target = $region8
    $region5: #{tpu_custom_call.1} parent=1 // loop_body
      %s36 = ssub.s32 %s31, 1
      %s37 = ssub.s32 %s31, 2
      %s44 = sadd.s32 1, %s39
      %p45 = scmp.ge.s32.totalorder %s44, 2
      %s46 = scalar_select %p45, 0, %s44
      %s47 = sadd.s32 1, %s38
      %s48 = scalar_select %p45, %s47, %s38
      %p49 = scmp.ge.s32.totalorder %s48, 2
      %s50 = scalar_select %p49, 0, %s48
      %s51 = ssub.s32 %s38, %s50
      %s52 = ssub.s32 %s39, %s46
      %s53 = sor.u32 %s51, %s52
      %p54 = scmp.eq.s32.totalorder %s53, 0
      %s56 = sadd.s32 %s55, 1
      %s57 = scalar_select %p54, %s55, %s56
      %p60 = pneg %p54
      %p61 = scmp.eq.s32.totalorder %s31, 3
      %p62 = por %p60, %p61
      %p63 = scmp.ne.s32.totalorder %s55, %s58
      %p64 = scmp.eq.s32.totalorder %s31, 0
      %p65 = por %p63, %p64
      %p66 = scmp.ne.s32.totalorder %s55, %s58
      %p67 = scmp.eq.s32.totalorder %s36, 3
      %p68 = por %p66, %p67
      %p69 = scmp.ne.s32.totalorder %s58, %s59
      %p70 = scmp.eq.s32.totalorder %s36, 0
      %p71 = por %p69, %p70
      %p72 = scmp.ne.s32.totalorder %s58, %s59
      %p73 = scmp.eq.s32.totalorder %s37, 3
      %p74 = por %p72, %p73
      %p76 = scmp.ne.s32.totalorder %s59, %s75
      %p77 = scmp.eq.s32.totalorder %s37, 0
      %p78 = por %p76, %p77
      %s79 = ssub.s32 %s38, %s50
      %p80 = scmp.eq.s32.totalorder %s79, 0
      %s82 = sadd.s32 %s81, 1
      %s83 = scalar_select %p80, %s81, %s82
      %p86 = pneg %p80
      %p87 = scmp.eq.s32.totalorder %s31, 3
      %p88 = por %p86, %p87
      %p89 = scmp.ne.s32.totalorder %s81, %s84
      %p90 = scmp.eq.s32.totalorder %s31, 0
      %p91 = por %p89, %p90
      %p92 = scmp.ne.s32.totalorder %s81, %s84
      %p93 = scmp.eq.s32.totalorder %s36, 3
      %p94 = por %p92, %p93
      %p95 = scmp.ne.s32.totalorder %s84, %s85
      %p96 = scmp.eq.s32.totalorder %s36, 0
      %p97 = por %p95, %p96
      %p98 = scmp.ne.s32.totalorder %s84, %s85
      %p99 = scmp.eq.s32.totalorder %s37, 3
      %p100 = por %p98, %p99
      %p102 = scmp.ne.s32.totalorder %s85, %s101
      %p103 = scmp.eq.s32.totalorder %s37, 0
      %p104 = por %p102, %p103
      %s105 = ssub.s32 %s38, %s50
      %p106 = scmp.eq.s32.totalorder %s105, 0
      %s108 = sadd.s32 %s107, 1
      %s109 = scalar_select %p106, %s107, %s108
      %p112 = pneg %p106
      %p113 = scmp.eq.s32.totalorder %s31, 3
      %p114 = por %p112, %p113
      %p115 = scmp.ne.s32.totalorder %s107, %s110
      %p116 = scmp.eq.s32.totalorder %s31, 0
      %p117 = por %p115, %p116
      %p118 = scmp.ne.s32.totalorder %s107, %s110
      %p119 = scmp.eq.s32.totalorder %s36, 3
      %p120 = por %p118, %p119
      %p121 = scmp.ne.s32.totalorder %s110, %s111
      %p122 = scmp.eq.s32.totalorder %s36, 0
      %p123 = por %p121, %p122
      %p124 = scmp.ne.s32.totalorder %s110, %s111
      %p125 = scmp.eq.s32.totalorder %s37, 3
      %p126 = por %p124, %p125
      %p128 = scmp.ne.s32.totalorder %s111, %s127
      %p129 = scmp.eq.s32.totalorder %s37, 0
      %p130 = por %p128, %p129
      %s132 = sadd.s32 %s131, 1
      %p135 = scmp.eq.s32.totalorder %s31, 3
      %p136 = scmp.ne.s32.totalorder %s131, %s133
      %p137 = scmp.eq.s32.totalorder %s31, 0
      %p138 = por %p136, %p137
      %p139 = scmp.ne.s32.totalorder %s131, %s133
      %p140 = scmp.eq.s32.totalorder %s36, 3
      %p141 = por %p139, %p140
      %p142 = scmp.ne.s32.totalorder %s133, %s134
      %p143 = scmp.eq.s32.totalorder %s36, 0
      %p144 = por %p142, %p143
      %p145 = scmp.ne.s32.totalorder %s133, %s134
      %p146 = scmp.eq.s32.totalorder %s37, 3
      %p147 = por %p145, %p146
      %p149 = scmp.ne.s32.totalorder %s134, %s148
      %p150 = scmp.eq.s32.totalorder %s37, 0
      %p151 = por %p149, %p150
      %s153 = sadd.s32 %s152, 1
      %p156 = scmp.eq.s32.totalorder %s31, 3
      %p157 = scmp.ne.s32.totalorder %s152, %s154
      %p158 = scmp.eq.s32.totalorder %s31, 0
      %p159 = por %p157, %p158
      %p160 = scmp.ne.s32.totalorder %s152, %s154
      %p161 = scmp.eq.s32.totalorder %s36, 3
      %p162 = por %p160, %p161
      %p163 = scmp.ne.s32.totalorder %s154, %s155
      %p164 = scmp.eq.s32.totalorder %s36, 0
      %p165 = por %p163, %p164
      %p166 = scmp.ne.s32.totalorder %s154, %s155
      %p167 = scmp.eq.s32.totalorder %s37, 3
      %p168 = por %p166, %p167
      %p170 = scmp.ne.s32.totalorder %s155, %s169
      %p171 = scmp.eq.s32.totalorder %s37, 0
      %p172 = por %p170, %p171
      %s174 = sadd.s32 %s173, 1
      %p177 = scmp.eq.s32.totalorder %s31, 3
      %p178 = scmp.ne.s32.totalorder %s173, %s175
      %p179 = scmp.eq.s32.totalorder %s31, 0
      %p180 = por %p178, %p179
      %p181 = scmp.ne.s32.totalorder %s173, %s175
      %p182 = scmp.eq.s32.totalorder %s36, 3
      %p183 = por %p181, %p182
      %p184 = scmp.ne.s32.totalorder %s175, %s176
      %p185 = scmp.eq.s32.totalorder %s36, 0
      %p186 = por %p184, %p185
      %p187 = scmp.ne.s32.totalorder %s175, %s176
      %p188 = scmp.eq.s32.totalorder %s37, 3
      %p189 = por %p187, %p188
      %p191 = scmp.ne.s32.totalorder %s176, %s190
      %p192 = scmp.eq.s32.totalorder %s37, 0
      %p193 = por %p191, %p192
      %s195 = sadd.s32 %s194, 1
      %p198 = scmp.eq.s32.totalorder %s31, 3
      %p199 = scmp.ne.s32.totalorder %s194, %s196
      %p200 = scmp.eq.s32.totalorder %s31, 0
      %p201 = por %p199, %p200
      %p202 = scmp.ne.s32.totalorder %s194, %s196
      %p203 = scmp.eq.s32.totalorder %s36, 3
      %p204 = por %p202, %p203
      %p205 = scmp.ne.s32.totalorder %s196, %s197
      %p206 = scmp.eq.s32.totalorder %s36, 0
      %p207 = por %p205, %p206
      %p208 = scmp.ne.s32.totalorder %s196, %s197
      %p209 = scmp.eq.s32.totalorder %s37, 3
      %p210 = por %p208, %p209
      %p212 = scmp.ne.s32.totalorder %s197, %s211
      %p213 = scmp.eq.s32.totalorder %s37, 0
      %p214 = por %p212, %p213
      %s216 = sadd.s32 %s215, 1
      %p219 = scmp.eq.s32.totalorder %s31, 3
      %p220 = scmp.ne.s32.totalorder %s215, %s217
      %p221 = scmp.eq.s32.totalorder %s31, 0
      %p222 = por %p220, %p221
      %p223 = scmp.ne.s32.totalorder %s215, %s217
      %p224 = scmp.eq.s32.totalorder %s36, 3
      %p225 = por %p223, %p224
      %p226 = scmp.ne.s32.totalorder %s217, %s218
      %p227 = scmp.eq.s32.totalorder %s36, 0
      %p228 = por %p226, %p227
      %p229 = scmp.ne.s32.totalorder %s217, %s218
      %p230 = scmp.eq.s32.totalorder %s37, 3
      %p231 = por %p229, %p230
      %p233 = scmp.ne.s32.totalorder %s218, %s232
      %p234 = scmp.eq.s32.totalorder %s37, 0
      %p235 = por %p233, %p234
      %s237 = sadd.s32 %s236, 1
      %p240 = scmp.eq.s32.totalorder %s31, 3
      %p241 = scmp.ne.s32.totalorder %s236, %s238
      %p242 = scmp.eq.s32.totalorder %s31, 0
      %p243 = por %p241, %p242
      %p244 = scmp.ne.s32.totalorder %s236, %s238
      %p245 = scmp.eq.s32.totalorder %s36, 3
      %p246 = por %p244, %p245
      %p247 = scmp.ne.s32.totalorder %s238, %s239
      %p248 = scmp.eq.s32.totalorder %s36, 0
      %p249 = por %p247, %p248
      %p250 = scmp.ne.s32.totalorder %s238, %s239
      %p251 = scmp.eq.s32.totalorder %s37, 3
      %p252 = por %p250, %p251
      %p254 = scmp.ne.s32.totalorder %s239, %s253
      %p255 = scmp.eq.s32.totalorder %s37, 0
      %p256 = por %p254, %p255
      %s258 = sadd.s32 %s257, 1
      %p261 = scmp.eq.s32.totalorder %s31, 3
      %p262 = scmp.ne.s32.totalorder %s257, %s259
      %p263 = scmp.eq.s32.totalorder %s31, 0
      %p264 = por %p262, %p263
      %p265 = scmp.ne.s32.totalorder %s257, %s259
      %p266 = scmp.eq.s32.totalorder %s36, 3
      %p267 = por %p265, %p266
      %p268 = scmp.ne.s32.totalorder %s259, %s260
      %p269 = scmp.eq.s32.totalorder %s36, 0
      %p270 = por %p268, %p269
      %p271 = scmp.ne.s32.totalorder %s259, %s260
      %p272 = scmp.eq.s32.totalorder %s37, 3
      %p273 = por %p271, %p272
      %p275 = scmp.ne.s32.totalorder %s260, %s274
      %p276 = scmp.eq.s32.totalorder %s37, 0
      %p277 = por %p275, %p276
      %s279 = sadd.s32 %s278, 1
      %p282 = scmp.eq.s32.totalorder %s31, 3
      %p283 = scmp.ne.s32.totalorder %s278, %s280
      %p284 = scmp.eq.s32.totalorder %s31, 0
      %p285 = por %p283, %p284
      %p286 = scmp.ne.s32.totalorder %s278, %s280
      %p287 = scmp.eq.s32.totalorder %s36, 3
      %p288 = por %p286, %p287
      %p289 = scmp.ne.s32.totalorder %s280, %s281
      %p290 = scmp.eq.s32.totalorder %s36, 0
      %p291 = por %p289, %p290
      %p292 = scmp.ne.s32.totalorder %s280, %s281
      %p293 = scmp.eq.s32.totalorder %s37, 3
      %p294 = por %p292, %p293
      %p296 = scmp.ne.s32.totalorder %s281, %s295
      %p297 = scmp.eq.s32.totalorder %s37, 0
      %p298 = por %p296, %p297
      %s300 = sadd.s32 %s299, 1
      %p303 = scmp.eq.s32.totalorder %s31, 3
      %p304 = scmp.ne.s32.totalorder %s299, %s301
      %p305 = scmp.eq.s32.totalorder %s31, 0
      %p306 = por %p304, %p305
      %p307 = scmp.ne.s32.totalorder %s299, %s301
      %p308 = scmp.eq.s32.totalorder %s36, 3
      %p309 = por %p307, %p308
      %p310 = scmp.ne.s32.totalorder %s301, %s302
      %p311 = scmp.eq.s32.totalorder %s36, 0
      %p312 = por %p310, %p311
      %p313 = scmp.ne.s32.totalorder %s301, %s302
      %p314 = scmp.eq.s32.totalorder %s37, 3
      %p315 = por %p313, %p314
      %p317 = scmp.ne.s32.totalorder %s302, %s316
      %p318 = scmp.eq.s32.totalorder %s37, 0
      %p319 = por %p317, %p318
      %s320 = ssub.s32 %s38, %s50
      %s321 = ssub.s32 %s39, %s46
      %s322 = sor.u32 %s320, %s321
      %p323 = scmp.eq.s32.totalorder %s322, 0
      %s325 = sadd.s32 %s324, 1
      %s326 = scalar_select %p323, %s324, %s325
      %p329 = pneg %p323
      %p330 = scmp.eq.s32.totalorder %s31, 3
      %p331 = por %p329, %p330
      %p332 = scmp.ne.s32.totalorder %s324, %s327
      %p333 = scmp.eq.s32.totalorder %s31, 0
      %p334 = por %p332, %p333
      %p335 = scmp.ne.s32.totalorder %s324, %s327
      %p336 = scmp.eq.s32.totalorder %s36, 3
      %p337 = por %p335, %p336
      %p338 = scmp.ne.s32.totalorder %s327, %s328
      %p339 = scmp.eq.s32.totalorder %s36, 0
      %p340 = por %p338, %p339
      %p341 = scmp.ne.s32.totalorder %s327, %s328
      %p342 = scmp.eq.s32.totalorder %s37, 3
      %p343 = por %p341, %p342
      %p345 = scmp.ne.s32.totalorder %s328, %s344
      %p346 = scmp.eq.s32.totalorder %s37, 0
      %p347 = por %p345, %p346
      %p348 = scmp.le.s32.totalorder 1, %s31
      %p349 = scmp.lt.s32.totalorder %s31, 5
      %p350 = pnand %p348, %p349
      %p351 = pneg %p350
      // Predicated region
      $region9: #{tpu_custom_call.1} parent=5 // pred_check
        _
      $region10: #{tpu_custom_call.1} parent=5 // pred_check_branch
        %353 = sbr.rel (%p350) target = $region12
      $region11: #{tpu_custom_call.1} parent=5 // pred_region
        %s354 = ssub.s32 %s31, 1
        // Predicated region
        $region13: #{tpu_custom_call.1} parent=11 // pred_check
          %p355 = pneg %p144
        $region14: #{tpu_custom_call.1} parent=11 // pred_check_branch
          %357 = sbr.rel (%p355) target = $region16
        $region15: #{tpu_custom_call.1} parent=11 // pred_region
          %s359 = ssub.s32 1024, 1024
          %360 = vsyncadd [#allocation10], %s359
          %s361 = sshll.u32 [#allocation11], 4
          %s362 = int_to_ptr.vmem [resolvable:$true] %s361
          %367 = dma.hbm_to_vmem [thread:$0]  %s3, 1024, %s362, [#allocation10], 256, 256, 16
        $region16: #{tpu_custom_call.1} parent=11 // pred_fallthru
          _
        // Predicated region
        $region17: #{tpu_custom_call.1} parent=11 // pred_check
          %p368 = pneg %p165
        $region18: #{tpu_custom_call.1} parent=11 // pred_check_branch
          %370 = sbr.rel (%p368) target = $region20
        $region19: #{tpu_custom_call.1} parent=11 // pred_region
          _
        $region20: #{tpu_custom_call.1} parent=11 // pred_fallthru
          _
        // Predicated region
        $region21: #{tpu_custom_call.1} parent=11 // pred_check
          %p371 = pneg %p186
        $region22: #{tpu_custom_call.1} parent=11 // pred_check_branch
          %373 = sbr.rel (%p371) target = $region24
        $region23: #{tpu_custom_call.1} parent=11 // pred_region
          _
        $region24: #{tpu_custom_call.1} parent=11 // pred_fallthru
          _
        // Predicated region
        $region25: #{tpu_custom_call.1} parent=11 // pred_check
          %p374 = pneg %p207
        $region26: #{tpu_custom_call.1} parent=11 // pred_check_branch
          %376 = sbr.rel (%p374) target = $region28
        $region27: #{tpu_custom_call.1} parent=11 // pred_region
          _
        $region28: #{tpu_custom_call.1} parent=11 // pred_fallthru
          _
        // Predicated region
        $region29: #{tpu_custom_call.1} parent=11 // pred_check
          %p377 = pneg %p228
        $region30: #{tpu_custom_call.1} parent=11 // pred_check_branch
          %379 = sbr.rel (%p377) target = $region32
        $region31: #{tpu_custom_call.1} parent=11 // pred_region
          _
        $region32: #{tpu_custom_call.1} parent=11 // pred_fallthru
          _
        // Predicated region
        $region33: #{tpu_custom_call.1} parent=11 // pred_check
          %p380 = pneg %p249
        $region34: #{tpu_custom_call.1} parent=11 // pred_check_branch
          %382 = sbr.rel (%p380) target = $region36
        $region35: #{tpu_custom_call.1} parent=11 // pred_region
          _
        $region36: #{tpu_custom_call.1} parent=11 // pred_fallthru
          _
        // Predicated region
        $region37: #{tpu_custom_call.1} parent=11 // pred_check
          %p383 = pneg %p270
        $region38: #{tpu_custom_call.1} parent=11 // pred_check_branch
          %385 = sbr.rel (%p383) target = $region40
        $region39: #{tpu_custom_call.1} parent=11 // pred_region
          _
        $region40: #{tpu_custom_call.1} parent=11 // pred_fallthru
          _
        // Predicated region
        $region41: #{tpu_custom_call.1} parent=11 // pred_check
          %p386 = pneg %p291
        $region42: #{tpu_custom_call.1} parent=11 // pred_check_branch
          %388 = sbr.rel (%p386) target = $region44
        $region43: #{tpu_custom_call.1} parent=11 // pred_region
          _
        $region44: #{tpu_custom_call.1} parent=11 // pred_fallthru
          _
        // Predicated region
        $region45: #{tpu_custom_call.1} parent=11 // pred_check
          %p389 = pneg %p312
        $region46: #{tpu_custom_call.1} parent=11 // pred_check_branch
          %391 = sbr.rel (%p389) target = $region48
        $region47: #{tpu_custom_call.1} parent=11 // pred_region
          _
        $region48: #{tpu_custom_call.1} parent=11 // pred_fallthru
          _
      $region12: #{tpu_custom_call.1} parent=5 // pred_fallthru
        _
      %p392 = scmp.lt.s32.totalorder %s31, 4
      // Predicated region
      $region49: #{tpu_custom_call.1} parent=5 // pred_check
        %p393 = pneg %p392
      $region50: #{tpu_custom_call.1} parent=5 // pred_check_branch
        %395 = sbr.rel (%p393) target = $region52
      $region51: #{tpu_custom_call.1} parent=5 // pred_region
        // Predicated region
        $region53: #{tpu_custom_call.1} parent=51 // pred_check
          %p396 = pneg %p65
        $region54: #{tpu_custom_call.1} parent=51 // pred_check_branch
          %398 = sbr.rel (%p396) target = $region56
        $region55: #{tpu_custom_call.1} parent=51 // pred_region
          %s399 = smul.u32 4, %s39
          %p400 = scmp.lt.s32.totalorder %s38, 1
          %s401 = scalar_select %p400, %s38, 1
          %p402 = scmp.lt.s32.totalorder %s399, 7
          %s403 = scalar_select %p402, %s399, 7
          %s404 = smul.addr %s403, 2
          %s405 = smul.addr %s401, 16
          %s406 = sadd.s32 %s404, %s405
          %s407 = smul.addr %s406, 2
          %s408 = scalar_lea.vmem %s0, %s407
          %s409 = smul.u32 4, %s39
        $region56: #{tpu_custom_call.1} parent=51 // pred_fallthru
          _
        // Predicated region
        $region57: #{tpu_custom_call.1} parent=51 // pred_check
          %p410 = pneg %p91
        $region58: #{tpu_custom_call.1} parent=51 // pred_check_branch
          %412 = sbr.rel (%p410) target = $region60
        $region59: #{tpu_custom_call.1} parent=51 // pred_region
          %s413 = sand.u32 %s81, 1
          %s414 = scalar_lea.sflag [#allocation7], %s413
          %s415 = sand.u32 %s81, 1
          %s416 = smul.addr %s415, 32
          %s417 = scalar_lea.vmem [#allocation6], %s416
          %s419 = ssub.s32 512, 512
          %420 = vsyncadd %s414, %s419
          %s421 = smul.addr %s38, 4
          %s422 = smul.addr %s421, 128
          %s423 = scalar_lea.hbm %s1, %s422
          %s424 = sshll.u32 %s417, 4
          %s425 = int_to_ptr.vmem [resolvable:$true] %s424
          %430 = dma.hbm_to_vmem [thread:$0]  %s423, 512, %s425, %s414, 128, 128, 8
        $region60: #{tpu_custom_call.1} parent=51 // pred_fallthru
          _
        // Predicated region
        $region61: #{tpu_custom_call.1} parent=51 // pred_check
          %p431 = pneg %p117
        $region62: #{tpu_custom_call.1} parent=51 // pred_check_branch
          %433 = sbr.rel (%p431) target = $region64
        $region63: #{tpu_custom_call.1} parent=51 // pred_region
          %s434 = sand.u32 %s31, 1
          %s435 = scalar_lea.sflag [#allocation10], %s434
          %s436 = sand.u32 %s107, 1
          %s437 = smul.addr %s436, 32
          %s438 = scalar_lea.vmem [#allocation9], %s437
          %s440 = ssub.s32 512, 512
          %441 = vsyncadd %s435, %s440
          %s442 = smul.addr %s38, 4
          %s443 = smul.addr %s442, 128
          %s444 = scalar_lea.hbm %s2, %s443
          %s445 = sshll.u32 %s438, 4
          %s446 = int_to_ptr.vmem [resolvable:$true] %s445
          %451 = dma.hbm_to_vmem [thread:$0]  %s444, 512, %s446, %s435, 128, 128, 8
        $region64: #{tpu_custom_call.1} parent=51 // pred_fallthru
          _
      $region52: #{tpu_custom_call.1} parent=5 // pred_fallthru
        _
      %p452 = scmp.le.s32.totalorder 1, %s31
      %p453 = scmp.lt.s32.totalorder %s31, 5
      %p454 = pnand %p452, %p453
      %p455 = pneg %p454
      // Predicated region
      $region65: #{tpu_custom_call.1} parent=5 // pred_check
        _
      $region66: #{tpu_custom_call.1} parent=5 // pred_check_branch
        %457 = sbr.rel (%p454) target = $region68
      $region67: #{tpu_custom_call.1} parent=5 // pred_region
        %s458 = ssub.s32 %s31, 1
        %s459 = sand.u32 %s84, 1
        %s460 = scalar_lea.sflag [#allocation7], %s459
        %s461 = sand.u32 %s84, 1
        %s462 = smul.addr %s461, 32
        %s463 = scalar_lea.vmem [#allocation6], %s462
        // Predicated region
        $region69: #{tpu_custom_call.1} parent=67 // pred_check
          %p464 = pneg %p97
        $region70: #{tpu_custom_call.1} parent=67 // pred_check_branch
          %466 = sbr.rel (%p464) target = $region72
        $region71: #{tpu_custom_call.1} parent=67 // pred_region
          %467 = dma.done %s460, 512
        $region72: #{tpu_custom_call.1} parent=67 // pred_fallthru
          _
        %s468 = sand.u32 %s36, 1
        %s469 = scalar_lea.sflag [#allocation10], %s468
        %s470 = sand.u32 %s110, 1
        %s471 = smul.addr %s470, 32
        %s472 = scalar_lea.vmem [#allocation9], %s471
        // Predicated region
        $region73: #{tpu_custom_call.1} parent=67 // pred_check
          %p473 = pneg %p123
        $region74: #{tpu_custom_call.1} parent=67 // pred_check_branch
          %475 = sbr.rel (%p473) target = $region76
        $region75: #{tpu_custom_call.1} parent=67 // pred_region
          %476 = dma.done %s469, 512
        $region76: #{tpu_custom_call.1} parent=67 // pred_fallthru
          _
        // Predicated region
        $region77: #{tpu_custom_call.1} parent=67 // pred_check
          %p477 = pneg %p144
        $region78: #{tpu_custom_call.1} parent=67 // pred_check_branch
          %479 = sbr.rel (%p477) target = $region80
        $region79: #{tpu_custom_call.1} parent=67 // pred_region
          %480 = dma.done [#allocation10], 1024
        $region80: #{tpu_custom_call.1} parent=67 // pred_fallthru
          _
        %s481 = smul.u32 4, %s41
        %p482 = scmp.lt.s32.totalorder %s40, 1
        %s483 = scalar_select %p482, %s40, 1
        %p484 = scmp.lt.s32.totalorder %s481, 7
        %s485 = scalar_select %p484, %s481, 7
        %s486 = smul.addr %s485, 2
        %s487 = smul.addr %s483, 16
        %s488 = sadd.s32 %s486, %s487
        %s489 = smul.addr %s488, 2
        %s490 = scalar_lea.vmem %s0, %s489
        %p491 = pneg %p71
        %p492 = pneg %p68
        %s493 = sand.u32 %s84, 1
        %s494 = scalar_lea.sflag [#allocation7], %s493
        %s495 = sand.u32 %s84, 1
        %s496 = smul.addr %s495, 32
        %s497 = scalar_lea.vmem [#allocation6], %s496
        %p498 = pneg %p97
        %p499 = pneg %p94
        %s500 = sand.u32 %s36, 1
        %s501 = scalar_lea.sflag [#allocation10], %s500
        %s502 = sand.u32 %s110, 1
        %s503 = smul.addr %s502, 32
        %s504 = scalar_lea.vmem [#allocation9], %s503
        %p505 = pneg %p123
        %p506 = pneg %p120
        %p507 = pneg %p144
        %p508 = pneg %p141
        %p509 = pneg %p165
        %p510 = pneg %p162
        %p511 = pneg %p186
        %p512 = pneg %p183
        %p513 = pneg %p207
        %p514 = pneg %p204
        %p515 = pneg %p228
        %p516 = pneg %p225
        %p517 = pneg %p249
        %p518 = pneg %p246
        %p519 = pneg %p270
        %p520 = pneg %p267
        %p521 = pneg %p291
        %p522 = pneg %p288
        %p523 = pneg %p312
        %p524 = pneg %p309
        %p525 = pneg %p340
        %p526 = pneg %p337
        %s527 = sand.u32 %s327, 1
        %s528 = scalar_lea.sflag [#allocation8], %s527
        %s529 = sand.u32 %s327, 1
        %s530 = smul.addr %s529, 8
        %s531 = scalar_lea.vmem [#allocation12], %s530
        %s532 = smul.u32 4, %s41
        %p533 = scmp.lt.s32.totalorder %s40, 1
        %s534 = scalar_select %p533, %s40, 1
        %p535 = scmp.lt.s32.totalorder %s532, 7
        %s536 = scalar_select %p535, %s532, 7
        %s537 = smul.addr %s536, 2
        %s538 = smul.addr %s534, 16
        %s539 = sadd.s32 %s537, %s538
        %s540 = smul.addr %s539, 2
        %s541 = scalar_lea.vmem %s0, %s540
        %s542 = smul.u32 4, %s41
        %s543 = smul.u32 4, %s41
        %p544 = scmp.eq.s32.totalorder %s41, 0
        // Predicated region
        $region81: #{tpu_custom_call.1} parent=67 // pred_check
          %p545 = pneg %p544
        $region82: #{tpu_custom_call.1} parent=67 // pred_check_branch
          %547 = sbr.rel (%p545) target = $region84
        $region83: #{tpu_custom_call.1} parent=67 // pred_region
          %vm548 = vcmask 254976
          %549 = vst.msk [vmem:[#allocation2] sm:$0x3] %vm548, 0.0
          %550 = vst.msk [vmem:[#allocation3] sm:$0x3] %vm548, 0.0
        $region84: #{tpu_custom_call.1} parent=67 // pred_fallthru
          _
        %v551 = vld [vmem:[%s463] sm:$0xff]
        %v552 = vld [vmem:[%s463 + $0x8] sm:$0xff]
        %v553 = vld [vmem:[%s463 + $0x10] sm:$0xff]
        %v554 = vld [vmem:[%s463 + $0x18] sm:$0xff]
        %v555 = vld [vmem:[%s472] sm:$0xff]
        %v556 = vld [vmem:[%s472 + $0x8] sm:$0xff]
        %v557 = vld [vmem:[%s472 + $0x10] sm:$0xff]
        %v558 = vld [vmem:[%s472 + $0x18] sm:$0xff]
        %v559 = vld [vmem:[#allocation11] sm:$0xff]
        %v560 = vld [vmem:[#allocation11 + $0x8] sm:$0xff]
        %v561 = vld [vmem:[#allocation11 + $0x10] sm:$0xff]
        %v562 = vld [vmem:[#allocation11 + $0x18] sm:$0xff]
        %v563 = vld [vmem:[#allocation11 + $0x20] sm:$0xff]
        %v564 = vld [vmem:[#allocation11 + $0x28] sm:$0xff]
        %v565 = vld [vmem:[#allocation11 + $0x30] sm:$0xff]
        %v566 = vld [vmem:[#allocation11 + $0x38] sm:$0xff]
        %v567 = vld [vmem:[%s4] sm:$0xff]
        %v568 = vld [vmem:[%s4 + $0x8] sm:$0xff]
        %v569 = vld [vmem:[%s4 + $0x10] sm:$0xff]
        %v570 = vld [vmem:[%s4 + $0x18] sm:$0xff]
        %v571 = vld [vmem:[%s5] sm:$0x1]
        %v572 = vld [vmem:[%s6] sm:$0xff]
        %v573 = vld [vmem:[%s6 + $0x8] sm:$0xff]
        %v574 = vld [vmem:[%s6 + $0x10] sm:$0xff]
        %v575 = vld [vmem:[%s6 + $0x18] sm:$0xff]
        %v576 = vld [vmem:[%s7] sm:$0x1]
        %v577 = vld [vmem:[%s8] sm:$0x1]
        %v578 = vld [vmem:[#allocation4] sm:$0x1]
        %v579 = vld [vmem:[%s10] sm:$0x1]
        %v580 = vld [vmem:[#allocation5] sm:$0x1]
        %v581 = vld [vmem:[#allocation2] sm:$0x3]
        %v582 = vld [vmem:[#allocation3] sm:$0x3]
        %v583 = vld [vmem:[%s541] sm:$0xf]
        %vm584 = vcmask 261120
        %v586 = vsel %vm584, %v581, 0
        %588 = vmatprep.subr.mxu0 %v560
        %589 = vmatpush1.msra.mxu0 %v559
        %590 = vmatprep.subr.mxu0 %v562
        %591 = vmatpush1.msra.mxu0 %v561
        %592 = vmatprep.subr.mxu0 %v564
        %593 = vmatpush1.msra.mxu0 %v563
        %594 = vmatprep.subr.mxu0 %v566
        %595 = vmatpush1.msra.mxu0 %v565
        %596 = vmatprep.subr.mxu0 0.0
        %597 = vmatpush1.msra.mxu0 0.0
        %598 = vmatprep.subr.mxu0 0.0
        %599 = vmatpush1.msra.mxu0 0.0
        %600 = vmatprep.subr.mxu0 0.0
        %601 = vmatpush1.msra.mxu0 0.0
        %602 = vmatprep.subr.mxu0 0.0
        %603 = vmatpush1.msra.mxu0 0.0
        %604 = vmatprep.subr.mxu0 0.0
        %605 = vmatpush1.msra.mxu0 0.0
        %606 = vmatprep.subr.mxu0 0.0
        %607 = vmatpush1.msra.mxu0 0.0
        %608 = vmatprep.subr.mxu0 0.0
        %609 = vmatpush1.msra.mxu0 0.0
        %610 = vmatprep.subr.mxu0 0.0
        %611 = vmatpush1.msra.mxu0 0.0
        %612 = vmatprep.subr.mxu0 0.0
        %613 = vmatpush1.msra.mxu0 0.0
        %614 = vmatprep.subr.mxu0 0.0
        %615 = vmatpush1.msra.mxu0 0.0
        %616 = vmatprep.subr.mxu0 0.0
        %617 = vmatpush1.msra.mxu0 0.0
        %618 = vmatprep.subr.mxu0 0.0
        %619 = vmatpush1.msra.mxu0 0.0
        %620 = vmatprep.subr.mxu0 0.0
        %621 = vmatpush1.msra.mxu0 0.0
        %622 = vmatprep.subr.mxu0 0.0
        %623 = vmatpush1.msra.mxu0 0.0
        %624 = vmatprep.subr.mxu0 0.0
        %625 = vmatpush1.msra.mxu0 0.0
        %626 = vmatprep.subr.mxu0 0.0
        %627 = vmatpush1.msra.mxu0 0.0
        %628 = vmatprep.subr.mxu0 0.0
        %629 = vmatpush1.msra.mxu0 0.0
        %630 = vmatprep.subr.mxu0 0.0
        %631 = vmatpush1.msra.mxu0 0.0
        %632 = vmatprep.subr.mxu0 0.0
        %633 = vmatpush1.msra.mxu0 0.0
        %634 = vmatprep.subr.mxu0 0.0
        %635 = vmatpush1.msra.mxu0 0.0
        %636 = vmatprep.subr.mxu0 0.0
        %637 = vmatpush1.msra.mxu0 0.0
        %638 = vmatprep.subr.mxu0 0.0
        %639 = vmatpush1.msra.mxu0 0.0
        %640 = vmatprep.subr.mxu0 0.0
        %641 = vmatpush1.msra.mxu0 0.0
        %642 = vmatprep.subr.mxu0 0.0
        %643 = vmatpush1.msra.mxu0 0.0
        %644 = vmatprep.subr.mxu0 0.0
        %645 = vmatpush1.msra.mxu0 0.0
        %646 = vmatprep.subr.mxu0 0.0
        %647 = vmatpush1.msra.mxu0 0.0
        %648 = vmatprep.subr.mxu0 0.0
        %649 = vmatpush1.msra.mxu0 0.0
        %650 = vmatprep.subr.mxu0 0.0
        %651 = vmatpush1.msra.mxu0 0.0
        %652 = vmatprep.mubr.f32.mxu0 0.0
        %653 = vmatmul.mubr.f32.gmra.mrb[0].mxu0 %v586
        %v654 = vpop.f32.mrb[0].mxu0
        %v655 = vadd.f32 0.0, %v654
        %v656 = vpop.f32.mrb[0].mxu0
        %v657 = vadd.f32 0.0, %v656
        %658 = vdwg.mxu0
        %v661 = vcombine.low %v655, %v657
        %v663 = vunpack.c.l.s4 1983009808
        %v664 = vunpack.c.0.s8 %v663
        %v665 = vlaneseq
        %v666 = vshrl.u32 %v665, 7
        %v667 = vsub.s32 %v664, %v666
        %v668 = vrot.slane %v661, %v667
        %v670 = vadd.f32 %v583, %v668
        %v671 = vsub.f32 0.0, %v670
        %v672 = vmul.f32 %v671, 1.442695
        %v673 = vpow.pop %v672
        %v674 = vadd.f32 %v673, 1.0
        %v675 = vrcp.pop %v674
        %v676 = vtanh.pop %v670
        %v678 = vrot.slane %v670, 2
        %v680 = vsub.f32 0.0, %v678
        %v681 = vmul.f32 %v680, 1.442695
        %v682 = vpow.pop %v681
        %v683 = vadd.f32 %v682, 1.0
        %v684 = vrcp.pop %v683
        %v687 = vunpack.c.l.s4 1983009808
        %v688 = vunpack.c.0.s8 %v687
        %v689 = vlaneseq
        %v690 = vshrl.u32 %v689, 7
        %v691 = vsub.s32 %v688, %v690
        %v692 = vrot.slane %v582, %v691
        %693 = vrot.lane.b32.xlu0 %v692, 32
        %v694 = vpop.permute.xlu0 %693
        %v696 = vmul.f32 %v675, %v694
        %698 = vrot.lane.b32.xlu0 %v676, 64
        %v699 = vpop.permute.xlu0 %698
        %v701 = vmul.f32 %v675, %v699
        %703 = vrot.lane.b32.xlu0 %v701, 32
        %v704 = vpop.permute.xlu0 %703
        %v706 = vadd.f32 %v696, %v704
        %v707 = vtanh.pop %v706
        %709 = vrot.lane.b32.xlu0 %v707, 64
        %v710 = vpop.permute.xlu0 %709
        %v712 = vmul.f32 %v675, %v710
        %713 = vrot.lane.b32.xlu0 %v707, 96
        %v714 = vpop.permute.xlu0 %713
        %v716 = vmul.f32 %v684, %v714
        %v718 = vlaneseq
        %v719 = vshrl.u32 %v718, 7
        %v720 = vsub.s32 0, %v719
        %v721 = vrot.slane %v571, %v720
        %v725 = vunpack.c.l.s4 1983009808
        %v726 = vunpack.c.0.s8 %v725
        %v727 = vlaneseq
        %v728 = vshrl.u32 %v727, 7
        %v729 = vsub.s32 %v726, %v728
        %v730 = vrot.slane %v712, %v729
        %731 = vrot.lane.b32.xlu0 %v730, 32
        %v732 = vpop.permute.xlu0 %731
        %v733 = vsel %vm584, %v732, 0
        %735 = vmatprep.subr.mxu0 0.0
        %736 = vmatpush1.msra.mxu0 %v567
        %737 = vmatprep.subr.mxu0 0.0
        %738 = vmatpush1.msra.mxu0 %v568
        %739 = vmatprep.subr.mxu0 0.0
        %740 = vmatpush1.msra.mxu0 %v569
        %741 = vmatprep.subr.mxu0 0.0
        %742 = vmatpush1.msra.mxu0 %v570
        %743 = vmatprep.subr.mxu0 0.0
        %744 = vmatpush1.msra.mxu0 0.0
        %745 = vmatprep.subr.mxu0 0.0
        %746 = vmatpush1.msra.mxu0 0.0
        %747 = vmatprep.subr.mxu0 0.0
        %748 = vmatpush1.msra.mxu0 0.0
        %749 = vmatprep.subr.mxu0 0.0
        %750 = vmatpush1.msra.mxu0 0.0
        %751 = vmatprep.subr.mxu0 0.0
        %752 = vmatpush1.msra.mxu0 0.0
        %753 = vmatprep.subr.mxu0 0.0
        %754 = vmatpush1.msra.mxu0 0.0
        %755 = vmatprep.subr.mxu0 0.0
        %756 = vmatpush1.msra.mxu0 0.0
        %757 = vmatprep.subr.mxu0 0.0
        %758 = vmatpush1.msra.mxu0 0.0
        %759 = vmatprep.subr.mxu0 0.0
        %760 = vmatpush1.msra.mxu0 0.0
        %761 = vmatprep.subr.mxu0 0.0
        %762 = vmatpush1.msra.mxu0 0.0
        %763 = vmatprep.subr.mxu0 0.0
        %764 = vmatpush1.msra.mxu0 0.0
        %765 = vmatprep.subr.mxu0 0.0
        %766 = vmatpush1.msra.mxu0 0.0
        %767 = vmatprep.subr.mxu0 0.0
        %768 = vmatpush1.msra.mxu0 0.0
        %769 = vmatprep.subr.mxu0 0.0
        %770 = vmatpush1.msra.mxu0 0.0
        %771 = vmatprep.subr.mxu0 0.0
        %772 = vmatpush1.msra.mxu0 0.0
        %773 = vmatprep.subr.mxu0 0.0
        %774 = vmatpush1.msra.mxu0 0.0
        %775 = vmatprep.subr.mxu0 0.0
        %776 = vmatpush1.msra.mxu0 0.0
        %777 = vmatprep.subr.mxu0 0.0
        %778 = vmatpush1.msra.mxu0 0.0
        %779 = vmatprep.subr.mxu0 0.0
        %780 = vmatpush1.msra.mxu0 0.0
        %781 = vmatprep.subr.mxu0 0.0
        %782 = vmatpush1.msra.mxu0 0.0
        %783 = vmatprep.subr.mxu0 0.0
        %784 = vmatpush1.msra.mxu0 0.0
        %785 = vmatprep.subr.mxu0 0.0
        %786 = vmatpush1.msra.mxu0 0.0
        %787 = vmatprep.subr.mxu0 0.0
        %788 = vmatpush1.msra.mxu0 0.0
        %789 = vmatprep.subr.mxu0 0.0
        %790 = vmatpush1.msra.mxu0 0.0
        %791 = vmatprep.subr.mxu0 0.0
        %792 = vmatpush1.msra.mxu0 0.0
        %793 = vmatprep.subr.mxu0 0.0
        %794 = vmatpush1.msra.mxu0 0.0
        %795 = vmatprep.subr.mxu0 0.0
        %796 = vmatpush1.msra.mxu0 0.0
        %797 = vmatprep.subr.mxu0 0.0
        %798 = vmatpush1.msra.mxu0 0.0
        %799 = vmatprep.mubr.f32.mxu0 0.0
        %800 = vmatmul.mubr.f32.gmra.mrb[0].mxu0 %v733
        %v801 = vpop.f32.mrb[0].mxu0
        %v802 = vadd.f32 %v721, %v801
        %v803 = vpop.f32.mrb[0].mxu0
        %804 = vdwg.mxu0
        %v807 = vunpack.c.l.s4 1966171168
        %v808 = vunpack.c.0.s8 %v807
        %v809 = vlaneseq
        %v810 = vshrl.u32 %v809, 7
        %v811 = vsub.s32 %v808, %v810
        %v812 = vrot.slane %v802, %v811
        %v813 = vcombine.high %v812, %v812
        %v815 = vunpack.c.l.s4 1966171168
        %v816 = vunpack.c.0.s8 %v815
        %v817 = vlaneseq
        %v818 = vshrl.u32 %v817, 7
        %v819 = vsub.s32 %v816, %v818
        %v820 = vrot.slane %v812, %v819
        %v822 = vunpack.c.l.s4 1966171168
        %v823 = vunpack.c.0.s8 %v822
        %v824 = vlaneseq
        %v825 = vshrl.u32 %v824, 7
        %v826 = vsub.s32 %v823, %v825
        %v827 = vrot.slane %v813, %v826
        %v828 = vlaneseq
        %v829 = vshrl.u32 %v828, 7
        %v830 = vsub.s32 0, %v829
        %v831 = vrot.slane %v820, %v830
        %v832 = vlaneseq
        %v833 = vshrl.u32 %v832, 7
        %v834 = vsub.s32 0, %v833
        %v835 = vrot.slane %v827, %v834
        %v838 = vadd.f32 %v555, %v831
        %v839 = vadd.f32 %v556, %v831
        %v840 = vadd.f32 %v557, %v835
        %v841 = vadd.f32 %v558, %v835
        %v842 = vtanh.pop %v838
        %v843 = vtanh.pop %v839
        %v844 = vtanh.pop %v840
        %v845 = vtanh.pop %v841
        %v847 = vlaneseq
        %v848 = vshrl.u32 %v847, 7
        %v849 = vsub.s32 0, %v848
        %v850 = vrot.slane %v577, %v849
        %v852 = vmul.f32 %v842, %v850
        %v853 = vmul.f32 %v843, %v850
        %v854 = vmul.f32 %v844, %v850
        %v855 = vmul.f32 %v845, %v850
        %vm856 = vcmask 130048
        %v857 = vsel %vm856, %v852, 0.0
        %858 = vadd.xlane.f32.xlu0 %v857
        %v859 = vpop.xlane.xlu0 %858
        %v860 = vsel %vm856, %v853, 0.0
        %861 = vadd.xlane.f32.xlu0 %v860
        %v862 = vpop.xlane.xlu0 %861
        %v863 = vsel %vm856, %v854, 0.0
        %864 = vadd.xlane.f32.xlu0 %v863
        %v865 = vpop.xlane.xlu0 %864
        %v866 = vsel %vm856, %v855, 0.0
        %867 = vadd.xlane.f32.xlu0 %v866
        %v868 = vpop.xlane.xlu0 %867
        %v870 = vlaneseq
        %v871 = vshrl.u32 %v870, 7
        %v872 = vsub.s32 0, %v871
        %v873 = vrot.slane %v578, %v872
        %874 = vset.pattern.permute.xlu0 0
        %875 = vperm.xlu0 %874, %v873
        %v876 = vpop.permute.xlu0 %875
        %v878 = vadd.f32 %v859, %v876
        %v879 = vadd.f32 %v862, %v876
        %v880 = vadd.f32 %v865, %v876
        %v881 = vadd.f32 %v868, %v876
        %v886 = vlaneseq
        %v887 = vand.u32 %v886, 127
        %v888 = vlaneseq
        %v889 = vshrl.u32 %v888, 7
        %v890 = vsub.s32 %v887, %v889
        %v891 = vrot.slane %v878, %v890
        %v892 = vadd.s32 %v887, 4294967288
        %v893 = vlaneseq
        %v894 = vshrl.u32 %v893, 7
        %v895 = vsub.s32 %v892, %v894
        %v896 = vrot.slane %v879, %v895
        %vm897 = vcmask 130112
        %v898 = vsel %vm897, %v896, %v891
        %v899 = vlaneseq
        %v900 = vshrl.u32 %v899, 7
        %v901 = vsub.s32 %v887, %v900
        %v902 = vrot.slane %v880, %v901
        %v903 = vlaneseq
        %v904 = vshrl.u32 %v903, 7
        %v905 = vsub.s32 %v892, %v904
        %v906 = vrot.slane %v881, %v905
        %v907 = vsel %vm897, %v906, %v902
        %vm908 = vcmask 1041409
        %v909 = vsel %vm908, %v907, %v898
        %vm911 = vcmask 123904
        %v912 = vsel %vm911, %v909, -inf
        %913 = vmax.xlane.f32.xlu0 %v912
        %v914 = vpop.xlane.xlu0 %913
        %v916 = vlaneseq
        %v917 = vshrl.u32 %v916, 7
        %v918 = vsub.s32 0, %v917
        %v919 = vrot.slane %v914, %v918
        %v920 = vlaneseq
        %v921 = vshrl.u32 %v920, 7
        %v922 = vsub.s32 1, %v921
        %v923 = vrot.slane %v914, %v922
        %v926 = vsub.f32 %v878, %v919
        %v927 = vsub.f32 %v879, %v919
        %v928 = vsub.f32 %v880, %v923
        %v929 = vsub.f32 %v881, %v923
        %v930 = vmul.f32 %v926, 1.442695
        %v931 = vpow.pop %v930
        %v932 = vmul.f32 %v927, 1.442695
        %v933 = vpow.pop %v932
        %v934 = vmul.f32 %v928, 1.442695
        %v935 = vpow.pop %v934
        %v936 = vmul.f32 %v929, 1.442695
        %v937 = vpow.pop %v936
        %942 = vset.pattern.permute.xlu0 0
        %943 = vperm.xlu0 %942, %v931
        %v944 = vpop.permute.xlu0 %943
        %945 = vset.pattern.permute.xlu0 0
        %946 = vperm.xlu0 %945, %v933
        %v947 = vpop.permute.xlu0 %946
        %948 = vset.pattern.permute.xlu0 0
        %949 = vperm.xlu0 %948, %v935
        %v950 = vpop.permute.xlu0 %949
        %951 = vset.pattern.permute.xlu0 0
        %952 = vperm.xlu0 %951, %v937
        %v953 = vpop.permute.xlu0 %952
        %v954 = vlaneseq
        %v955 = vshrl.u32 %v954, 7
        %v956 = vsub.s32 %v887, %v955
        %v957 = vrot.slane %v944, %v956
        %v958 = vlaneseq
        %v959 = vshrl.u32 %v958, 7
        %v960 = vsub.s32 %v892, %v959
        %v961 = vrot.slane %v947, %v960
        %v962 = vsel %vm897, %v961, %v957
        %v963 = vlaneseq
        %v964 = vshrl.u32 %v963, 7
        %v965 = vsub.s32 %v887, %v964
        %v966 = vrot.slane %v950, %v965
        %v967 = vlaneseq
        %v968 = vshrl.u32 %v967, 7
        %v969 = vsub.s32 %v892, %v968
        %v970 = vrot.slane %v953, %v969
        %v971 = vsel %vm897, %v970, %v966
        %v972 = vsel %vm908, %v971, %v962
        %v974 = vsel %vm911, %v972, 0.0
        %975 = vadd.xlane.f32.xlu0 %v974
        %v976 = vpop.xlane.xlu0 %975
        %v977 = vrcp.pop %v976
        %v979 = vlaneseq
        %v980 = vshrl.u32 %v979, 7
        %v981 = vsub.s32 0, %v980
        %v982 = vrot.slane %v977, %v981
        %v983 = vlaneseq
        %v984 = vshrl.u32 %v983, 7
        %v985 = vsub.s32 1, %v984
        %v986 = vrot.slane %v977, %v985
        %v989 = vmul.f32 %v931, %v982
        %v990 = vmul.f32 %v933, %v982
        %v991 = vmul.f32 %v935, %v986
        %v992 = vmul.f32 %v937, %v986
        %994 = vset.pattern.permute.xlu0 0
        %995 = vperm.xlu0 %994, %v989
        %v996 = vpop.permute.xlu0 %995
        %999 = vset.pattern.permute.xlu0 0
        %1000 = vperm.xlu0 %999, %v990
        %v1001 = vpop.permute.xlu0 %1000
        %1004 = vset.pattern.permute.xlu0 0
        %1005 = vperm.xlu0 %1004, %v991
        %v1006 = vpop.permute.xlu0 %1005
        %1009 = vset.pattern.permute.xlu0 0
        %1010 = vperm.xlu0 %1009, %v992
        %v1011 = vpop.permute.xlu0 %1010
        %v1013 = vmul.f32 %v551, %v996
        %v1014 = vmul.f32 %v552, %v1001
        %v1015 = vmul.f32 %v553, %v1006
        %v1016 = vmul.f32 %v554, %v1011
        %v1017 = vsel %vm584, %v1013, 0.0
        %v1018 = vsel %vm584, %v1014, 0.0
        %v1019 = vadd.f32 %v1017, %v1018
        %v1020 = vrot.slane %v1019, 4
        %v1021 = vadd.f32 %v1019, %v1020
        %v1022 = vrot.slane %v1021, 2
        %v1023 = vadd.f32 %v1021, %v1022
        %v1024 = vrot.slane %v1023, 1
        %v1025 = vadd.f32 %v1023, %v1024
        %v1026 = vsel %vm584, %v1015, 0.0
        %v1027 = vsel %vm584, %v1016, 0.0
        %v1028 = vadd.f32 %v1026, %v1027
        %v1029 = vrot.slane %v1028, 4
        %v1030 = vadd.f32 %v1028, %v1029
        %v1031 = vrot.slane %v1030, 2
        %v1032 = vadd.f32 %v1030, %v1031
        %v1033 = vrot.slane %v1032, 1
        %v1034 = vadd.f32 %v1032, %v1033
        %v1036 = vlaneseq
        %v1037 = vshrl.u32 %v1036, 7
        %v1038 = vsub.s32 0, %v1037
        %v1039 = vrot.slane %v576, %v1038
        %v1042 = vsel %vm584, %v716, 0
        %1044 = vmatprep.subr.mxu0 0.0
        %1045 = vmatpush1.msra.mxu0 %v572
        %1046 = vmatprep.subr.mxu0 0.0
        %1047 = vmatpush1.msra.mxu0 %v573
        %1048 = vmatprep.subr.mxu0 0.0
        %1049 = vmatpush1.msra.mxu0 %v574
        %1050 = vmatprep.subr.mxu0 0.0
        %1051 = vmatpush1.msra.mxu0 %v575
        %1052 = vmatprep.subr.mxu0 0.0
        %1053 = vmatpush1.msra.mxu0 0.0
        %1054 = vmatprep.subr.mxu0 0.0
        %1055 = vmatpush1.msra.mxu0 0.0
        %1056 = vmatprep.subr.mxu0 0.0
        %1057 = vmatpush1.msra.mxu0 0.0
        %1058 = vmatprep.subr.mxu0 0.0
        %1059 = vmatpush1.msra.mxu0 0.0
        %1060 = vmatprep.subr.mxu0 0.0
        %1061 = vmatpush1.msra.mxu0 0.0
        %1062 = vmatprep.subr.mxu0 0.0
        %1063 = vmatpush1.msra.mxu0 0.0
        %1064 = vmatprep.subr.mxu0 0.0
        %1065 = vmatpush1.msra.mxu0 0.0
        %1066 = vmatprep.subr.mxu0 0.0
        %1067 = vmatpush1.msra.mxu0 0.0
        %1068 = vmatprep.subr.mxu0 0.0
        %1069 = vmatpush1.msra.mxu0 0.0
        %1070 = vmatprep.subr.mxu0 0.0
        %1071 = vmatpush1.msra.mxu0 0.0
        %1072 = vmatprep.subr.mxu0 0.0
        %1073 = vmatpush1.msra.mxu0 0.0
        %1074 = vmatprep.subr.mxu0 0.0
        %1075 = vmatpush1.msra.mxu0 0.0
        %1076 = vmatprep.subr.mxu0 0.0
        %1077 = vmatpush1.msra.mxu0 0.0
        %1078 = vmatprep.subr.mxu0 0.0
        %1079 = vmatpush1.msra.mxu0 0.0
        %1080 = vmatprep.subr.mxu0 0.0
        %1081 = vmatpush1.msra.mxu0 0.0
        %1082 = vmatprep.subr.mxu0 0.0
        %1083 = vmatpush1.msra.mxu0 0.0
        %1084 = vmatprep.subr.mxu0 0.0
        %1085 = vmatpush1.msra.mxu0 0.0
        %1086 = vmatprep.subr.mxu0 0.0
        %1087 = vmatpush1.msra.mxu0 0.0
        %1088 = vmatprep.subr.mxu0 0.0
        %1089 = vmatpush1.msra.mxu0 0.0
        %1090 = vmatprep.subr.mxu0 0.0
        %1091 = vmatpush1.msra.mxu0 0.0
        %1092 = vmatprep.subr.mxu0 0.0
        %1093 = vmatpush1.msra.mxu0 0.0
        %1094 = vmatprep.subr.mxu0 0.0
        %1095 = vmatpush1.msra.mxu0 0.0
        %1096 = vmatprep.subr.mxu0 0.0
        %1097 = vmatpush1.msra.mxu0 0.0
        %1098 = vmatprep.subr.mxu0 0.0
        %1099 = vmatpush1.msra.mxu0 0.0
        %1100 = vmatprep.subr.mxu0 0.0
        %1101 = vmatpush1.msra.mxu0 0.0
        %1102 = vmatprep.subr.mxu0 0.0
        %1103 = vmatpush1.msra.mxu0 0.0
        %1104 = vmatprep.subr.mxu0 0.0
        %1105 = vmatpush1.msra.mxu0 0.0
        %1106 = vmatprep.subr.mxu0 0.0
        %1107 = vmatpush1.msra.mxu0 0.0
        %1108 = vmatprep.mubr.f32.mxu0 0.0
        %1109 = vmatmul.mubr.f32.gmra.mrb[0].mxu0 %v1042
        %v1110 = vpop.f32.mrb[0].mxu0
        %v1111 = vadd.f32 %v1039, %v1110
        %v1112 = vpop.f32.mrb[0].mxu0
        %1113 = vdwg.mxu0
        %v1114 = vadd.f32 %v1111, %v802
        %v1115 = vtanh.pop %v1114
        %v1117 = vlaneseq
        %v1118 = vshrl.u32 %v1117, 7
        %v1119 = vsub.s32 0, %v1118
        %v1120 = vrot.slane %v579, %v1119
        %v1122 = vmul.f32 %v1115, %v1120
        %v1123 = vsel %vm911, %v1122, 0.0
        %1124 = vadd.xlane.f32.xlu0 %v1123
        %v1125 = vpop.xlane.xlu0 %1124
        %v1127 = vlaneseq
        %v1128 = vshrl.u32 %v1127, 7
        %v1129 = vsub.s32 0, %v1128
        %v1130 = vrot.slane %v580, %v1129
        %v1132 = vadd.f32 %v1125, %v1130
        %v1133 = vmax.f32 %v914, %v1132
        %v1134 = vsub.f32 %v1132, %v1133
        %v1135 = vmul.f32 %v1134, 1.442695
        %v1136 = vpow.pop %v1135
        %1138 = vset.pattern.permute.xlu0 0
        %1139 = vperm.xlu0 %1138, %v1133
        %v1140 = vpop.permute.xlu0 %1139
        %v1141 = vlaneseq
        %v1142 = vshrl.u32 %v1141, 7
        %v1143 = vsub.s32 0, %v1142
        %v1144 = vrot.slane %v1140, %v1143
        %v1145 = vlaneseq
        %v1146 = vshrl.u32 %v1145, 7
        %v1147 = vsub.s32 1, %v1146
        %v1148 = vrot.slane %v1140, %v1147
        %v1151 = vsub.f32 %v878, %v1144
        %v1152 = vsub.f32 %v879, %v1144
        %v1153 = vsub.f32 %v880, %v1148
        %v1154 = vsub.f32 %v881, %v1148
        %v1155 = vmul.f32 %v1151, 1.442695
        %v1156 = vpow.pop %v1155
        %v1157 = vmul.f32 %v1152, 1.442695
        %v1158 = vpow.pop %v1157
        %v1159 = vmul.f32 %v1153, 1.442695
        %v1160 = vpow.pop %v1159
        %v1161 = vmul.f32 %v1154, 1.442695
        %v1162 = vpow.pop %v1161
        %1167 = vset.pattern.permute.xlu0 0
        %1168 = vperm.xlu0 %1167, %v1156
        %v1169 = vpop.permute.xlu0 %1168
        %1170 = vset.pattern.permute.xlu0 0
        %1171 = vperm.xlu0 %1170, %v1158
        %v1172 = vpop.permute.xlu0 %1171
        %1173 = vset.pattern.permute.xlu0 0
        %1174 = vperm.xlu0 %1173, %v1160
        %v1175 = vpop.permute.xlu0 %1174
        %1176 = vset.pattern.permute.xlu0 0
        %1177 = vperm.xlu0 %1176, %v1162
        %v1178 = vpop.permute.xlu0 %1177
        %v1179 = vlaneseq
        %v1180 = vshrl.u32 %v1179, 7
        %v1181 = vsub.s32 %v887, %v1180
        %v1182 = vrot.slane %v1169, %v1181
        %v1183 = vlaneseq
        %v1184 = vshrl.u32 %v1183, 7
        %v1185 = vsub.s32 %v892, %v1184
        %v1186 = vrot.slane %v1172, %v1185
        %v1187 = vsel %vm897, %v1186, %v1182
        %v1188 = vlaneseq
        %v1189 = vshrl.u32 %v1188, 7
        %v1190 = vsub.s32 %v887, %v1189
        %v1191 = vrot.slane %v1175, %v1190
        %v1192 = vlaneseq
        %v1193 = vshrl.u32 %v1192, 7
        %v1194 = vsub.s32 %v892, %v1193
        %v1195 = vrot.slane %v1178, %v1194
        %v1196 = vsel %vm897, %v1195, %v1191
        %v1197 = vsel %vm908, %v1196, %v1187
        %v1199 = vsel %vm911, %v1197, 0.0
        %1200 = vadd.xlane.f32.xlu0 %v1199
        %v1201 = vpop.xlane.xlu0 %1200
        %v1202 = vadd.f32 %v1201, %v1136
        %v1203 = vrcp.pop %v1202
        %v1204 = vmul.f32 %v1136, %v1203
        %1206 = vset.pattern.permute.xlu0 0
        %1207 = vperm.xlu0 %1206, %v1204
        %v1208 = vpop.permute.xlu0 %1207
        %v1210 = vmul.f32 %v1208, %v716
        %v1211 = vsub.f32 1.0, %v1204
        %1213 = vset.pattern.permute.xlu0 0
        %1214 = vperm.xlu0 %1213, %v1211
        %v1215 = vpop.permute.xlu0 %1214
        %v1219 = vsel %vm908, %v1034, %v1025
        %v1221 = vmul.f32 %v1215, %v1219
        %v1222 = vadd.f32 %v1210, %v1221
        %v1224 = vadd.f32 %v1222, %v732
        %vm1225 = vcmask 254976
        %1226 = vst.msk [vmem:[%s531] sm:$0x3] %vm1225, %v1224
        %s1227 = scalar_lea.vmem %s541, 4
        %v1228 = vld [vmem:[%s1227] sm:$0xf]
        %1229 = vmatprep.subr.mxu0 %v560
        %1230 = vmatpush1.msra.mxu0 %v559
        %1231 = vmatprep.subr.mxu0 %v562
        %1232 = vmatpush1.msra.mxu0 %v561
        %1233 = vmatprep.subr.mxu0 %v564
        %1234 = vmatpush1.msra.mxu0 %v563
        %1235 = vmatprep.subr.mxu0 %v566
        %1236 = vmatpush1.msra.mxu0 %v565
        %1237 = vmatprep.subr.mxu0 0.0
        %1238 = vmatpush1.msra.mxu0 0.0
        %1239 = vmatprep.subr.mxu0 0.0
        %1240 = vmatpush1.msra.mxu0 0.0
        %1241 = vmatprep.subr.mxu0 0.0
        %1242 = vmatpush1.msra.mxu0 0.0
        %1243 = vmatprep.subr.mxu0 0.0
        %1244 = vmatpush1.msra.mxu0 0.0
        %1245 = vmatprep.subr.mxu0 0.0
        %1246 = vmatpush1.msra.mxu0 0.0
        %1247 = vmatprep.subr.mxu0 0.0
        %1248 = vmatpush1.msra.mxu0 0.0
        %1249 = vmatprep.subr.mxu0 0.0
        %1250 = vmatpush1.msra.mxu0 0.0
        %1251 = vmatprep.subr.mxu0 0.0
        %1252 = vmatpush1.msra.mxu0 0.0
        %1253 = vmatprep.subr.mxu0 0.0
        %1254 = vmatpush1.msra.mxu0 0.0
        %1255 = vmatprep.subr.mxu0 0.0
        %1256 = vmatpush1.msra.mxu0 0.0
        %1257 = vmatprep.subr.mxu0 0.0
        %1258 = vmatpush1.msra.mxu0 0.0
        %1259 = vmatprep.subr.mxu0 0.0
        %1260 = vmatpush1.msra.mxu0 0.0
        %1261 = vmatprep.subr.mxu0 0.0
        %1262 = vmatpush1.msra.mxu0 0.0
        %1263 = vmatprep.subr.mxu0 0.0
        %1264 = vmatpush1.msra.mxu0 0.0
        %1265 = vmatprep.subr.mxu0 0.0
        %1266 = vmatpush1.msra.mxu0 0.0
        %1267 = vmatprep.subr.mxu0 0.0
        %1268 = vmatpush1.msra.mxu0 0.0
        %1269 = vmatprep.subr.mxu0 0.0
        %1270 = vmatpush1.msra.mxu0 0.0
        %1271 = vmatprep.subr.mxu0 0.0
        %1272 = vmatpush1.msra.mxu0 0.0
        %1273 = vmatprep.subr.mxu0 0.0
        %1274 = vmatpush1.msra.mxu0 0.0
        %1275 = vmatprep.subr.mxu0 0.0
        %1276 = vmatpush1.msra.mxu0 0.0
        %1277 = vmatprep.subr.mxu0 0.0
        %1278 = vmatpush1.msra.mxu0 0.0
        %1279 = vmatprep.subr.mxu0 0.0
        %1280 = vmatpush1.msra.mxu0 0.0
        %1281 = vmatprep.subr.mxu0 0.0
        %1282 = vmatpush1.msra.mxu0 0.0
        %1283 = vmatprep.subr.mxu0 0.0
        %1284 = vmatpush1.msra.mxu0 0.0
        %1285 = vmatprep.subr.mxu0 0.0
        %1286 = vmatpush1.msra.mxu0 0.0
        %1287 = vmatprep.subr.mxu0 0.0
        %1288 = vmatpush1.msra.mxu0 0.0
        %1289 = vmatprep.subr.mxu0 0.0
        %1290 = vmatpush1.msra.mxu0 0.0
        %1291 = vmatprep.subr.mxu0 0.0
        %1292 = vmatpush1.msra.mxu0 0.0
        %1293 = vmatprep.mubr.f32.mxu0 0.0
        %1294 = vmatmul.mubr.f32.gmra.mrb[0].mxu0 %v733
        %v1295 = vpop.f32.mrb[0].mxu0
        %v1296 = vadd.f32 0.0, %v1295
        %v1297 = vpop.f32.mrb[0].mxu0
        %v1298 = vadd.f32 0.0, %v1297
        %1299 = vdwg.mxu0
        %v1302 = vcombine.low %v1296, %v1298
        %v1304 = vunpack.c.l.s4 1983009808
        %v1305 = vunpack.c.0.s8 %v1304
        %v1306 = vlaneseq
        %v1307 = vshrl.u32 %v1306, 7
        %v1308 = vsub.s32 %v1305, %v1307
        %v1309 = vrot.slane %v1302, %v1308
        %v1311 = vadd.f32 %v1228, %v1309
        %v1312 = vsub.f32 0.0, %v1311
        %v1313 = vmul.f32 %v1312, 1.442695
        %v1314 = vpow.pop %v1313
        %v1315 = vadd.f32 %v1314, 1.0
        %v1316 = vrcp.pop %v1315
        %v1317 = vtanh.pop %v1311
        %v1319 = vrot.slane %v1311, 2
        %v1321 = vsub.f32 0.0, %v1319
        %v1322 = vmul.f32 %v1321, 1.442695
        %v1323 = vpow.pop %v1322
        %v1324 = vadd.f32 %v1323, 1.0
        %v1325 = vrcp.pop %v1324
        %v1326 = vmul.f32 %v1316, %v706
        %1328 = vrot.lane.b32.xlu0 %v1317, 64
        %v1329 = vpop.permute.xlu0 %1328
        %v1331 = vmul.f32 %v1316, %v1329
        %1333 = vrot.lane.b32.xlu0 %v1331, 32
        %v1334 = vpop.permute.xlu0 %1333
        %v1336 = vadd.f32 %v1326, %v1334
        %v1337 = vtanh.pop %v1336
        %1339 = vrot.lane.b32.xlu0 %v1337, 64
        %v1340 = vpop.permute.xlu0 %1339
        %v1342 = vmul.f32 %v1316, %v1340
        %1343 = vrot.lane.b32.xlu0 %v1337, 96
        %v1344 = vpop.permute.xlu0 %1343
        %v1346 = vmul.f32 %v1325, %v1344
        %v1349 = vunpack.c.l.s4 1983009808
        %v1350 = vunpack.c.0.s8 %v1349
        %v1351 = vlaneseq
        %v1352 = vshrl.u32 %v1351, 7
        %v1353 = vsub.s32 %v1350, %v1352
        %v1354 = vrot.slane %v1342, %v1353
        %1355 = vrot.lane.b32.xlu0 %v1354, 32
        %v1356 = vpop.permute.xlu0 %1355
        %v1357 = vsel %vm584, %v1356, 0
        %1359 = vmatprep.subr.mxu0 0.0
        %1360 = vmatpush1.msra.mxu0 %v567
        %1361 = vmatprep.subr.mxu0 0.0
        %1362 = vmatpush1.msra.mxu0 %v568
        %1363 = vmatprep.subr.mxu0 0.0
        %1364 = vmatpush1.msra.mxu0 %v569
        %1365 = vmatprep.subr.mxu0 0.0
        %1366 = vmatpush1.msra.mxu0 %v570
        %1367 = vmatprep.subr.mxu0 0.0
        %1368 = vmatpush1.msra.mxu0 0.0
        %1369 = vmatprep.subr.mxu0 0.0
        %1370 = vmatpush1.msra.mxu0 0.0
        %1371 = vmatprep.subr.mxu0 0.0
        %1372 = vmatpush1.msra.mxu0 0.0
        %1373 = vmatprep.subr.mxu0 0.0
        %1374 = vmatpush1.msra.mxu0 0.0
        %1375 = vmatprep.subr.mxu0 0.0
        %1376 = vmatpush1.msra.mxu0 0.0
        %1377 = vmatprep.subr.mxu0 0.0
        %1378 = vmatpush1.msra.mxu0 0.0
        %1379 = vmatprep.subr.mxu0 0.0
        %1380 = vmatpush1.msra.mxu0 0.0
        %1381 = vmatprep.subr.mxu0 0.0
        %1382 = vmatpush1.msra.mxu0 0.0
        %1383 = vmatprep.subr.mxu0 0.0
        %1384 = vmatpush1.msra.mxu0 0.0
        %1385 = vmatprep.subr.mxu0 0.0
        %1386 = vmatpush1.msra.mxu0 0.0
        %1387 = vmatprep.subr.mxu0 0.0
        %1388 = vmatpush1.msra.mxu0 0.0
        %1389 = vmatprep.subr.mxu0 0.0
        %1390 = vmatpush1.msra.mxu0 0.0
        %1391 = vmatprep.subr.mxu0 0.0
        %1392 = vmatpush1.msra.mxu0 0.0
        %1393 = vmatprep.subr.mxu0 0.0
        %1394 = vmatpush1.msra.mxu0 0.0
        %1395 = vmatprep.subr.mxu0 0.0
        %1396 = vmatpush1.msra.mxu0 0.0
        %1397 = vmatprep.subr.mxu0 0.0
        %1398 = vmatpush1.msra.mxu0 0.0
        %1399 = vmatprep.subr.mxu0 0.0
        %1400 = vmatpush1.msra.mxu0 0.0
        %1401 = vmatprep.subr.mxu0 0.0
        %1402 = vmatpush1.msra.mxu0 0.0
        %1403 = vmatprep.subr.mxu0 0.0
        %1404 = vmatpush1.msra.mxu0 0.0
        %1405 = vmatprep.subr.mxu0 0.0
        %1406 = vmatpush1.msra.mxu0 0.0
        %1407 = vmatprep.subr.mxu0 0.0
        %1408 = vmatpush1.msra.mxu0 0.0
        %1409 = vmatprep.subr.mxu0 0.0
        %1410 = vmatpush1.msra.mxu0 0.0
        %1411 = vmatprep.subr.mxu0 0.0
        %1412 = vmatpush1.msra.mxu0 0.0
        %1413 = vmatprep.subr.mxu0 0.0
        %1414 = vmatpush1.msra.mxu0 0.0
        %1415 = vmatprep.subr.mxu0 0.0
        %1416 = vmatpush1.msra.mxu0 0.0
        %1417 = vmatprep.subr.mxu0 0.0
        %1418 = vmatpush1.msra.mxu0 0.0
        %1419 = vmatprep.subr.mxu0 0.0
        %1420 = vmatpush1.msra.mxu0 0.0
        %1421 = vmatprep.subr.mxu0 0.0
        %1422 = vmatpush1.msra.mxu0 0.0
        %1423 = vmatprep.mubr.f32.mxu0 0.0
        %1424 = vmatmul.mubr.f32.gmra.mrb[0].mxu0 %v1357
        %v1425 = vpop.f32.mrb[0].mxu0
        %v1426 = vadd.f32 %v721, %v1425
        %v1427 = vpop.f32.mrb[0].mxu0
        %1428 = vdwg.mxu0
        %v1431 = vunpack.c.l.s4 1966171168
        %v1432 = vunpack.c.0.s8 %v1431
        %v1433 = vlaneseq
        %v1434 = vshrl.u32 %v1433, 7
        %v1435 = vsub.s32 %v1432, %v1434
        %v1436 = vrot.slane %v1426, %v1435
        %v1437 = vcombine.high %v1436, %v1436
        %v1439 = vunpack.c.l.s4 1966171168
        %v1440 = vunpack.c.0.s8 %v1439
        %v1441 = vlaneseq
        %v1442 = vshrl.u32 %v1441, 7
        %v1443 = vsub.s32 %v1440, %v1442
        %v1444 = vrot.slane %v1436, %v1443
        %v1446 = vunpack.c.l.s4 1966171168
        %v1447 = vunpack.c.0.s8 %v1446
        %v1448 = vlaneseq
        %v1449 = vshrl.u32 %v1448, 7
        %v1450 = vsub.s32 %v1447, %v1449
        %v1451 = vrot.slane %v1437, %v1450
        %v1452 = vlaneseq
        %v1453 = vshrl.u32 %v1452, 7
        %v1454 = vsub.s32 0, %v1453
        %v1455 = vrot.slane %v1444, %v1454
        %v1456 = vlaneseq
        %v1457 = vshrl.u32 %v1456, 7
        %v1458 = vsub.s32 0, %v1457
        %v1459 = vrot.slane %v1451, %v1458
        %v1462 = vadd.f32 %v555, %v1455
        %v1463 = vadd.f32 %v556, %v1455
        %v1464 = vadd.f32 %v557, %v1459
        %v1465 = vadd.f32 %v558, %v1459
        %v1466 = vtanh.pop %v1462
        %v1467 = vtanh.pop %v1463
        %v1468 = vtanh.pop %v1464
        %v1469 = vtanh.pop %v1465
        %v1470 = vmul.f32 %v1466, %v850
        %v1471 = vmul.f32 %v1467, %v850
        %v1472 = vmul.f32 %v1468, %v850
        %v1473 = vmul.f32 %v1469, %v850
        %v1474 = vsel %vm856, %v1470, 0.0
        %1475 = vadd.xlane.f32.xlu0 %v1474
        %v1476 = vpop.xlane.xlu0 %1475
        %v1477 = vsel %vm856, %v1471, 0.0
        %1478 = vadd.xlane.f32.xlu0 %v1477
        %v1479 = vpop.xlane.xlu0 %1478
        %v1480 = vsel %vm856, %v1472, 0.0
        %1481 = vadd.xlane.f32.xlu0 %v1480
        %v1482 = vpop.xlane.xlu0 %1481
        %v1483 = vsel %vm856, %v1473, 0.0
        %1484 = vadd.xlane.f32.xlu0 %v1483
        %v1485 = vpop.xlane.xlu0 %1484
        %v1486 = vadd.f32 %v1476, %v876
        %v1487 = vadd.f32 %v1479, %v876
        %v1488 = vadd.f32 %v1482, %v876
        %v1489 = vadd.f32 %v1485, %v876
        %v1494 = vlaneseq
        %v1495 = vshrl.u32 %v1494, 7
        %v1496 = vsub.s32 %v887, %v1495
        %v1497 = vrot.slane %v1486, %v1496
        %v1498 = vlaneseq
        %v1499 = vshrl.u32 %v1498, 7
        %v1500 = vsub.s32 %v892, %v1499
        %v1501 = vrot.slane %v1487, %v1500
        %v1502 = vsel %vm897, %v1501, %v1497
        %v1503 = vlaneseq
        %v1504 = vshrl.u32 %v1503, 7
        %v1505 = vsub.s32 %v887, %v1504
        %v1506 = vrot.slane %v1488, %v1505
        %v1507 = vlaneseq
        %v1508 = vshrl.u32 %v1507, 7
        %v1509 = vsub.s32 %v892, %v1508
        %v1510 = vrot.slane %v1489, %v1509
        %v1511 = vsel %vm897, %v1510, %v1506
        %v1512 = vsel %vm908, %v1511, %v1502
        %v1514 = vsel %vm911, %v1512, -inf
        %1515 = vmax.xlane.f32.xlu0 %v1514
        %v1516 = vpop.xlane.xlu0 %1515
        %v1518 = vlaneseq
        %v1519 = vshrl.u32 %v1518, 7
        %v1520 = vsub.s32 0, %v1519
        %v1521 = vrot.slane %v1516, %v1520
        %v1522 = vlaneseq
        %v1523 = vshrl.u32 %v1522, 7
        %v1524 = vsub.s32 1, %v1523
        %v1525 = vrot.slane %v1516, %v1524
        %v1528 = vsub.f32 %v1486, %v1521
        %v1529 = vsub.f32 %v1487, %v1521
        %v1530 = vsub.f32 %v1488, %v1525
        %v1531 = vsub.f32 %v1489, %v1525
        %v1532 = vmul.f32 %v1528, 1.442695
        %v1533 = vpow.pop %v1532
        %v1534 = vmul.f32 %v1529, 1.442695
        %v1535 = vpow.pop %v1534
        %v1536 = vmul.f32 %v1530, 1.442695
        %v1537 = vpow.pop %v1536
        %v1538 = vmul.f32 %v1531, 1.442695
        %v1539 = vpow.pop %v1538
        %1544 = vset.pattern.permute.xlu0 0
        %1545 = vperm.xlu0 %1544, %v1533
        %v1546 = vpop.permute.xlu0 %1545
        %1547 = vset.pattern.permute.xlu0 0
        %1548 = vperm.xlu0 %1547, %v1535
        %v1549 = vpop.permute.xlu0 %1548
        %1550 = vset.pattern.permute.xlu0 0
        %1551 = vperm.xlu0 %1550, %v1537
        %v1552 = vpop.permute.xlu0 %1551
        %1553 = vset.pattern.permute.xlu0 0
        %1554 = vperm.xlu0 %1553, %v1539
        %v1555 = vpop.permute.xlu0 %1554
        %v1556 = vlaneseq
        %v1557 = vshrl.u32 %v1556, 7
        %v1558 = vsub.s32 %v887, %v1557
        %v1559 = vrot.slane %v1546, %v1558
        %v1560 = vlaneseq
        %v1561 = vshrl.u32 %v1560, 7
        %v1562 = vsub.s32 %v892, %v1561
        %v1563 = vrot.slane %v1549, %v1562
        %v1564 = vsel %vm897, %v1563, %v1559
        %v1565 = vlaneseq
        %v1566 = vshrl.u32 %v1565, 7
        %v1567 = vsub.s32 %v887, %v1566
        %v1568 = vrot.slane %v1552, %v1567
        %v1569 = vlaneseq
        %v1570 = vshrl.u32 %v1569, 7
        %v1571 = vsub.s32 %v892, %v1570
        %v1572 = vrot.slane %v1555, %v1571
        %v1573 = vsel %vm897, %v1572, %v1568
        %v1574 = vsel %vm908, %v1573, %v1564
        %v1576 = vsel %vm911, %v1574, 0.0
        %1577 = vadd.xlane.f32.xlu0 %v1576
        %v1578 = vpop.xlane.xlu0 %1577
        %v1579 = vrcp.pop %v1578
        %v1581 = vlaneseq
        %v1582 = vshrl.u32 %v1581, 7
        %v1583 = vsub.s32 0, %v1582
        %v1584 = vrot.slane %v1579, %v1583
        %v1585 = vlaneseq
        %v1586 = vshrl.u32 %v1585, 7
        %v1587 = vsub.s32 1, %v1586
        %v1588 = vrot.slane %v1579, %v1587
        %v1591 = vmul.f32 %v1533, %v1584
        %v1592 = vmul.f32 %v1535, %v1584
        %v1593 = vmul.f32 %v1537, %v1588
        %v1594 = vmul.f32 %v1539, %v1588
        %1596 = vset.pattern.permute.xlu0 0
        %1597 = vperm.xlu0 %1596, %v1591
        %v1598 = vpop.permute.xlu0 %1597
        %1601 = vset.pattern.permute.xlu0 0
        %1602 = vperm.xlu0 %1601, %v1592
        %v1603 = vpop.permute.xlu0 %1602
        %1606 = vset.pattern.permute.xlu0 0
        %1607 = vperm.xlu0 %1606, %v1593
        %v1608 = vpop.permute.xlu0 %1607
        %1611 = vset.pattern.permute.xlu0 0
        %1612 = vperm.xlu0 %1611, %v1594
        %v1613 = vpop.permute.xlu0 %1612
        %v1615 = vmul.f32 %v551, %v1598
        %v1616 = vmul.f32 %v552, %v1603
        %v1617 = vmul.f32 %v553, %v1608
        %v1618 = vmul.f32 %v554, %v1613
        %v1619 = vsel %vm584, %v1615, 0.0
        %v1620 = vsel %vm584, %v1616, 0.0
        %v1621 = vadd.f32 %v1619, %v1620
        %v1622 = vrot.slane %v1621, 4
        %v1623 = vadd.f32 %v1621, %v1622
        %v1624 = vrot.slane %v1623, 2
        %v1625 = vadd.f32 %v1623, %v1624
        %v1626 = vrot.slane %v1625, 1
        %v1627 = vadd.f32 %v1625, %v1626
        %v1628 = vsel %vm584, %v1617, 0.0
        %v1629 = vsel %vm584, %v1618, 0.0
        %v1630 = vadd.f32 %v1628, %v1629
        %v1631 = vrot.slane %v1630, 4
        %v1632 = vadd.f32 %v1630, %v1631
        %v1633 = vrot.slane %v1632, 2
        %v1634 = vadd.f32 %v1632, %v1633
        %v1635 = vrot.slane %v1634, 1
        %v1636 = vadd.f32 %v1634, %v1635
        %v1638 = vsel %vm584, %v1346, 0
        %1640 = vmatprep.subr.mxu0 0.0
        %1641 = vmatpush1.msra.mxu0 %v572
        %1642 = vmatprep.subr.mxu0 0.0
        %1643 = vmatpush1.msra.mxu0 %v573
        %1644 = vmatprep.subr.mxu0 0.0
        %1645 = vmatpush1.msra.mxu0 %v574
        %1646 = vmatprep.subr.mxu0 0.0
        %1647 = vmatpush1.msra.mxu0 %v575
        %1648 = vmatprep.subr.mxu0 0.0
        %1649 = vmatpush1.msra.mxu0 0.0
        %1650 = vmatprep.subr.mxu0 0.0
        %1651 = vmatpush1.msra.mxu0 0.0
        %1652 = vmatprep.subr.mxu0 0.0
        %1653 = vmatpush1.msra.mxu0 0.0
        %1654 = vmatprep.subr.mxu0 0.0
        %1655 = vmatpush1.msra.mxu0 0.0
        %1656 = vmatprep.subr.mxu0 0.0
        %1657 = vmatpush1.msra.mxu0 0.0
        %1658 = vmatprep.subr.mxu0 0.0
        %1659 = vmatpush1.msra.mxu0 0.0
        %1660 = vmatprep.subr.mxu0 0.0
        %1661 = vmatpush1.msra.mxu0 0.0
        %1662 = vmatprep.subr.mxu0 0.0
        %1663 = vmatpush1.msra.mxu0 0.0
        %1664 = vmatprep.subr.mxu0 0.0
        %1665 = vmatpush1.msra.mxu0 0.0
        %1666 = vmatprep.subr.mxu0 0.0
        %1667 = vmatpush1.msra.mxu0 0.0
        %1668 = vmatprep.subr.mxu0 0.0
        %1669 = vmatpush1.msra.mxu0 0.0
        %1670 = vmatprep.subr.mxu0 0.0
        %1671 = vmatpush1.msra.mxu0 0.0
        %1672 = vmatprep.subr.mxu0 0.0
        %1673 = vmatpush1.msra.mxu0 0.0
        %1674 = vmatprep.subr.mxu0 0.0
        %1675 = vmatpush1.msra.mxu0 0.0
        %1676 = vmatprep.subr.mxu0 0.0
        %1677 = vmatpush1.msra.mxu0 0.0
        %1678 = vmatprep.subr.mxu0 0.0
        %1679 = vmatpush1.msra.mxu0 0.0
        %1680 = vmatprep.subr.mxu0 0.0
        %1681 = vmatpush1.msra.mxu0 0.0
        %1682 = vmatprep.subr.mxu0 0.0
        %1683 = vmatpush1.msra.mxu0 0.0
        %1684 = vmatprep.subr.mxu0 0.0
        %1685 = vmatpush1.msra.mxu0 0.0
        %1686 = vmatprep.subr.mxu0 0.0
        %1687 = vmatpush1.msra.mxu0 0.0
        %1688 = vmatprep.subr.mxu0 0.0
        %1689 = vmatpush1.msra.mxu0 0.0
        %1690 = vmatprep.subr.mxu0 0.0
        %1691 = vmatpush1.msra.mxu0 0.0
        %1692 = vmatprep.subr.mxu0 0.0
        %1693 = vmatpush1.msra.mxu0 0.0
        %1694 = vmatprep.subr.mxu0 0.0
        %1695 = vmatpush1.msra.mxu0 0.0
        %1696 = vmatprep.subr.mxu0 0.0
        %1697 = vmatpush1.msra.mxu0 0.0
        %1698 = vmatprep.subr.mxu0 0.0
        %1699 = vmatpush1.msra.mxu0 0.0
        %1700 = vmatprep.subr.mxu0 0.0
        %1701 = vmatpush1.msra.mxu0 0.0
        %1702 = vmatprep.subr.mxu0 0.0
        %1703 = vmatpush1.msra.mxu0 0.0
        %1704 = vmatprep.mubr.f32.mxu0 0.0
        %1705 = vmatmul.mubr.f32.gmra.mrb[0].mxu0 %v1638
        %v1706 = vpop.f32.mrb[0].mxu0
        %v1707 = vadd.f32 %v1039, %v1706
        %v1708 = vpop.f32.mrb[0].mxu0
        %1709 = vdwg.mxu0
        %v1710 = vadd.f32 %v1707, %v1426
        %v1711 = vtanh.pop %v1710
        %v1712 = vmul.f32 %v1711, %v1120
        %v1713 = vsel %vm911, %v1712, 0.0
        %1714 = vadd.xlane.f32.xlu0 %v1713
        %v1715 = vpop.xlane.xlu0 %1714
        %v1716 = vadd.f32 %v1715, %v1130
        %v1717 = vmax.f32 %v1516, %v1716
        %v1718 = vsub.f32 %v1716, %v1717
        %v1719 = vmul.f32 %v1718, 1.442695
        %v1720 = vpow.pop %v1719
        %1722 = vset.pattern.permute.xlu0 0
        %1723 = vperm.xlu0 %1722, %v1717
        %v1724 = vpop.permute.xlu0 %1723
        %v1725 = vlaneseq
        %v1726 = vshrl.u32 %v1725, 7
        %v1727 = vsub.s32 0, %v1726
        %v1728 = vrot.slane %v1724, %v1727
        %v1729 = vlaneseq
        %v1730 = vshrl.u32 %v1729, 7
        %v1731 = vsub.s32 1, %v1730
        %v1732 = vrot.slane %v1724, %v1731
        %v1735 = vsub.f32 %v1486, %v1728
        %v1736 = vsub.f32 %v1487, %v1728
        %v1737 = vsub.f32 %v1488, %v1732
        %v1738 = vsub.f32 %v1489, %v1732
        %v1739 = vmul.f32 %v1735, 1.442695
        %v1740 = vpow.pop %v1739
        %v1741 = vmul.f32 %v1736, 1.442695
        %v1742 = vpow.pop %v1741
        %v1743 = vmul.f32 %v1737, 1.442695
        %v1744 = vpow.pop %v1743
        %v1745 = vmul.f32 %v1738, 1.442695
        %v1746 = vpow.pop %v1745
        %1751 = vset.pattern.permute.xlu0 0
        %1752 = vperm.xlu0 %1751, %v1740
        %v1753 = vpop.permute.xlu0 %1752
        %1754 = vset.pattern.permute.xlu0 0
        %1755 = vperm.xlu0 %1754, %v1742
        %v1756 = vpop.permute.xlu0 %1755
        %1757 = vset.pattern.permute.xlu0 0
        %1758 = vperm.xlu0 %1757, %v1744
        %v1759 = vpop.permute.xlu0 %1758
        %1760 = vset.pattern.permute.xlu0 0
        %1761 = vperm.xlu0 %1760, %v1746
        %v1762 = vpop.permute.xlu0 %1761
        %v1763 = vlaneseq
        %v1764 = vshrl.u32 %v1763, 7
        %v1765 = vsub.s32 %v887, %v1764
        %v1766 = vrot.slane %v1753, %v1765
        %v1767 = vlaneseq
        %v1768 = vshrl.u32 %v1767, 7
        %v1769 = vsub.s32 %v892, %v1768
        %v1770 = vrot.slane %v1756, %v1769
        %v1771 = vsel %vm897, %v1770, %v1766
        %v1772 = vlaneseq
        %v1773 = vshrl.u32 %v1772, 7
        %v1774 = vsub.s32 %v887, %v1773
        %v1775 = vrot.slane %v1759, %v1774
        %v1776 = vlaneseq
        %v1777 = vshrl.u32 %v1776, 7
        %v1778 = vsub.s32 %v892, %v1777
        %v1779 = vrot.slane %v1762, %v1778
        %v1780 = vsel %vm897, %v1779, %v1775
        %v1781 = vsel %vm908, %v1780, %v1771
        %v1783 = vsel %vm911, %v1781, 0.0
        %1784 = vadd.xlane.f32.xlu0 %v1783
        %v1785 = vpop.xlane.xlu0 %1784
        %v1786 = vadd.f32 %v1785, %v1720
        %v1787 = vrcp.pop %v1786
        %v1788 = vmul.f32 %v1720, %v1787
        %1790 = vset.pattern.permute.xlu0 0
        %1791 = vperm.xlu0 %1790, %v1788
        %v1792 = vpop.permute.xlu0 %1791
        %v1794 = vmul.f32 %v1792, %v1346
        %v1795 = vsub.f32 1.0, %v1788
        %1797 = vset.pattern.permute.xlu0 0
        %1798 = vperm.xlu0 %1797, %v1795
        %v1799 = vpop.permute.xlu0 %1798
        %v1803 = vsel %vm908, %v1636, %v1627
        %v1805 = vmul.f32 %v1799, %v1803
        %v1806 = vadd.f32 %v1794, %v1805
        %v1808 = vadd.f32 %v1806, %v1356
        %s1809 = scalar_lea.vmem %s531, 2 [#allocation12]
        %1810 = vst.msk [vmem:[%s1809] sm:$0x3] %vm1225, %v1808
        %s1811 = scalar_lea.vmem %s541, 8
        %v1812 = vld [vmem:[%s1811] sm:$0xf]
        %1813 = vmatprep.subr.mxu0 %v560
        %1814 = vmatpush1.msra.mxu0 %v559
        %1815 = vmatprep.subr.mxu0 %v562
        %1816 = vmatpush1.msra.mxu0 %v561
        %1817 = vmatprep.subr.mxu0 %v564
        %1818 = vmatpush1.msra.mxu0 %v563
        %1819 = vmatprep.subr.mxu0 %v566
        %1820 = vmatpush1.msra.mxu0 %v565
        %1821 = vmatprep.subr.mxu0 0.0
        %1822 = vmatpush1.msra.mxu0 0.0
        %1823 = vmatprep.subr.mxu0 0.0
        %1824 = vmatpush1.msra.mxu0 0.0
        %1825 = vmatprep.subr.mxu0 0.0
        %1826 = vmatpush1.msra.mxu0 0.0
        %1827 = vmatprep.subr.mxu0 0.0
        %1828 = vmatpush1.msra.mxu0 0.0
        %1829 = vmatprep.subr.mxu0 0.0
        %1830 = vmatpush1.msra.mxu0 0.0
        %1831 = vmatprep.subr.mxu0 0.0
        %1832 = vmatpush1.msra.mxu0 0.0
        %1833 = vmatprep.subr.mxu0 0.0
        %1834 = vmatpush1.msra.mxu0 0.0
        %1835 = vmatprep.subr.mxu0 0.0
        %1836 = vmatpush1.msra.mxu0 0.0
        %1837 = vmatprep.subr.mxu0 0.0
        %1838 = vmatpush1.msra.mxu0 0.0
        %1839 = vmatprep.subr.mxu0 0.0
        %1840 = vmatpush1.msra.mxu0 0.0
        %1841 = vmatprep.subr.mxu0 0.0
        %1842 = vmatpush1.msra.mxu0 0.0
        %1843 = vmatprep.subr.mxu0 0.0
        %1844 = vmatpush1.msra.mxu0 0.0
        %1845 = vmatprep.subr.mxu0 0.0
        %1846 = vmatpush1.msra.mxu0 0.0
        %1847 = vmatprep.subr.mxu0 0.0
        %1848 = vmatpush1.msra.mxu0 0.0
        %1849 = vmatprep.subr.mxu0 0.0
        %1850 = vmatpush1.msra.mxu0 0.0
        %1851 = vmatprep.subr.mxu0 0.0
        %1852 = vmatpush1.msra.mxu0 0.0
        %1853 = vmatprep.subr.mxu0 0.0
        %1854 = vmatpush1.msra.mxu0 0.0
        %1855 = vmatprep.subr.mxu0 0.0
        %1856 = vmatpush1.msra.mxu0 0.0
        %1857 = vmatprep.subr.mxu0 0.0
        %1858 = vmatpush1.msra.mxu0 0.0
        %1859 = vmatprep.subr.mxu0 0.0
        %1860 = vmatpush1.msra.mxu0 0.0
        %1861 = vmatprep.subr.mxu0 0.0
        %1862 = vmatpush1.msra.mxu0 0.0
        %1863 = vmatprep.subr.mxu0 0.0
        %1864 = vmatpush1.msra.mxu0 0.0
        %1865 = vmatprep.subr.mxu0 0.0
        %1866 = vmatpush1.msra.mxu0 0.0
        %1867 = vmatprep.subr.mxu0 0.0
        %1868 = vmatpush1.msra.mxu0 0.0
        %1869 = vmatprep.subr.mxu0 0.0
        %1870 = vmatpush1.msra.mxu0 0.0
        %1871 = vmatprep.subr.mxu0 0.0
        %1872 = vmatpush1.msra.mxu0 0.0
        %1873 = vmatprep.subr.mxu0 0.0
        %1874 = vmatpush1.msra.mxu0 0.0
        %1875 = vmatprep.subr.mxu0 0.0
        %1876 = vmatpush1.msra.mxu0 0.0
        %1877 = vmatprep.mubr.f32.mxu0 0.0
        %1878 = vmatmul.mubr.f32.gmra.mrb[0].mxu0 %v1357
        %v1879 = vpop.f32.mrb[0].mxu0
        %v1880 = vadd.f32 0.0, %v1879
        %v1881 = vpop.f32.mrb[0].mxu0
        %v1882 = vadd.f32 0.0, %v1881
        %1883 = vdwg.mxu0
        %v1886 = vcombine.low %v1880, %v1882
        %v1888 = vunpack.c.l.s4 1983009808
        %v1889 = vunpack.c.0.s8 %v1888
        %v1890 = vlaneseq
        %v1891 = vshrl.u32 %v1890, 7
        %v1892 = vsub.s32 %v1889, %v1891
        %v1893 = vrot.slane %v1886, %v1892
        %v1895 = vadd.f32 %v1812, %v1893
        %v1896 = vsub.f32 0.0, %v1895
        %v1897 = vmul.f32 %v1896, 1.442695
        %v1898 = vpow.pop %v1897
        %v1899 = vadd.f32 %v1898, 1.0
        %v1900 = vrcp.pop %v1899
        %v1901 = vtanh.pop %v1895
        %v1903 = vrot.slane %v1895, 2
        %v1905 = vsub.f32 0.0, %v1903
        %v1906 = vmul.f32 %v1905, 1.442695
        %v1907 = vpow.pop %v1906
        %v1908 = vadd.f32 %v1907, 1.0
        %v1909 = vrcp.pop %v1908
        %v1910 = vmul.f32 %v1900, %v1336
        %1912 = vrot.lane.b32.xlu0 %v1901, 64
        %v1913 = vpop.permute.xlu0 %1912
        %v1915 = vmul.f32 %v1900, %v1913
        %1917 = vrot.lane.b32.xlu0 %v1915, 32
        %v1918 = vpop.permute.xlu0 %1917
        %v1920 = vadd.f32 %v1910, %v1918
        %v1921 = vtanh.pop %v1920
        %1923 = vrot.lane.b32.xlu0 %v1921, 64
        %v1924 = vpop.permute.xlu0 %1923
        %v1926 = vmul.f32 %v1900, %v1924
        %1927 = vrot.lane.b32.xlu0 %v1921, 96
        %v1928 = vpop.permute.xlu0 %1927
        %v1930 = vmul.f32 %v1909, %v1928
        %v1933 = vunpack.c.l.s4 1983009808
        %v1934 = vunpack.c.0.s8 %v1933
        %v1935 = vlaneseq
        %v1936 = vshrl.u32 %v1935, 7
        %v1937 = vsub.s32 %v1934, %v1936
        %v1938 = vrot.slane %v1926, %v1937
        %1939 = vrot.lane.b32.xlu0 %v1938, 32
        %v1940 = vpop.permute.xlu0 %1939
        %v1941 = vsel %vm584, %v1940, 0
        %1943 = vmatprep.subr.mxu0 0.0
        %1944 = vmatpush1.msra.mxu0 %v567
        %1945 = vmatprep.subr.mxu0 0.0
        %1946 = vmatpush1.msra.mxu0 %v568
        %1947 = vmatprep.subr.mxu0 0.0
        %1948 = vmatpush1.msra.mxu0 %v569
        %1949 = vmatprep.subr.mxu0 0.0
        %1950 = vmatpush1.msra.mxu0 %v570
        %1951 = vmatprep.subr.mxu0 0.0
        %1952 = vmatpush1.msra.mxu0 0.0
        %1953 = vmatprep.subr.mxu0 0.0
        %1954 = vmatpush1.msra.mxu0 0.0
        %1955 = vmatprep.subr.mxu0 0.0
        %1956 = vmatpush1.msra.mxu0 0.0
        %1957 = vmatprep.subr.mxu0 0.0
        %1958 = vmatpush1.msra.mxu0 0.0
        %1959 = vmatprep.subr.mxu0 0.0
        %1960 = vmatpush1.msra.mxu0 0.0
        %1961 = vmatprep.subr.mxu0 0.0
        %1962 = vmatpush1.msra.mxu0 0.0
        %1963 = vmatprep.subr.mxu0 0.0
        %1964 = vmatpush1.msra.mxu0 0.0
        %1965 = vmatprep.subr.mxu0 0.0
        %1966 = vmatpush1.msra.mxu0 0.0
        %1967 = vmatprep.subr.mxu0 0.0
        %1968 = vmatpush1.msra.mxu0 0.0
        %1969 = vmatprep.subr.mxu0 0.0
        %1970 = vmatpush1.msra.mxu0 0.0
        %1971 = vmatprep.subr.mxu0 0.0
        %1972 = vmatpush1.msra.mxu0 0.0
        %1973 = vmatprep.subr.mxu0 0.0
        %1974 = vmatpush1.msra.mxu0 0.0
        %1975 = vmatprep.subr.mxu0 0.0
        %1976 = vmatpush1.msra.mxu0 0.0
        %1977 = vmatprep.subr.mxu0 0.0
        %1978 = vmatpush1.msra.mxu0 0.0
        %1979 = vmatprep.subr.mxu0 0.0
        %1980 = vmatpush1.msra.mxu0 0.0
        %1981 = vmatprep.subr.mxu0 0.0
        %1982 = vmatpush1.msra.mxu0 0.0
        %1983 = vmatprep.subr.mxu0 0.0
        %1984 = vmatpush1.msra.mxu0 0.0
        %1985 = vmatprep.subr.mxu0 0.0
        %1986 = vmatpush1.msra.mxu0 0.0
        %1987 = vmatprep.subr.mxu0 0.0
        %1988 = vmatpush1.msra.mxu0 0.0
        %1989 = vmatprep.subr.mxu0 0.0
        %1990 = vmatpush1.msra.mxu0 0.0
        %1991 = vmatprep.subr.mxu0 0.0
        %1992 = vmatpush1.msra.mxu0 0.0
        %1993 = vmatprep.subr.mxu0 0.0
        %1994 = vmatpush1.msra.mxu0 0.0
        %1995 = vmatprep.subr.mxu0 0.0
        %1996 = vmatpush1.msra.mxu0 0.0
        %1997 = vmatprep.subr.mxu0 0.0
        %1998 = vmatpush1.msra.mxu0 0.0
        %1999 = vmatprep.subr.mxu0 0.0
        %2000 = vmatpush1.msra.mxu0 0.0
        %2001 = vmatprep.subr.mxu0 0.0
        %2002 = vmatpush1.msra.mxu0 0.0
        %2003 = vmatprep.subr.mxu0 0.0
        %2004 = vmatpush1.msra.mxu0 0.0
        %2005 = vmatprep.subr.mxu0 0.0
        %2006 = vmatpush1.msra.mxu0 0.0
        %2007 = vmatprep.mubr.f32.mxu0 0.0
        %2008 = vmatmul.mubr.f32.gmra.mrb[0].mxu0 %v1941
        %v2009 = vpop.f32.mrb[0].mxu0
        %v2010 = vadd.f32 %v721, %v2009
        %v2011 = vpop.f32.mrb[0].mxu0
        %2012 = vdwg.mxu0
        %v2015 = vunpack.c.l.s4 1966171168
        %v2016 = vunpack.c.0.s8 %v2015
        %v2017 = vlaneseq
        %v2018 = vshrl.u32 %v2017, 7
        %v2019 = vsub.s32 %v2016, %v2018
        %v2020 = vrot.slane %v2010, %v2019
        %v2021 = vcombine.high %v2020, %v2020
        %v2023 = vunpack.c.l.s4 1966171168
        %v2024 = vunpack.c.0.s8 %v2023
        %v2025 = vlaneseq
        %v2026 = vshrl.u32 %v2025, 7
        %v2027 = vsub.s32 %v2024, %v2026
        %v2028 = vrot.slane %v2020, %v2027
        %v2030 = vunpack.c.l.s4 1966171168
        %v2031 = vunpack.c.0.s8 %v2030
        %v2032 = vlaneseq
        %v2033 = vshrl.u32 %v2032, 7
        %v2034 = vsub.s32 %v2031, %v2033
        %v2035 = vrot.slane %v2021, %v2034
        %v2036 = vlaneseq
        %v2037 = vshrl.u32 %v2036, 7
        %v2038 = vsub.s32 0, %v2037
        %v2039 = vrot.slane %v2028, %v2038
        %v2040 = vlaneseq
        %v2041 = vshrl.u32 %v2040, 7
        %v2042 = vsub.s32 0, %v2041
        %v2043 = vrot.slane %v2035, %v2042
        %v2046 = vadd.f32 %v555, %v2039
        %v2047 = vadd.f32 %v556, %v2039
        %v2048 = vadd.f32 %v557, %v2043
        %v2049 = vadd.f32 %v558, %v2043
        %v2050 = vtanh.pop %v2046
        %v2051 = vtanh.pop %v2047
        %v2052 = vtanh.pop %v2048
        %v2053 = vtanh.pop %v2049
        %v2054 = vmul.f32 %v2050, %v850
        %v2055 = vmul.f32 %v2051, %v850
        %v2056 = vmul.f32 %v2052, %v850
        %v2057 = vmul.f32 %v2053, %v850
        %v2058 = vsel %vm856, %v2054, 0.0
        %2059 = vadd.xlane.f32.xlu0 %v2058
        %v2060 = vpop.xlane.xlu0 %2059
        %v2061 = vsel %vm856, %v2055, 0.0
        %2062 = vadd.xlane.f32.xlu0 %v2061
        %v2063 = vpop.xlane.xlu0 %2062
        %v2064 = vsel %vm856, %v2056, 0.0
        %2065 = vadd.xlane.f32.xlu0 %v2064
        %v2066 = vpop.xlane.xlu0 %2065
        %v2067 = vsel %vm856, %v2057, 0.0
        %2068 = vadd.xlane.f32.xlu0 %v2067
        %v2069 = vpop.xlane.xlu0 %2068
        %v2070 = vadd.f32 %v2060, %v876
        %v2071 = vadd.f32 %v2063, %v876
        %v2072 = vadd.f32 %v2066, %v876
        %v2073 = vadd.f32 %v2069, %v876
        %v2078 = vlaneseq
        %v2079 = vshrl.u32 %v2078, 7
        %v2080 = vsub.s32 %v887, %v2079
        %v2081 = vrot.slane %v2070, %v2080
        %v2082 = vlaneseq
        %v2083 = vshrl.u32 %v2082, 7
        %v2084 = vsub.s32 %v892, %v2083
        %v2085 = vrot.slane %v2071, %v2084
        %v2086 = vsel %vm897, %v2085, %v2081
        %v2087 = vlaneseq
        %v2088 = vshrl.u32 %v2087, 7
        %v2089 = vsub.s32 %v887, %v2088
        %v2090 = vrot.slane %v2072, %v2089
        %v2091 = vlaneseq
        %v2092 = vshrl.u32 %v2091, 7
        %v2093 = vsub.s32 %v892, %v2092
        %v2094 = vrot.slane %v2073, %v2093
        %v2095 = vsel %vm897, %v2094, %v2090
        %v2096 = vsel %vm908, %v2095, %v2086
        %v2098 = vsel %vm911, %v2096, -inf
        %2099 = vmax.xlane.f32.xlu0 %v2098
        %v2100 = vpop.xlane.xlu0 %2099
        %v2102 = vlaneseq
        %v2103 = vshrl.u32 %v2102, 7
        %v2104 = vsub.s32 0, %v2103
        %v2105 = vrot.slane %v2100, %v2104
        %v2106 = vlaneseq
        %v2107 = vshrl.u32 %v2106, 7
        %v2108 = vsub.s32 1, %v2107
        %v2109 = vrot.slane %v2100, %v2108
        %v2112 = vsub.f32 %v2070, %v2105
        %v2113 = vsub.f32 %v2071, %v2105
        %v2114 = vsub.f32 %v2072, %v2109
        %v2115 = vsub.f32 %v2073, %v2109
        %v2116 = vmul.f32 %v2112, 1.442695
        %v2117 = vpow.pop %v2116
        %v2118 = vmul.f32 %v2113, 1.442695
        %v2119 = vpow.pop %v2118
        %v2120 = vmul.f32 %v2114, 1.442695
        %v2121 = vpow.pop %v2120
        %v2122 = vmul.f32 %v2115, 1.442695
        %v2123 = vpow.pop %v2122
        %2128 = vset.pattern.permute.xlu0 0
        %2129 = vperm.xlu0 %2128, %v2117
        %v2130 = vpop.permute.xlu0 %2129
        %2131 = vset.pattern.permute.xlu0 0
        %2132 = vperm.xlu0 %2131, %v2119
        %v2133 = vpop.permute.xlu0 %2132
        %2134 = vset.pattern.permute.xlu0 0
        %2135 = vperm.xlu0 %2134, %v2121
        %v2136 = vpop.permute.xlu0 %2135
        %2137 = vset.pattern.permute.xlu0 0
        %2138 = vperm.xlu0 %2137, %v2123
        %v2139 = vpop.permute.xlu0 %2138
        %v2140 = vlaneseq
        %v2141 = vshrl.u32 %v2140, 7
        %v2142 = vsub.s32 %v887, %v2141
        %v2143 = vrot.slane %v2130, %v2142
        %v2144 = vlaneseq
        %v2145 = vshrl.u32 %v2144, 7
        %v2146 = vsub.s32 %v892, %v2145
        %v2147 = vrot.slane %v2133, %v2146
        %v2148 = vsel %vm897, %v2147, %v2143
        %v2149 = vlaneseq
        %v2150 = vshrl.u32 %v2149, 7
        %v2151 = vsub.s32 %v887, %v2150
        %v2152 = vrot.slane %v2136, %v2151
        %v2153 = vlaneseq
        %v2154 = vshrl.u32 %v2153, 7
        %v2155 = vsub.s32 %v892, %v2154
        %v2156 = vrot.slane %v2139, %v2155
        %v2157 = vsel %vm897, %v2156, %v2152
        %v2158 = vsel %vm908, %v2157, %v2148
        %v2160 = vsel %vm911, %v2158, 0.0
        %2161 = vadd.xlane.f32.xlu0 %v2160
        %v2162 = vpop.xlane.xlu0 %2161
        %v2163 = vrcp.pop %v2162
        %v2165 = vlaneseq
        %v2166 = vshrl.u32 %v2165, 7
        %v2167 = vsub.s32 0, %v2166
        %v2168 = vrot.slane %v2163, %v2167
        %v2169 = vlaneseq
        %v2170 = vshrl.u32 %v2169, 7
        %v2171 = vsub.s32 1, %v2170
        %v2172 = vrot.slane %v2163, %v2171
        %v2175 = vmul.f32 %v2117, %v2168
        %v2176 = vmul.f32 %v2119, %v2168
        %v2177 = vmul.f32 %v2121, %v2172
        %v2178 = vmul.f32 %v2123, %v2172
        %2180 = vset.pattern.permute.xlu0 0
        %2181 = vperm.xlu0 %2180, %v2175
        %v2182 = vpop.permute.xlu0 %2181
        %2185 = vset.pattern.permute.xlu0 0
        %2186 = vperm.xlu0 %2185, %v2176
        %v2187 = vpop.permute.xlu0 %2186
        %2190 = vset.pattern.permute.xlu0 0
        %2191 = vperm.xlu0 %2190, %v2177
        %v2192 = vpop.permute.xlu0 %2191
        %2195 = vset.pattern.permute.xlu0 0
        %2196 = vperm.xlu0 %2195, %v2178
        %v2197 = vpop.permute.xlu0 %2196
        %v2199 = vmul.f32 %v551, %v2182
        %v2200 = vmul.f32 %v552, %v2187
        %v2201 = vmul.f32 %v553, %v2192
        %v2202 = vmul.f32 %v554, %v2197
        %v2203 = vsel %vm584, %v2199, 0.0
        %v2204 = vsel %vm584, %v2200, 0.0
        %v2205 = vadd.f32 %v2203, %v2204
        %v2206 = vrot.slane %v2205, 4
        %v2207 = vadd.f32 %v2205, %v2206
        %v2208 = vrot.slane %v2207, 2
        %v2209 = vadd.f32 %v2207, %v2208
        %v2210 = vrot.slane %v2209, 1
        %v2211 = vadd.f32 %v2209, %v2210
        %v2212 = vsel %vm584, %v2201, 0.0
        %v2213 = vsel %vm584, %v2202, 0.0
        %v2214 = vadd.f32 %v2212, %v2213
        %v2215 = vrot.slane %v2214, 4
        %v2216 = vadd.f32 %v2214, %v2215
        %v2217 = vrot.slane %v2216, 2
        %v2218 = vadd.f32 %v2216, %v2217
        %v2219 = vrot.slane %v2218, 1
        %v2220 = vadd.f32 %v2218, %v2219
        %v2222 = vsel %vm584, %v1930, 0
        %2224 = vmatprep.subr.mxu0 0.0
        %2225 = vmatpush1.msra.mxu0 %v572
        %2226 = vmatprep.subr.mxu0 0.0
        %2227 = vmatpush1.msra.mxu0 %v573
        %2228 = vmatprep.subr.mxu0 0.0
        %2229 = vmatpush1.msra.mxu0 %v574
        %2230 = vmatprep.subr.mxu0 0.0
        %2231 = vmatpush1.msra.mxu0 %v575
        %2232 = vmatprep.subr.mxu0 0.0
        %2233 = vmatpush1.msra.mxu0 0.0
        %2234 = vmatprep.subr.mxu0 0.0
        %2235 = vmatpush1.msra.mxu0 0.0
        %2236 = vmatprep.subr.mxu0 0.0
        %2237 = vmatpush1.msra.mxu0 0.0
        %2238 = vmatprep.subr.mxu0 0.0
        %2239 = vmatpush1.msra.mxu0 0.0
        %2240 = vmatprep.subr.mxu0 0.0
        %2241 = vmatpush1.msra.mxu0 0.0
        %2242 = vmatprep.subr.mxu0 0.0
        %2243 = vmatpush1.msra.mxu0 0.0
        %2244 = vmatprep.subr.mxu0 0.0
        %2245 = vmatpush1.msra.mxu0 0.0
        %2246 = vmatprep.subr.mxu0 0.0
        %2247 = vmatpush1.msra.mxu0 0.0
        %2248 = vmatprep.subr.mxu0 0.0
        %2249 = vmatpush1.msra.mxu0 0.0
        %2250 = vmatprep.subr.mxu0 0.0
        %2251 = vmatpush1.msra.mxu0 0.0
        %2252 = vmatprep.subr.mxu0 0.0
        %2253 = vmatpush1.msra.mxu0 0.0
        %2254 = vmatprep.subr.mxu0 0.0
        %2255 = vmatpush1.msra.mxu0 0.0
        %2256 = vmatprep.subr.mxu0 0.0
        %2257 = vmatpush1.msra.mxu0 0.0
        %2258 = vmatprep.subr.mxu0 0.0
        %2259 = vmatpush1.msra.mxu0 0.0
        %2260 = vmatprep.subr.mxu0 0.0
        %2261 = vmatpush1.msra.mxu0 0.0
        %2262 = vmatprep.subr.mxu0 0.0
        %2263 = vmatpush1.msra.mxu0 0.0
        %2264 = vmatprep.subr.mxu0 0.0
        %2265 = vmatpush1.msra.mxu0 0.0
        %2266 = vmatprep.subr.mxu0 0.0
        %2267 = vmatpush1.msra.mxu0 0.0
        %2268 = vmatprep.subr.mxu0 0.0
        %2269 = vmatpush1.msra.mxu0 0.0
        %2270 = vmatprep.subr.mxu0 0.0
        %2271 = vmatpush1.msra.mxu0 0.0
        %2272 = vmatprep.subr.mxu0 0.0
        %2273 = vmatpush1.msra.mxu0 0.0
        %2274 = vmatprep.subr.mxu0 0.0
        %2275 = vmatpush1.msra.mxu0 0.0
        %2276 = vmatprep.subr.mxu0 0.0
        %2277 = vmatpush1.msra.mxu0 0.0
        %2278 = vmatprep.subr.mxu0 0.0
        %2279 = vmatpush1.msra.mxu0 0.0
        %2280 = vmatprep.subr.mxu0 0.0
        %2281 = vmatpush1.msra.mxu0 0.0
        %2282 = vmatprep.subr.mxu0 0.0
        %2283 = vmatpush1.msra.mxu0 0.0
        %2284 = vmatprep.subr.mxu0 0.0
        %2285 = vmatpush1.msra.mxu0 0.0
        %2286 = vmatprep.subr.mxu0 0.0
        %2287 = vmatpush1.msra.mxu0 0.0
        %2288 = vmatprep.mubr.f32.mxu0 0.0
        %2289 = vmatmul.mubr.f32.gmra.mrb[0].mxu0 %v2222
        %v2290 = vpop.f32.mrb[0].mxu0
        %v2291 = vadd.f32 %v1039, %v2290
        %v2292 = vpop.f32.mrb[0].mxu0
        %2293 = vdwg.mxu0
        %v2294 = vadd.f32 %v2291, %v2010
        %v2295 = vtanh.pop %v2294
        %v2296 = vmul.f32 %v2295, %v1120
        %v2297 = vsel %vm911, %v2296, 0.0
        %2298 = vadd.xlane.f32.xlu0 %v2297
        %v2299 = vpop.xlane.xlu0 %2298
        %v2300 = vadd.f32 %v2299, %v1130
        %v2301 = vmax.f32 %v2100, %v2300
        %v2302 = vsub.f32 %v2300, %v2301
        %v2303 = vmul.f32 %v2302, 1.442695
        %v2304 = vpow.pop %v2303
        %2306 = vset.pattern.permute.xlu0 0
        %2307 = vperm.xlu0 %2306, %v2301
        %v2308 = vpop.permute.xlu0 %2307
        %v2309 = vlaneseq
        %v2310 = vshrl.u32 %v2309, 7
        %v2311 = vsub.s32 0, %v2310
        %v2312 = vrot.slane %v2308, %v2311
        %v2313 = vlaneseq
        %v2314 = vshrl.u32 %v2313, 7
        %v2315 = vsub.s32 1, %v2314
        %v2316 = vrot.slane %v2308, %v2315
        %v2319 = vsub.f32 %v2070, %v2312
        %v2320 = vsub.f32 %v2071, %v2312
        %v2321 = vsub.f32 %v2072, %v2316
        %v2322 = vsub.f32 %v2073, %v2316
        %v2323 = vmul.f32 %v2319, 1.442695
        %v2324 = vpow.pop %v2323
        %v2325 = vmul.f32 %v2320, 1.442695
        %v2326 = vpow.pop %v2325
        %v2327 = vmul.f32 %v2321, 1.442695
        %v2328 = vpow.pop %v2327
        %v2329 = vmul.f32 %v2322, 1.442695
        %v2330 = vpow.pop %v2329
        %2335 = vset.pattern.permute.xlu0 0
        %2336 = vperm.xlu0 %2335, %v2324
        %v2337 = vpop.permute.xlu0 %2336
        %2338 = vset.pattern.permute.xlu0 0
        %2339 = vperm.xlu0 %2338, %v2326
        %v2340 = vpop.permute.xlu0 %2339
        %2341 = vset.pattern.permute.xlu0 0
        %2342 = vperm.xlu0 %2341, %v2328
        %v2343 = vpop.permute.xlu0 %2342
        %2344 = vset.pattern.permute.xlu0 0
        %2345 = vperm.xlu0 %2344, %v2330
        %v2346 = vpop.permute.xlu0 %2345
        %v2347 = vlaneseq
        %v2348 = vshrl.u32 %v2347, 7
        %v2349 = vsub.s32 %v887, %v2348
        %v2350 = vrot.slane %v2337, %v2349
        %v2351 = vlaneseq
        %v2352 = vshrl.u32 %v2351, 7
        %v2353 = vsub.s32 %v892, %v2352
        %v2354 = vrot.slane %v2340, %v2353
        %v2355 = vsel %vm897, %v2354, %v2350
        %v2356 = vlaneseq
        %v2357 = vshrl.u32 %v2356, 7
        %v2358 = vsub.s32 %v887, %v2357
        %v2359 = vrot.slane %v2343, %v2358
        %v2360 = vlaneseq
        %v2361 = vshrl.u32 %v2360, 7
        %v2362 = vsub.s32 %v892, %v2361
        %v2363 = vrot.slane %v2346, %v2362
        %v2364 = vsel %vm897, %v2363, %v2359
        %v2365 = vsel %vm908, %v2364, %v2355
        %v2367 = vsel %vm911, %v2365, 0.0
        %2368 = vadd.xlane.f32.xlu0 %v2367
        %v2369 = vpop.xlane.xlu0 %2368
        %v2370 = vadd.f32 %v2369, %v2304
        %v2371 = vrcp.pop %v2370
        %v2372 = vmul.f32 %v2304, %v2371
        %2374 = vset.pattern.permute.xlu0 0
        %2375 = vperm.xlu0 %2374, %v2372
        %v2376 = vpop.permute.xlu0 %2375
        %v2378 = vmul.f32 %v2376, %v1930
        %v2379 = vsub.f32 1.0, %v2372
        %2381 = vset.pattern.permute.xlu0 0
        %2382 = vperm.xlu0 %2381, %v2379
        %v2383 = vpop.permute.xlu0 %2382
        %v2387 = vsel %vm908, %v2220, %v2211
        %v2389 = vmul.f32 %v2383, %v2387
        %v2390 = vadd.f32 %v2378, %v2389
        %v2392 = vadd.f32 %v2390, %v1940
        %s2393 = scalar_lea.vmem %s531, 4 [#allocation12]
        %2394 = vst.msk [vmem:[%s2393] sm:$0x3] %vm1225, %v2392
        %s2395 = scalar_lea.vmem %s541, 12
        %v2396 = vld [vmem:[%s2395] sm:$0xf]
        %2397 = vmatprep.subr.mxu0 %v560
        %2398 = vmatpush1.msra.mxu0 %v559
        %2399 = vmatprep.subr.mxu0 %v562
        %2400 = vmatpush1.msra.mxu0 %v561
        %2401 = vmatprep.subr.mxu0 %v564
        %2402 = vmatpush1.msra.mxu0 %v563
        %2403 = vmatprep.subr.mxu0 %v566
        %2404 = vmatpush1.msra.mxu0 %v565
        %2405 = vmatprep.subr.mxu0 0.0
        %2406 = vmatpush1.msra.mxu0 0.0
        %2407 = vmatprep.subr.mxu0 0.0
        %2408 = vmatpush1.msra.mxu0 0.0
        %2409 = vmatprep.subr.mxu0 0.0
        %2410 = vmatpush1.msra.mxu0 0.0
        %2411 = vmatprep.subr.mxu0 0.0
        %2412 = vmatpush1.msra.mxu0 0.0
        %2413 = vmatprep.subr.mxu0 0.0
        %2414 = vmatpush1.msra.mxu0 0.0
        %2415 = vmatprep.subr.mxu0 0.0
        %2416 = vmatpush1.msra.mxu0 0.0
        %2417 = vmatprep.subr.mxu0 0.0
        %2418 = vmatpush1.msra.mxu0 0.0
        %2419 = vmatprep.subr.mxu0 0.0
        %2420 = vmatpush1.msra.mxu0 0.0
        %2421 = vmatprep.subr.mxu0 0.0
        %2422 = vmatpush1.msra.mxu0 0.0
        %2423 = vmatprep.subr.mxu0 0.0
        %2424 = vmatpush1.msra.mxu0 0.0
        %2425 = vmatprep.subr.mxu0 0.0
        %2426 = vmatpush1.msra.mxu0 0.0
        %2427 = vmatprep.subr.mxu0 0.0
        %2428 = vmatpush1.msra.mxu0 0.0
        %2429 = vmatprep.subr.mxu0 0.0
        %2430 = vmatpush1.msra.mxu0 0.0
        %2431 = vmatprep.subr.mxu0 0.0
        %2432 = vmatpush1.msra.mxu0 0.0
        %2433 = vmatprep.subr.mxu0 0.0
        %2434 = vmatpush1.msra.mxu0 0.0
        %2435 = vmatprep.subr.mxu0 0.0
        %2436 = vmatpush1.msra.mxu0 0.0
        %2437 = vmatprep.subr.mxu0 0.0
        %2438 = vmatpush1.msra.mxu0 0.0
        %2439 = vmatprep.subr.mxu0 0.0
        %2440 = vmatpush1.msra.mxu0 0.0
        %2441 = vmatprep.subr.mxu0 0.0
        %2442 = vmatpush1.msra.mxu0 0.0
        %2443 = vmatprep.subr.mxu0 0.0
        %2444 = vmatpush1.msra.mxu0 0.0
        %2445 = vmatprep.subr.mxu0 0.0
        %2446 = vmatpush1.msra.mxu0 0.0
        %2447 = vmatprep.subr.mxu0 0.0
        %2448 = vmatpush1.msra.mxu0 0.0
        %2449 = vmatprep.subr.mxu0 0.0
        %2450 = vmatpush1.msra.mxu0 0.0
        %2451 = vmatprep.subr.mxu0 0.0
        %2452 = vmatpush1.msra.mxu0 0.0
        %2453 = vmatprep.subr.mxu0 0.0
        %2454 = vmatpush1.msra.mxu0 0.0
        %2455 = vmatprep.subr.mxu0 0.0
        %2456 = vmatpush1.msra.mxu0 0.0
        %2457 = vmatprep.subr.mxu0 0.0
        %2458 = vmatpush1.msra.mxu0 0.0
        %2459 = vmatprep.subr.mxu0 0.0
        %2460 = vmatpush1.msra.mxu0 0.0
        %2461 = vmatprep.mubr.f32.mxu0 0.0
        %2462 = vmatmul.mubr.f32.gmra.mrb[0].mxu0 %v1941
        %v2463 = vpop.f32.mrb[0].mxu0
        %v2464 = vadd.f32 0.0, %v2463
        %v2465 = vpop.f32.mrb[0].mxu0
        %v2466 = vadd.f32 0.0, %v2465
        %2467 = vdwg.mxu0
        %v2470 = vcombine.low %v2464, %v2466
        %v2472 = vunpack.c.l.s4 1983009808
        %v2473 = vunpack.c.0.s8 %v2472
        %v2474 = vlaneseq
        %v2475 = vshrl.u32 %v2474, 7
        %v2476 = vsub.s32 %v2473, %v2475
        %v2477 = vrot.slane %v2470, %v2476
        %v2479 = vadd.f32 %v2396, %v2477
        %v2480 = vsub.f32 0.0, %v2479
        %v2481 = vmul.f32 %v2480, 1.442695
        %v2482 = vpow.pop %v2481
        %v2483 = vadd.f32 %v2482, 1.0
        %v2484 = vrcp.pop %v2483
        %v2485 = vtanh.pop %v2479
        %v2487 = vrot.slane %v2479, 2
        %v2489 = vsub.f32 0.0, %v2487
        %v2490 = vmul.f32 %v2489, 1.442695
        %v2491 = vpow.pop %v2490
        %v2492 = vadd.f32 %v2491, 1.0
        %v2493 = vrcp.pop %v2492
        %v2494 = vmul.f32 %v2484, %v1920
        %2496 = vrot.lane.b32.xlu0 %v2485, 64
        %v2497 = vpop.permute.xlu0 %2496
        %v2499 = vmul.f32 %v2484, %v2497
        %2501 = vrot.lane.b32.xlu0 %v2499, 32
        %v2502 = vpop.permute.xlu0 %2501
        %v2504 = vadd.f32 %v2494, %v2502
        %v2505 = vtanh.pop %v2504
        %2507 = vrot.lane.b32.xlu0 %v2505, 64
        %v2508 = vpop.permute.xlu0 %2507
        %v2510 = vmul.f32 %v2484, %v2508
        %2511 = vrot.lane.b32.xlu0 %v2505, 96
        %v2512 = vpop.permute.xlu0 %2511
        %v2514 = vmul.f32 %v2493, %v2512
        %v2517 = vunpack.c.l.s4 1983009808
        %v2518 = vunpack.c.0.s8 %v2517
        %v2519 = vlaneseq
        %v2520 = vshrl.u32 %v2519, 7
        %v2521 = vsub.s32 %v2518, %v2520
        %v2522 = vrot.slane %v2510, %v2521
        %2523 = vrot.lane.b32.xlu0 %v2522, 32
        %v2524 = vpop.permute.xlu0 %2523
        %v2525 = vsel %vm584, %v2524, 0
        %2527 = vmatprep.subr.mxu0 0.0
        %2528 = vmatpush1.msra.mxu0 %v567
        %2529 = vmatprep.subr.mxu0 0.0
        %2530 = vmatpush1.msra.mxu0 %v568
        %2531 = vmatprep.subr.mxu0 0.0
        %2532 = vmatpush1.msra.mxu0 %v569
        %2533 = vmatprep.subr.mxu0 0.0
        %2534 = vmatpush1.msra.mxu0 %v570
        %2535 = vmatprep.subr.mxu0 0.0
        %2536 = vmatpush1.msra.mxu0 0.0
        %2537 = vmatprep.subr.mxu0 0.0
        %2538 = vmatpush1.msra.mxu0 0.0
        %2539 = vmatprep.subr.mxu0 0.0
        %2540 = vmatpush1.msra.mxu0 0.0
        %2541 = vmatprep.subr.mxu0 0.0
        %2542 = vmatpush1.msra.mxu0 0.0
        %2543 = vmatprep.subr.mxu0 0.0
        %2544 = vmatpush1.msra.mxu0 0.0
        %2545 = vmatprep.subr.mxu0 0.0
        %2546 = vmatpush1.msra.mxu0 0.0
        %2547 = vmatprep.subr.mxu0 0.0
        %2548 = vmatpush1.msra.mxu0 0.0
        %2549 = vmatprep.subr.mxu0 0.0
        %2550 = vmatpush1.msra.mxu0 0.0
        %2551 = vmatprep.subr.mxu0 0.0
        %2552 = vmatpush1.msra.mxu0 0.0
        %2553 = vmatprep.subr.mxu0 0.0
        %2554 = vmatpush1.msra.mxu0 0.0
        %2555 = vmatprep.subr.mxu0 0.0
        %2556 = vmatpush1.msra.mxu0 0.0
        %2557 = vmatprep.subr.mxu0 0.0
        %2558 = vmatpush1.msra.mxu0 0.0
        %2559 = vmatprep.subr.mxu0 0.0
        %2560 = vmatpush1.msra.mxu0 0.0
        %2561 = vmatprep.subr.mxu0 0.0
        %2562 = vmatpush1.msra.mxu0 0.0
        %2563 = vmatprep.subr.mxu0 0.0
        %2564 = vmatpush1.msra.mxu0 0.0
        %2565 = vmatprep.subr.mxu0 0.0
        %2566 = vmatpush1.msra.mxu0 0.0
        %2567 = vmatprep.subr.mxu0 0.0
        %2568 = vmatpush1.msra.mxu0 0.0
        %2569 = vmatprep.subr.mxu0 0.0
        %2570 = vmatpush1.msra.mxu0 0.0
        %2571 = vmatprep.subr.mxu0 0.0
        %2572 = vmatpush1.msra.mxu0 0.0
        %2573 = vmatprep.subr.mxu0 0.0
        %2574 = vmatpush1.msra.mxu0 0.0
        %2575 = vmatprep.subr.mxu0 0.0
        %2576 = vmatpush1.msra.mxu0 0.0
        %2577 = vmatprep.subr.mxu0 0.0
        %2578 = vmatpush1.msra.mxu0 0.0
        %2579 = vmatprep.subr.mxu0 0.0
        %2580 = vmatpush1.msra.mxu0 0.0
        %2581 = vmatprep.subr.mxu0 0.0
        %2582 = vmatpush1.msra.mxu0 0.0
        %2583 = vmatprep.subr.mxu0 0.0
        %2584 = vmatpush1.msra.mxu0 0.0
        %2585 = vmatprep.subr.mxu0 0.0
        %2586 = vmatpush1.msra.mxu0 0.0
        %2587 = vmatprep.subr.mxu0 0.0
        %2588 = vmatpush1.msra.mxu0 0.0
        %2589 = vmatprep.subr.mxu0 0.0
        %2590 = vmatpush1.msra.mxu0 0.0
        %2591 = vmatprep.mubr.f32.mxu0 0.0
        %2592 = vmatmul.mubr.f32.gmra.mrb[0].mxu0 %v2525
        %v2593 = vpop.f32.mrb[0].mxu0
        %v2594 = vadd.f32 %v721, %v2593
        %v2595 = vpop.f32.mrb[0].mxu0
        %2596 = vdwg.mxu0
        %v2599 = vunpack.c.l.s4 1966171168
        %v2600 = vunpack.c.0.s8 %v2599
        %v2601 = vlaneseq
        %v2602 = vshrl.u32 %v2601, 7
        %v2603 = vsub.s32 %v2600, %v2602
        %v2604 = vrot.slane %v2594, %v2603
        %v2605 = vcombine.high %v2604, %v2604
        %v2607 = vunpack.c.l.s4 1966171168
        %v2608 = vunpack.c.0.s8 %v2607
        %v2609 = vlaneseq
        %v2610 = vshrl.u32 %v2609, 7
        %v2611 = vsub.s32 %v2608, %v2610
        %v2612 = vrot.slane %v2604, %v2611
        %v2614 = vunpack.c.l.s4 1966171168
        %v2615 = vunpack.c.0.s8 %v2614
        %v2616 = vlaneseq
        %v2617 = vshrl.u32 %v2616, 7
        %v2618 = vsub.s32 %v2615, %v2617
        %v2619 = vrot.slane %v2605, %v2618
        %v2620 = vlaneseq
        %v2621 = vshrl.u32 %v2620, 7
        %v2622 = vsub.s32 0, %v2621
        %v2623 = vrot.slane %v2612, %v2622
        %v2624 = vlaneseq
        %v2625 = vshrl.u32 %v2624, 7
        %v2626 = vsub.s32 0, %v2625
        %v2627 = vrot.slane %v2619, %v2626
        %v2630 = vadd.f32 %v555, %v2623
        %v2631 = vadd.f32 %v556, %v2623
        %v2632 = vadd.f32 %v557, %v2627
        %v2633 = vadd.f32 %v558, %v2627
        %v2634 = vtanh.pop %v2630
        %v2635 = vtanh.pop %v2631
        %v2636 = vtanh.pop %v2632
        %v2637 = vtanh.pop %v2633
        %v2638 = vmul.f32 %v2634, %v850
        %v2639 = vmul.f32 %v2635, %v850
        %v2640 = vmul.f32 %v2636, %v850
        %v2641 = vmul.f32 %v2637, %v850
        %v2642 = vsel %vm856, %v2638, 0.0
        %2643 = vadd.xlane.f32.xlu0 %v2642
        %v2644 = vpop.xlane.xlu0 %2643
        %v2645 = vsel %vm856, %v2639, 0.0
        %2646 = vadd.xlane.f32.xlu0 %v2645
        %v2647 = vpop.xlane.xlu0 %2646
        %v2648 = vsel %vm856, %v2640, 0.0
        %2649 = vadd.xlane.f32.xlu0 %v2648
        %v2650 = vpop.xlane.xlu0 %2649
        %v2651 = vsel %vm856, %v2641, 0.0
        %2652 = vadd.xlane.f32.xlu0 %v2651
        %v2653 = vpop.xlane.xlu0 %2652
        %v2654 = vadd.f32 %v2644, %v876
        %v2655 = vadd.f32 %v2647, %v876
        %v2656 = vadd.f32 %v2650, %v876
        %v2657 = vadd.f32 %v2653, %v876
        %v2662 = vlaneseq
        %v2663 = vshrl.u32 %v2662, 7
        %v2664 = vsub.s32 %v887, %v2663
        %v2665 = vrot.slane %v2654, %v2664
        %v2666 = vlaneseq
        %v2667 = vshrl.u32 %v2666, 7
        %v2668 = vsub.s32 %v892, %v2667
        %v2669 = vrot.slane %v2655, %v2668
        %v2670 = vsel %vm897, %v2669, %v2665
        %v2671 = vlaneseq
        %v2672 = vshrl.u32 %v2671, 7
        %v2673 = vsub.s32 %v887, %v2672
        %v2674 = vrot.slane %v2656, %v2673
        %v2675 = vlaneseq
        %v2676 = vshrl.u32 %v2675, 7
        %v2677 = vsub.s32 %v892, %v2676
        %v2678 = vrot.slane %v2657, %v2677
        %v2679 = vsel %vm897, %v2678, %v2674
        %v2680 = vsel %vm908, %v2679, %v2670
        %v2682 = vsel %vm911, %v2680, -inf
        %2683 = vmax.xlane.f32.xlu0 %v2682
        %v2684 = vpop.xlane.xlu0 %2683
        %v2686 = vlaneseq
        %v2687 = vshrl.u32 %v2686, 7
        %v2688 = vsub.s32 0, %v2687
        %v2689 = vrot.slane %v2684, %v2688
        %v2690 = vlaneseq
        %v2691 = vshrl.u32 %v2690, 7
        %v2692 = vsub.s32 1, %v2691
        %v2693 = vrot.slane %v2684, %v2692
        %v2696 = vsub.f32 %v2654, %v2689
        %v2697 = vsub.f32 %v2655, %v2689
        %v2698 = vsub.f32 %v2656, %v2693
        %v2699 = vsub.f32 %v2657, %v2693
        %v2700 = vmul.f32 %v2696, 1.442695
        %v2701 = vpow.pop %v2700
        %v2702 = vmul.f32 %v2697, 1.442695
        %v2703 = vpow.pop %v2702
        %v2704 = vmul.f32 %v2698, 1.442695
        %v2705 = vpow.pop %v2704
        %v2706 = vmul.f32 %v2699, 1.442695
        %v2707 = vpow.pop %v2706
        %2712 = vset.pattern.permute.xlu0 0
        %2713 = vperm.xlu0 %2712, %v2701
        %v2714 = vpop.permute.xlu0 %2713
        %2715 = vset.pattern.permute.xlu0 0
        %2716 = vperm.xlu0 %2715, %v2703
        %v2717 = vpop.permute.xlu0 %2716
        %2718 = vset.pattern.permute.xlu0 0
        %2719 = vperm.xlu0 %2718, %v2705
        %v2720 = vpop.permute.xlu0 %2719
        %2721 = vset.pattern.permute.xlu0 0
        %2722 = vperm.xlu0 %2721, %v2707
        %v2723 = vpop.permute.xlu0 %2722
        %v2724 = vlaneseq
        %v2725 = vshrl.u32 %v2724, 7
        %v2726 = vsub.s32 %v887, %v2725
        %v2727 = vrot.slane %v2714, %v2726
        %v2728 = vlaneseq
        %v2729 = vshrl.u32 %v2728, 7
        %v2730 = vsub.s32 %v892, %v2729
        %v2731 = vrot.slane %v2717, %v2730
        %v2732 = vsel %vm897, %v2731, %v2727
        %v2733 = vlaneseq
        %v2734 = vshrl.u32 %v2733, 7
        %v2735 = vsub.s32 %v887, %v2734
        %v2736 = vrot.slane %v2720, %v2735
        %v2737 = vlaneseq
        %v2738 = vshrl.u32 %v2737, 7
        %v2739 = vsub.s32 %v892, %v2738
        %v2740 = vrot.slane %v2723, %v2739
        %v2741 = vsel %vm897, %v2740, %v2736
        %v2742 = vsel %vm908, %v2741, %v2732
        %v2744 = vsel %vm911, %v2742, 0.0
        %2745 = vadd.xlane.f32.xlu0 %v2744
        %v2746 = vpop.xlane.xlu0 %2745
        %v2747 = vrcp.pop %v2746
        %v2749 = vlaneseq
        %v2750 = vshrl.u32 %v2749, 7
        %v2751 = vsub.s32 0, %v2750
        %v2752 = vrot.slane %v2747, %v2751
        %v2753 = vlaneseq
        %v2754 = vshrl.u32 %v2753, 7
        %v2755 = vsub.s32 1, %v2754
        %v2756 = vrot.slane %v2747, %v2755
        %v2759 = vmul.f32 %v2701, %v2752
        %v2760 = vmul.f32 %v2703, %v2752
        %v2761 = vmul.f32 %v2705, %v2756
        %v2762 = vmul.f32 %v2707, %v2756
        %2764 = vset.pattern.permute.xlu0 0
        %2765 = vperm.xlu0 %2764, %v2759
        %v2766 = vpop.permute.xlu0 %2765
        %2769 = vset.pattern.permute.xlu0 0
        %2770 = vperm.xlu0 %2769, %v2760
        %v2771 = vpop.permute.xlu0 %2770
        %2774 = vset.pattern.permute.xlu0 0
        %2775 = vperm.xlu0 %2774, %v2761
        %v2776 = vpop.permute.xlu0 %2775
        %2779 = vset.pattern.permute.xlu0 0
        %2780 = vperm.xlu0 %2779, %v2762
        %v2781 = vpop.permute.xlu0 %2780
        %v2783 = vmul.f32 %v551, %v2766
        %v2784 = vmul.f32 %v552, %v2771
        %v2785 = vmul.f32 %v553, %v2776
        %v2786 = vmul.f32 %v554, %v2781
        %v2787 = vsel %vm584, %v2783, 0.0
        %v2788 = vsel %vm584, %v2784, 0.0
        %v2789 = vadd.f32 %v2787, %v2788
        %v2790 = vrot.slane %v2789, 4
        %v2791 = vadd.f32 %v2789, %v2790
        %v2792 = vrot.slane %v2791, 2
        %v2793 = vadd.f32 %v2791, %v2792
        %v2794 = vrot.slane %v2793, 1
        %v2795 = vadd.f32 %v2793, %v2794
        %v2796 = vsel %vm584, %v2785, 0.0
        %v2797 = vsel %vm584, %v2786, 0.0
        %v2798 = vadd.f32 %v2796, %v2797
        %v2799 = vrot.slane %v2798, 4
        %v2800 = vadd.f32 %v2798, %v2799
        %v2801 = vrot.slane %v2800, 2
        %v2802 = vadd.f32 %v2800, %v2801
        %v2803 = vrot.slane %v2802, 1
        %v2804 = vadd.f32 %v2802, %v2803
        %v2806 = vsel %vm584, %v2514, 0
        %2808 = vmatprep.subr.mxu0 0.0
        %2809 = vmatpush1.msra.mxu0 %v572
        %2810 = vmatprep.subr.mxu0 0.0
        %2811 = vmatpush1.msra.mxu0 %v573
        %2812 = vmatprep.subr.mxu0 0.0
        %2813 = vmatpush1.msra.mxu0 %v574
        %2814 = vmatprep.subr.mxu0 0.0
        %2815 = vmatpush1.msra.mxu0 %v575
        %2816 = vmatprep.subr.mxu0 0.0
        %2817 = vmatpush1.msra.mxu0 0.0
        %2818 = vmatprep.subr.mxu0 0.0
        %2819 = vmatpush1.msra.mxu0 0.0
        %2820 = vmatprep.subr.mxu0 0.0
        %2821 = vmatpush1.msra.mxu0 0.0
        %2822 = vmatprep.subr.mxu0 0.0
        %2823 = vmatpush1.msra.mxu0 0.0
        %2824 = vmatprep.subr.mxu0 0.0
        %2825 = vmatpush1.msra.mxu0 0.0
        %2826 = vmatprep.subr.mxu0 0.0
        %2827 = vmatpush1.msra.mxu0 0.0
        %2828 = vmatprep.subr.mxu0 0.0
        %2829 = vmatpush1.msra.mxu0 0.0
        %2830 = vmatprep.subr.mxu0 0.0
        %2831 = vmatpush1.msra.mxu0 0.0
        %2832 = vmatprep.subr.mxu0 0.0
        %2833 = vmatpush1.msra.mxu0 0.0
        %2834 = vmatprep.subr.mxu0 0.0
        %2835 = vmatpush1.msra.mxu0 0.0
        %2836 = vmatprep.subr.mxu0 0.0
        %2837 = vmatpush1.msra.mxu0 0.0
        %2838 = vmatprep.subr.mxu0 0.0
        %2839 = vmatpush1.msra.mxu0 0.0
        %2840 = vmatprep.subr.mxu0 0.0
        %2841 = vmatpush1.msra.mxu0 0.0
        %2842 = vmatprep.subr.mxu0 0.0
        %2843 = vmatpush1.msra.mxu0 0.0
        %2844 = vmatprep.subr.mxu0 0.0
        %2845 = vmatpush1.msra.mxu0 0.0
        %2846 = vmatprep.subr.mxu0 0.0
        %2847 = vmatpush1.msra.mxu0 0.0
        %2848 = vmatprep.subr.mxu0 0.0
        %2849 = vmatpush1.msra.mxu0 0.0
        %2850 = vmatprep.subr.mxu0 0.0
        %2851 = vmatpush1.msra.mxu0 0.0
        %2852 = vmatprep.subr.mxu0 0.0
        %2853 = vmatpush1.msra.mxu0 0.0
        %2854 = vmatprep.subr.mxu0 0.0
        %2855 = vmatpush1.msra.mxu0 0.0
        %2856 = vmatprep.subr.mxu0 0.0
        %2857 = vmatpush1.msra.mxu0 0.0
        %2858 = vmatprep.subr.mxu0 0.0
        %2859 = vmatpush1.msra.mxu0 0.0
        %2860 = vmatprep.subr.mxu0 0.0
        %2861 = vmatpush1.msra.mxu0 0.0
        %2862 = vmatprep.subr.mxu0 0.0
        %2863 = vmatpush1.msra.mxu0 0.0
        %2864 = vmatprep.subr.mxu0 0.0
        %2865 = vmatpush1.msra.mxu0 0.0
        %2866 = vmatprep.subr.mxu0 0.0
        %2867 = vmatpush1.msra.mxu0 0.0
        %2868 = vmatprep.subr.mxu0 0.0
        %2869 = vmatpush1.msra.mxu0 0.0
        %2870 = vmatprep.subr.mxu0 0.0
        %2871 = vmatpush1.msra.mxu0 0.0
        %2872 = vmatprep.mubr.f32.mxu0 0.0
        %2873 = vmatmul.mubr.f32.gmra.mrb[0].mxu0 %v2806
        %v2874 = vpop.f32.mrb[0].mxu0
        %v2875 = vadd.f32 %v1039, %v2874
        %v2876 = vpop.f32.mrb[0].mxu0
        %2877 = vdwg.mxu0
        %v2878 = vadd.f32 %v2875, %v2594
        %v2879 = vtanh.pop %v2878
        %v2880 = vmul.f32 %v2879, %v1120
        %v2881 = vsel %vm911, %v2880, 0.0
        %2882 = vadd.xlane.f32.xlu0 %v2881
        %v2883 = vpop.xlane.xlu0 %2882
        %v2884 = vadd.f32 %v2883, %v1130
        %v2885 = vmax.f32 %v2684, %v2884
        %v2886 = vsub.f32 %v2884, %v2885
        %v2887 = vmul.f32 %v2886, 1.442695
        %v2888 = vpow.pop %v2887
        %2890 = vset.pattern.permute.xlu0 0
        %2891 = vperm.xlu0 %2890, %v2885
        %v2892 = vpop.permute.xlu0 %2891
        %v2893 = vlaneseq
        %v2894 = vshrl.u32 %v2893, 7
        %v2895 = vsub.s32 0, %v2894
        %v2896 = vrot.slane %v2892, %v2895
        %v2897 = vlaneseq
        %v2898 = vshrl.u32 %v2897, 7
        %v2899 = vsub.s32 1, %v2898
        %v2900 = vrot.slane %v2892, %v2899
        %v2903 = vsub.f32 %v2654, %v2896
        %v2904 = vsub.f32 %v2655, %v2896
        %v2905 = vsub.f32 %v2656, %v2900
        %v2906 = vsub.f32 %v2657, %v2900
        %v2907 = vmul.f32 %v2903, 1.442695
        %v2908 = vpow.pop %v2907
        %v2909 = vmul.f32 %v2904, 1.442695
        %v2910 = vpow.pop %v2909
        %v2911 = vmul.f32 %v2905, 1.442695
        %v2912 = vpow.pop %v2911
        %v2913 = vmul.f32 %v2906, 1.442695
        %v2914 = vpow.pop %v2913
        %2919 = vset.pattern.permute.xlu0 0
        %2920 = vperm.xlu0 %2919, %v2908
        %v2921 = vpop.permute.xlu0 %2920
        %2922 = vset.pattern.permute.xlu0 0
        %2923 = vperm.xlu0 %2922, %v2910
        %v2924 = vpop.permute.xlu0 %2923
        %2925 = vset.pattern.permute.xlu0 0
        %2926 = vperm.xlu0 %2925, %v2912
        %v2927 = vpop.permute.xlu0 %2926
        %2928 = vset.pattern.permute.xlu0 0
        %2929 = vperm.xlu0 %2928, %v2914
        %v2930 = vpop.permute.xlu0 %2929
        %v2931 = vlaneseq
        %v2932 = vshrl.u32 %v2931, 7
        %v2933 = vsub.s32 %v887, %v2932
        %v2934 = vrot.slane %v2921, %v2933
        %v2935 = vlaneseq
        %v2936 = vshrl.u32 %v2935, 7
        %v2937 = vsub.s32 %v892, %v2936
        %v2938 = vrot.slane %v2924, %v2937
        %v2939 = vsel %vm897, %v2938, %v2934
        %v2940 = vlaneseq
        %v2941 = vshrl.u32 %v2940, 7
        %v2942 = vsub.s32 %v887, %v2941
        %v2943 = vrot.slane %v2927, %v2942
        %v2944 = vlaneseq
        %v2945 = vshrl.u32 %v2944, 7
        %v2946 = vsub.s32 %v892, %v2945
        %v2947 = vrot.slane %v2930, %v2946
        %v2948 = vsel %vm897, %v2947, %v2943
        %v2949 = vsel %vm908, %v2948, %v2939
        %v2951 = vsel %vm911, %v2949, 0.0
        %2952 = vadd.xlane.f32.xlu0 %v2951
        %v2953 = vpop.xlane.xlu0 %2952
        %v2954 = vadd.f32 %v2953, %v2888
        %v2955 = vrcp.pop %v2954
        %v2956 = vmul.f32 %v2888, %v2955
        %2958 = vset.pattern.permute.xlu0 0
        %2959 = vperm.xlu0 %2958, %v2956
        %v2960 = vpop.permute.xlu0 %2959
        %v2962 = vmul.f32 %v2960, %v2514
        %v2963 = vsub.f32 1.0, %v2956
        %2965 = vset.pattern.permute.xlu0 0
        %2966 = vperm.xlu0 %2965, %v2963
        %v2967 = vpop.permute.xlu0 %2966
        %v2971 = vsel %vm908, %v2804, %v2795
        %v2973 = vmul.f32 %v2967, %v2971
        %v2974 = vadd.f32 %v2962, %v2973
        %v2976 = vadd.f32 %v2974, %v2524
        %s2977 = scalar_lea.vmem %s531, 6 [#allocation12]
        %2978 = vst.msk [vmem:[%s2977] sm:$0x3] %vm1225, %v2976
        %2979 = vst.msk [vmem:[#allocation2] sm:$0x3] %vm1225, %v2524
        %v2982 = vunpack.c.l.s4 1983009808
        %v2983 = vunpack.c.0.s8 %v2982
        %v2984 = vlaneseq
        %v2985 = vshrl.u32 %v2984, 7
        %v2986 = vsub.s32 %v2983, %v2985
        %v2987 = vrot.slane %v2504, %v2986
        %2988 = vrot.lane.b32.xlu0 %v2987, 96
        %v2989 = vpop.permute.xlu0 %2988
        %2991 = vst.msk [vmem:[#allocation3] sm:$0x3] %vm1225, %v2989
        %s2992 = sand.u32 %s327, 1
        %s2993 = scalar_lea.sflag [#allocation8], %s2992
        %s2994 = sand.u32 %s327, 1
        %s2995 = smul.addr %s2994, 8
        %s2996 = scalar_lea.vmem [#allocation12], %s2995
        // Predicated region
        $region85: #{tpu_custom_call.1} parent=67 // pred_check
          %p2997 = pneg %p337
        $region86: #{tpu_custom_call.1} parent=67 // pred_check_branch
          %2999 = sbr.rel (%p2997) target = $region88
        $region87: #{tpu_custom_call.1} parent=67 // pred_region
          %s3000 = smul.u32 4, %s41
          %s3002 = ssub.s32 128, 128
          %3003 = vsyncadd %s2993, %s3002
          %s3004 = smul.addr %s40, 8
          %s3005 = sadd.s32 %s3000, %s3004
          %s3006 = smul.addr %s3005, 32
          %s3007 = scalar_lea.hbm %s12, %s3006
          %s3008 = sshll.u32 %s2996, 4
          %s3009 = int_to_ptr.vmem [resolvable:$true] %s3008
          %3014 = dma.vmem_to_hbm [thread:$0]  %s3009, 128, %s3007, %s2993, 32, 32, 2
        $region88: #{tpu_custom_call.1} parent=67 // pred_fallthru
          _
      $region68: #{tpu_custom_call.1} parent=5 // pred_fallthru
        _
      %p3015 = scmp.le.s32.totalorder 2, %s31
      // Predicated region
      $region89: #{tpu_custom_call.1} parent=5 // pred_check
        %p3016 = pneg %p3015
      $region90: #{tpu_custom_call.1} parent=5 // pred_check_branch
        %3018 = sbr.rel (%p3016) target = $region92
      $region91: #{tpu_custom_call.1} parent=5 // pred_region
        %s3019 = ssub.s32 %s31, 2
        // Predicated region
        $region93: #{tpu_custom_call.1} parent=91 // pred_check
          %p3020 = pneg %p343
        $region94: #{tpu_custom_call.1} parent=91 // pred_check_branch
          %3022 = sbr.rel (%p3020) target = $region96
        $region95: #{tpu_custom_call.1} parent=91 // pred_region
          %s3023 = sand.u32 %s328, 1
          %s3024 = scalar_lea.sflag [#allocation8], %s3023
          %s3025 = sand.u32 %s328, 1
          %s3026 = smul.addr %s3025, 8
          %s3027 = scalar_lea.vmem [#allocation12], %s3026
          %3028 = dma.done %s3024, 128
        $region96: #{tpu_custom_call.1} parent=91 // pred_fallthru
          _
      $region92: #{tpu_custom_call.1} parent=5 // pred_fallthru
        _
    $region6: #{tpu_custom_call.1} parent=1 // loop_footer
      %s35 = sadd.s32 1, %s31
    $region7: #{tpu_custom_call.1} parent=1 // loop_footer_branch
      %30 = sbr.rel target = $region3
    $region8: #{tpu_custom_call.1} parent=1 // loop_exit
      _
    %3029 = vsyncpa [#allocation7], 1
    %s3030 = scalar_lea.sflag [#allocation7], 1
    %3031 = vsyncpa %s3030, 1
    %3032 = vsyncpa [#allocation10], 1
    %s3033 = scalar_lea.sflag [#allocation10], 1
    %3034 = vsyncpa %s3033, 1
    %3035 = vsyncpa [#allocation8], 1
    %s3036 = scalar_lea.sflag [#allocation8], 1
    %3037 = vsyncpa %s3036, 1

</llo_original>
